<compile_context>
chip_gen: v6e
topology: v6e:2x2x1
jax: 0.10.0
libtpu: 0.0.40
codegen_flags: <defaults>
</compile_context>

<pallas_src>
import math

import jax
import jax.numpy as jnp
from jax.experimental import pallas as pl
from jax.experimental.pallas import tpu as pltpu

OMEGA_0 = 30.0


def _round_up(x, m):
    return ((x + m - 1) // m) * m


def spder_kernel(x_ref, w_ref, b_ref, o_ref):
    # x_ref: (TM, IN)  w_ref: (IN, OUT)  b_ref: (1, OUT)  o_ref: (TM, OUT)
    # omega_0 is already folded into w_ref / b_ref.
    z = jnp.dot(x_ref[...], w_ref[...],
                preferred_element_type=jnp.float32,
                precision=jax.lax.Precision.HIGHEST)
    z = z + b_ref[...]
    # sin -> VPU polynomial; sqrt -> EUP slot (co-issues with the VPU work).
    o_ref[...] = (jnp.sin(z) * jnp.sqrt(jnp.abs(z))).astype(o_ref.dtype)


def prepare_spder_params(w, b, *, omega_0=OMEGA_0):
    """One-time parameter transform: fold omega_0 into W and b (no padding).

    w: (in_features, out_features) == nn.Linear weight transposed; b: (out_features,).
    Returns (w_prep, b_prep) with shapes (IN, OUT) and (1, OUT).
    """
    w_s = (omega_0 * w).astype(jnp.float32)
    b_s = (omega_0 * b).astype(jnp.float32)
    return w_s, b_s.reshape(1, -1)


def spder_layer(x, w_prep, b_prep, *, tm=4096, min_grid=2):
    """x: (N, IN) float32; w_prep/b_prep from prepare_spder_params.

    Returns (N, out_features) float32.
    tm: max rows per grid step (sweep 2048-8192 for long audio).
    min_grid: minimum grid steps so v7x's 2 TensorCores both get work.
    """
    N, IN = x.shape
    OUT = w_prep.shape[1]

    # Even-split row tiling:
    #   - num_tiles >= cdiv(N, tm) keeps each tile <= tm rows,
    #   - num_tiles >= min_grid (when N is big enough) keeps >=2 steps for v7x,
    #   - tm_eff is sublane-rounded (8) so the block shape is legal,
    #   - tail padding is bounded to < 8 rows per tile (vs. up to tm-8 before).
    num_tiles = max(1, pl.cdiv(N, tm))
    if N >= 8 * min_grid:
        num_tiles = max(num_tiles, min_grid)
    tm_eff = _round_up(pl.cdiv(N, num_tiles), 8)
    N_pad = num_tiles * tm_eff
    if N_pad != N:
        x = jnp.pad(x, ((0, N_pad - N), (0, 0)))

    out = pl.pallas_call(
        spder_kernel,
        out_shape=jax.ShapeDtypeStruct((N_pad, OUT), x.dtype),
        grid_spec=pltpu.PrefetchScalarGridSpec(
            num_scalar_prefetch=0,
            grid=(num_tiles,),
            in_specs=[
                pl.BlockSpec((tm_eff, IN), lambda i: (i, 0)),  # row tile of inputs
                pl.BlockSpec((IN, OUT), lambda i: (0, 0)),     # full weight, resident
                pl.BlockSpec((1, OUT), lambda i: (0, 0)),      # full bias, resident
            ],
            out_specs=pl.BlockSpec((tm_eff, OUT), lambda i: (i, 0)),  # 64-wide, unpadded
        ),
        compiler_params=pltpu.CompilerParams(
            dimension_semantics=("parallel",)  # shards row tiles across v7x's 2 TCs
        ),
    )(x, w_prep, b_prep)

    if N_pad != N:
        out = out[:N]
    return out


def init_spder_params(key, in_features, out_features, is_first=False):
    """Deterministic init matching SPDERLayer.init_weights + nn.Linear bias init.

    Returns the *raw* (unscaled) parameters; omega_0 folding happens in
    prepare_spder_params (fold after sampling, not into the bound).
    """
    kw, kb = jax.random.split(key)
    if is_first:
        bound_w = 1.0 / in_features
    else:
        bound_w = math.sqrt(6.0 / in_features) / OMEGA_0
    # Stored as (in_features, out_features) == W.T so the kernel does x @ W.
    w = jax.random.uniform(kw, (in_features, out_features), jnp.float32,
                           minval=-bound_w, maxval=bound_w)
    bound_b = 1.0 / math.sqrt(in_features)  # nn.Linear default bias init
    b = jax.random.uniform(kb, (out_features,), jnp.float32,
                           minval=-bound_b, maxval=bound_b)
    return w, b


def spder_reference(x, w, b):
    z = OMEGA_0 * (x @ w + b[None, :])
    return jnp.sin(z) * jnp.sqrt(jnp.abs(z))


# TODO(synk): when this layer is used inside a stacked SPDER MLP, fuse the
# consecutive layers into one pallas_call (all weights ~8-32 KiB stay resident
# in VMEM, activation ping-pongs in a VMEM scratch), removing the per-layer
# N x hidden activation round-trip to HBM.

if __name__ == "__main__":
    key = jax.random.PRNGKey(0)
    k_x, k_p = jax.random.split(key)

    # Small shapes consistent with the module; N is deliberately NOT a multiple
    # of 8 or of the row tile so the even-split + padded-tail path is exercised
    # and the grid still has 2 steps.  in_features=32, out_features=64
    # (hidden layer, is_first=False).
    N, IN, OUT = 1000, 32, 64
    x = jax.random.normal(k_x, (N, IN), jnp.float32)
    w, b = init_spder_params(k_p, IN, OUT, is_first=False)
    w_prep, b_prep = prepare_spder_params(w, b)

    out = spder_layer(x, w_prep, b_prep, tm=4096)
    out = jax.block_until_ready(out)

    ref = spder_reference(x, w, b)
    assert out.shape == (N, OUT), f"bad shape {out.shape}"
    assert jnp.allclose(out, ref, atol=1e-4, rtol=1e-4), "mismatch vs reference"

    print("KERNEL_OK")
</pallas_src>

<mosaic_0001>
module attributes {stable_mosaic.version = 11 : i64} {
  func.func @spder_kernel(%arg0: i32, %arg1: memref<504x32xf32, #tpu.memory_space<vmem>>, %arg2: memref<32x64xf32, #tpu.memory_space<vmem>>, %arg3: memref<1x64xf32, #tpu.memory_space<vmem>>, %arg4: memref<504x64xf32, #tpu.memory_space<vmem>>) attributes {dimension_semantics = [#tpu.dimension_semantics<parallel>], iteration_bounds = array<i64: 2>, scalar_prefetch = 0 : i64, scratch_operands = 0 : i64, tpu.core_type = #tpu.core_type<tc>, window_params = [{transform_indices = @transform_0, window_bounds = array<i64: 504, 32>}, {pipeline_mode = #tpu.pipeline_mode<synchronous>, transform_indices = @transform_1, window_bounds = array<i64: 32, 64>}, {pipeline_mode = #tpu.pipeline_mode<synchronous>, transform_indices = @transform_2, window_bounds = array<i64: 1, 64>}, {transform_indices = @transform_3, window_bounds = array<i64: 504, 64>}]} {
    %c0 = arith.constant 0 : index
    %c0_0 = arith.constant 0 : index
    %0 = vector.load %arg1[%c0, %c0_0] : memref<504x32xf32, #tpu.memory_space<vmem>>, vector<504x32xf32>
    %c0_1 = arith.constant 0 : index
    %c0_2 = arith.constant 0 : index
    %1 = vector.load %arg2[%c0_1, %c0_2] : memref<32x64xf32, #tpu.memory_space<vmem>>, vector<32x64xf32>
    %cst = arith.constant dense<0.000000e+00> : vector<504x64xf32>
    %2 = tpu.matmul %0, %1, %cst {dimension_numbers = #tpu.dot_dimension_numbers<[1], [0], [0], [1], [0, 0, 1, 1], [], []>, precision = #tpu.contract_precision<fp32>} : vector<504x32xf32>, vector<32x64xf32>, vector<504x64xf32> -> vector<504x64xf32>
    %c0_3 = arith.constant 0 : index
    %c0_4 = arith.constant 0 : index
    %3 = vector.load %arg3[%c0_3, %c0_4] : memref<1x64xf32, #tpu.memory_space<vmem>>, vector<1x64xf32>
    %4 = vector.broadcast %3 : vector<1x64xf32> to vector<504x64xf32>
    %5 = arith.addf %2, %4 : vector<504x64xf32>
    %6 = math.sin %5 : vector<504x64xf32>
    %7 = math.absf %5 : vector<504x64xf32>
    %8 = math.sqrt %7 : vector<504x64xf32>
    %9 = arith.mulf %6, %8 : vector<504x64xf32>
    %c0_5 = arith.constant 0 : index
    %c0_6 = arith.constant 0 : index
    %10 = vector.load %arg4[%c0_5, %c0_6] : memref<504x64xf32, #tpu.memory_space<vmem>>, vector<504x64xf32>
    tpu.vector_store %arg4[%c0_5, %c0_6], %9 {strides = array<i32>} : memref<504x64xf32, #tpu.memory_space<vmem>>, vector<504x64xf32>,
    return
  }
  func.func @transform_0(%arg0: i32) -> (i32, i32) {
    %c0_i32 = arith.constant 0 : i32
    %c0_i32_0 = arith.constant 0 : i32
    return %arg0, %c0_i32 : i32, i32
  }
  func.func @transform_1(%arg0: i32) -> (i32, i32) {
    %c0_i32 = arith.constant 0 : i32
    %c0_i32_0 = arith.constant 0 : i32
    %c0_i32_1 = arith.constant 0 : i32
    return %c0_i32, %c0_i32_0 : i32, i32
  }
  func.func @transform_2(%arg0: i32) -> (i32, i32) {
    %c0_i32 = arith.constant 0 : i32
    %c0_i32_0 = arith.constant 0 : i32
    %c0_i32_1 = arith.constant 0 : i32
    return %c0_i32, %c0_i32_0 : i32, i32
  }
  func.func @transform_3(%arg0: i32) -> (i32, i32) {
    %c0_i32 = arith.constant 0 : i32
    %c0_i32_0 = arith.constant 0 : i32
    return %arg0, %c0_i32 : i32, i32
  }
}

</mosaic_0001>

<llo_original>
// kernel: tpu_custom_call.1
$region0: #{tpu_custom_call.1}
  #allocation0 [shape = 'u32[]', space=smem, size = 0x4, offset = 0x4, fixed_abs, tag = 'smem constant byte address 0x4 - core index']
  #allocation1 [shape = 'u32[144,128]{1,0:T(1,128)}', space=vmem, size = 0x12000, scoped, tag = 'internal scratch']
  %s0 = inlined_call_operand.vmem [shape: f32[1008,32], index: 0, kind: input, shape index: {}]
  %s1 = inlined_call_operand.vmem [shape: f32[32,64], index: 1, kind: input, shape index: {}]
  %s2 = inlined_call_operand.vmem [shape: f32[1,64], index: 2, kind: input, shape index: {}]
  %s3 = inlined_call_operand.vmem [shape: f32[1008,64], index: 3, kind: output, shape index: {}]
  %s4 = sld [smem:[#allocation0]]
  $region45: #{tpu_custom_call.1} parent=0
    _
  %s6 = ssub.s32 1, %s4
  %s7 = scalar_select 0, %s6, %s4
  loop: start=0, step=1, limit=4
  $region2: #{tpu_custom_call.1} parent=0 // loop_pre_header
    _
  $region3: #{tpu_custom_call.1} parent=0 // loop_header
    %s9 = sphi 0, %s13
    %p10 = scmp.ge.s32.totalorder %s9, 4
    %s19 = sphi 0, %s21
    %s22 = sphi 0, %s19
    %s23 = sphi 0, %s22
    %s39 = sphi 0, %s23
    %s43 = sphi 0, %s43
    %s45 = sphi 0, %s43
    %s46 = sphi 0, %s45
    %s60 = sphi 0, %s46
    %s64 = sphi 0, %s64
    %s66 = sphi 0, %s64
    %s67 = sphi 0, %s66
    %s81 = sphi 0, %s67
    %s87 = sphi 0, %s89
    %s90 = sphi 0, %s87
    %s91 = sphi 0, %s90
    %s107 = sphi 0, %s91
  $region4: #{tpu_custom_call.1} parent=0 // loop_header_branch
    %12 = sbr.rel (%p10) target = $region8
  $region5: #{tpu_custom_call.1} parent=0 // loop_body
    %s14 = ssub.s32 %s9, 1
    %s15 = ssub.s32 %s9, 2
    %s16 = sadd.s32 %s9, 1
    %s17 = ssub.s32 %s9, %s16
    %p18 = scmp.eq.s32.totalorder %s17, 0
    %s20 = sadd.s32 %s19, 1
    %s21 = scalar_select %p18, %s19, %s20
    %p24 = pneg %p18
    %p25 = scmp.eq.s32.totalorder %s9, 1
    %p26 = por %p24, %p25
    %p27 = scmp.ne.s32.totalorder %s19, %s22
    %p28 = scmp.eq.s32.totalorder %s9, 0
    %p29 = por %p27, %p28
    %p30 = scmp.ne.s32.totalorder %s19, %s22
    %p31 = scmp.eq.s32.totalorder %s14, 1
    %p32 = por %p30, %p31
    %p33 = scmp.ne.s32.totalorder %s22, %s23
    %p34 = scmp.eq.s32.totalorder %s14, 0
    %p35 = por %p33, %p34
    %p36 = scmp.ne.s32.totalorder %s22, %s23
    %p37 = scmp.eq.s32.totalorder %s15, 1
    %p38 = por %p36, %p37
    %p40 = scmp.ne.s32.totalorder %s23, %s39
    %p41 = scmp.eq.s32.totalorder %s15, 0
    %p42 = por %p40, %p41
    %s44 = sadd.s32 %s43, 1
    %p47 = scmp.eq.s32.totalorder %s9, 1
    %p48 = scmp.ne.s32.totalorder %s43, %s45
    %p49 = scmp.eq.s32.totalorder %s9, 0
    %p50 = por %p48, %p49
    %p51 = scmp.ne.s32.totalorder %s43, %s45
    %p52 = scmp.eq.s32.totalorder %s14, 1
    %p53 = por %p51, %p52
    %p54 = scmp.ne.s32.totalorder %s45, %s46
    %p55 = scmp.eq.s32.totalorder %s14, 0
    %p56 = por %p54, %p55
    %p57 = scmp.ne.s32.totalorder %s45, %s46
    %p58 = scmp.eq.s32.totalorder %s15, 1
    %p59 = por %p57, %p58
    %p61 = scmp.ne.s32.totalorder %s46, %s60
    %p62 = scmp.eq.s32.totalorder %s15, 0
    %p63 = por %p61, %p62
    %s65 = sadd.s32 %s64, 1
    %p68 = scmp.eq.s32.totalorder %s9, 1
    %p69 = scmp.ne.s32.totalorder %s64, %s66
    %p70 = scmp.eq.s32.totalorder %s9, 0
    %p71 = por %p69, %p70
    %p72 = scmp.ne.s32.totalorder %s64, %s66
    %p73 = scmp.eq.s32.totalorder %s14, 1
    %p74 = por %p72, %p73
    %p75 = scmp.ne.s32.totalorder %s66, %s67
    %p76 = scmp.eq.s32.totalorder %s14, 0
    %p77 = por %p75, %p76
    %p78 = scmp.ne.s32.totalorder %s66, %s67
    %p79 = scmp.eq.s32.totalorder %s15, 1
    %p80 = por %p78, %p79
    %p82 = scmp.ne.s32.totalorder %s67, %s81
    %p83 = scmp.eq.s32.totalorder %s15, 0
    %p84 = por %p82, %p83
    %s85 = ssub.s32 %s9, %s16
    %p86 = scmp.eq.s32.totalorder %s85, 0
    %s88 = sadd.s32 %s87, 1
    %s89 = scalar_select %p86, %s87, %s88
    %p92 = pneg %p86
    %p93 = scmp.eq.s32.totalorder %s9, 1
    %p94 = por %p92, %p93
    %p95 = scmp.ne.s32.totalorder %s87, %s90
    %p96 = scmp.eq.s32.totalorder %s9, 0
    %p97 = por %p95, %p96
    %p98 = scmp.ne.s32.totalorder %s87, %s90
    %p99 = scmp.eq.s32.totalorder %s14, 1
    %p100 = por %p98, %p99
    %p101 = scmp.ne.s32.totalorder %s90, %s91
    %p102 = scmp.eq.s32.totalorder %s14, 0
    %p103 = por %p101, %p102
    %p104 = scmp.ne.s32.totalorder %s90, %s91
    %p105 = scmp.eq.s32.totalorder %s15, 1
    %p106 = por %p104, %p105
    %p108 = scmp.ne.s32.totalorder %s91, %s107
    %p109 = scmp.eq.s32.totalorder %s15, 0
    %p110 = por %p108, %p109
    %p111 = scmp.le.s32.totalorder 1, %s9
    %p112 = scmp.lt.s32.totalorder %s9, 3
    %p113 = pnand %p111, %p112
    %p114 = pneg %p113
    // Predicated region
    $region9: #{tpu_custom_call.1} parent=5 // pred_check
      _
    $region10: #{tpu_custom_call.1} parent=5 // pred_check_branch
      %116 = sbr.rel (%p113) target = $region12
    $region11: #{tpu_custom_call.1} parent=5 // pred_region
      %s117 = ssub.s32 %s9, 1
      // Predicated region
      $region13: #{tpu_custom_call.1} parent=11 // pred_check
        %p118 = pneg %p56
      $region14: #{tpu_custom_call.1} parent=11 // pred_check_branch
        %120 = sbr.rel (%p118) target = $region16
      $region15: #{tpu_custom_call.1} parent=11 // pred_region
        _
      $region16: #{tpu_custom_call.1} parent=11 // pred_fallthru
        _
      // Predicated region
      $region17: #{tpu_custom_call.1} parent=11 // pred_check
        %p121 = pneg %p77
      $region18: #{tpu_custom_call.1} parent=11 // pred_check_branch
        %123 = sbr.rel (%p121) target = $region20
      $region19: #{tpu_custom_call.1} parent=11 // pred_region
        _
      $region20: #{tpu_custom_call.1} parent=11 // pred_fallthru
        _
    $region12: #{tpu_custom_call.1} parent=5 // pred_fallthru
      _
    %p124 = scmp.lt.s32.totalorder %s9, 2
    // Predicated region
    $region21: #{tpu_custom_call.1} parent=5 // pred_check
      %p125 = pneg %p124
    $region22: #{tpu_custom_call.1} parent=5 // pred_check_branch
      %127 = sbr.rel (%p125) target = $region24
    $region23: #{tpu_custom_call.1} parent=5 // pred_region
      // Predicated region
      $region25: #{tpu_custom_call.1} parent=23 // pred_check
        %p128 = pneg %p29
      $region26: #{tpu_custom_call.1} parent=23 // pred_check_branch
        %130 = sbr.rel (%p128) target = $region28
      $region27: #{tpu_custom_call.1} parent=23 // pred_region
        %s131 = smul.u32 63, %s9
        %p132 = scmp.lt.s32.totalorder %s131, 125
        %s133 = scalar_select %p132, %s131, 125
        %s134 = smul.addr %s133, 8
        %s135 = scalar_lea.vmem %s0, %s134
        %s136 = smul.u32 63, %s9
      $region28: #{tpu_custom_call.1} parent=23 // pred_fallthru
        _
    $region24: #{tpu_custom_call.1} parent=5 // pred_fallthru
      _
    %p137 = scmp.le.s32.totalorder 1, %s9
    %p138 = scmp.lt.s32.totalorder %s9, 3
    %p139 = pnand %p137, %p138
    %p140 = pneg %p139
    // Predicated region
    $region29: #{tpu_custom_call.1} parent=5 // pred_check
      _
    $region30: #{tpu_custom_call.1} parent=5 // pred_check_branch
      %142 = sbr.rel (%p139) target = $region32
    $region31: #{tpu_custom_call.1} parent=5 // pred_region
      %s143 = ssub.s32 %s9, 1
      %s144 = smul.u32 63, %s14
      %p145 = scmp.lt.s32.totalorder %s144, 125
      %s146 = scalar_select %p145, %s144, 125
      %s147 = smul.addr %s146, 8
      %s148 = scalar_lea.vmem %s0, %s147
      %p149 = pneg %p35
      %p150 = pneg %p32
      %p151 = pneg %p56
      %p152 = pneg %p53
      %p153 = pneg %p77
      %p154 = pneg %p74
      %p155 = pneg %p103
      %p156 = pneg %p100
      %s157 = smul.u32 63, %s14
      %p158 = scmp.lt.s32.totalorder %s157, 125
      %s159 = scalar_select %p158, %s157, 125
      %s160 = smul.addr %s159, 8
      %s161 = scalar_lea.vmem %s3, %s160
      %s162 = smul.u32 63, %s14
      %p163 = scmp.lt.s32.totalorder %s162, 125
      %s164 = scalar_select %p163, %s162, 125
      %s165 = smul.addr %s164, 8
      %s166 = scalar_lea.vmem %s0, %s165
      %s167 = smul.u32 63, %s14
      %s168 = smul.u32 63, %s14
      %p169 = scmp.lt.s32.totalorder %s168, 125
      %s170 = scalar_select %p169, %s168, 125
      %s171 = smul.addr %s170, 8
      %s172 = scalar_lea.vmem %s3, %s171
      %s173 = smul.u32 63, %s14
      %v174 = vld [vmem:[%s166] sm:$0xff]
      %v175 = vld [vmem:[%s166 + $0x8] sm:$0xff]
      %v176 = vld [vmem:[%s166 + $0x10] sm:$0xff]
      %v177 = vld [vmem:[%s166 + $0x18] sm:$0xff]
      %v178 = vld [vmem:[%s166 + $0x20] sm:$0xff]
      %v179 = vld [vmem:[%s166 + $0x28] sm:$0xff]
      %v180 = vld [vmem:[%s166 + $0x30] sm:$0xff]
      %v181 = vld [vmem:[%s166 + $0x38] sm:$0xff]
      %v182 = vld [vmem:[%s166 + $0x40] sm:$0xff]
      %v183 = vld [vmem:[%s166 + $0x48] sm:$0xff]
      %v184 = vld [vmem:[%s166 + $0x50] sm:$0xff]
      %v185 = vld [vmem:[%s166 + $0x58] sm:$0xff]
      %v186 = vld [vmem:[%s166 + $0x60] sm:$0xff]
      %v187 = vld [vmem:[%s166 + $0x68] sm:$0xff]
      %v188 = vld [vmem:[%s166 + $0x70] sm:$0xff]
      %v189 = vld [vmem:[%s166 + $0x78] sm:$0xff]
      %v190 = vld [vmem:[%s166 + $0x80] sm:$0xff]
      %v191 = vld [vmem:[%s166 + $0x88] sm:$0xff]
      %v192 = vld [vmem:[%s166 + $0x90] sm:$0xff]
      %v193 = vld [vmem:[%s166 + $0x98] sm:$0xff]
      %v194 = vld [vmem:[%s166 + $0xa0] sm:$0xff]
      %v195 = vld [vmem:[%s166 + $0xa8] sm:$0xff]
      %v196 = vld [vmem:[%s166 + $0xb0] sm:$0xff]
      %v197 = vld [vmem:[%s166 + $0xb8] sm:$0xff]
      %v198 = vld [vmem:[%s166 + $0xc0] sm:$0xff]
      %v199 = vld [vmem:[%s166 + $0xc8] sm:$0xff]
      %v200 = vld [vmem:[%s166 + $0xd0] sm:$0xff]
      %v201 = vld [vmem:[%s166 + $0xd8] sm:$0xff]
      %v202 = vld [vmem:[%s166 + $0xe0] sm:$0xff]
      %v203 = vld [vmem:[%s166 + $0xe8] sm:$0xff]
      %v204 = vld [vmem:[%s166 + $0xf0] sm:$0xff]
      %v205 = vld [vmem:[%s166 + $0xf8] sm:$0xff]
      %v206 = vld [vmem:[%s166 + $0x100] sm:$0xff]
      %v207 = vld [vmem:[%s166 + $0x108] sm:$0xff]
      %v208 = vld [vmem:[%s166 + $0x110] sm:$0xff]
      %v209 = vld [vmem:[%s166 + $0x118] sm:$0xff]
      %v210 = vld [vmem:[%s166 + $0x120] sm:$0xff]
      %v211 = vld [vmem:[%s166 + $0x128] sm:$0xff]
      %v212 = vld [vmem:[%s166 + $0x130] sm:$0xff]
      %v213 = vld [vmem:[%s166 + $0x138] sm:$0xff]
      %v214 = vld [vmem:[%s166 + $0x140] sm:$0xff]
      %v215 = vld [vmem:[%s166 + $0x148] sm:$0xff]
      %v216 = vld [vmem:[%s166 + $0x150] sm:$0xff]
      %v217 = vld [vmem:[%s166 + $0x158] sm:$0xff]
      %v218 = vld [vmem:[%s166 + $0x160] sm:$0xff]
      %v219 = vld [vmem:[%s166 + $0x168] sm:$0xff]
      %v220 = vld [vmem:[%s166 + $0x170] sm:$0xff]
      %v221 = vld [vmem:[%s166 + $0x178] sm:$0xff]
      %v222 = vld [vmem:[%s166 + $0x180] sm:$0xff]
      %v223 = vld [vmem:[%s166 + $0x188] sm:$0xff]
      %v224 = vld [vmem:[%s166 + $0x190] sm:$0xff]
      %v225 = vld [vmem:[%s166 + $0x198] sm:$0xff]
      %v226 = vld [vmem:[%s166 + $0x1a0] sm:$0xff]
      %v227 = vld [vmem:[%s166 + $0x1a8] sm:$0xff]
      %v228 = vld [vmem:[%s166 + $0x1b0] sm:$0xff]
      %v229 = vld [vmem:[%s166 + $0x1b8] sm:$0xff]
      %v230 = vld [vmem:[%s166 + $0x1c0] sm:$0xff]
      %v231 = vld [vmem:[%s166 + $0x1c8] sm:$0xff]
      %v232 = vld [vmem:[%s166 + $0x1d0] sm:$0xff]
      %v233 = vld [vmem:[%s166 + $0x1d8] sm:$0xff]
      %v234 = vld [vmem:[%s166 + $0x1e0] sm:$0xff]
      %v235 = vld [vmem:[%s166 + $0x1e8] sm:$0xff]
      %v236 = vld [vmem:[%s166 + $0x1f0] sm:$0xff]
      %v237 = vld [vmem:[%s1] sm:$0xff]
      %v238 = vld [vmem:[%s1 + $0x8] sm:$0xff]
      %v239 = vld [vmem:[%s1 + $0x10] sm:$0xff]
      %v240 = vld [vmem:[%s1 + $0x18] sm:$0xff]
      %v241 = vld [vmem:[%s2] sm:$0x1]
      %v243 = vlaneseq
      %v244 = vshrl.u32 %v243, 7
      %v245 = vsub.s32 0, %v244
      %v246 = vrot.slane %v241, %v245
      %vm248 = vcmask 261120
      %v250 = vsel %vm248, %v174, 0
      %v253 = vsel %vm248, %v175, 0
      %v256 = vsel %vm248, %v176, 0
      %v259 = vsel %vm248, %v177, 0
      %v262 = vsel %vm248, %v178, 0
      %v265 = vsel %vm248, %v179, 0
      %v268 = vsel %vm248, %v180, 0
      %v271 = vsel %vm248, %v181, 0
      %v274 = vsel %vm248, %v182, 0
      %v277 = vsel %vm248, %v183, 0
      %v280 = vsel %vm248, %v184, 0
      %v283 = vsel %vm248, %v185, 0
      %v286 = vsel %vm248, %v186, 0
      %v289 = vsel %vm248, %v187, 0
      %v292 = vsel %vm248, %v188, 0
      %v295 = vsel %vm248, %v189, 0
      %v298 = vsel %vm248, %v190, 0
      %v301 = vsel %vm248, %v191, 0
      %v304 = vsel %vm248, %v192, 0
      %v307 = vsel %vm248, %v193, 0
      %v310 = vsel %vm248, %v194, 0
      %v313 = vsel %vm248, %v195, 0
      %v316 = vsel %vm248, %v196, 0
      %v319 = vsel %vm248, %v197, 0
      %v322 = vsel %vm248, %v198, 0
      %v325 = vsel %vm248, %v199, 0
      %v328 = vsel %vm248, %v200, 0
      %v331 = vsel %vm248, %v201, 0
      %v334 = vsel %vm248, %v202, 0
      %v337 = vsel %vm248, %v203, 0
      %v340 = vsel %vm248, %v204, 0
      %v343 = vsel %vm248, %v205, 0
      %v346 = vsel %vm248, %v206, 0
      %v349 = vsel %vm248, %v207, 0
      %v352 = vsel %vm248, %v208, 0
      %v355 = vsel %vm248, %v209, 0
      %v358 = vsel %vm248, %v210, 0
      %v361 = vsel %vm248, %v211, 0
      %v364 = vsel %vm248, %v212, 0
      %v367 = vsel %vm248, %v213, 0
      %v370 = vsel %vm248, %v214, 0
      %v373 = vsel %vm248, %v215, 0
      %v376 = vsel %vm248, %v216, 0
      %v379 = vsel %vm248, %v217, 0
      %v382 = vsel %vm248, %v218, 0
      %v385 = vsel %vm248, %v219, 0
      %v388 = vsel %vm248, %v220, 0
      %v391 = vsel %vm248, %v221, 0
      %v394 = vsel %vm248, %v222, 0
      %v397 = vsel %vm248, %v223, 0
      %v400 = vsel %vm248, %v224, 0
      %v403 = vsel %vm248, %v225, 0
      %v406 = vsel %vm248, %v226, 0
      %v409 = vsel %vm248, %v227, 0
      %v412 = vsel %vm248, %v228, 0
      %v415 = vsel %vm248, %v229, 0
      %v418 = vsel %vm248, %v230, 0
      %v421 = vsel %vm248, %v231, 0
      %v424 = vsel %vm248, %v232, 0
      %v427 = vsel %vm248, %v233, 0
      %v430 = vsel %vm248, %v234, 0
      %v433 = vsel %vm248, %v235, 0
      %v436 = vsel %vm248, %v236, 0
      %438 = vmatprep.subr.mxu0 0.0
      %439 = vmatpush1.msra.mxu0 0.0
      %440 = vmatprep.subr.mxu0 0.0
      %441 = vmatpush1.msra.mxu0 0.0
      %442 = vmatprep.subr.mxu0 0.0
      %443 = vmatpush1.msra.mxu0 0.0
      %444 = vmatprep.subr.mxu0 0.0
      %445 = vmatpush1.msra.mxu0 0.0
      %446 = vmatprep.subr.mxu0 0.0
      %447 = vmatpush1.msra.mxu0 0.0
      %448 = vmatprep.subr.mxu0 0.0
      %449 = vmatpush1.msra.mxu0 0.0
      %450 = vmatprep.subr.mxu0 0.0
      %451 = vmatpush1.msra.mxu0 0.0
      %452 = vmatprep.subr.mxu0 0.0
      %453 = vmatpush1.msra.mxu0 0.0
      %454 = vmatprep.subr.mxu0 0.0
      %455 = vmatpush1.msra.mxu0 0.0
      %456 = vmatprep.subr.mxu0 0.0
      %457 = vmatpush1.msra.mxu0 0.0
      %458 = vmatprep.subr.mxu0 0.0
      %459 = vmatpush1.msra.mxu0 0.0
      %460 = vmatprep.subr.mxu0 0.0
      %461 = vmatpush1.msra.mxu0 0.0
      %462 = vmatprep.subr.mxu0 0.0
      %v463 = vand.u32 %v240, 4294901760
      %464 = vmatpush1.msra.mxu0 %v463
      %465 = vmatprep.subr.mxu0 0.0
      %v466 = vand.u32 %v239, 4294901760
      %467 = vmatpush1.msra.mxu0 %v466
      %468 = vmatprep.subr.mxu0 0.0
      %v469 = vand.u32 %v238, 4294901760
      %470 = vmatpush1.msra.mxu0 %v469
      %471 = vmatprep.subr.mxu0 0.0
      %v472 = vand.u32 %v237, 4294901760
      %473 = vmatpush1.msra.mxu0 %v472
      %474 = vmatprep.subr.mxu0 0.0
      %475 = vmatpush2.msra.mxu0 0.0
      %476 = vmatprep.subr.mxu0 0.0
      %477 = vmatpush2.msra.mxu0 0.0
      %478 = vmatprep.subr.mxu0 0.0
      %479 = vmatpush2.msra.mxu0 0.0
      %480 = vmatprep.subr.mxu0 0.0
      %481 = vmatpush2.msra.mxu0 0.0
      %482 = vmatprep.subr.mxu0 0.0
      %483 = vmatpush2.msra.mxu0 0.0
      %484 = vmatprep.subr.mxu0 0.0
      %485 = vmatpush2.msra.mxu0 0.0
      %486 = vmatprep.subr.mxu0 0.0
      %487 = vmatpush2.msra.mxu0 0.0
      %488 = vmatprep.subr.mxu0 0.0
      %489 = vmatpush2.msra.mxu0 0.0
      %490 = vmatprep.subr.mxu0 0.0
      %491 = vmatpush2.msra.mxu0 0.0
      %492 = vmatprep.subr.mxu0 0.0
      %493 = vmatpush2.msra.mxu0 0.0
      %494 = vmatprep.subr.mxu0 0.0
      %495 = vmatpush2.msra.mxu0 0.0
      %496 = vmatprep.subr.mxu0 0.0
      %497 = vmatpush2.msra.mxu0 0.0
      %498 = vmatprep.subr.mxu0 0.0
      %499 = vmatpush2.msra.mxu0 0.0
      %500 = vmatprep.subr.mxu0 0.0
      %501 = vmatpush2.msra.mxu0 0.0
      %502 = vmatprep.subr.mxu0 0.0
      %503 = vmatpush2.msra.mxu0 0.0
      %504 = vmatprep.subr.mxu0 0.0
      %505 = vmatpush2.msra.mxu0 0.0
      %506 = vmatprep.mubr.f32.mxu0 0.0
      %v507 = vand.u32 %v250, 4294901760
      %v508 = vsub.f32 %v250, %v507
      %v509 = vand.u32 %v508, 4294901760
      %v510 = vsub.f32 %v508, %v509
      %v511 = vand.u32 %v510, 4294901760
      %512 = vmatmul.mubr.f32.gmra.mxu0 %v511
      %v513 = vpop.f32.mrf.mxu0
      %v514 = vadd.f32 %v246, %v513
      %v515 = vpop.f32.mrf.mxu0
      %516 = vmatprep.mubr.f32.mxu0 0.0
      %v517 = vand.u32 %v253, 4294901760
      %v518 = vsub.f32 %v253, %v517
      %v519 = vand.u32 %v518, 4294901760
      %v520 = vsub.f32 %v518, %v519
      %v521 = vand.u32 %v520, 4294901760
      %522 = vmatmul.mubr.f32.gmra.mxu0 %v521
      %v523 = vpop.f32.mrf.mxu0
      %v524 = vadd.f32 %v246, %v523
      %v525 = vpop.f32.mrf.mxu0
      %526 = vmatprep.mubr.f32.mxu0 0.0
      %v527 = vand.u32 %v256, 4294901760
      %v528 = vsub.f32 %v256, %v527
      %v529 = vand.u32 %v528, 4294901760
      %v530 = vsub.f32 %v528, %v529
      %v531 = vand.u32 %v530, 4294901760
      %532 = vmatmul.mubr.f32.gmra.mxu0 %v531
      %v533 = vpop.f32.mrf.mxu0
      %v534 = vadd.f32 %v246, %v533
      %v535 = vpop.f32.mrf.mxu0
      %536 = vmatprep.mubr.f32.mxu0 0.0
      %v537 = vand.u32 %v259, 4294901760
      %v538 = vsub.f32 %v259, %v537
      %v539 = vand.u32 %v538, 4294901760
      %v540 = vsub.f32 %v538, %v539
      %v541 = vand.u32 %v540, 4294901760
      %542 = vmatmul.mubr.f32.gmra.mxu0 %v541
      %v543 = vpop.f32.mrf.mxu0
      %v544 = vadd.f32 %v246, %v543
      %v545 = vpop.f32.mrf.mxu0
      %546 = vmatprep.mubr.f32.mxu0 0.0
      %v547 = vand.u32 %v262, 4294901760
      %v548 = vsub.f32 %v262, %v547
      %v549 = vand.u32 %v548, 4294901760
      %v550 = vsub.f32 %v548, %v549
      %v551 = vand.u32 %v550, 4294901760
      %552 = vmatmul.mubr.f32.gmra.mxu0 %v551
      %v553 = vpop.f32.mrf.mxu0
      %v554 = vadd.f32 %v246, %v553
      %v555 = vpop.f32.mrf.mxu0
      %556 = vmatprep.mubr.f32.mxu0 0.0
      %v557 = vand.u32 %v265, 4294901760
      %v558 = vsub.f32 %v265, %v557
      %v559 = vand.u32 %v558, 4294901760
      %v560 = vsub.f32 %v558, %v559
      %v561 = vand.u32 %v560, 4294901760
      %562 = vmatmul.mubr.f32.gmra.mxu0 %v561
      %v563 = vpop.f32.mrf.mxu0
      %v564 = vadd.f32 %v246, %v563
      %v565 = vpop.f32.mrf.mxu0
      %566 = vmatprep.mubr.f32.mxu0 0.0
      %v567 = vand.u32 %v268, 4294901760
      %v568 = vsub.f32 %v268, %v567
      %v569 = vand.u32 %v568, 4294901760
      %v570 = vsub.f32 %v568, %v569
      %v571 = vand.u32 %v570, 4294901760
      %572 = vmatmul.mubr.f32.gmra.mxu0 %v571
      %v573 = vpop.f32.mrf.mxu0
      %v574 = vadd.f32 %v246, %v573
      %v575 = vpop.f32.mrf.mxu0
      %576 = vmatprep.mubr.f32.mxu0 0.0
      %v577 = vand.u32 %v271, 4294901760
      %v578 = vsub.f32 %v271, %v577
      %v579 = vand.u32 %v578, 4294901760
      %v580 = vsub.f32 %v578, %v579
      %v581 = vand.u32 %v580, 4294901760
      %582 = vmatmul.mubr.f32.gmra.mxu0 %v581
      %v583 = vpop.f32.mrf.mxu0
      %v584 = vadd.f32 %v246, %v583
      %v585 = vpop.f32.mrf.mxu0
      %586 = vmatprep.mubr.f32.mxu0 0.0
      %v587 = vand.u32 %v274, 4294901760
      %v588 = vsub.f32 %v274, %v587
      %v589 = vand.u32 %v588, 4294901760
      %v590 = vsub.f32 %v588, %v589
      %v591 = vand.u32 %v590, 4294901760
      %592 = vmatmul.mubr.f32.gmra.mxu0 %v591
      %v593 = vpop.f32.mrf.mxu0
      %v594 = vadd.f32 %v246, %v593
      %v595 = vpop.f32.mrf.mxu0
      %596 = vmatprep.mubr.f32.mxu0 0.0
      %v597 = vand.u32 %v277, 4294901760
      %v598 = vsub.f32 %v277, %v597
      %v599 = vand.u32 %v598, 4294901760
      %v600 = vsub.f32 %v598, %v599
      %v601 = vand.u32 %v600, 4294901760
      %602 = vmatmul.mubr.f32.gmra.mxu0 %v601
      %v603 = vpop.f32.mrf.mxu0
      %v604 = vadd.f32 %v246, %v603
      %v605 = vpop.f32.mrf.mxu0
      %606 = vmatprep.mubr.f32.mxu0 0.0
      %v607 = vand.u32 %v280, 4294901760
      %v608 = vsub.f32 %v280, %v607
      %v609 = vand.u32 %v608, 4294901760
      %v610 = vsub.f32 %v608, %v609
      %v611 = vand.u32 %v610, 4294901760
      %612 = vmatmul.mubr.f32.gmra.mxu0 %v611
      %v613 = vpop.f32.mrf.mxu0
      %v614 = vadd.f32 %v246, %v613
      %v615 = vpop.f32.mrf.mxu0
      %616 = vmatprep.mubr.f32.mxu0 0.0
      %v617 = vand.u32 %v283, 4294901760
      %v618 = vsub.f32 %v283, %v617
      %v619 = vand.u32 %v618, 4294901760
      %v620 = vsub.f32 %v618, %v619
      %v621 = vand.u32 %v620, 4294901760
      %622 = vmatmul.mubr.f32.gmra.mxu0 %v621
      %v623 = vpop.f32.mrf.mxu0
      %v624 = vadd.f32 %v246, %v623
      %v625 = vpop.f32.mrf.mxu0
      %626 = vmatprep.mubr.f32.mxu0 0.0
      %v627 = vand.u32 %v286, 4294901760
      %v628 = vsub.f32 %v286, %v627
      %v629 = vand.u32 %v628, 4294901760
      %v630 = vsub.f32 %v628, %v629
      %v631 = vand.u32 %v630, 4294901760
      %632 = vmatmul.mubr.f32.gmra.mxu0 %v631
      %v633 = vpop.f32.mrf.mxu0
      %v634 = vadd.f32 %v246, %v633
      %v635 = vpop.f32.mrf.mxu0
      %636 = vmatprep.mubr.f32.mxu0 0.0
      %v637 = vand.u32 %v289, 4294901760
      %v638 = vsub.f32 %v289, %v637
      %v639 = vand.u32 %v638, 4294901760
      %v640 = vsub.f32 %v638, %v639
      %v641 = vand.u32 %v640, 4294901760
      %642 = vmatmul.mubr.f32.gmra.mxu0 %v641
      %v643 = vpop.f32.mrf.mxu0
      %v644 = vadd.f32 %v246, %v643
      %v645 = vpop.f32.mrf.mxu0
      %646 = vmatprep.mubr.f32.mxu0 0.0
      %v647 = vand.u32 %v292, 4294901760
      %v648 = vsub.f32 %v292, %v647
      %v649 = vand.u32 %v648, 4294901760
      %v650 = vsub.f32 %v648, %v649
      %v651 = vand.u32 %v650, 4294901760
      %652 = vmatmul.mubr.f32.gmra.mxu0 %v651
      %v653 = vpop.f32.mrf.mxu0
      %v654 = vadd.f32 %v246, %v653
      %v655 = vpop.f32.mrf.mxu0
      %656 = vmatprep.mubr.f32.mxu0 0.0
      %v657 = vand.u32 %v295, 4294901760
      %v658 = vsub.f32 %v295, %v657
      %v659 = vand.u32 %v658, 4294901760
      %v660 = vsub.f32 %v658, %v659
      %v661 = vand.u32 %v660, 4294901760
      %662 = vmatmul.mubr.f32.gmra.mxu0 %v661
      %v663 = vpop.f32.mrf.mxu0
      %v664 = vadd.f32 %v246, %v663
      %v665 = vpop.f32.mrf.mxu0
      %666 = vmatprep.mubr.f32.mxu0 0.0
      %v667 = vand.u32 %v298, 4294901760
      %v668 = vsub.f32 %v298, %v667
      %v669 = vand.u32 %v668, 4294901760
      %v670 = vsub.f32 %v668, %v669
      %v671 = vand.u32 %v670, 4294901760
      %672 = vmatmul.mubr.f32.gmra.mxu0 %v671
      %v673 = vpop.f32.mrf.mxu0
      %v674 = vadd.f32 %v246, %v673
      %v675 = vpop.f32.mrf.mxu0
      %676 = vmatprep.mubr.f32.mxu0 0.0
      %v677 = vand.u32 %v301, 4294901760
      %v678 = vsub.f32 %v301, %v677
      %v679 = vand.u32 %v678, 4294901760
      %v680 = vsub.f32 %v678, %v679
      %v681 = vand.u32 %v680, 4294901760
      %682 = vmatmul.mubr.f32.gmra.mxu0 %v681
      %v683 = vpop.f32.mrf.mxu0
      %v684 = vadd.f32 %v246, %v683
      %v685 = vpop.f32.mrf.mxu0
      %686 = vmatprep.mubr.f32.mxu0 0.0
      %v687 = vand.u32 %v304, 4294901760
      %v688 = vsub.f32 %v304, %v687
      %v689 = vand.u32 %v688, 4294901760
      %v690 = vsub.f32 %v688, %v689
      %v691 = vand.u32 %v690, 4294901760
      %692 = vmatmul.mubr.f32.gmra.mxu0 %v691
      %v693 = vpop.f32.mrf.mxu0
      %v694 = vadd.f32 %v246, %v693
      %v695 = vpop.f32.mrf.mxu0
      %696 = vmatprep.mubr.f32.mxu0 0.0
      %v697 = vand.u32 %v307, 4294901760
      %v698 = vsub.f32 %v307, %v697
      %v699 = vand.u32 %v698, 4294901760
      %v700 = vsub.f32 %v698, %v699
      %v701 = vand.u32 %v700, 4294901760
      %702 = vmatmul.mubr.f32.gmra.mxu0 %v701
      %v703 = vpop.f32.mrf.mxu0
      %v704 = vadd.f32 %v246, %v703
      %v705 = vpop.f32.mrf.mxu0
      %706 = vmatprep.mubr.f32.mxu0 0.0
      %v707 = vand.u32 %v310, 4294901760
      %v708 = vsub.f32 %v310, %v707
      %v709 = vand.u32 %v708, 4294901760
      %v710 = vsub.f32 %v708, %v709
      %v711 = vand.u32 %v710, 4294901760
      %712 = vmatmul.mubr.f32.gmra.mxu0 %v711
      %v713 = vpop.f32.mrf.mxu0
      %v714 = vadd.f32 %v246, %v713
      %v715 = vpop.f32.mrf.mxu0
      %716 = vmatprep.mubr.f32.mxu0 0.0
      %v717 = vand.u32 %v313, 4294901760
      %v718 = vsub.f32 %v313, %v717
      %v719 = vand.u32 %v718, 4294901760
      %v720 = vsub.f32 %v718, %v719
      %v721 = vand.u32 %v720, 4294901760
      %722 = vmatmul.mubr.f32.gmra.mxu0 %v721
      %v723 = vpop.f32.mrf.mxu0
      %v724 = vadd.f32 %v246, %v723
      %v725 = vpop.f32.mrf.mxu0
      %726 = vmatprep.mubr.f32.mxu0 0.0
      %v727 = vand.u32 %v316, 4294901760
      %v728 = vsub.f32 %v316, %v727
      %v729 = vand.u32 %v728, 4294901760
      %v730 = vsub.f32 %v728, %v729
      %v731 = vand.u32 %v730, 4294901760
      %732 = vmatmul.mubr.f32.gmra.mxu0 %v731
      %v733 = vpop.f32.mrf.mxu0
      %v734 = vadd.f32 %v246, %v733
      %v735 = vpop.f32.mrf.mxu0
      %736 = vmatprep.mubr.f32.mxu0 0.0
      %v737 = vand.u32 %v319, 4294901760
      %v738 = vsub.f32 %v319, %v737
      %v739 = vand.u32 %v738, 4294901760
      %v740 = vsub.f32 %v738, %v739
      %v741 = vand.u32 %v740, 4294901760
      %742 = vmatmul.mubr.f32.gmra.mxu0 %v741
      %v743 = vpop.f32.mrf.mxu0
      %v744 = vadd.f32 %v246, %v743
      %v745 = vpop.f32.mrf.mxu0
      %746 = vmatprep.mubr.f32.mxu0 0.0
      %v747 = vand.u32 %v322, 4294901760
      %v748 = vsub.f32 %v322, %v747
      %v749 = vand.u32 %v748, 4294901760
      %v750 = vsub.f32 %v748, %v749
      %v751 = vand.u32 %v750, 4294901760
      %752 = vmatmul.mubr.f32.gmra.mxu0 %v751
      %v753 = vpop.f32.mrf.mxu0
      %v754 = vadd.f32 %v246, %v753
      %v755 = vpop.f32.mrf.mxu0
      %756 = vmatprep.mubr.f32.mxu0 0.0
      %v757 = vand.u32 %v325, 4294901760
      %v758 = vsub.f32 %v325, %v757
      %v759 = vand.u32 %v758, 4294901760
      %v760 = vsub.f32 %v758, %v759
      %v761 = vand.u32 %v760, 4294901760
      %762 = vmatmul.mubr.f32.gmra.mxu0 %v761
      %v763 = vpop.f32.mrf.mxu0
      %v764 = vadd.f32 %v246, %v763
      %v765 = vpop.f32.mrf.mxu0
      %766 = vmatprep.mubr.f32.mxu0 0.0
      %v767 = vand.u32 %v328, 4294901760
      %v768 = vsub.f32 %v328, %v767
      %v769 = vand.u32 %v768, 4294901760
      %v770 = vsub.f32 %v768, %v769
      %v771 = vand.u32 %v770, 4294901760
      %772 = vmatmul.mubr.f32.gmra.mxu0 %v771
      %v773 = vpop.f32.mrf.mxu0
      %v774 = vadd.f32 %v246, %v773
      %v775 = vpop.f32.mrf.mxu0
      %776 = vmatprep.mubr.f32.mxu0 0.0
      %v777 = vand.u32 %v331, 4294901760
      %v778 = vsub.f32 %v331, %v777
      %v779 = vand.u32 %v778, 4294901760
      %v780 = vsub.f32 %v778, %v779
      %v781 = vand.u32 %v780, 4294901760
      %782 = vmatmul.mubr.f32.gmra.mxu0 %v781
      %v783 = vpop.f32.mrf.mxu0
      %v784 = vadd.f32 %v246, %v783
      %v785 = vpop.f32.mrf.mxu0
      %786 = vmatprep.mubr.f32.mxu0 0.0
      %v787 = vand.u32 %v334, 4294901760
      %v788 = vsub.f32 %v334, %v787
      %v789 = vand.u32 %v788, 4294901760
      %v790 = vsub.f32 %v788, %v789
      %v791 = vand.u32 %v790, 4294901760
      %792 = vmatmul.mubr.f32.gmra.mxu0 %v791
      %v793 = vpop.f32.mrf.mxu0
      %v794 = vadd.f32 %v246, %v793
      %v795 = vpop.f32.mrf.mxu0
      %796 = vmatprep.mubr.f32.mxu0 0.0
      %v797 = vand.u32 %v337, 4294901760
      %v798 = vsub.f32 %v337, %v797
      %v799 = vand.u32 %v798, 4294901760
      %v800 = vsub.f32 %v798, %v799
      %v801 = vand.u32 %v800, 4294901760
      %802 = vmatmul.mubr.f32.gmra.mxu0 %v801
      %v803 = vpop.f32.mrf.mxu0
      %v804 = vadd.f32 %v246, %v803
      %v805 = vpop.f32.mrf.mxu0
      %806 = vmatprep.mubr.f32.mxu0 0.0
      %v807 = vand.u32 %v340, 4294901760
      %v808 = vsub.f32 %v340, %v807
      %v809 = vand.u32 %v808, 4294901760
      %v810 = vsub.f32 %v808, %v809
      %v811 = vand.u32 %v810, 4294901760
      %812 = vmatmul.mubr.f32.gmra.mxu0 %v811
      %v813 = vpop.f32.mrf.mxu0
      %v814 = vadd.f32 %v246, %v813
      %v815 = vpop.f32.mrf.mxu0
      %816 = vmatprep.mubr.f32.mxu0 0.0
      %v817 = vand.u32 %v343, 4294901760
      %v818 = vsub.f32 %v343, %v817
      %v819 = vand.u32 %v818, 4294901760
      %v820 = vsub.f32 %v818, %v819
      %v821 = vand.u32 %v820, 4294901760
      %822 = vmatmul.mubr.f32.gmra.mxu0 %v821
      %v823 = vpop.f32.mrf.mxu0
      %v824 = vadd.f32 %v246, %v823
      %v825 = vpop.f32.mrf.mxu0
      %826 = vmatprep.mubr.f32.mxu0 0.0
      %v827 = vand.u32 %v346, 4294901760
      %v828 = vsub.f32 %v346, %v827
      %v829 = vand.u32 %v828, 4294901760
      %v830 = vsub.f32 %v828, %v829
      %v831 = vand.u32 %v830, 4294901760
      %832 = vmatmul.mubr.f32.gmra.mxu0 %v831
      %v833 = vpop.f32.mrf.mxu0
      %v834 = vadd.f32 %v246, %v833
      %v835 = vpop.f32.mrf.mxu0
      %836 = vmatprep.mubr.f32.mxu0 0.0
      %v837 = vand.u32 %v349, 4294901760
      %v838 = vsub.f32 %v349, %v837
      %v839 = vand.u32 %v838, 4294901760
      %v840 = vsub.f32 %v838, %v839
      %v841 = vand.u32 %v840, 4294901760
      %842 = vmatmul.mubr.f32.gmra.mxu0 %v841
      %v843 = vpop.f32.mrf.mxu0
      %v844 = vadd.f32 %v246, %v843
      %v845 = vpop.f32.mrf.mxu0
      %846 = vmatprep.mubr.f32.mxu0 0.0
      %v847 = vand.u32 %v352, 4294901760
      %v848 = vsub.f32 %v352, %v847
      %v849 = vand.u32 %v848, 4294901760
      %v850 = vsub.f32 %v848, %v849
      %v851 = vand.u32 %v850, 4294901760
      %852 = vmatmul.mubr.f32.gmra.mxu0 %v851
      %v853 = vpop.f32.mrf.mxu0
      %v854 = vadd.f32 %v246, %v853
      %v855 = vpop.f32.mrf.mxu0
      %856 = vmatprep.mubr.f32.mxu0 0.0
      %v857 = vand.u32 %v355, 4294901760
      %v858 = vsub.f32 %v355, %v857
      %v859 = vand.u32 %v858, 4294901760
      %v860 = vsub.f32 %v858, %v859
      %v861 = vand.u32 %v860, 4294901760
      %862 = vmatmul.mubr.f32.gmra.mxu0 %v861
      %v863 = vpop.f32.mrf.mxu0
      %v864 = vadd.f32 %v246, %v863
      %v865 = vpop.f32.mrf.mxu0
      %866 = vmatprep.mubr.f32.mxu0 0.0
      %v867 = vand.u32 %v358, 4294901760
      %v868 = vsub.f32 %v358, %v867
      %v869 = vand.u32 %v868, 4294901760
      %v870 = vsub.f32 %v868, %v869
      %v871 = vand.u32 %v870, 4294901760
      %872 = vmatmul.mubr.f32.gmra.mxu0 %v871
      %v873 = vpop.f32.mrf.mxu0
      %v874 = vadd.f32 %v246, %v873
      %v875 = vpop.f32.mrf.mxu0
      %876 = vmatprep.mubr.f32.mxu0 0.0
      %v877 = vand.u32 %v361, 4294901760
      %v878 = vsub.f32 %v361, %v877
      %v879 = vand.u32 %v878, 4294901760
      %v880 = vsub.f32 %v878, %v879
      %v881 = vand.u32 %v880, 4294901760
      %882 = vmatmul.mubr.f32.gmra.mxu0 %v881
      %v883 = vpop.f32.mrf.mxu0
      %v884 = vadd.f32 %v246, %v883
      %v885 = vpop.f32.mrf.mxu0
      %886 = vmatprep.mubr.f32.mxu0 0.0
      %v887 = vand.u32 %v364, 4294901760
      %v888 = vsub.f32 %v364, %v887
      %v889 = vand.u32 %v888, 4294901760
      %v890 = vsub.f32 %v888, %v889
      %v891 = vand.u32 %v890, 4294901760
      %892 = vmatmul.mubr.f32.gmra.mxu0 %v891
      %v893 = vpop.f32.mrf.mxu0
      %v894 = vadd.f32 %v246, %v893
      %v895 = vpop.f32.mrf.mxu0
      %896 = vmatprep.mubr.f32.mxu0 0.0
      %v897 = vand.u32 %v367, 4294901760
      %v898 = vsub.f32 %v367, %v897
      %v899 = vand.u32 %v898, 4294901760
      %v900 = vsub.f32 %v898, %v899
      %v901 = vand.u32 %v900, 4294901760
      %902 = vmatmul.mubr.f32.gmra.mxu0 %v901
      %v903 = vpop.f32.mrf.mxu0
      %v904 = vadd.f32 %v246, %v903
      %v905 = vpop.f32.mrf.mxu0
      %906 = vmatprep.mubr.f32.mxu0 0.0
      %v907 = vand.u32 %v370, 4294901760
      %v908 = vsub.f32 %v370, %v907
      %v909 = vand.u32 %v908, 4294901760
      %v910 = vsub.f32 %v908, %v909
      %v911 = vand.u32 %v910, 4294901760
      %912 = vmatmul.mubr.f32.gmra.mxu0 %v911
      %v913 = vpop.f32.mrf.mxu0
      %v914 = vadd.f32 %v246, %v913
      %v915 = vpop.f32.mrf.mxu0
      %916 = vmatprep.mubr.f32.mxu0 0.0
      %v917 = vand.u32 %v373, 4294901760
      %v918 = vsub.f32 %v373, %v917
      %v919 = vand.u32 %v918, 4294901760
      %v920 = vsub.f32 %v918, %v919
      %v921 = vand.u32 %v920, 4294901760
      %922 = vmatmul.mubr.f32.gmra.mxu0 %v921
      %v923 = vpop.f32.mrf.mxu0
      %v924 = vadd.f32 %v246, %v923
      %v925 = vpop.f32.mrf.mxu0
      %926 = vmatprep.mubr.f32.mxu0 0.0
      %v927 = vand.u32 %v376, 4294901760
      %v928 = vsub.f32 %v376, %v927
      %v929 = vand.u32 %v928, 4294901760
      %v930 = vsub.f32 %v928, %v929
      %v931 = vand.u32 %v930, 4294901760
      %932 = vmatmul.mubr.f32.gmra.mxu0 %v931
      %v933 = vpop.f32.mrf.mxu0
      %v934 = vadd.f32 %v246, %v933
      %v935 = vpop.f32.mrf.mxu0
      %936 = vmatprep.mubr.f32.mxu0 0.0
      %v937 = vand.u32 %v379, 4294901760
      %v938 = vsub.f32 %v379, %v937
      %v939 = vand.u32 %v938, 4294901760
      %v940 = vsub.f32 %v938, %v939
      %v941 = vand.u32 %v940, 4294901760
      %942 = vmatmul.mubr.f32.gmra.mxu0 %v941
      %v943 = vpop.f32.mrf.mxu0
      %v944 = vadd.f32 %v246, %v943
      %v945 = vpop.f32.mrf.mxu0
      %946 = vmatprep.mubr.f32.mxu0 0.0
      %v947 = vand.u32 %v382, 4294901760
      %v948 = vsub.f32 %v382, %v947
      %v949 = vand.u32 %v948, 4294901760
      %v950 = vsub.f32 %v948, %v949
      %v951 = vand.u32 %v950, 4294901760
      %952 = vmatmul.mubr.f32.gmra.mxu0 %v951
      %v953 = vpop.f32.mrf.mxu0
      %v954 = vadd.f32 %v246, %v953
      %v955 = vpop.f32.mrf.mxu0
      %956 = vmatprep.mubr.f32.mxu0 0.0
      %v957 = vand.u32 %v385, 4294901760
      %v958 = vsub.f32 %v385, %v957
      %v959 = vand.u32 %v958, 4294901760
      %v960 = vsub.f32 %v958, %v959
      %v961 = vand.u32 %v960, 4294901760
      %962 = vmatmul.mubr.f32.gmra.mxu0 %v961
      %v963 = vpop.f32.mrf.mxu0
      %v964 = vadd.f32 %v246, %v963
      %v965 = vpop.f32.mrf.mxu0
      %966 = vmatprep.mubr.f32.mxu0 0.0
      %v967 = vand.u32 %v388, 4294901760
      %v968 = vsub.f32 %v388, %v967
      %v969 = vand.u32 %v968, 4294901760
      %v970 = vsub.f32 %v968, %v969
      %v971 = vand.u32 %v970, 4294901760
      %972 = vmatmul.mubr.f32.gmra.mxu0 %v971
      %v973 = vpop.f32.mrf.mxu0
      %v974 = vadd.f32 %v246, %v973
      %v975 = vpop.f32.mrf.mxu0
      %976 = vmatprep.mubr.f32.mxu0 0.0
      %v977 = vand.u32 %v391, 4294901760
      %v978 = vsub.f32 %v391, %v977
      %v979 = vand.u32 %v978, 4294901760
      %v980 = vsub.f32 %v978, %v979
      %v981 = vand.u32 %v980, 4294901760
      %982 = vmatmul.mubr.f32.gmra.mxu0 %v981
      %v983 = vpop.f32.mrf.mxu0
      %v984 = vadd.f32 %v246, %v983
      %v985 = vpop.f32.mrf.mxu0
      %986 = vmatprep.mubr.f32.mxu0 0.0
      %v987 = vand.u32 %v394, 4294901760
      %v988 = vsub.f32 %v394, %v987
      %v989 = vand.u32 %v988, 4294901760
      %v990 = vsub.f32 %v988, %v989
      %v991 = vand.u32 %v990, 4294901760
      %992 = vmatmul.mubr.f32.gmra.mxu0 %v991
      %v993 = vpop.f32.mrf.mxu0
      %v994 = vadd.f32 %v246, %v993
      %v995 = vpop.f32.mrf.mxu0
      %996 = vmatprep.mubr.f32.mxu0 0.0
      %v997 = vand.u32 %v397, 4294901760
      %v998 = vsub.f32 %v397, %v997
      %v999 = vand.u32 %v998, 4294901760
      %v1000 = vsub.f32 %v998, %v999
      %v1001 = vand.u32 %v1000, 4294901760
      %1002 = vmatmul.mubr.f32.gmra.mxu0 %v1001
      %v1003 = vpop.f32.mrf.mxu0
      %v1004 = vadd.f32 %v246, %v1003
      %v1005 = vpop.f32.mrf.mxu0
      %1006 = vmatprep.mubr.f32.mxu0 0.0
      %v1007 = vand.u32 %v400, 4294901760
      %v1008 = vsub.f32 %v400, %v1007
      %v1009 = vand.u32 %v1008, 4294901760
      %v1010 = vsub.f32 %v1008, %v1009
      %v1011 = vand.u32 %v1010, 4294901760
      %1012 = vmatmul.mubr.f32.gmra.mxu0 %v1011
      %v1013 = vpop.f32.mrf.mxu0
      %v1014 = vadd.f32 %v246, %v1013
      %v1015 = vpop.f32.mrf.mxu0
      %1016 = vmatprep.mubr.f32.mxu0 0.0
      %v1017 = vand.u32 %v403, 4294901760
      %v1018 = vsub.f32 %v403, %v1017
      %v1019 = vand.u32 %v1018, 4294901760
      %v1020 = vsub.f32 %v1018, %v1019
      %v1021 = vand.u32 %v1020, 4294901760
      %1022 = vmatmul.mubr.f32.gmra.mxu0 %v1021
      %v1023 = vpop.f32.mrf.mxu0
      %v1024 = vadd.f32 %v246, %v1023
      %v1025 = vpop.f32.mrf.mxu0
      %1026 = vmatprep.mubr.f32.mxu0 0.0
      %v1027 = vand.u32 %v406, 4294901760
      %v1028 = vsub.f32 %v406, %v1027
      %v1029 = vand.u32 %v1028, 4294901760
      %v1030 = vsub.f32 %v1028, %v1029
      %v1031 = vand.u32 %v1030, 4294901760
      %1032 = vmatmul.mubr.f32.gmra.mxu0 %v1031
      %v1033 = vpop.f32.mrf.mxu0
      %v1034 = vadd.f32 %v246, %v1033
      %v1035 = vpop.f32.mrf.mxu0
      %1036 = vmatprep.mubr.f32.mxu0 0.0
      %v1037 = vand.u32 %v409, 4294901760
      %v1038 = vsub.f32 %v409, %v1037
      %v1039 = vand.u32 %v1038, 4294901760
      %v1040 = vsub.f32 %v1038, %v1039
      %v1041 = vand.u32 %v1040, 4294901760
      %1042 = vmatmul.mubr.f32.gmra.mxu0 %v1041
      %v1043 = vpop.f32.mrf.mxu0
      %v1044 = vadd.f32 %v246, %v1043
      %v1045 = vpop.f32.mrf.mxu0
      %1046 = vmatprep.mubr.f32.mxu0 0.0
      %v1047 = vand.u32 %v412, 4294901760
      %v1048 = vsub.f32 %v412, %v1047
      %v1049 = vand.u32 %v1048, 4294901760
      %v1050 = vsub.f32 %v1048, %v1049
      %v1051 = vand.u32 %v1050, 4294901760
      %1052 = vmatmul.mubr.f32.gmra.mxu0 %v1051
      %v1053 = vpop.f32.mrf.mxu0
      %v1054 = vadd.f32 %v246, %v1053
      %v1055 = vpop.f32.mrf.mxu0
      %1056 = vmatprep.mubr.f32.mxu0 0.0
      %v1057 = vand.u32 %v415, 4294901760
      %v1058 = vsub.f32 %v415, %v1057
      %v1059 = vand.u32 %v1058, 4294901760
      %v1060 = vsub.f32 %v1058, %v1059
      %v1061 = vand.u32 %v1060, 4294901760
      %1062 = vmatmul.mubr.f32.gmra.mxu0 %v1061
      %v1063 = vpop.f32.mrf.mxu0
      %v1064 = vadd.f32 %v246, %v1063
      %v1065 = vpop.f32.mrf.mxu0
      %1066 = vmatprep.mubr.f32.mxu0 0.0
      %v1067 = vand.u32 %v418, 4294901760
      %v1068 = vsub.f32 %v418, %v1067
      %v1069 = vand.u32 %v1068, 4294901760
      %v1070 = vsub.f32 %v1068, %v1069
      %v1071 = vand.u32 %v1070, 4294901760
      %1072 = vmatmul.mubr.f32.gmra.mxu0 %v1071
      %v1073 = vpop.f32.mrf.mxu0
      %v1074 = vadd.f32 %v246, %v1073
      %v1075 = vpop.f32.mrf.mxu0
      %1076 = vmatprep.mubr.f32.mxu0 0.0
      %v1077 = vand.u32 %v421, 4294901760
      %v1078 = vsub.f32 %v421, %v1077
      %v1079 = vand.u32 %v1078, 4294901760
      %v1080 = vsub.f32 %v1078, %v1079
      %v1081 = vand.u32 %v1080, 4294901760
      %1082 = vmatmul.mubr.f32.gmra.mxu0 %v1081
      %v1083 = vpop.f32.mrf.mxu0
      %v1084 = vadd.f32 %v246, %v1083
      %v1085 = vpop.f32.mrf.mxu0
      %1086 = vmatprep.mubr.f32.mxu0 0.0
      %v1087 = vand.u32 %v424, 4294901760
      %v1088 = vsub.f32 %v424, %v1087
      %v1089 = vand.u32 %v1088, 4294901760
      %v1090 = vsub.f32 %v1088, %v1089
      %v1091 = vand.u32 %v1090, 4294901760
      %1092 = vmatmul.mubr.f32.gmra.mxu0 %v1091
      %v1093 = vpop.f32.mrf.mxu0
      %v1094 = vadd.f32 %v246, %v1093
      %v1095 = vpop.f32.mrf.mxu0
      %1096 = vmatprep.mubr.f32.mxu0 0.0
      %v1097 = vand.u32 %v427, 4294901760
      %v1098 = vsub.f32 %v427, %v1097
      %v1099 = vand.u32 %v1098, 4294901760
      %v1100 = vsub.f32 %v1098, %v1099
      %v1101 = vand.u32 %v1100, 4294901760
      %1102 = vmatmul.mubr.f32.gmra.mxu0 %v1101
      %v1103 = vpop.f32.mrf.mxu0
      %v1104 = vadd.f32 %v246, %v1103
      %v1105 = vpop.f32.mrf.mxu0
      %1106 = vmatprep.mubr.f32.mxu0 0.0
      %v1107 = vand.u32 %v430, 4294901760
      %v1108 = vsub.f32 %v430, %v1107
      %v1109 = vand.u32 %v1108, 4294901760
      %v1110 = vsub.f32 %v1108, %v1109
      %v1111 = vand.u32 %v1110, 4294901760
      %1112 = vmatmul.mubr.f32.gmra.mxu0 %v1111
      %v1113 = vpop.f32.mrf.mxu0
      %v1114 = vadd.f32 %v246, %v1113
      %v1115 = vpop.f32.mrf.mxu0
      %1116 = vmatprep.mubr.f32.mxu0 0.0
      %v1117 = vand.u32 %v433, 4294901760
      %v1118 = vsub.f32 %v433, %v1117
      %v1119 = vand.u32 %v1118, 4294901760
      %v1120 = vsub.f32 %v1118, %v1119
      %v1121 = vand.u32 %v1120, 4294901760
      %1122 = vmatmul.mubr.f32.gmra.mxu0 %v1121
      %v1123 = vpop.f32.mrf.mxu0
      %v1124 = vadd.f32 %v246, %v1123
      %v1125 = vpop.f32.mrf.mxu0
      %1126 = vmatprep.mubr.f32.mxu0 0.0
      %v1127 = vand.u32 %v436, 4294901760
      %v1128 = vsub.f32 %v436, %v1127
      %v1129 = vand.u32 %v1128, 4294901760
      %v1130 = vsub.f32 %v1128, %v1129
      %v1131 = vand.u32 %v1130, 4294901760
      %1132 = vmatmul.mubr.f32.gmra.mxu0 %v1131
      %v1133 = vpop.f32.mrf.mxu0
      %v1134 = vadd.f32 %v246, %v1133
      %v1135 = vpop.f32.mrf.mxu0
      %1136 = vdwg.mxu0
      %1137 = vmatprep.subr.mxu0 0.0
      %1138 = vmatpush1.msra.mxu0 0.0
      %1139 = vmatprep.subr.mxu0 0.0
      %1140 = vmatpush1.msra.mxu0 0.0
      %1141 = vmatprep.subr.mxu0 0.0
      %1142 = vmatpush1.msra.mxu0 0.0
      %1143 = vmatprep.subr.mxu0 0.0
      %1144 = vmatpush1.msra.mxu0 0.0
      %1145 = vmatprep.subr.mxu0 0.0
      %1146 = vmatpush1.msra.mxu0 0.0
      %1147 = vmatprep.subr.mxu0 0.0
      %1148 = vmatpush1.msra.mxu0 0.0
      %1149 = vmatprep.subr.mxu0 0.0
      %1150 = vmatpush1.msra.mxu0 0.0
      %1151 = vmatprep.subr.mxu0 0.0
      %1152 = vmatpush1.msra.mxu0 0.0
      %1153 = vmatprep.subr.mxu0 0.0
      %1154 = vmatpush1.msra.mxu0 0.0
      %1155 = vmatprep.subr.mxu0 0.0
      %1156 = vmatpush1.msra.mxu0 0.0
      %1157 = vmatprep.subr.mxu0 0.0
      %1158 = vmatpush1.msra.mxu0 0.0
      %1159 = vmatprep.subr.mxu0 0.0
      %1160 = vmatpush1.msra.mxu0 0.0
      %1161 = vmatprep.subr.mxu0 0.0
      %v1162 = vand.u32 %v240, 4294901760
      %v1163 = vsub.f32 %v240, %v1162
      %v1164 = vand.u32 %v1163, 4294901760
      %v1165 = vsub.f32 %v1163, %v1164
      %v1166 = vand.u32 %v1165, 4294901760
      %1167 = vmatpush1.msra.mxu0 %v1166
      %1168 = vmatprep.subr.mxu0 0.0
      %v1169 = vand.u32 %v239, 4294901760
      %v1170 = vsub.f32 %v239, %v1169
      %v1171 = vand.u32 %v1170, 4294901760
      %v1172 = vsub.f32 %v1170, %v1171
      %v1173 = vand.u32 %v1172, 4294901760
      %1174 = vmatpush1.msra.mxu0 %v1173
      %1175 = vmatprep.subr.mxu0 0.0
      %v1176 = vand.u32 %v238, 4294901760
      %v1177 = vsub.f32 %v238, %v1176
      %v1178 = vand.u32 %v1177, 4294901760
      %v1179 = vsub.f32 %v1177, %v1178
      %v1180 = vand.u32 %v1179, 4294901760
      %1181 = vmatpush1.msra.mxu0 %v1180
      %1182 = vmatprep.subr.mxu0 0.0
      %v1183 = vand.u32 %v237, 4294901760
      %v1184 = vsub.f32 %v237, %v1183
      %v1185 = vand.u32 %v1184, 4294901760
      %v1186 = vsub.f32 %v1184, %v1185
      %v1187 = vand.u32 %v1186, 4294901760
      %1188 = vmatpush1.msra.mxu0 %v1187
      %1189 = vmatprep.subr.mxu0 0.0
      %1190 = vmatpush2.msra.mxu0 0.0
      %1191 = vmatprep.subr.mxu0 0.0
      %1192 = vmatpush2.msra.mxu0 0.0
      %1193 = vmatprep.subr.mxu0 0.0
      %1194 = vmatpush2.msra.mxu0 0.0
      %1195 = vmatprep.subr.mxu0 0.0
      %1196 = vmatpush2.msra.mxu0 0.0
      %1197 = vmatprep.subr.mxu0 0.0
      %1198 = vmatpush2.msra.mxu0 0.0
      %1199 = vmatprep.subr.mxu0 0.0
      %1200 = vmatpush2.msra.mxu0 0.0
      %1201 = vmatprep.subr.mxu0 0.0
      %1202 = vmatpush2.msra.mxu0 0.0
      %1203 = vmatprep.subr.mxu0 0.0
      %1204 = vmatpush2.msra.mxu0 0.0
      %1205 = vmatprep.subr.mxu0 0.0
      %1206 = vmatpush2.msra.mxu0 0.0
      %1207 = vmatprep.subr.mxu0 0.0
      %1208 = vmatpush2.msra.mxu0 0.0
      %1209 = vmatprep.subr.mxu0 0.0
      %1210 = vmatpush2.msra.mxu0 0.0
      %1211 = vmatprep.subr.mxu0 0.0
      %1212 = vmatpush2.msra.mxu0 0.0
      %1213 = vmatprep.subr.mxu0 0.0
      %1214 = vmatpush2.msra.mxu0 0.0
      %1215 = vmatprep.subr.mxu0 0.0
      %1216 = vmatpush2.msra.mxu0 0.0
      %1217 = vmatprep.subr.mxu0 0.0
      %1218 = vmatpush2.msra.mxu0 0.0
      %1219 = vmatprep.subr.mxu0 0.0
      %1220 = vmatpush2.msra.mxu0 0.0
      %1221 = vmatprep.mubr.f32.mxu0 0.0
      %v1222 = vand.u32 %v250, 4294901760
      %1223 = vmatmul.mubr.f32.gmra.mxu0 %v1222
      %v1224 = vpop.f32.mrf.mxu0
      %v1225 = vadd.f32 %v514, %v1224
      %v1226 = vpop.f32.mrf.mxu0
      %1227 = vmatprep.mubr.f32.mxu0 0.0
      %v1228 = vand.u32 %v253, 4294901760
      %1229 = vmatmul.mubr.f32.gmra.mxu0 %v1228
      %v1230 = vpop.f32.mrf.mxu0
      %v1231 = vadd.f32 %v524, %v1230
      %v1232 = vpop.f32.mrf.mxu0
      %1233 = vmatprep.mubr.f32.mxu0 0.0
      %v1234 = vand.u32 %v256, 4294901760
      %1235 = vmatmul.mubr.f32.gmra.mxu0 %v1234
      %v1236 = vpop.f32.mrf.mxu0
      %v1237 = vadd.f32 %v534, %v1236
      %v1238 = vpop.f32.mrf.mxu0
      %1239 = vmatprep.mubr.f32.mxu0 0.0
      %v1240 = vand.u32 %v259, 4294901760
      %1241 = vmatmul.mubr.f32.gmra.mxu0 %v1240
      %v1242 = vpop.f32.mrf.mxu0
      %v1243 = vadd.f32 %v544, %v1242
      %v1244 = vpop.f32.mrf.mxu0
      %1245 = vmatprep.mubr.f32.mxu0 0.0
      %v1246 = vand.u32 %v262, 4294901760
      %1247 = vmatmul.mubr.f32.gmra.mxu0 %v1246
      %v1248 = vpop.f32.mrf.mxu0
      %v1249 = vadd.f32 %v554, %v1248
      %v1250 = vpop.f32.mrf.mxu0
      %1251 = vmatprep.mubr.f32.mxu0 0.0
      %v1252 = vand.u32 %v265, 4294901760
      %1253 = vmatmul.mubr.f32.gmra.mxu0 %v1252
      %v1254 = vpop.f32.mrf.mxu0
      %v1255 = vadd.f32 %v564, %v1254
      %v1256 = vpop.f32.mrf.mxu0
      %1257 = vmatprep.mubr.f32.mxu0 0.0
      %v1258 = vand.u32 %v268, 4294901760
      %1259 = vmatmul.mubr.f32.gmra.mxu0 %v1258
      %v1260 = vpop.f32.mrf.mxu0
      %v1261 = vadd.f32 %v574, %v1260
      %v1262 = vpop.f32.mrf.mxu0
      %1263 = vmatprep.mubr.f32.mxu0 0.0
      %v1264 = vand.u32 %v271, 4294901760
      %1265 = vmatmul.mubr.f32.gmra.mxu0 %v1264
      %v1266 = vpop.f32.mrf.mxu0
      %v1267 = vadd.f32 %v584, %v1266
      %v1268 = vpop.f32.mrf.mxu0
      %1269 = vmatprep.mubr.f32.mxu0 0.0
      %v1270 = vand.u32 %v274, 4294901760
      %1271 = vmatmul.mubr.f32.gmra.mxu0 %v1270
      %v1272 = vpop.f32.mrf.mxu0
      %v1273 = vadd.f32 %v594, %v1272
      %v1274 = vpop.f32.mrf.mxu0
      %1275 = vmatprep.mubr.f32.mxu0 0.0
      %v1276 = vand.u32 %v277, 4294901760
      %1277 = vmatmul.mubr.f32.gmra.mxu0 %v1276
      %v1278 = vpop.f32.mrf.mxu0
      %v1279 = vadd.f32 %v604, %v1278
      %v1280 = vpop.f32.mrf.mxu0
      %1281 = vmatprep.mubr.f32.mxu0 0.0
      %v1282 = vand.u32 %v280, 4294901760
      %1283 = vmatmul.mubr.f32.gmra.mxu0 %v1282
      %v1284 = vpop.f32.mrf.mxu0
      %v1285 = vadd.f32 %v614, %v1284
      %v1286 = vpop.f32.mrf.mxu0
      %1287 = vmatprep.mubr.f32.mxu0 0.0
      %v1288 = vand.u32 %v283, 4294901760
      %1289 = vmatmul.mubr.f32.gmra.mxu0 %v1288
      %v1290 = vpop.f32.mrf.mxu0
      %v1291 = vadd.f32 %v624, %v1290
      %v1292 = vpop.f32.mrf.mxu0
      %1293 = vmatprep.mubr.f32.mxu0 0.0
      %v1294 = vand.u32 %v286, 4294901760
      %1295 = vmatmul.mubr.f32.gmra.mxu0 %v1294
      %v1296 = vpop.f32.mrf.mxu0
      %v1297 = vadd.f32 %v634, %v1296
      %v1298 = vpop.f32.mrf.mxu0
      %1299 = vmatprep.mubr.f32.mxu0 0.0
      %v1300 = vand.u32 %v289, 4294901760
      %1301 = vmatmul.mubr.f32.gmra.mxu0 %v1300
      %v1302 = vpop.f32.mrf.mxu0
      %v1303 = vadd.f32 %v644, %v1302
      %v1304 = vpop.f32.mrf.mxu0
      %1305 = vmatprep.mubr.f32.mxu0 0.0
      %v1306 = vand.u32 %v292, 4294901760
      %1307 = vmatmul.mubr.f32.gmra.mxu0 %v1306
      %v1308 = vpop.f32.mrf.mxu0
      %v1309 = vadd.f32 %v654, %v1308
      %v1310 = vpop.f32.mrf.mxu0
      %1311 = vmatprep.mubr.f32.mxu0 0.0
      %v1312 = vand.u32 %v295, 4294901760
      %1313 = vmatmul.mubr.f32.gmra.mxu0 %v1312
      %v1314 = vpop.f32.mrf.mxu0
      %v1315 = vadd.f32 %v664, %v1314
      %v1316 = vpop.f32.mrf.mxu0
      %1317 = vmatprep.mubr.f32.mxu0 0.0
      %v1318 = vand.u32 %v298, 4294901760
      %1319 = vmatmul.mubr.f32.gmra.mxu0 %v1318
      %v1320 = vpop.f32.mrf.mxu0
      %v1321 = vadd.f32 %v674, %v1320
      %v1322 = vpop.f32.mrf.mxu0
      %1323 = vmatprep.mubr.f32.mxu0 0.0
      %v1324 = vand.u32 %v301, 4294901760
      %1325 = vmatmul.mubr.f32.gmra.mxu0 %v1324
      %v1326 = vpop.f32.mrf.mxu0
      %v1327 = vadd.f32 %v684, %v1326
      %v1328 = vpop.f32.mrf.mxu0
      %1329 = vmatprep.mubr.f32.mxu0 0.0
      %v1330 = vand.u32 %v304, 4294901760
      %1331 = vmatmul.mubr.f32.gmra.mxu0 %v1330
      %v1332 = vpop.f32.mrf.mxu0
      %v1333 = vadd.f32 %v694, %v1332
      %v1334 = vpop.f32.mrf.mxu0
      %1335 = vmatprep.mubr.f32.mxu0 0.0
      %v1336 = vand.u32 %v307, 4294901760
      %1337 = vmatmul.mubr.f32.gmra.mxu0 %v1336
      %v1338 = vpop.f32.mrf.mxu0
      %v1339 = vadd.f32 %v704, %v1338
      %v1340 = vpop.f32.mrf.mxu0
      %1341 = vmatprep.mubr.f32.mxu0 0.0
      %v1342 = vand.u32 %v310, 4294901760
      %1343 = vmatmul.mubr.f32.gmra.mxu0 %v1342
      %v1344 = vpop.f32.mrf.mxu0
      %v1345 = vadd.f32 %v714, %v1344
      %v1346 = vpop.f32.mrf.mxu0
      %1347 = vmatprep.mubr.f32.mxu0 0.0
      %v1348 = vand.u32 %v313, 4294901760
      %1349 = vmatmul.mubr.f32.gmra.mxu0 %v1348
      %v1350 = vpop.f32.mrf.mxu0
      %v1351 = vadd.f32 %v724, %v1350
      %v1352 = vpop.f32.mrf.mxu0
      %1353 = vmatprep.mubr.f32.mxu0 0.0
      %v1354 = vand.u32 %v316, 4294901760
      %1355 = vmatmul.mubr.f32.gmra.mxu0 %v1354
      %v1356 = vpop.f32.mrf.mxu0
      %v1357 = vadd.f32 %v734, %v1356
      %v1358 = vpop.f32.mrf.mxu0
      %1359 = vmatprep.mubr.f32.mxu0 0.0
      %v1360 = vand.u32 %v319, 4294901760
      %1361 = vmatmul.mubr.f32.gmra.mxu0 %v1360
      %v1362 = vpop.f32.mrf.mxu0
      %v1363 = vadd.f32 %v744, %v1362
      %v1364 = vpop.f32.mrf.mxu0
      %1365 = vmatprep.mubr.f32.mxu0 0.0
      %v1366 = vand.u32 %v322, 4294901760
      %1367 = vmatmul.mubr.f32.gmra.mxu0 %v1366
      %v1368 = vpop.f32.mrf.mxu0
      %v1369 = vadd.f32 %v754, %v1368
      %v1370 = vpop.f32.mrf.mxu0
      %1371 = vmatprep.mubr.f32.mxu0 0.0
      %v1372 = vand.u32 %v325, 4294901760
      %1373 = vmatmul.mubr.f32.gmra.mxu0 %v1372
      %v1374 = vpop.f32.mrf.mxu0
      %v1375 = vadd.f32 %v764, %v1374
      %v1376 = vpop.f32.mrf.mxu0
      %1377 = vmatprep.mubr.f32.mxu0 0.0
      %v1378 = vand.u32 %v328, 4294901760
      %1379 = vmatmul.mubr.f32.gmra.mxu0 %v1378
      %v1380 = vpop.f32.mrf.mxu0
      %v1381 = vadd.f32 %v774, %v1380
      %v1382 = vpop.f32.mrf.mxu0
      %1383 = vmatprep.mubr.f32.mxu0 0.0
      %v1384 = vand.u32 %v331, 4294901760
      %1385 = vmatmul.mubr.f32.gmra.mxu0 %v1384
      %v1386 = vpop.f32.mrf.mxu0
      %v1387 = vadd.f32 %v784, %v1386
      %v1388 = vpop.f32.mrf.mxu0
      %1389 = vmatprep.mubr.f32.mxu0 0.0
      %v1390 = vand.u32 %v334, 4294901760
      %1391 = vmatmul.mubr.f32.gmra.mxu0 %v1390
      %v1392 = vpop.f32.mrf.mxu0
      %v1393 = vadd.f32 %v794, %v1392
      %v1394 = vpop.f32.mrf.mxu0
      %1395 = vmatprep.mubr.f32.mxu0 0.0
      %v1396 = vand.u32 %v337, 4294901760
      %1397 = vmatmul.mubr.f32.gmra.mxu0 %v1396
      %v1398 = vpop.f32.mrf.mxu0
      %v1399 = vadd.f32 %v804, %v1398
      %v1400 = vpop.f32.mrf.mxu0
      %1401 = vmatprep.mubr.f32.mxu0 0.0
      %v1402 = vand.u32 %v340, 4294901760
      %1403 = vmatmul.mubr.f32.gmra.mxu0 %v1402
      %v1404 = vpop.f32.mrf.mxu0
      %v1405 = vadd.f32 %v814, %v1404
      %v1406 = vpop.f32.mrf.mxu0
      %1407 = vmatprep.mubr.f32.mxu0 0.0
      %v1408 = vand.u32 %v343, 4294901760
      %1409 = vmatmul.mubr.f32.gmra.mxu0 %v1408
      %v1410 = vpop.f32.mrf.mxu0
      %v1411 = vadd.f32 %v824, %v1410
      %v1412 = vpop.f32.mrf.mxu0
      %1413 = vmatprep.mubr.f32.mxu0 0.0
      %v1414 = vand.u32 %v346, 4294901760
      %1415 = vmatmul.mubr.f32.gmra.mxu0 %v1414
      %v1416 = vpop.f32.mrf.mxu0
      %v1417 = vadd.f32 %v834, %v1416
      %v1418 = vpop.f32.mrf.mxu0
      %1419 = vmatprep.mubr.f32.mxu0 0.0
      %v1420 = vand.u32 %v349, 4294901760
      %1421 = vmatmul.mubr.f32.gmra.mxu0 %v1420
      %v1422 = vpop.f32.mrf.mxu0
      %v1423 = vadd.f32 %v844, %v1422
      %v1424 = vpop.f32.mrf.mxu0
      %1425 = vmatprep.mubr.f32.mxu0 0.0
      %v1426 = vand.u32 %v352, 4294901760
      %1427 = vmatmul.mubr.f32.gmra.mxu0 %v1426
      %v1428 = vpop.f32.mrf.mxu0
      %v1429 = vadd.f32 %v854, %v1428
      %v1430 = vpop.f32.mrf.mxu0
      %1431 = vmatprep.mubr.f32.mxu0 0.0
      %v1432 = vand.u32 %v355, 4294901760
      %1433 = vmatmul.mubr.f32.gmra.mxu0 %v1432
      %v1434 = vpop.f32.mrf.mxu0
      %v1435 = vadd.f32 %v864, %v1434
      %v1436 = vpop.f32.mrf.mxu0
      %1437 = vmatprep.mubr.f32.mxu0 0.0
      %v1438 = vand.u32 %v358, 4294901760
      %1439 = vmatmul.mubr.f32.gmra.mxu0 %v1438
      %v1440 = vpop.f32.mrf.mxu0
      %v1441 = vadd.f32 %v874, %v1440
      %v1442 = vpop.f32.mrf.mxu0
      %1443 = vmatprep.mubr.f32.mxu0 0.0
      %v1444 = vand.u32 %v361, 4294901760
      %1445 = vmatmul.mubr.f32.gmra.mxu0 %v1444
      %v1446 = vpop.f32.mrf.mxu0
      %v1447 = vadd.f32 %v884, %v1446
      %v1448 = vpop.f32.mrf.mxu0
      %1449 = vmatprep.mubr.f32.mxu0 0.0
      %v1450 = vand.u32 %v364, 4294901760
      %1451 = vmatmul.mubr.f32.gmra.mxu0 %v1450
      %v1452 = vpop.f32.mrf.mxu0
      %v1453 = vadd.f32 %v894, %v1452
      %v1454 = vpop.f32.mrf.mxu0
      %1455 = vmatprep.mubr.f32.mxu0 0.0
      %v1456 = vand.u32 %v367, 4294901760
      %1457 = vmatmul.mubr.f32.gmra.mxu0 %v1456
      %v1458 = vpop.f32.mrf.mxu0
      %v1459 = vadd.f32 %v904, %v1458
      %v1460 = vpop.f32.mrf.mxu0
      %1461 = vmatprep.mubr.f32.mxu0 0.0
      %v1462 = vand.u32 %v370, 4294901760
      %1463 = vmatmul.mubr.f32.gmra.mxu0 %v1462
      %v1464 = vpop.f32.mrf.mxu0
      %v1465 = vadd.f32 %v914, %v1464
      %v1466 = vpop.f32.mrf.mxu0
      %1467 = vmatprep.mubr.f32.mxu0 0.0
      %v1468 = vand.u32 %v373, 4294901760
      %1469 = vmatmul.mubr.f32.gmra.mxu0 %v1468
      %v1470 = vpop.f32.mrf.mxu0
      %v1471 = vadd.f32 %v924, %v1470
      %v1472 = vpop.f32.mrf.mxu0
      %1473 = vmatprep.mubr.f32.mxu0 0.0
      %v1474 = vand.u32 %v376, 4294901760
      %1475 = vmatmul.mubr.f32.gmra.mxu0 %v1474
      %v1476 = vpop.f32.mrf.mxu0
      %v1477 = vadd.f32 %v934, %v1476
      %v1478 = vpop.f32.mrf.mxu0
      %1479 = vmatprep.mubr.f32.mxu0 0.0
      %v1480 = vand.u32 %v379, 4294901760
      %1481 = vmatmul.mubr.f32.gmra.mxu0 %v1480
      %v1482 = vpop.f32.mrf.mxu0
      %v1483 = vadd.f32 %v944, %v1482
      %v1484 = vpop.f32.mrf.mxu0
      %1485 = vmatprep.mubr.f32.mxu0 0.0
      %v1486 = vand.u32 %v382, 4294901760
      %1487 = vmatmul.mubr.f32.gmra.mxu0 %v1486
      %v1488 = vpop.f32.mrf.mxu0
      %v1489 = vadd.f32 %v954, %v1488
      %v1490 = vpop.f32.mrf.mxu0
      %1491 = vmatprep.mubr.f32.mxu0 0.0
      %v1492 = vand.u32 %v385, 4294901760
      %1493 = vmatmul.mubr.f32.gmra.mxu0 %v1492
      %v1494 = vpop.f32.mrf.mxu0
      %v1495 = vadd.f32 %v964, %v1494
      %v1496 = vpop.f32.mrf.mxu0
      %1497 = vmatprep.mubr.f32.mxu0 0.0
      %v1498 = vand.u32 %v388, 4294901760
      %1499 = vmatmul.mubr.f32.gmra.mxu0 %v1498
      %v1500 = vpop.f32.mrf.mxu0
      %v1501 = vadd.f32 %v974, %v1500
      %v1502 = vpop.f32.mrf.mxu0
      %1503 = vmatprep.mubr.f32.mxu0 0.0
      %v1504 = vand.u32 %v391, 4294901760
      %1505 = vmatmul.mubr.f32.gmra.mxu0 %v1504
      %v1506 = vpop.f32.mrf.mxu0
      %v1507 = vadd.f32 %v984, %v1506
      %v1508 = vpop.f32.mrf.mxu0
      %1509 = vmatprep.mubr.f32.mxu0 0.0
      %v1510 = vand.u32 %v394, 4294901760
      %1511 = vmatmul.mubr.f32.gmra.mxu0 %v1510
      %v1512 = vpop.f32.mrf.mxu0
      %v1513 = vadd.f32 %v994, %v1512
      %v1514 = vpop.f32.mrf.mxu0
      %1515 = vmatprep.mubr.f32.mxu0 0.0
      %v1516 = vand.u32 %v397, 4294901760
      %1517 = vmatmul.mubr.f32.gmra.mxu0 %v1516
      %v1518 = vpop.f32.mrf.mxu0
      %v1519 = vadd.f32 %v1004, %v1518
      %v1520 = vpop.f32.mrf.mxu0
      %1521 = vmatprep.mubr.f32.mxu0 0.0
      %v1522 = vand.u32 %v400, 4294901760
      %1523 = vmatmul.mubr.f32.gmra.mxu0 %v1522
      %v1524 = vpop.f32.mrf.mxu0
      %v1525 = vadd.f32 %v1014, %v1524
      %v1526 = vpop.f32.mrf.mxu0
      %1527 = vmatprep.mubr.f32.mxu0 0.0
      %v1528 = vand.u32 %v403, 4294901760
      %1529 = vmatmul.mubr.f32.gmra.mxu0 %v1528
      %v1530 = vpop.f32.mrf.mxu0
      %v1531 = vadd.f32 %v1024, %v1530
      %v1532 = vpop.f32.mrf.mxu0
      %1533 = vmatprep.mubr.f32.mxu0 0.0
      %v1534 = vand.u32 %v406, 4294901760
      %1535 = vmatmul.mubr.f32.gmra.mxu0 %v1534
      %v1536 = vpop.f32.mrf.mxu0
      %v1537 = vadd.f32 %v1034, %v1536
      %v1538 = vpop.f32.mrf.mxu0
      %1539 = vmatprep.mubr.f32.mxu0 0.0
      %v1540 = vand.u32 %v409, 4294901760
      %1541 = vmatmul.mubr.f32.gmra.mxu0 %v1540
      %v1542 = vpop.f32.mrf.mxu0
      %v1543 = vadd.f32 %v1044, %v1542
      %v1544 = vpop.f32.mrf.mxu0
      %1545 = vmatprep.mubr.f32.mxu0 0.0
      %v1546 = vand.u32 %v412, 4294901760
      %1547 = vmatmul.mubr.f32.gmra.mxu0 %v1546
      %v1548 = vpop.f32.mrf.mxu0
      %v1549 = vadd.f32 %v1054, %v1548
      %v1550 = vpop.f32.mrf.mxu0
      %1551 = vmatprep.mubr.f32.mxu0 0.0
      %v1552 = vand.u32 %v415, 4294901760
      %1553 = vmatmul.mubr.f32.gmra.mxu0 %v1552
      %v1554 = vpop.f32.mrf.mxu0
      %v1555 = vadd.f32 %v1064, %v1554
      %v1556 = vpop.f32.mrf.mxu0
      %1557 = vmatprep.mubr.f32.mxu0 0.0
      %v1558 = vand.u32 %v418, 4294901760
      %1559 = vmatmul.mubr.f32.gmra.mxu0 %v1558
      %v1560 = vpop.f32.mrf.mxu0
      %v1561 = vadd.f32 %v1074, %v1560
      %v1562 = vpop.f32.mrf.mxu0
      %1563 = vmatprep.mubr.f32.mxu0 0.0
      %v1564 = vand.u32 %v421, 4294901760
      %1565 = vmatmul.mubr.f32.gmra.mxu0 %v1564
      %v1566 = vpop.f32.mrf.mxu0
      %v1567 = vadd.f32 %v1084, %v1566
      %v1568 = vpop.f32.mrf.mxu0
      %1569 = vmatprep.mubr.f32.mxu0 0.0
      %v1570 = vand.u32 %v424, 4294901760
      %1571 = vmatmul.mubr.f32.gmra.mxu0 %v1570
      %v1572 = vpop.f32.mrf.mxu0
      %v1573 = vadd.f32 %v1094, %v1572
      %v1574 = vpop.f32.mrf.mxu0
      %1575 = vmatprep.mubr.f32.mxu0 0.0
      %v1576 = vand.u32 %v427, 4294901760
      %1577 = vmatmul.mubr.f32.gmra.mxu0 %v1576
      %v1578 = vpop.f32.mrf.mxu0
      %v1579 = vadd.f32 %v1104, %v1578
      %v1580 = vpop.f32.mrf.mxu0
      %1581 = vmatprep.mubr.f32.mxu0 0.0
      %v1582 = vand.u32 %v430, 4294901760
      %1583 = vmatmul.mubr.f32.gmra.mxu0 %v1582
      %v1584 = vpop.f32.mrf.mxu0
      %v1585 = vadd.f32 %v1114, %v1584
      %v1586 = vpop.f32.mrf.mxu0
      %1587 = vmatprep.mubr.f32.mxu0 0.0
      %v1588 = vand.u32 %v433, 4294901760
      %1589 = vmatmul.mubr.f32.gmra.mxu0 %v1588
      %v1590 = vpop.f32.mrf.mxu0
      %v1591 = vadd.f32 %v1124, %v1590
      %v1592 = vpop.f32.mrf.mxu0
      %1593 = vmatprep.mubr.f32.mxu0 0.0
      %v1594 = vand.u32 %v436, 4294901760
      %1595 = vmatmul.mubr.f32.gmra.mxu0 %v1594
      %v1596 = vpop.f32.mrf.mxu0
      %v1597 = vadd.f32 %v1134, %v1596
      %v1598 = vpop.f32.mrf.mxu0
      %1599 = vdwg.mxu0
      %1600 = vmatprep.subr.mxu0 0.0
      %1601 = vmatpush1.msra.mxu0 0.0
      %1602 = vmatprep.subr.mxu0 0.0
      %1603 = vmatpush1.msra.mxu0 0.0
      %1604 = vmatprep.subr.mxu0 0.0
      %1605 = vmatpush1.msra.mxu0 0.0
      %1606 = vmatprep.subr.mxu0 0.0
      %1607 = vmatpush1.msra.mxu0 0.0
      %1608 = vmatprep.subr.mxu0 0.0
      %1609 = vmatpush1.msra.mxu0 0.0
      %1610 = vmatprep.subr.mxu0 0.0
      %1611 = vmatpush1.msra.mxu0 0.0
      %1612 = vmatprep.subr.mxu0 0.0
      %1613 = vmatpush1.msra.mxu0 0.0
      %1614 = vmatprep.subr.mxu0 0.0
      %1615 = vmatpush1.msra.mxu0 0.0
      %1616 = vmatprep.subr.mxu0 0.0
      %1617 = vmatpush1.msra.mxu0 0.0
      %1618 = vmatprep.subr.mxu0 0.0
      %1619 = vmatpush1.msra.mxu0 0.0
      %1620 = vmatprep.subr.mxu0 0.0
      %1621 = vmatpush1.msra.mxu0 0.0
      %1622 = vmatprep.subr.mxu0 0.0
      %1623 = vmatpush1.msra.mxu0 0.0
      %1624 = vmatprep.subr.mxu0 0.0
      %v1625 = vand.u32 %v240, 4294901760
      %v1626 = vsub.f32 %v240, %v1625
      %1627 = vmatpush1.msra.mxu0 %v1626
      %1628 = vmatprep.subr.mxu0 0.0
      %v1629 = vand.u32 %v239, 4294901760
      %v1630 = vsub.f32 %v239, %v1629
      %1631 = vmatpush1.msra.mxu0 %v1630
      %1632 = vmatprep.subr.mxu0 0.0
      %v1633 = vand.u32 %v238, 4294901760
      %v1634 = vsub.f32 %v238, %v1633
      %1635 = vmatpush1.msra.mxu0 %v1634
      %1636 = vmatprep.subr.mxu0 0.0
      %v1637 = vand.u32 %v237, 4294901760
      %v1638 = vsub.f32 %v237, %v1637
      %1639 = vmatpush1.msra.mxu0 %v1638
      %1640 = vmatprep.subr.mxu0 0.0
      %1641 = vmatpush2.msra.mxu0 0.0
      %1642 = vmatprep.subr.mxu0 0.0
      %1643 = vmatpush2.msra.mxu0 0.0
      %1644 = vmatprep.subr.mxu0 0.0
      %1645 = vmatpush2.msra.mxu0 0.0
      %1646 = vmatprep.subr.mxu0 0.0
      %1647 = vmatpush2.msra.mxu0 0.0
      %1648 = vmatprep.subr.mxu0 0.0
      %1649 = vmatpush2.msra.mxu0 0.0
      %1650 = vmatprep.subr.mxu0 0.0
      %1651 = vmatpush2.msra.mxu0 0.0
      %1652 = vmatprep.subr.mxu0 0.0
      %1653 = vmatpush2.msra.mxu0 0.0
      %1654 = vmatprep.subr.mxu0 0.0
      %1655 = vmatpush2.msra.mxu0 0.0
      %1656 = vmatprep.subr.mxu0 0.0
      %1657 = vmatpush2.msra.mxu0 0.0
      %1658 = vmatprep.subr.mxu0 0.0
      %1659 = vmatpush2.msra.mxu0 0.0
      %1660 = vmatprep.subr.mxu0 0.0
      %1661 = vmatpush2.msra.mxu0 0.0
      %1662 = vmatprep.subr.mxu0 0.0
      %1663 = vmatpush2.msra.mxu0 0.0
      %1664 = vmatprep.subr.mxu0 0.0
      %1665 = vmatpush2.msra.mxu0 0.0
      %1666 = vmatprep.subr.mxu0 0.0
      %1667 = vmatpush2.msra.mxu0 0.0
      %1668 = vmatprep.subr.mxu0 0.0
      %1669 = vmatpush2.msra.mxu0 0.0
      %1670 = vmatprep.subr.mxu0 0.0
      %1671 = vmatpush2.msra.mxu0 0.0
      %1672 = vmatprep.mubr.f32.mxu0 0.0
      %v1673 = vand.u32 %v250, 4294901760
      %v1674 = vsub.f32 %v250, %v1673
      %1675 = vmatmul.mubr.f32.gmra.mxu0 %v1674
      %v1676 = vpop.f32.mrf.mxu0
      %v1677 = vadd.f32 %v1225, %v1676
      %v1678 = vpop.f32.mrf.mxu0
      %1679 = vmatprep.mubr.f32.mxu0 0.0
      %v1680 = vand.u32 %v253, 4294901760
      %v1681 = vsub.f32 %v253, %v1680
      %1682 = vmatmul.mubr.f32.gmra.mxu0 %v1681
      %v1683 = vpop.f32.mrf.mxu0
      %v1684 = vadd.f32 %v1231, %v1683
      %v1685 = vpop.f32.mrf.mxu0
      %1686 = vmatprep.mubr.f32.mxu0 0.0
      %v1687 = vand.u32 %v256, 4294901760
      %v1688 = vsub.f32 %v256, %v1687
      %1689 = vmatmul.mubr.f32.gmra.mxu0 %v1688
      %v1690 = vpop.f32.mrf.mxu0
      %v1691 = vadd.f32 %v1237, %v1690
      %v1692 = vpop.f32.mrf.mxu0
      %1693 = vmatprep.mubr.f32.mxu0 0.0
      %v1694 = vand.u32 %v259, 4294901760
      %v1695 = vsub.f32 %v259, %v1694
      %1696 = vmatmul.mubr.f32.gmra.mxu0 %v1695
      %v1697 = vpop.f32.mrf.mxu0
      %v1698 = vadd.f32 %v1243, %v1697
      %v1699 = vpop.f32.mrf.mxu0
      %1700 = vmatprep.mubr.f32.mxu0 0.0
      %v1701 = vand.u32 %v262, 4294901760
      %v1702 = vsub.f32 %v262, %v1701
      %1703 = vmatmul.mubr.f32.gmra.mxu0 %v1702
      %v1704 = vpop.f32.mrf.mxu0
      %v1705 = vadd.f32 %v1249, %v1704
      %v1706 = vpop.f32.mrf.mxu0
      %1707 = vmatprep.mubr.f32.mxu0 0.0
      %v1708 = vand.u32 %v265, 4294901760
      %v1709 = vsub.f32 %v265, %v1708
      %1710 = vmatmul.mubr.f32.gmra.mxu0 %v1709
      %v1711 = vpop.f32.mrf.mxu0
      %v1712 = vadd.f32 %v1255, %v1711
      %v1713 = vpop.f32.mrf.mxu0
      %1714 = vmatprep.mubr.f32.mxu0 0.0
      %v1715 = vand.u32 %v268, 4294901760
      %v1716 = vsub.f32 %v268, %v1715
      %1717 = vmatmul.mubr.f32.gmra.mxu0 %v1716
      %v1718 = vpop.f32.mrf.mxu0
      %v1719 = vadd.f32 %v1261, %v1718
      %v1720 = vpop.f32.mrf.mxu0
      %1721 = vmatprep.mubr.f32.mxu0 0.0
      %v1722 = vand.u32 %v271, 4294901760
      %v1723 = vsub.f32 %v271, %v1722
      %1724 = vmatmul.mubr.f32.gmra.mxu0 %v1723
      %v1725 = vpop.f32.mrf.mxu0
      %v1726 = vadd.f32 %v1267, %v1725
      %v1727 = vpop.f32.mrf.mxu0
      %1728 = vmatprep.mubr.f32.mxu0 0.0
      %v1729 = vand.u32 %v274, 4294901760
      %v1730 = vsub.f32 %v274, %v1729
      %1731 = vmatmul.mubr.f32.gmra.mxu0 %v1730
      %v1732 = vpop.f32.mrf.mxu0
      %v1733 = vadd.f32 %v1273, %v1732
      %v1734 = vpop.f32.mrf.mxu0
      %1735 = vmatprep.mubr.f32.mxu0 0.0
      %v1736 = vand.u32 %v277, 4294901760
      %v1737 = vsub.f32 %v277, %v1736
      %1738 = vmatmul.mubr.f32.gmra.mxu0 %v1737
      %v1739 = vpop.f32.mrf.mxu0
      %v1740 = vadd.f32 %v1279, %v1739
      %v1741 = vpop.f32.mrf.mxu0
      %1742 = vmatprep.mubr.f32.mxu0 0.0
      %v1743 = vand.u32 %v280, 4294901760
      %v1744 = vsub.f32 %v280, %v1743
      %1745 = vmatmul.mubr.f32.gmra.mxu0 %v1744
      %v1746 = vpop.f32.mrf.mxu0
      %v1747 = vadd.f32 %v1285, %v1746
      %v1748 = vpop.f32.mrf.mxu0
      %1749 = vmatprep.mubr.f32.mxu0 0.0
      %v1750 = vand.u32 %v283, 4294901760
      %v1751 = vsub.f32 %v283, %v1750
      %1752 = vmatmul.mubr.f32.gmra.mxu0 %v1751
      %v1753 = vpop.f32.mrf.mxu0
      %v1754 = vadd.f32 %v1291, %v1753
      %v1755 = vpop.f32.mrf.mxu0
      %1756 = vmatprep.mubr.f32.mxu0 0.0
      %v1757 = vand.u32 %v286, 4294901760
      %v1758 = vsub.f32 %v286, %v1757
      %1759 = vmatmul.mubr.f32.gmra.mxu0 %v1758
      %v1760 = vpop.f32.mrf.mxu0
      %v1761 = vadd.f32 %v1297, %v1760
      %v1762 = vpop.f32.mrf.mxu0
      %1763 = vmatprep.mubr.f32.mxu0 0.0
      %v1764 = vand.u32 %v289, 4294901760
      %v1765 = vsub.f32 %v289, %v1764
      %1766 = vmatmul.mubr.f32.gmra.mxu0 %v1765
      %v1767 = vpop.f32.mrf.mxu0
      %v1768 = vadd.f32 %v1303, %v1767
      %v1769 = vpop.f32.mrf.mxu0
      %1770 = vmatprep.mubr.f32.mxu0 0.0
      %v1771 = vand.u32 %v292, 4294901760
      %v1772 = vsub.f32 %v292, %v1771
      %1773 = vmatmul.mubr.f32.gmra.mxu0 %v1772
      %v1774 = vpop.f32.mrf.mxu0
      %v1775 = vadd.f32 %v1309, %v1774
      %v1776 = vpop.f32.mrf.mxu0
      %1777 = vmatprep.mubr.f32.mxu0 0.0
      %v1778 = vand.u32 %v295, 4294901760
      %v1779 = vsub.f32 %v295, %v1778
      %1780 = vmatmul.mubr.f32.gmra.mxu0 %v1779
      %v1781 = vpop.f32.mrf.mxu0
      %v1782 = vadd.f32 %v1315, %v1781
      %v1783 = vpop.f32.mrf.mxu0
      %1784 = vmatprep.mubr.f32.mxu0 0.0
      %v1785 = vand.u32 %v298, 4294901760
      %v1786 = vsub.f32 %v298, %v1785
      %1787 = vmatmul.mubr.f32.gmra.mxu0 %v1786
      %v1788 = vpop.f32.mrf.mxu0
      %v1789 = vadd.f32 %v1321, %v1788
      %v1790 = vpop.f32.mrf.mxu0
      %1791 = vmatprep.mubr.f32.mxu0 0.0
      %v1792 = vand.u32 %v301, 4294901760
      %v1793 = vsub.f32 %v301, %v1792
      %1794 = vmatmul.mubr.f32.gmra.mxu0 %v1793
      %v1795 = vpop.f32.mrf.mxu0
      %v1796 = vadd.f32 %v1327, %v1795
      %v1797 = vpop.f32.mrf.mxu0
      %1798 = vmatprep.mubr.f32.mxu0 0.0
      %v1799 = vand.u32 %v304, 4294901760
      %v1800 = vsub.f32 %v304, %v1799
      %1801 = vmatmul.mubr.f32.gmra.mxu0 %v1800
      %v1802 = vpop.f32.mrf.mxu0
      %v1803 = vadd.f32 %v1333, %v1802
      %v1804 = vpop.f32.mrf.mxu0
      %1805 = vmatprep.mubr.f32.mxu0 0.0
      %v1806 = vand.u32 %v307, 4294901760
      %v1807 = vsub.f32 %v307, %v1806
      %1808 = vmatmul.mubr.f32.gmra.mxu0 %v1807
      %v1809 = vpop.f32.mrf.mxu0
      %v1810 = vadd.f32 %v1339, %v1809
      %v1811 = vpop.f32.mrf.mxu0
      %1812 = vmatprep.mubr.f32.mxu0 0.0
      %v1813 = vand.u32 %v310, 4294901760
      %v1814 = vsub.f32 %v310, %v1813
      %1815 = vmatmul.mubr.f32.gmra.mxu0 %v1814
      %v1816 = vpop.f32.mrf.mxu0
      %v1817 = vadd.f32 %v1345, %v1816
      %v1818 = vpop.f32.mrf.mxu0
      %1819 = vmatprep.mubr.f32.mxu0 0.0
      %v1820 = vand.u32 %v313, 4294901760
      %v1821 = vsub.f32 %v313, %v1820
      %1822 = vmatmul.mubr.f32.gmra.mxu0 %v1821
      %v1823 = vpop.f32.mrf.mxu0
      %v1824 = vadd.f32 %v1351, %v1823
      %v1825 = vpop.f32.mrf.mxu0
      %1826 = vmatprep.mubr.f32.mxu0 0.0
      %v1827 = vand.u32 %v316, 4294901760
      %v1828 = vsub.f32 %v316, %v1827
      %1829 = vmatmul.mubr.f32.gmra.mxu0 %v1828
      %v1830 = vpop.f32.mrf.mxu0
      %v1831 = vadd.f32 %v1357, %v1830
      %v1832 = vpop.f32.mrf.mxu0
      %1833 = vmatprep.mubr.f32.mxu0 0.0
      %v1834 = vand.u32 %v319, 4294901760
      %v1835 = vsub.f32 %v319, %v1834
      %1836 = vmatmul.mubr.f32.gmra.mxu0 %v1835
      %v1837 = vpop.f32.mrf.mxu0
      %v1838 = vadd.f32 %v1363, %v1837
      %v1839 = vpop.f32.mrf.mxu0
      %1840 = vmatprep.mubr.f32.mxu0 0.0
      %v1841 = vand.u32 %v322, 4294901760
      %v1842 = vsub.f32 %v322, %v1841
      %1843 = vmatmul.mubr.f32.gmra.mxu0 %v1842
      %v1844 = vpop.f32.mrf.mxu0
      %v1845 = vadd.f32 %v1369, %v1844
      %v1846 = vpop.f32.mrf.mxu0
      %1847 = vmatprep.mubr.f32.mxu0 0.0
      %v1848 = vand.u32 %v325, 4294901760
      %v1849 = vsub.f32 %v325, %v1848
      %1850 = vmatmul.mubr.f32.gmra.mxu0 %v1849
      %v1851 = vpop.f32.mrf.mxu0
      %v1852 = vadd.f32 %v1375, %v1851
      %v1853 = vpop.f32.mrf.mxu0
      %1854 = vmatprep.mubr.f32.mxu0 0.0
      %v1855 = vand.u32 %v328, 4294901760
      %v1856 = vsub.f32 %v328, %v1855
      %1857 = vmatmul.mubr.f32.gmra.mxu0 %v1856
      %v1858 = vpop.f32.mrf.mxu0
      %v1859 = vadd.f32 %v1381, %v1858
      %v1860 = vpop.f32.mrf.mxu0
      %1861 = vmatprep.mubr.f32.mxu0 0.0
      %v1862 = vand.u32 %v331, 4294901760
      %v1863 = vsub.f32 %v331, %v1862
      %1864 = vmatmul.mubr.f32.gmra.mxu0 %v1863
      %v1865 = vpop.f32.mrf.mxu0
      %v1866 = vadd.f32 %v1387, %v1865
      %v1867 = vpop.f32.mrf.mxu0
      %1868 = vmatprep.mubr.f32.mxu0 0.0
      %v1869 = vand.u32 %v334, 4294901760
      %v1870 = vsub.f32 %v334, %v1869
      %1871 = vmatmul.mubr.f32.gmra.mxu0 %v1870
      %v1872 = vpop.f32.mrf.mxu0
      %v1873 = vadd.f32 %v1393, %v1872
      %v1874 = vpop.f32.mrf.mxu0
      %1875 = vmatprep.mubr.f32.mxu0 0.0
      %v1876 = vand.u32 %v337, 4294901760
      %v1877 = vsub.f32 %v337, %v1876
      %1878 = vmatmul.mubr.f32.gmra.mxu0 %v1877
      %v1879 = vpop.f32.mrf.mxu0
      %v1880 = vadd.f32 %v1399, %v1879
      %v1881 = vpop.f32.mrf.mxu0
      %1882 = vmatprep.mubr.f32.mxu0 0.0
      %v1883 = vand.u32 %v340, 4294901760
      %v1884 = vsub.f32 %v340, %v1883
      %1885 = vmatmul.mubr.f32.gmra.mxu0 %v1884
      %v1886 = vpop.f32.mrf.mxu0
      %v1887 = vadd.f32 %v1405, %v1886
      %v1888 = vpop.f32.mrf.mxu0
      %1889 = vmatprep.mubr.f32.mxu0 0.0
      %v1890 = vand.u32 %v343, 4294901760
      %v1891 = vsub.f32 %v343, %v1890
      %1892 = vmatmul.mubr.f32.gmra.mxu0 %v1891
      %v1893 = vpop.f32.mrf.mxu0
      %v1894 = vadd.f32 %v1411, %v1893
      %v1895 = vpop.f32.mrf.mxu0
      %1896 = vmatprep.mubr.f32.mxu0 0.0
      %v1897 = vand.u32 %v346, 4294901760
      %v1898 = vsub.f32 %v346, %v1897
      %1899 = vmatmul.mubr.f32.gmra.mxu0 %v1898
      %v1900 = vpop.f32.mrf.mxu0
      %v1901 = vadd.f32 %v1417, %v1900
      %v1902 = vpop.f32.mrf.mxu0
      %1903 = vmatprep.mubr.f32.mxu0 0.0
      %v1904 = vand.u32 %v349, 4294901760
      %v1905 = vsub.f32 %v349, %v1904
      %1906 = vmatmul.mubr.f32.gmra.mxu0 %v1905
      %v1907 = vpop.f32.mrf.mxu0
      %v1908 = vadd.f32 %v1423, %v1907
      %v1909 = vpop.f32.mrf.mxu0
      %1910 = vmatprep.mubr.f32.mxu0 0.0
      %v1911 = vand.u32 %v352, 4294901760
      %v1912 = vsub.f32 %v352, %v1911
      %1913 = vmatmul.mubr.f32.gmra.mxu0 %v1912
      %v1914 = vpop.f32.mrf.mxu0
      %v1915 = vadd.f32 %v1429, %v1914
      %v1916 = vpop.f32.mrf.mxu0
      %1917 = vmatprep.mubr.f32.mxu0 0.0
      %v1918 = vand.u32 %v355, 4294901760
      %v1919 = vsub.f32 %v355, %v1918
      %1920 = vmatmul.mubr.f32.gmra.mxu0 %v1919
      %v1921 = vpop.f32.mrf.mxu0
      %v1922 = vadd.f32 %v1435, %v1921
      %v1923 = vpop.f32.mrf.mxu0
      %1924 = vmatprep.mubr.f32.mxu0 0.0
      %v1925 = vand.u32 %v358, 4294901760
      %v1926 = vsub.f32 %v358, %v1925
      %1927 = vmatmul.mubr.f32.gmra.mxu0 %v1926
      %v1928 = vpop.f32.mrf.mxu0
      %v1929 = vadd.f32 %v1441, %v1928
      %v1930 = vpop.f32.mrf.mxu0
      %1931 = vmatprep.mubr.f32.mxu0 0.0
      %v1932 = vand.u32 %v361, 4294901760
      %v1933 = vsub.f32 %v361, %v1932
      %1934 = vmatmul.mubr.f32.gmra.mxu0 %v1933
      %v1935 = vpop.f32.mrf.mxu0
      %v1936 = vadd.f32 %v1447, %v1935
      %v1937 = vpop.f32.mrf.mxu0
      %1938 = vmatprep.mubr.f32.mxu0 0.0
      %v1939 = vand.u32 %v364, 4294901760
      %v1940 = vsub.f32 %v364, %v1939
      %1941 = vmatmul.mubr.f32.gmra.mxu0 %v1940
      %v1942 = vpop.f32.mrf.mxu0
      %v1943 = vadd.f32 %v1453, %v1942
      %v1944 = vpop.f32.mrf.mxu0
      %1945 = vmatprep.mubr.f32.mxu0 0.0
      %v1946 = vand.u32 %v367, 4294901760
      %v1947 = vsub.f32 %v367, %v1946
      %1948 = vmatmul.mubr.f32.gmra.mxu0 %v1947
      %v1949 = vpop.f32.mrf.mxu0
      %v1950 = vadd.f32 %v1459, %v1949
      %v1951 = vpop.f32.mrf.mxu0
      %1952 = vmatprep.mubr.f32.mxu0 0.0
      %v1953 = vand.u32 %v370, 4294901760
      %v1954 = vsub.f32 %v370, %v1953
      %1955 = vmatmul.mubr.f32.gmra.mxu0 %v1954
      %v1956 = vpop.f32.mrf.mxu0
      %v1957 = vadd.f32 %v1465, %v1956
      %v1958 = vpop.f32.mrf.mxu0
      %1959 = vmatprep.mubr.f32.mxu0 0.0
      %v1960 = vand.u32 %v373, 4294901760
      %v1961 = vsub.f32 %v373, %v1960
      %1962 = vmatmul.mubr.f32.gmra.mxu0 %v1961
      %v1963 = vpop.f32.mrf.mxu0
      %v1964 = vadd.f32 %v1471, %v1963
      %v1965 = vpop.f32.mrf.mxu0
      %1966 = vmatprep.mubr.f32.mxu0 0.0
      %v1967 = vand.u32 %v376, 4294901760
      %v1968 = vsub.f32 %v376, %v1967
      %1969 = vmatmul.mubr.f32.gmra.mxu0 %v1968
      %v1970 = vpop.f32.mrf.mxu0
      %v1971 = vadd.f32 %v1477, %v1970
      %v1972 = vpop.f32.mrf.mxu0
      %1973 = vmatprep.mubr.f32.mxu0 0.0
      %v1974 = vand.u32 %v379, 4294901760
      %v1975 = vsub.f32 %v379, %v1974
      %1976 = vmatmul.mubr.f32.gmra.mxu0 %v1975
      %v1977 = vpop.f32.mrf.mxu0
      %v1978 = vadd.f32 %v1483, %v1977
      %v1979 = vpop.f32.mrf.mxu0
      %1980 = vmatprep.mubr.f32.mxu0 0.0
      %v1981 = vand.u32 %v382, 4294901760
      %v1982 = vsub.f32 %v382, %v1981
      %1983 = vmatmul.mubr.f32.gmra.mxu0 %v1982
      %v1984 = vpop.f32.mrf.mxu0
      %v1985 = vadd.f32 %v1489, %v1984
      %v1986 = vpop.f32.mrf.mxu0
      %1987 = vmatprep.mubr.f32.mxu0 0.0
      %v1988 = vand.u32 %v385, 4294901760
      %v1989 = vsub.f32 %v385, %v1988
      %1990 = vmatmul.mubr.f32.gmra.mxu0 %v1989
      %v1991 = vpop.f32.mrf.mxu0
      %v1992 = vadd.f32 %v1495, %v1991
      %v1993 = vpop.f32.mrf.mxu0
      %1994 = vmatprep.mubr.f32.mxu0 0.0
      %v1995 = vand.u32 %v388, 4294901760
      %v1996 = vsub.f32 %v388, %v1995
      %1997 = vmatmul.mubr.f32.gmra.mxu0 %v1996
      %v1998 = vpop.f32.mrf.mxu0
      %v1999 = vadd.f32 %v1501, %v1998
      %v2000 = vpop.f32.mrf.mxu0
      %2001 = vmatprep.mubr.f32.mxu0 0.0
      %v2002 = vand.u32 %v391, 4294901760
      %v2003 = vsub.f32 %v391, %v2002
      %2004 = vmatmul.mubr.f32.gmra.mxu0 %v2003
      %v2005 = vpop.f32.mrf.mxu0
      %v2006 = vadd.f32 %v1507, %v2005
      %v2007 = vpop.f32.mrf.mxu0
      %2008 = vmatprep.mubr.f32.mxu0 0.0
      %v2009 = vand.u32 %v394, 4294901760
      %v2010 = vsub.f32 %v394, %v2009
      %2011 = vmatmul.mubr.f32.gmra.mxu0 %v2010
      %v2012 = vpop.f32.mrf.mxu0
      %v2013 = vadd.f32 %v1513, %v2012
      %v2014 = vpop.f32.mrf.mxu0
      %2015 = vmatprep.mubr.f32.mxu0 0.0
      %v2016 = vand.u32 %v397, 4294901760
      %v2017 = vsub.f32 %v397, %v2016
      %2018 = vmatmul.mubr.f32.gmra.mxu0 %v2017
      %v2019 = vpop.f32.mrf.mxu0
      %v2020 = vadd.f32 %v1519, %v2019
      %v2021 = vpop.f32.mrf.mxu0
      %2022 = vmatprep.mubr.f32.mxu0 0.0
      %v2023 = vand.u32 %v400, 4294901760
      %v2024 = vsub.f32 %v400, %v2023
      %2025 = vmatmul.mubr.f32.gmra.mxu0 %v2024
      %v2026 = vpop.f32.mrf.mxu0
      %v2027 = vadd.f32 %v1525, %v2026
      %v2028 = vpop.f32.mrf.mxu0
      %2029 = vmatprep.mubr.f32.mxu0 0.0
      %v2030 = vand.u32 %v403, 4294901760
      %v2031 = vsub.f32 %v403, %v2030
      %2032 = vmatmul.mubr.f32.gmra.mxu0 %v2031
      %v2033 = vpop.f32.mrf.mxu0
      %v2034 = vadd.f32 %v1531, %v2033
      %v2035 = vpop.f32.mrf.mxu0
      %2036 = vmatprep.mubr.f32.mxu0 0.0
      %v2037 = vand.u32 %v406, 4294901760
      %v2038 = vsub.f32 %v406, %v2037
      %2039 = vmatmul.mubr.f32.gmra.mxu0 %v2038
      %v2040 = vpop.f32.mrf.mxu0
      %v2041 = vadd.f32 %v1537, %v2040
      %v2042 = vpop.f32.mrf.mxu0
      %2043 = vmatprep.mubr.f32.mxu0 0.0
      %v2044 = vand.u32 %v409, 4294901760
      %v2045 = vsub.f32 %v409, %v2044
      %2046 = vmatmul.mubr.f32.gmra.mxu0 %v2045
      %v2047 = vpop.f32.mrf.mxu0
      %v2048 = vadd.f32 %v1543, %v2047
      %v2049 = vpop.f32.mrf.mxu0
      %2050 = vmatprep.mubr.f32.mxu0 0.0
      %v2051 = vand.u32 %v412, 4294901760
      %v2052 = vsub.f32 %v412, %v2051
      %2053 = vmatmul.mubr.f32.gmra.mxu0 %v2052
      %v2054 = vpop.f32.mrf.mxu0
      %v2055 = vadd.f32 %v1549, %v2054
      %v2056 = vpop.f32.mrf.mxu0
      %2057 = vmatprep.mubr.f32.mxu0 0.0
      %v2058 = vand.u32 %v415, 4294901760
      %v2059 = vsub.f32 %v415, %v2058
      %2060 = vmatmul.mubr.f32.gmra.mxu0 %v2059
      %v2061 = vpop.f32.mrf.mxu0
      %v2062 = vadd.f32 %v1555, %v2061
      %v2063 = vpop.f32.mrf.mxu0
      %2064 = vmatprep.mubr.f32.mxu0 0.0
      %v2065 = vand.u32 %v418, 4294901760
      %v2066 = vsub.f32 %v418, %v2065
      %2067 = vmatmul.mubr.f32.gmra.mxu0 %v2066
      %v2068 = vpop.f32.mrf.mxu0
      %v2069 = vadd.f32 %v1561, %v2068
      %v2070 = vpop.f32.mrf.mxu0
      %2071 = vmatprep.mubr.f32.mxu0 0.0
      %v2072 = vand.u32 %v421, 4294901760
      %v2073 = vsub.f32 %v421, %v2072
      %2074 = vmatmul.mubr.f32.gmra.mxu0 %v2073
      %v2075 = vpop.f32.mrf.mxu0
      %v2076 = vadd.f32 %v1567, %v2075
      %v2077 = vpop.f32.mrf.mxu0
      %2078 = vmatprep.mubr.f32.mxu0 0.0
      %v2079 = vand.u32 %v424, 4294901760
      %v2080 = vsub.f32 %v424, %v2079
      %2081 = vmatmul.mubr.f32.gmra.mxu0 %v2080
      %v2082 = vpop.f32.mrf.mxu0
      %v2083 = vadd.f32 %v1573, %v2082
      %v2084 = vpop.f32.mrf.mxu0
      %2085 = vmatprep.mubr.f32.mxu0 0.0
      %v2086 = vand.u32 %v427, 4294901760
      %v2087 = vsub.f32 %v427, %v2086
      %2088 = vmatmul.mubr.f32.gmra.mxu0 %v2087
      %v2089 = vpop.f32.mrf.mxu0
      %v2090 = vadd.f32 %v1579, %v2089
      %v2091 = vpop.f32.mrf.mxu0
      %2092 = vmatprep.mubr.f32.mxu0 0.0
      %v2093 = vand.u32 %v430, 4294901760
      %v2094 = vsub.f32 %v430, %v2093
      %2095 = vmatmul.mubr.f32.gmra.mxu0 %v2094
      %v2096 = vpop.f32.mrf.mxu0
      %v2097 = vadd.f32 %v1585, %v2096
      %v2098 = vpop.f32.mrf.mxu0
      %2099 = vmatprep.mubr.f32.mxu0 0.0
      %v2100 = vand.u32 %v433, 4294901760
      %v2101 = vsub.f32 %v433, %v2100
      %2102 = vmatmul.mubr.f32.gmra.mxu0 %v2101
      %v2103 = vpop.f32.mrf.mxu0
      %v2104 = vadd.f32 %v1591, %v2103
      %v2105 = vpop.f32.mrf.mxu0
      %2106 = vmatprep.mubr.f32.mxu0 0.0
      %v2107 = vand.u32 %v436, 4294901760
      %v2108 = vsub.f32 %v436, %v2107
      %2109 = vmatmul.mubr.f32.gmra.mxu0 %v2108
      %v2110 = vpop.f32.mrf.mxu0
      %v2111 = vadd.f32 %v1597, %v2110
      %v2112 = vpop.f32.mrf.mxu0
      %2113 = vdwg.mxu0
      %2114 = vmatprep.subr.mxu0 0.0
      %2115 = vmatpush1.msra.mxu0 0.0
      %2116 = vmatprep.subr.mxu0 0.0
      %2117 = vmatpush1.msra.mxu0 0.0
      %2118 = vmatprep.subr.mxu0 0.0
      %2119 = vmatpush1.msra.mxu0 0.0
      %2120 = vmatprep.subr.mxu0 0.0
      %2121 = vmatpush1.msra.mxu0 0.0
      %2122 = vmatprep.subr.mxu0 0.0
      %2123 = vmatpush1.msra.mxu0 0.0
      %2124 = vmatprep.subr.mxu0 0.0
      %2125 = vmatpush1.msra.mxu0 0.0
      %2126 = vmatprep.subr.mxu0 0.0
      %2127 = vmatpush1.msra.mxu0 0.0
      %2128 = vmatprep.subr.mxu0 0.0
      %2129 = vmatpush1.msra.mxu0 0.0
      %2130 = vmatprep.subr.mxu0 0.0
      %2131 = vmatpush1.msra.mxu0 0.0
      %2132 = vmatprep.subr.mxu0 0.0
      %2133 = vmatpush1.msra.mxu0 0.0
      %2134 = vmatprep.subr.mxu0 0.0
      %2135 = vmatpush1.msra.mxu0 0.0
      %2136 = vmatprep.subr.mxu0 0.0
      %2137 = vmatpush1.msra.mxu0 0.0
      %2138 = vmatprep.subr.mxu0 0.0
      %v2139 = vand.u32 %v240, 4294901760
      %2140 = vmatpush1.msra.mxu0 %v2139
      %2141 = vmatprep.subr.mxu0 0.0
      %v2142 = vand.u32 %v239, 4294901760
      %2143 = vmatpush1.msra.mxu0 %v2142
      %2144 = vmatprep.subr.mxu0 0.0
      %v2145 = vand.u32 %v238, 4294901760
      %2146 = vmatpush1.msra.mxu0 %v2145
      %2147 = vmatprep.subr.mxu0 0.0
      %v2148 = vand.u32 %v237, 4294901760
      %2149 = vmatpush1.msra.mxu0 %v2148
      %2150 = vmatprep.subr.mxu0 0.0
      %2151 = vmatpush2.msra.mxu0 0.0
      %2152 = vmatprep.subr.mxu0 0.0
      %2153 = vmatpush2.msra.mxu0 0.0
      %2154 = vmatprep.subr.mxu0 0.0
      %2155 = vmatpush2.msra.mxu0 0.0
      %2156 = vmatprep.subr.mxu0 0.0
      %2157 = vmatpush2.msra.mxu0 0.0
      %2158 = vmatprep.subr.mxu0 0.0
      %2159 = vmatpush2.msra.mxu0 0.0
      %2160 = vmatprep.subr.mxu0 0.0
      %2161 = vmatpush2.msra.mxu0 0.0
      %2162 = vmatprep.subr.mxu0 0.0
      %2163 = vmatpush2.msra.mxu0 0.0
      %2164 = vmatprep.subr.mxu0 0.0
      %2165 = vmatpush2.msra.mxu0 0.0
      %2166 = vmatprep.subr.mxu0 0.0
      %2167 = vmatpush2.msra.mxu0 0.0
      %2168 = vmatprep.subr.mxu0 0.0
      %2169 = vmatpush2.msra.mxu0 0.0
      %2170 = vmatprep.subr.mxu0 0.0
      %2171 = vmatpush2.msra.mxu0 0.0
      %2172 = vmatprep.subr.mxu0 0.0
      %2173 = vmatpush2.msra.mxu0 0.0
      %2174 = vmatprep.subr.mxu0 0.0
      %2175 = vmatpush2.msra.mxu0 0.0
      %2176 = vmatprep.subr.mxu0 0.0
      %2177 = vmatpush2.msra.mxu0 0.0
      %2178 = vmatprep.subr.mxu0 0.0
      %2179 = vmatpush2.msra.mxu0 0.0
      %2180 = vmatprep.subr.mxu0 0.0
      %2181 = vmatpush2.msra.mxu0 0.0
      %2182 = vmatprep.mubr.f32.mxu0 0.0
      %v2183 = vand.u32 %v250, 4294901760
      %v2184 = vsub.f32 %v250, %v2183
      %v2185 = vand.u32 %v2184, 4294901760
      %2186 = vmatmul.mubr.f32.gmra.mxu0 %v2185
      %v2187 = vpop.f32.mrf.mxu0
      %v2188 = vadd.f32 %v1677, %v2187
      %v2189 = vpop.f32.mrf.mxu0
      %2190 = vmatprep.mubr.f32.mxu0 0.0
      %v2191 = vand.u32 %v253, 4294901760
      %v2192 = vsub.f32 %v253, %v2191
      %v2193 = vand.u32 %v2192, 4294901760
      %2194 = vmatmul.mubr.f32.gmra.mxu0 %v2193
      %v2195 = vpop.f32.mrf.mxu0
      %v2196 = vadd.f32 %v1684, %v2195
      %v2197 = vpop.f32.mrf.mxu0
      %2198 = vmatprep.mubr.f32.mxu0 0.0
      %v2199 = vand.u32 %v256, 4294901760
      %v2200 = vsub.f32 %v256, %v2199
      %v2201 = vand.u32 %v2200, 4294901760
      %2202 = vmatmul.mubr.f32.gmra.mxu0 %v2201
      %v2203 = vpop.f32.mrf.mxu0
      %v2204 = vadd.f32 %v1691, %v2203
      %v2205 = vpop.f32.mrf.mxu0
      %2206 = vmatprep.mubr.f32.mxu0 0.0
      %v2207 = vand.u32 %v259, 4294901760
      %v2208 = vsub.f32 %v259, %v2207
      %v2209 = vand.u32 %v2208, 4294901760
      %2210 = vmatmul.mubr.f32.gmra.mxu0 %v2209
      %v2211 = vpop.f32.mrf.mxu0
      %v2212 = vadd.f32 %v1698, %v2211
      %v2213 = vpop.f32.mrf.mxu0
      %2214 = vmatprep.mubr.f32.mxu0 0.0
      %v2215 = vand.u32 %v262, 4294901760
      %v2216 = vsub.f32 %v262, %v2215
      %v2217 = vand.u32 %v2216, 4294901760
      %2218 = vmatmul.mubr.f32.gmra.mxu0 %v2217
      %v2219 = vpop.f32.mrf.mxu0
      %v2220 = vadd.f32 %v1705, %v2219
      %v2221 = vpop.f32.mrf.mxu0
      %2222 = vmatprep.mubr.f32.mxu0 0.0
      %v2223 = vand.u32 %v265, 4294901760
      %v2224 = vsub.f32 %v265, %v2223
      %v2225 = vand.u32 %v2224, 4294901760
      %2226 = vmatmul.mubr.f32.gmra.mxu0 %v2225
      %v2227 = vpop.f32.mrf.mxu0
      %v2228 = vadd.f32 %v1712, %v2227
      %v2229 = vpop.f32.mrf.mxu0
      %2230 = vmatprep.mubr.f32.mxu0 0.0
      %v2231 = vand.u32 %v268, 4294901760
      %v2232 = vsub.f32 %v268, %v2231
      %v2233 = vand.u32 %v2232, 4294901760
      %2234 = vmatmul.mubr.f32.gmra.mxu0 %v2233
      %v2235 = vpop.f32.mrf.mxu0
      %v2236 = vadd.f32 %v1719, %v2235
      %v2237 = vpop.f32.mrf.mxu0
      %2238 = vmatprep.mubr.f32.mxu0 0.0
      %v2239 = vand.u32 %v271, 4294901760
      %v2240 = vsub.f32 %v271, %v2239
      %v2241 = vand.u32 %v2240, 4294901760
      %2242 = vmatmul.mubr.f32.gmra.mxu0 %v2241
      %v2243 = vpop.f32.mrf.mxu0
      %v2244 = vadd.f32 %v1726, %v2243
      %v2245 = vpop.f32.mrf.mxu0
      %2246 = vmatprep.mubr.f32.mxu0 0.0
      %v2247 = vand.u32 %v274, 4294901760
      %v2248 = vsub.f32 %v274, %v2247
      %v2249 = vand.u32 %v2248, 4294901760
      %2250 = vmatmul.mubr.f32.gmra.mxu0 %v2249
      %v2251 = vpop.f32.mrf.mxu0
      %v2252 = vadd.f32 %v1733, %v2251
      %v2253 = vpop.f32.mrf.mxu0
      %2254 = vmatprep.mubr.f32.mxu0 0.0
      %v2255 = vand.u32 %v277, 4294901760
      %v2256 = vsub.f32 %v277, %v2255
      %v2257 = vand.u32 %v2256, 4294901760
      %2258 = vmatmul.mubr.f32.gmra.mxu0 %v2257
      %v2259 = vpop.f32.mrf.mxu0
      %v2260 = vadd.f32 %v1740, %v2259
      %v2261 = vpop.f32.mrf.mxu0
      %2262 = vmatprep.mubr.f32.mxu0 0.0
      %v2263 = vand.u32 %v280, 4294901760
      %v2264 = vsub.f32 %v280, %v2263
      %v2265 = vand.u32 %v2264, 4294901760
      %2266 = vmatmul.mubr.f32.gmra.mxu0 %v2265
      %v2267 = vpop.f32.mrf.mxu0
      %v2268 = vadd.f32 %v1747, %v2267
      %v2269 = vpop.f32.mrf.mxu0
      %2270 = vmatprep.mubr.f32.mxu0 0.0
      %v2271 = vand.u32 %v283, 4294901760
      %v2272 = vsub.f32 %v283, %v2271
      %v2273 = vand.u32 %v2272, 4294901760
      %2274 = vmatmul.mubr.f32.gmra.mxu0 %v2273
      %v2275 = vpop.f32.mrf.mxu0
      %v2276 = vadd.f32 %v1754, %v2275
      %v2277 = vpop.f32.mrf.mxu0
      %2278 = vmatprep.mubr.f32.mxu0 0.0
      %v2279 = vand.u32 %v286, 4294901760
      %v2280 = vsub.f32 %v286, %v2279
      %v2281 = vand.u32 %v2280, 4294901760
      %2282 = vmatmul.mubr.f32.gmra.mxu0 %v2281
      %v2283 = vpop.f32.mrf.mxu0
      %v2284 = vadd.f32 %v1761, %v2283
      %v2285 = vpop.f32.mrf.mxu0
      %2286 = vmatprep.mubr.f32.mxu0 0.0
      %v2287 = vand.u32 %v289, 4294901760
      %v2288 = vsub.f32 %v289, %v2287
      %v2289 = vand.u32 %v2288, 4294901760
      %2290 = vmatmul.mubr.f32.gmra.mxu0 %v2289
      %v2291 = vpop.f32.mrf.mxu0
      %v2292 = vadd.f32 %v1768, %v2291
      %v2293 = vpop.f32.mrf.mxu0
      %2294 = vmatprep.mubr.f32.mxu0 0.0
      %v2295 = vand.u32 %v292, 4294901760
      %v2296 = vsub.f32 %v292, %v2295
      %v2297 = vand.u32 %v2296, 4294901760
      %2298 = vmatmul.mubr.f32.gmra.mxu0 %v2297
      %v2299 = vpop.f32.mrf.mxu0
      %v2300 = vadd.f32 %v1775, %v2299
      %v2301 = vpop.f32.mrf.mxu0
      %2302 = vmatprep.mubr.f32.mxu0 0.0
      %v2303 = vand.u32 %v295, 4294901760
      %v2304 = vsub.f32 %v295, %v2303
      %v2305 = vand.u32 %v2304, 4294901760
      %2306 = vmatmul.mubr.f32.gmra.mxu0 %v2305
      %v2307 = vpop.f32.mrf.mxu0
      %v2308 = vadd.f32 %v1782, %v2307
      %v2309 = vpop.f32.mrf.mxu0
      %2310 = vmatprep.mubr.f32.mxu0 0.0
      %v2311 = vand.u32 %v298, 4294901760
      %v2312 = vsub.f32 %v298, %v2311
      %v2313 = vand.u32 %v2312, 4294901760
      %2314 = vmatmul.mubr.f32.gmra.mxu0 %v2313
      %v2315 = vpop.f32.mrf.mxu0
      %v2316 = vadd.f32 %v1789, %v2315
      %v2317 = vpop.f32.mrf.mxu0
      %2318 = vmatprep.mubr.f32.mxu0 0.0
      %v2319 = vand.u32 %v301, 4294901760
      %v2320 = vsub.f32 %v301, %v2319
      %v2321 = vand.u32 %v2320, 4294901760
      %2322 = vmatmul.mubr.f32.gmra.mxu0 %v2321
      %v2323 = vpop.f32.mrf.mxu0
      %v2324 = vadd.f32 %v1796, %v2323
      %v2325 = vpop.f32.mrf.mxu0
      %2326 = vmatprep.mubr.f32.mxu0 0.0
      %v2327 = vand.u32 %v304, 4294901760
      %v2328 = vsub.f32 %v304, %v2327
      %v2329 = vand.u32 %v2328, 4294901760
      %2330 = vmatmul.mubr.f32.gmra.mxu0 %v2329
      %v2331 = vpop.f32.mrf.mxu0
      %v2332 = vadd.f32 %v1803, %v2331
      %v2333 = vpop.f32.mrf.mxu0
      %2334 = vmatprep.mubr.f32.mxu0 0.0
      %v2335 = vand.u32 %v307, 4294901760
      %v2336 = vsub.f32 %v307, %v2335
      %v2337 = vand.u32 %v2336, 4294901760
      %2338 = vmatmul.mubr.f32.gmra.mxu0 %v2337
      %v2339 = vpop.f32.mrf.mxu0
      %v2340 = vadd.f32 %v1810, %v2339
      %v2341 = vpop.f32.mrf.mxu0
      %2342 = vmatprep.mubr.f32.mxu0 0.0
      %v2343 = vand.u32 %v310, 4294901760
      %v2344 = vsub.f32 %v310, %v2343
      %v2345 = vand.u32 %v2344, 4294901760
      %2346 = vmatmul.mubr.f32.gmra.mxu0 %v2345
      %v2347 = vpop.f32.mrf.mxu0
      %v2348 = vadd.f32 %v1817, %v2347
      %v2349 = vpop.f32.mrf.mxu0
      %2350 = vmatprep.mubr.f32.mxu0 0.0
      %v2351 = vand.u32 %v313, 4294901760
      %v2352 = vsub.f32 %v313, %v2351
      %v2353 = vand.u32 %v2352, 4294901760
      %2354 = vmatmul.mubr.f32.gmra.mxu0 %v2353
      %v2355 = vpop.f32.mrf.mxu0
      %v2356 = vadd.f32 %v1824, %v2355
      %v2357 = vpop.f32.mrf.mxu0
      %2358 = vmatprep.mubr.f32.mxu0 0.0
      %v2359 = vand.u32 %v316, 4294901760
      %v2360 = vsub.f32 %v316, %v2359
      %v2361 = vand.u32 %v2360, 4294901760
      %2362 = vmatmul.mubr.f32.gmra.mxu0 %v2361
      %v2363 = vpop.f32.mrf.mxu0
      %v2364 = vadd.f32 %v1831, %v2363
      %v2365 = vpop.f32.mrf.mxu0
      %2366 = vmatprep.mubr.f32.mxu0 0.0
      %v2367 = vand.u32 %v319, 4294901760
      %v2368 = vsub.f32 %v319, %v2367
      %v2369 = vand.u32 %v2368, 4294901760
      %2370 = vmatmul.mubr.f32.gmra.mxu0 %v2369
      %v2371 = vpop.f32.mrf.mxu0
      %v2372 = vadd.f32 %v1838, %v2371
      %v2373 = vpop.f32.mrf.mxu0
      %2374 = vmatprep.mubr.f32.mxu0 0.0
      %v2375 = vand.u32 %v322, 4294901760
      %v2376 = vsub.f32 %v322, %v2375
      %v2377 = vand.u32 %v2376, 4294901760
      %2378 = vmatmul.mubr.f32.gmra.mxu0 %v2377
      %v2379 = vpop.f32.mrf.mxu0
      %v2380 = vadd.f32 %v1845, %v2379
      %v2381 = vpop.f32.mrf.mxu0
      %2382 = vmatprep.mubr.f32.mxu0 0.0
      %v2383 = vand.u32 %v325, 4294901760
      %v2384 = vsub.f32 %v325, %v2383
      %v2385 = vand.u32 %v2384, 4294901760
      %2386 = vmatmul.mubr.f32.gmra.mxu0 %v2385
      %v2387 = vpop.f32.mrf.mxu0
      %v2388 = vadd.f32 %v1852, %v2387
      %v2389 = vpop.f32.mrf.mxu0
      %2390 = vmatprep.mubr.f32.mxu0 0.0
      %v2391 = vand.u32 %v328, 4294901760
      %v2392 = vsub.f32 %v328, %v2391
      %v2393 = vand.u32 %v2392, 4294901760
      %2394 = vmatmul.mubr.f32.gmra.mxu0 %v2393
      %v2395 = vpop.f32.mrf.mxu0
      %v2396 = vadd.f32 %v1859, %v2395
      %v2397 = vpop.f32.mrf.mxu0
      %2398 = vmatprep.mubr.f32.mxu0 0.0
      %v2399 = vand.u32 %v331, 4294901760
      %v2400 = vsub.f32 %v331, %v2399
      %v2401 = vand.u32 %v2400, 4294901760
      %2402 = vmatmul.mubr.f32.gmra.mxu0 %v2401
      %v2403 = vpop.f32.mrf.mxu0
      %v2404 = vadd.f32 %v1866, %v2403
      %v2405 = vpop.f32.mrf.mxu0
      %2406 = vmatprep.mubr.f32.mxu0 0.0
      %v2407 = vand.u32 %v334, 4294901760
      %v2408 = vsub.f32 %v334, %v2407
      %v2409 = vand.u32 %v2408, 4294901760
      %2410 = vmatmul.mubr.f32.gmra.mxu0 %v2409
      %v2411 = vpop.f32.mrf.mxu0
      %v2412 = vadd.f32 %v1873, %v2411
      %v2413 = vpop.f32.mrf.mxu0
      %2414 = vmatprep.mubr.f32.mxu0 0.0
      %v2415 = vand.u32 %v337, 4294901760
      %v2416 = vsub.f32 %v337, %v2415
      %v2417 = vand.u32 %v2416, 4294901760
      %2418 = vmatmul.mubr.f32.gmra.mxu0 %v2417
      %v2419 = vpop.f32.mrf.mxu0
      %v2420 = vadd.f32 %v1880, %v2419
      %v2421 = vpop.f32.mrf.mxu0
      %2422 = vmatprep.mubr.f32.mxu0 0.0
      %v2423 = vand.u32 %v340, 4294901760
      %v2424 = vsub.f32 %v340, %v2423
      %v2425 = vand.u32 %v2424, 4294901760
      %2426 = vmatmul.mubr.f32.gmra.mxu0 %v2425
      %v2427 = vpop.f32.mrf.mxu0
      %v2428 = vadd.f32 %v1887, %v2427
      %v2429 = vpop.f32.mrf.mxu0
      %2430 = vmatprep.mubr.f32.mxu0 0.0
      %v2431 = vand.u32 %v343, 4294901760
      %v2432 = vsub.f32 %v343, %v2431
      %v2433 = vand.u32 %v2432, 4294901760
      %2434 = vmatmul.mubr.f32.gmra.mxu0 %v2433
      %v2435 = vpop.f32.mrf.mxu0
      %v2436 = vadd.f32 %v1894, %v2435
      %v2437 = vpop.f32.mrf.mxu0
      %2438 = vmatprep.mubr.f32.mxu0 0.0
      %v2439 = vand.u32 %v346, 4294901760
      %v2440 = vsub.f32 %v346, %v2439
      %v2441 = vand.u32 %v2440, 4294901760
      %2442 = vmatmul.mubr.f32.gmra.mxu0 %v2441
      %v2443 = vpop.f32.mrf.mxu0
      %v2444 = vadd.f32 %v1901, %v2443
      %v2445 = vpop.f32.mrf.mxu0
      %2446 = vmatprep.mubr.f32.mxu0 0.0
      %v2447 = vand.u32 %v349, 4294901760
      %v2448 = vsub.f32 %v349, %v2447
      %v2449 = vand.u32 %v2448, 4294901760
      %2450 = vmatmul.mubr.f32.gmra.mxu0 %v2449
      %v2451 = vpop.f32.mrf.mxu0
      %v2452 = vadd.f32 %v1908, %v2451
      %v2453 = vpop.f32.mrf.mxu0
      %2454 = vmatprep.mubr.f32.mxu0 0.0
      %v2455 = vand.u32 %v352, 4294901760
      %v2456 = vsub.f32 %v352, %v2455
      %v2457 = vand.u32 %v2456, 4294901760
      %2458 = vmatmul.mubr.f32.gmra.mxu0 %v2457
      %v2459 = vpop.f32.mrf.mxu0
      %v2460 = vadd.f32 %v1915, %v2459
      %v2461 = vpop.f32.mrf.mxu0
      %2462 = vmatprep.mubr.f32.mxu0 0.0
      %v2463 = vand.u32 %v355, 4294901760
      %v2464 = vsub.f32 %v355, %v2463
      %v2465 = vand.u32 %v2464, 4294901760
      %2466 = vmatmul.mubr.f32.gmra.mxu0 %v2465
      %v2467 = vpop.f32.mrf.mxu0
      %v2468 = vadd.f32 %v1922, %v2467
      %v2469 = vpop.f32.mrf.mxu0
      %2470 = vmatprep.mubr.f32.mxu0 0.0
      %v2471 = vand.u32 %v358, 4294901760
      %v2472 = vsub.f32 %v358, %v2471
      %v2473 = vand.u32 %v2472, 4294901760
      %2474 = vmatmul.mubr.f32.gmra.mxu0 %v2473
      %v2475 = vpop.f32.mrf.mxu0
      %v2476 = vadd.f32 %v1929, %v2475
      %v2477 = vpop.f32.mrf.mxu0
      %2478 = vmatprep.mubr.f32.mxu0 0.0
      %v2479 = vand.u32 %v361, 4294901760
      %v2480 = vsub.f32 %v361, %v2479
      %v2481 = vand.u32 %v2480, 4294901760
      %2482 = vmatmul.mubr.f32.gmra.mxu0 %v2481
      %v2483 = vpop.f32.mrf.mxu0
      %v2484 = vadd.f32 %v1936, %v2483
      %v2485 = vpop.f32.mrf.mxu0
      %2486 = vmatprep.mubr.f32.mxu0 0.0
      %v2487 = vand.u32 %v364, 4294901760
      %v2488 = vsub.f32 %v364, %v2487
      %v2489 = vand.u32 %v2488, 4294901760
      %2490 = vmatmul.mubr.f32.gmra.mxu0 %v2489
      %v2491 = vpop.f32.mrf.mxu0
      %v2492 = vadd.f32 %v1943, %v2491
      %v2493 = vpop.f32.mrf.mxu0
      %2494 = vmatprep.mubr.f32.mxu0 0.0
      %v2495 = vand.u32 %v367, 4294901760
      %v2496 = vsub.f32 %v367, %v2495
      %v2497 = vand.u32 %v2496, 4294901760
      %2498 = vmatmul.mubr.f32.gmra.mxu0 %v2497
      %v2499 = vpop.f32.mrf.mxu0
      %v2500 = vadd.f32 %v1950, %v2499
      %v2501 = vpop.f32.mrf.mxu0
      %2502 = vmatprep.mubr.f32.mxu0 0.0
      %v2503 = vand.u32 %v370, 4294901760
      %v2504 = vsub.f32 %v370, %v2503
      %v2505 = vand.u32 %v2504, 4294901760
      %2506 = vmatmul.mubr.f32.gmra.mxu0 %v2505
      %v2507 = vpop.f32.mrf.mxu0
      %v2508 = vadd.f32 %v1957, %v2507
      %v2509 = vpop.f32.mrf.mxu0
      %2510 = vmatprep.mubr.f32.mxu0 0.0
      %v2511 = vand.u32 %v373, 4294901760
      %v2512 = vsub.f32 %v373, %v2511
      %v2513 = vand.u32 %v2512, 4294901760
      %2514 = vmatmul.mubr.f32.gmra.mxu0 %v2513
      %v2515 = vpop.f32.mrf.mxu0
      %v2516 = vadd.f32 %v1964, %v2515
      %v2517 = vpop.f32.mrf.mxu0
      %2518 = vmatprep.mubr.f32.mxu0 0.0
      %v2519 = vand.u32 %v376, 4294901760
      %v2520 = vsub.f32 %v376, %v2519
      %v2521 = vand.u32 %v2520, 4294901760
      %2522 = vmatmul.mubr.f32.gmra.mxu0 %v2521
      %v2523 = vpop.f32.mrf.mxu0
      %v2524 = vadd.f32 %v1971, %v2523
      %v2525 = vpop.f32.mrf.mxu0
      %2526 = vmatprep.mubr.f32.mxu0 0.0
      %v2527 = vand.u32 %v379, 4294901760
      %v2528 = vsub.f32 %v379, %v2527
      %v2529 = vand.u32 %v2528, 4294901760
      %2530 = vmatmul.mubr.f32.gmra.mxu0 %v2529
      %v2531 = vpop.f32.mrf.mxu0
      %v2532 = vadd.f32 %v1978, %v2531
      %v2533 = vpop.f32.mrf.mxu0
      %2534 = vmatprep.mubr.f32.mxu0 0.0
      %v2535 = vand.u32 %v382, 4294901760
      %v2536 = vsub.f32 %v382, %v2535
      %v2537 = vand.u32 %v2536, 4294901760
      %2538 = vmatmul.mubr.f32.gmra.mxu0 %v2537
      %v2539 = vpop.f32.mrf.mxu0
      %v2540 = vadd.f32 %v1985, %v2539
      %v2541 = vpop.f32.mrf.mxu0
      %2542 = vmatprep.mubr.f32.mxu0 0.0
      %v2543 = vand.u32 %v385, 4294901760
      %v2544 = vsub.f32 %v385, %v2543
      %v2545 = vand.u32 %v2544, 4294901760
      %2546 = vmatmul.mubr.f32.gmra.mxu0 %v2545
      %v2547 = vpop.f32.mrf.mxu0
      %v2548 = vadd.f32 %v1992, %v2547
      %v2549 = vpop.f32.mrf.mxu0
      %2550 = vmatprep.mubr.f32.mxu0 0.0
      %v2551 = vand.u32 %v388, 4294901760
      %v2552 = vsub.f32 %v388, %v2551
      %v2553 = vand.u32 %v2552, 4294901760
      %2554 = vmatmul.mubr.f32.gmra.mxu0 %v2553
      %v2555 = vpop.f32.mrf.mxu0
      %v2556 = vadd.f32 %v1999, %v2555
      %v2557 = vpop.f32.mrf.mxu0
      %2558 = vmatprep.mubr.f32.mxu0 0.0
      %v2559 = vand.u32 %v391, 4294901760
      %v2560 = vsub.f32 %v391, %v2559
      %v2561 = vand.u32 %v2560, 4294901760
      %2562 = vmatmul.mubr.f32.gmra.mxu0 %v2561
      %v2563 = vpop.f32.mrf.mxu0
      %v2564 = vadd.f32 %v2006, %v2563
      %v2565 = vpop.f32.mrf.mxu0
      %2566 = vmatprep.mubr.f32.mxu0 0.0
      %v2567 = vand.u32 %v394, 4294901760
      %v2568 = vsub.f32 %v394, %v2567
      %v2569 = vand.u32 %v2568, 4294901760
      %2570 = vmatmul.mubr.f32.gmra.mxu0 %v2569
      %v2571 = vpop.f32.mrf.mxu0
      %v2572 = vadd.f32 %v2013, %v2571
      %v2573 = vpop.f32.mrf.mxu0
      %2574 = vmatprep.mubr.f32.mxu0 0.0
      %v2575 = vand.u32 %v397, 4294901760
      %v2576 = vsub.f32 %v397, %v2575
      %v2577 = vand.u32 %v2576, 4294901760
      %2578 = vmatmul.mubr.f32.gmra.mxu0 %v2577
      %v2579 = vpop.f32.mrf.mxu0
      %v2580 = vadd.f32 %v2020, %v2579
      %v2581 = vpop.f32.mrf.mxu0
      %2582 = vmatprep.mubr.f32.mxu0 0.0
      %v2583 = vand.u32 %v400, 4294901760
      %v2584 = vsub.f32 %v400, %v2583
      %v2585 = vand.u32 %v2584, 4294901760
      %2586 = vmatmul.mubr.f32.gmra.mxu0 %v2585
      %v2587 = vpop.f32.mrf.mxu0
      %v2588 = vadd.f32 %v2027, %v2587
      %v2589 = vpop.f32.mrf.mxu0
      %2590 = vmatprep.mubr.f32.mxu0 0.0
      %v2591 = vand.u32 %v403, 4294901760
      %v2592 = vsub.f32 %v403, %v2591
      %v2593 = vand.u32 %v2592, 4294901760
      %2594 = vmatmul.mubr.f32.gmra.mxu0 %v2593
      %v2595 = vpop.f32.mrf.mxu0
      %v2596 = vadd.f32 %v2034, %v2595
      %v2597 = vpop.f32.mrf.mxu0
      %2598 = vmatprep.mubr.f32.mxu0 0.0
      %v2599 = vand.u32 %v406, 4294901760
      %v2600 = vsub.f32 %v406, %v2599
      %v2601 = vand.u32 %v2600, 4294901760
      %2602 = vmatmul.mubr.f32.gmra.mxu0 %v2601
      %v2603 = vpop.f32.mrf.mxu0
      %v2604 = vadd.f32 %v2041, %v2603
      %v2605 = vpop.f32.mrf.mxu0
      %2606 = vmatprep.mubr.f32.mxu0 0.0
      %v2607 = vand.u32 %v409, 4294901760
      %v2608 = vsub.f32 %v409, %v2607
      %v2609 = vand.u32 %v2608, 4294901760
      %2610 = vmatmul.mubr.f32.gmra.mxu0 %v2609
      %v2611 = vpop.f32.mrf.mxu0
      %v2612 = vadd.f32 %v2048, %v2611
      %v2613 = vpop.f32.mrf.mxu0
      %2614 = vmatprep.mubr.f32.mxu0 0.0
      %v2615 = vand.u32 %v412, 4294901760
      %v2616 = vsub.f32 %v412, %v2615
      %v2617 = vand.u32 %v2616, 4294901760
      %2618 = vmatmul.mubr.f32.gmra.mxu0 %v2617
      %v2619 = vpop.f32.mrf.mxu0
      %v2620 = vadd.f32 %v2055, %v2619
      %v2621 = vpop.f32.mrf.mxu0
      %2622 = vmatprep.mubr.f32.mxu0 0.0
      %v2623 = vand.u32 %v415, 4294901760
      %v2624 = vsub.f32 %v415, %v2623
      %v2625 = vand.u32 %v2624, 4294901760
      %2626 = vmatmul.mubr.f32.gmra.mxu0 %v2625
      %v2627 = vpop.f32.mrf.mxu0
      %v2628 = vadd.f32 %v2062, %v2627
      %v2629 = vpop.f32.mrf.mxu0
      %2630 = vmatprep.mubr.f32.mxu0 0.0
      %v2631 = vand.u32 %v418, 4294901760
      %v2632 = vsub.f32 %v418, %v2631
      %v2633 = vand.u32 %v2632, 4294901760
      %2634 = vmatmul.mubr.f32.gmra.mxu0 %v2633
      %v2635 = vpop.f32.mrf.mxu0
      %v2636 = vadd.f32 %v2069, %v2635
      %v2637 = vpop.f32.mrf.mxu0
      %2638 = vmatprep.mubr.f32.mxu0 0.0
      %v2639 = vand.u32 %v421, 4294901760
      %v2640 = vsub.f32 %v421, %v2639
      %v2641 = vand.u32 %v2640, 4294901760
      %2642 = vmatmul.mubr.f32.gmra.mxu0 %v2641
      %v2643 = vpop.f32.mrf.mxu0
      %v2644 = vadd.f32 %v2076, %v2643
      %v2645 = vpop.f32.mrf.mxu0
      %2646 = vmatprep.mubr.f32.mxu0 0.0
      %v2647 = vand.u32 %v424, 4294901760
      %v2648 = vsub.f32 %v424, %v2647
      %v2649 = vand.u32 %v2648, 4294901760
      %2650 = vmatmul.mubr.f32.gmra.mxu0 %v2649
      %v2651 = vpop.f32.mrf.mxu0
      %v2652 = vadd.f32 %v2083, %v2651
      %v2653 = vpop.f32.mrf.mxu0
      %2654 = vmatprep.mubr.f32.mxu0 0.0
      %v2655 = vand.u32 %v427, 4294901760
      %v2656 = vsub.f32 %v427, %v2655
      %v2657 = vand.u32 %v2656, 4294901760
      %2658 = vmatmul.mubr.f32.gmra.mxu0 %v2657
      %v2659 = vpop.f32.mrf.mxu0
      %v2660 = vadd.f32 %v2090, %v2659
      %v2661 = vpop.f32.mrf.mxu0
      %2662 = vmatprep.mubr.f32.mxu0 0.0
      %v2663 = vand.u32 %v430, 4294901760
      %v2664 = vsub.f32 %v430, %v2663
      %v2665 = vand.u32 %v2664, 4294901760
      %2666 = vmatmul.mubr.f32.gmra.mxu0 %v2665
      %v2667 = vpop.f32.mrf.mxu0
      %v2668 = vadd.f32 %v2097, %v2667
      %v2669 = vpop.f32.mrf.mxu0
      %2670 = vmatprep.mubr.f32.mxu0 0.0
      %v2671 = vand.u32 %v433, 4294901760
      %v2672 = vsub.f32 %v433, %v2671
      %v2673 = vand.u32 %v2672, 4294901760
      %2674 = vmatmul.mubr.f32.gmra.mxu0 %v2673
      %v2675 = vpop.f32.mrf.mxu0
      %v2676 = vadd.f32 %v2104, %v2675
      %v2677 = vpop.f32.mrf.mxu0
      %2678 = vmatprep.mubr.f32.mxu0 0.0
      %v2679 = vand.u32 %v436, 4294901760
      %v2680 = vsub.f32 %v436, %v2679
      %v2681 = vand.u32 %v2680, 4294901760
      %2682 = vmatmul.mubr.f32.gmra.mxu0 %v2681
      %v2683 = vpop.f32.mrf.mxu0
      %v2684 = vadd.f32 %v2111, %v2683
      %v2685 = vpop.f32.mrf.mxu0
      %2686 = vdwg.mxu0
      %2687 = vmatprep.subr.mxu0 0.0
      %2688 = vmatpush1.msra.mxu0 0.0
      %2689 = vmatprep.subr.mxu0 0.0
      %2690 = vmatpush1.msra.mxu0 0.0
      %2691 = vmatprep.subr.mxu0 0.0
      %2692 = vmatpush1.msra.mxu0 0.0
      %2693 = vmatprep.subr.mxu0 0.0
      %2694 = vmatpush1.msra.mxu0 0.0
      %2695 = vmatprep.subr.mxu0 0.0
      %2696 = vmatpush1.msra.mxu0 0.0
      %2697 = vmatprep.subr.mxu0 0.0
      %2698 = vmatpush1.msra.mxu0 0.0
      %2699 = vmatprep.subr.mxu0 0.0
      %2700 = vmatpush1.msra.mxu0 0.0
      %2701 = vmatprep.subr.mxu0 0.0
      %2702 = vmatpush1.msra.mxu0 0.0
      %2703 = vmatprep.subr.mxu0 0.0
      %2704 = vmatpush1.msra.mxu0 0.0
      %2705 = vmatprep.subr.mxu0 0.0
      %2706 = vmatpush1.msra.mxu0 0.0
      %2707 = vmatprep.subr.mxu0 0.0
      %2708 = vmatpush1.msra.mxu0 0.0
      %2709 = vmatprep.subr.mxu0 0.0
      %2710 = vmatpush1.msra.mxu0 0.0
      %2711 = vmatprep.subr.mxu0 0.0
      %v2712 = vand.u32 %v240, 4294901760
      %v2713 = vsub.f32 %v240, %v2712
      %v2714 = vand.u32 %v2713, 4294901760
      %2715 = vmatpush1.msra.mxu0 %v2714
      %2716 = vmatprep.subr.mxu0 0.0
      %v2717 = vand.u32 %v239, 4294901760
      %v2718 = vsub.f32 %v239, %v2717
      %v2719 = vand.u32 %v2718, 4294901760
      %2720 = vmatpush1.msra.mxu0 %v2719
      %2721 = vmatprep.subr.mxu0 0.0
      %v2722 = vand.u32 %v238, 4294901760
      %v2723 = vsub.f32 %v238, %v2722
      %v2724 = vand.u32 %v2723, 4294901760
      %2725 = vmatpush1.msra.mxu0 %v2724
      %2726 = vmatprep.subr.mxu0 0.0
      %v2727 = vand.u32 %v237, 4294901760
      %v2728 = vsub.f32 %v237, %v2727
      %v2729 = vand.u32 %v2728, 4294901760
      %2730 = vmatpush1.msra.mxu0 %v2729
      %2731 = vmatprep.subr.mxu0 0.0
      %2732 = vmatpush2.msra.mxu0 0.0
      %2733 = vmatprep.subr.mxu0 0.0
      %2734 = vmatpush2.msra.mxu0 0.0
      %2735 = vmatprep.subr.mxu0 0.0
      %2736 = vmatpush2.msra.mxu0 0.0
      %2737 = vmatprep.subr.mxu0 0.0
      %2738 = vmatpush2.msra.mxu0 0.0
      %2739 = vmatprep.subr.mxu0 0.0
      %2740 = vmatpush2.msra.mxu0 0.0
      %2741 = vmatprep.subr.mxu0 0.0
      %2742 = vmatpush2.msra.mxu0 0.0
      %2743 = vmatprep.subr.mxu0 0.0
      %2744 = vmatpush2.msra.mxu0 0.0
      %2745 = vmatprep.subr.mxu0 0.0
      %2746 = vmatpush2.msra.mxu0 0.0
      %2747 = vmatprep.subr.mxu0 0.0
      %2748 = vmatpush2.msra.mxu0 0.0
      %2749 = vmatprep.subr.mxu0 0.0
      %2750 = vmatpush2.msra.mxu0 0.0
      %2751 = vmatprep.subr.mxu0 0.0
      %2752 = vmatpush2.msra.mxu0 0.0
      %2753 = vmatprep.subr.mxu0 0.0
      %2754 = vmatpush2.msra.mxu0 0.0
      %2755 = vmatprep.subr.mxu0 0.0
      %2756 = vmatpush2.msra.mxu0 0.0
      %2757 = vmatprep.subr.mxu0 0.0
      %2758 = vmatpush2.msra.mxu0 0.0
      %2759 = vmatprep.subr.mxu0 0.0
      %2760 = vmatpush2.msra.mxu0 0.0
      %2761 = vmatprep.subr.mxu0 0.0
      %2762 = vmatpush2.msra.mxu0 0.0
      %2763 = vmatprep.mubr.f32.mxu0 0.0
      %v2764 = vand.u32 %v250, 4294901760
      %2765 = vmatmul.mubr.f32.gmra.mxu0 %v2764
      %v2766 = vpop.f32.mrf.mxu0
      %v2767 = vadd.f32 %v2188, %v2766
      %v2768 = vpop.f32.mrf.mxu0
      %2769 = vmatprep.mubr.f32.mxu0 0.0
      %v2770 = vand.u32 %v253, 4294901760
      %2771 = vmatmul.mubr.f32.gmra.mxu0 %v2770
      %v2772 = vpop.f32.mrf.mxu0
      %v2773 = vadd.f32 %v2196, %v2772
      %v2774 = vpop.f32.mrf.mxu0
      %2775 = vmatprep.mubr.f32.mxu0 0.0
      %v2776 = vand.u32 %v256, 4294901760
      %2777 = vmatmul.mubr.f32.gmra.mxu0 %v2776
      %v2778 = vpop.f32.mrf.mxu0
      %v2779 = vadd.f32 %v2204, %v2778
      %v2780 = vpop.f32.mrf.mxu0
      %2781 = vmatprep.mubr.f32.mxu0 0.0
      %v2782 = vand.u32 %v259, 4294901760
      %2783 = vmatmul.mubr.f32.gmra.mxu0 %v2782
      %v2784 = vpop.f32.mrf.mxu0
      %v2785 = vadd.f32 %v2212, %v2784
      %v2786 = vpop.f32.mrf.mxu0
      %2787 = vmatprep.mubr.f32.mxu0 0.0
      %v2788 = vand.u32 %v262, 4294901760
      %2789 = vmatmul.mubr.f32.gmra.mxu0 %v2788
      %v2790 = vpop.f32.mrf.mxu0
      %v2791 = vadd.f32 %v2220, %v2790
      %v2792 = vpop.f32.mrf.mxu0
      %2793 = vmatprep.mubr.f32.mxu0 0.0
      %v2794 = vand.u32 %v265, 4294901760
      %2795 = vmatmul.mubr.f32.gmra.mxu0 %v2794
      %v2796 = vpop.f32.mrf.mxu0
      %v2797 = vadd.f32 %v2228, %v2796
      %v2798 = vpop.f32.mrf.mxu0
      %2799 = vmatprep.mubr.f32.mxu0 0.0
      %v2800 = vand.u32 %v268, 4294901760
      %2801 = vmatmul.mubr.f32.gmra.mxu0 %v2800
      %v2802 = vpop.f32.mrf.mxu0
      %v2803 = vadd.f32 %v2236, %v2802
      %v2804 = vpop.f32.mrf.mxu0
      %2805 = vmatprep.mubr.f32.mxu0 0.0
      %v2806 = vand.u32 %v271, 4294901760
      %2807 = vmatmul.mubr.f32.gmra.mxu0 %v2806
      %v2808 = vpop.f32.mrf.mxu0
      %v2809 = vadd.f32 %v2244, %v2808
      %v2810 = vpop.f32.mrf.mxu0
      %2811 = vmatprep.mubr.f32.mxu0 0.0
      %v2812 = vand.u32 %v274, 4294901760
      %2813 = vmatmul.mubr.f32.gmra.mxu0 %v2812
      %v2814 = vpop.f32.mrf.mxu0
      %v2815 = vadd.f32 %v2252, %v2814
      %v2816 = vpop.f32.mrf.mxu0
      %2817 = vmatprep.mubr.f32.mxu0 0.0
      %v2818 = vand.u32 %v277, 4294901760
      %2819 = vmatmul.mubr.f32.gmra.mxu0 %v2818
      %v2820 = vpop.f32.mrf.mxu0
      %v2821 = vadd.f32 %v2260, %v2820
      %v2822 = vpop.f32.mrf.mxu0
      %2823 = vmatprep.mubr.f32.mxu0 0.0
      %v2824 = vand.u32 %v280, 4294901760
      %2825 = vmatmul.mubr.f32.gmra.mxu0 %v2824
      %v2826 = vpop.f32.mrf.mxu0
      %v2827 = vadd.f32 %v2268, %v2826
      %v2828 = vpop.f32.mrf.mxu0
      %2829 = vmatprep.mubr.f32.mxu0 0.0
      %v2830 = vand.u32 %v283, 4294901760
      %2831 = vmatmul.mubr.f32.gmra.mxu0 %v2830
      %v2832 = vpop.f32.mrf.mxu0
      %v2833 = vadd.f32 %v2276, %v2832
      %v2834 = vpop.f32.mrf.mxu0
      %2835 = vmatprep.mubr.f32.mxu0 0.0
      %v2836 = vand.u32 %v286, 4294901760
      %2837 = vmatmul.mubr.f32.gmra.mxu0 %v2836
      %v2838 = vpop.f32.mrf.mxu0
      %v2839 = vadd.f32 %v2284, %v2838
      %v2840 = vpop.f32.mrf.mxu0
      %2841 = vmatprep.mubr.f32.mxu0 0.0
      %v2842 = vand.u32 %v289, 4294901760
      %2843 = vmatmul.mubr.f32.gmra.mxu0 %v2842
      %v2844 = vpop.f32.mrf.mxu0
      %v2845 = vadd.f32 %v2292, %v2844
      %v2846 = vpop.f32.mrf.mxu0
      %2847 = vmatprep.mubr.f32.mxu0 0.0
      %v2848 = vand.u32 %v292, 4294901760
      %2849 = vmatmul.mubr.f32.gmra.mxu0 %v2848
      %v2850 = vpop.f32.mrf.mxu0
      %v2851 = vadd.f32 %v2300, %v2850
      %v2852 = vpop.f32.mrf.mxu0
      %2853 = vmatprep.mubr.f32.mxu0 0.0
      %v2854 = vand.u32 %v295, 4294901760
      %2855 = vmatmul.mubr.f32.gmra.mxu0 %v2854
      %v2856 = vpop.f32.mrf.mxu0
      %v2857 = vadd.f32 %v2308, %v2856
      %v2858 = vpop.f32.mrf.mxu0
      %2859 = vmatprep.mubr.f32.mxu0 0.0
      %v2860 = vand.u32 %v298, 4294901760
      %2861 = vmatmul.mubr.f32.gmra.mxu0 %v2860
      %v2862 = vpop.f32.mrf.mxu0
      %v2863 = vadd.f32 %v2316, %v2862
      %v2864 = vpop.f32.mrf.mxu0
      %2865 = vmatprep.mubr.f32.mxu0 0.0
      %v2866 = vand.u32 %v301, 4294901760
      %2867 = vmatmul.mubr.f32.gmra.mxu0 %v2866
      %v2868 = vpop.f32.mrf.mxu0
      %v2869 = vadd.f32 %v2324, %v2868
      %v2870 = vpop.f32.mrf.mxu0
      %2871 = vmatprep.mubr.f32.mxu0 0.0
      %v2872 = vand.u32 %v304, 4294901760
      %2873 = vmatmul.mubr.f32.gmra.mxu0 %v2872
      %v2874 = vpop.f32.mrf.mxu0
      %v2875 = vadd.f32 %v2332, %v2874
      %v2876 = vpop.f32.mrf.mxu0
      %2877 = vmatprep.mubr.f32.mxu0 0.0
      %v2878 = vand.u32 %v307, 4294901760
      %2879 = vmatmul.mubr.f32.gmra.mxu0 %v2878
      %v2880 = vpop.f32.mrf.mxu0
      %v2881 = vadd.f32 %v2340, %v2880
      %v2882 = vpop.f32.mrf.mxu0
      %2883 = vmatprep.mubr.f32.mxu0 0.0
      %v2884 = vand.u32 %v310, 4294901760
      %2885 = vmatmul.mubr.f32.gmra.mxu0 %v2884
      %v2886 = vpop.f32.mrf.mxu0
      %v2887 = vadd.f32 %v2348, %v2886
      %v2888 = vpop.f32.mrf.mxu0
      %2889 = vmatprep.mubr.f32.mxu0 0.0
      %v2890 = vand.u32 %v313, 4294901760
      %2891 = vmatmul.mubr.f32.gmra.mxu0 %v2890
      %v2892 = vpop.f32.mrf.mxu0
      %v2893 = vadd.f32 %v2356, %v2892
      %v2894 = vpop.f32.mrf.mxu0
      %2895 = vmatprep.mubr.f32.mxu0 0.0
      %v2896 = vand.u32 %v316, 4294901760
      %2897 = vmatmul.mubr.f32.gmra.mxu0 %v2896
      %v2898 = vpop.f32.mrf.mxu0
      %v2899 = vadd.f32 %v2364, %v2898
      %v2900 = vpop.f32.mrf.mxu0
      %2901 = vmatprep.mubr.f32.mxu0 0.0
      %v2902 = vand.u32 %v319, 4294901760
      %2903 = vmatmul.mubr.f32.gmra.mxu0 %v2902
      %v2904 = vpop.f32.mrf.mxu0
      %v2905 = vadd.f32 %v2372, %v2904
      %v2906 = vpop.f32.mrf.mxu0
      %2907 = vmatprep.mubr.f32.mxu0 0.0
      %v2908 = vand.u32 %v322, 4294901760
      %2909 = vmatmul.mubr.f32.gmra.mxu0 %v2908
      %v2910 = vpop.f32.mrf.mxu0
      %v2911 = vadd.f32 %v2380, %v2910
      %v2912 = vpop.f32.mrf.mxu0
      %2913 = vmatprep.mubr.f32.mxu0 0.0
      %v2914 = vand.u32 %v325, 4294901760
      %2915 = vmatmul.mubr.f32.gmra.mxu0 %v2914
      %v2916 = vpop.f32.mrf.mxu0
      %v2917 = vadd.f32 %v2388, %v2916
      %v2918 = vpop.f32.mrf.mxu0
      %2919 = vmatprep.mubr.f32.mxu0 0.0
      %v2920 = vand.u32 %v328, 4294901760
      %2921 = vmatmul.mubr.f32.gmra.mxu0 %v2920
      %v2922 = vpop.f32.mrf.mxu0
      %v2923 = vadd.f32 %v2396, %v2922
      %v2924 = vpop.f32.mrf.mxu0
      %2925 = vmatprep.mubr.f32.mxu0 0.0
      %v2926 = vand.u32 %v331, 4294901760
      %2927 = vmatmul.mubr.f32.gmra.mxu0 %v2926
      %v2928 = vpop.f32.mrf.mxu0
      %v2929 = vadd.f32 %v2404, %v2928
      %v2930 = vpop.f32.mrf.mxu0
      %2931 = vmatprep.mubr.f32.mxu0 0.0
      %v2932 = vand.u32 %v334, 4294901760
      %2933 = vmatmul.mubr.f32.gmra.mxu0 %v2932
      %v2934 = vpop.f32.mrf.mxu0
      %v2935 = vadd.f32 %v2412, %v2934
      %v2936 = vpop.f32.mrf.mxu0
      %2937 = vmatprep.mubr.f32.mxu0 0.0
      %v2938 = vand.u32 %v337, 4294901760
      %2939 = vmatmul.mubr.f32.gmra.mxu0 %v2938
      %v2940 = vpop.f32.mrf.mxu0
      %v2941 = vadd.f32 %v2420, %v2940
      %v2942 = vpop.f32.mrf.mxu0
      %2943 = vmatprep.mubr.f32.mxu0 0.0
      %v2944 = vand.u32 %v340, 4294901760
      %2945 = vmatmul.mubr.f32.gmra.mxu0 %v2944
      %v2946 = vpop.f32.mrf.mxu0
      %v2947 = vadd.f32 %v2428, %v2946
      %v2948 = vpop.f32.mrf.mxu0
      %2949 = vmatprep.mubr.f32.mxu0 0.0
      %v2950 = vand.u32 %v343, 4294901760
      %2951 = vmatmul.mubr.f32.gmra.mxu0 %v2950
      %v2952 = vpop.f32.mrf.mxu0
      %v2953 = vadd.f32 %v2436, %v2952
      %v2954 = vpop.f32.mrf.mxu0
      %2955 = vmatprep.mubr.f32.mxu0 0.0
      %v2956 = vand.u32 %v346, 4294901760
      %2957 = vmatmul.mubr.f32.gmra.mxu0 %v2956
      %v2958 = vpop.f32.mrf.mxu0
      %v2959 = vadd.f32 %v2444, %v2958
      %v2960 = vpop.f32.mrf.mxu0
      %2961 = vmatprep.mubr.f32.mxu0 0.0
      %v2962 = vand.u32 %v349, 4294901760
      %2963 = vmatmul.mubr.f32.gmra.mxu0 %v2962
      %v2964 = vpop.f32.mrf.mxu0
      %v2965 = vadd.f32 %v2452, %v2964
      %v2966 = vpop.f32.mrf.mxu0
      %2967 = vmatprep.mubr.f32.mxu0 0.0
      %v2968 = vand.u32 %v352, 4294901760
      %2969 = vmatmul.mubr.f32.gmra.mxu0 %v2968
      %v2970 = vpop.f32.mrf.mxu0
      %v2971 = vadd.f32 %v2460, %v2970
      %v2972 = vpop.f32.mrf.mxu0
      %2973 = vmatprep.mubr.f32.mxu0 0.0
      %v2974 = vand.u32 %v355, 4294901760
      %2975 = vmatmul.mubr.f32.gmra.mxu0 %v2974
      %v2976 = vpop.f32.mrf.mxu0
      %v2977 = vadd.f32 %v2468, %v2976
      %v2978 = vpop.f32.mrf.mxu0
      %2979 = vmatprep.mubr.f32.mxu0 0.0
      %v2980 = vand.u32 %v358, 4294901760
      %2981 = vmatmul.mubr.f32.gmra.mxu0 %v2980
      %v2982 = vpop.f32.mrf.mxu0
      %v2983 = vadd.f32 %v2476, %v2982
      %v2984 = vpop.f32.mrf.mxu0
      %2985 = vmatprep.mubr.f32.mxu0 0.0
      %v2986 = vand.u32 %v361, 4294901760
      %2987 = vmatmul.mubr.f32.gmra.mxu0 %v2986
      %v2988 = vpop.f32.mrf.mxu0
      %v2989 = vadd.f32 %v2484, %v2988
      %v2990 = vpop.f32.mrf.mxu0
      %2991 = vmatprep.mubr.f32.mxu0 0.0
      %v2992 = vand.u32 %v364, 4294901760
      %2993 = vmatmul.mubr.f32.gmra.mxu0 %v2992
      %v2994 = vpop.f32.mrf.mxu0
      %v2995 = vadd.f32 %v2492, %v2994
      %v2996 = vpop.f32.mrf.mxu0
      %2997 = vmatprep.mubr.f32.mxu0 0.0
      %v2998 = vand.u32 %v367, 4294901760
      %2999 = vmatmul.mubr.f32.gmra.mxu0 %v2998
      %v3000 = vpop.f32.mrf.mxu0
      %v3001 = vadd.f32 %v2500, %v3000
      %v3002 = vpop.f32.mrf.mxu0
      %3003 = vmatprep.mubr.f32.mxu0 0.0
      %v3004 = vand.u32 %v370, 4294901760
      %3005 = vmatmul.mubr.f32.gmra.mxu0 %v3004
      %v3006 = vpop.f32.mrf.mxu0
      %v3007 = vadd.f32 %v2508, %v3006
      %v3008 = vpop.f32.mrf.mxu0
      %3009 = vmatprep.mubr.f32.mxu0 0.0
      %v3010 = vand.u32 %v373, 4294901760
      %3011 = vmatmul.mubr.f32.gmra.mxu0 %v3010
      %v3012 = vpop.f32.mrf.mxu0
      %v3013 = vadd.f32 %v2516, %v3012
      %v3014 = vpop.f32.mrf.mxu0
      %3015 = vmatprep.mubr.f32.mxu0 0.0
      %v3016 = vand.u32 %v376, 4294901760
      %3017 = vmatmul.mubr.f32.gmra.mxu0 %v3016
      %v3018 = vpop.f32.mrf.mxu0
      %v3019 = vadd.f32 %v2524, %v3018
      %v3020 = vpop.f32.mrf.mxu0
      %3021 = vmatprep.mubr.f32.mxu0 0.0
      %v3022 = vand.u32 %v379, 4294901760
      %3023 = vmatmul.mubr.f32.gmra.mxu0 %v3022
      %v3024 = vpop.f32.mrf.mxu0
      %v3025 = vadd.f32 %v2532, %v3024
      %v3026 = vpop.f32.mrf.mxu0
      %3027 = vmatprep.mubr.f32.mxu0 0.0
      %v3028 = vand.u32 %v382, 4294901760
      %3029 = vmatmul.mubr.f32.gmra.mxu0 %v3028
      %v3030 = vpop.f32.mrf.mxu0
      %v3031 = vadd.f32 %v2540, %v3030
      %v3032 = vpop.f32.mrf.mxu0
      %3033 = vmatprep.mubr.f32.mxu0 0.0
      %v3034 = vand.u32 %v385, 4294901760
      %3035 = vmatmul.mubr.f32.gmra.mxu0 %v3034
      %v3036 = vpop.f32.mrf.mxu0
      %v3037 = vadd.f32 %v2548, %v3036
      %v3038 = vpop.f32.mrf.mxu0
      %3039 = vmatprep.mubr.f32.mxu0 0.0
      %v3040 = vand.u32 %v388, 4294901760
      %3041 = vmatmul.mubr.f32.gmra.mxu0 %v3040
      %v3042 = vpop.f32.mrf.mxu0
      %v3043 = vadd.f32 %v2556, %v3042
      %v3044 = vpop.f32.mrf.mxu0
      %3045 = vmatprep.mubr.f32.mxu0 0.0
      %v3046 = vand.u32 %v391, 4294901760
      %3047 = vmatmul.mubr.f32.gmra.mxu0 %v3046
      %v3048 = vpop.f32.mrf.mxu0
      %v3049 = vadd.f32 %v2564, %v3048
      %v3050 = vpop.f32.mrf.mxu0
      %3051 = vmatprep.mubr.f32.mxu0 0.0
      %v3052 = vand.u32 %v394, 4294901760
      %3053 = vmatmul.mubr.f32.gmra.mxu0 %v3052
      %v3054 = vpop.f32.mrf.mxu0
      %v3055 = vadd.f32 %v2572, %v3054
      %v3056 = vpop.f32.mrf.mxu0
      %3057 = vmatprep.mubr.f32.mxu0 0.0
      %v3058 = vand.u32 %v397, 4294901760
      %3059 = vmatmul.mubr.f32.gmra.mxu0 %v3058
      %v3060 = vpop.f32.mrf.mxu0
      %v3061 = vadd.f32 %v2580, %v3060
      %v3062 = vpop.f32.mrf.mxu0
      %3063 = vmatprep.mubr.f32.mxu0 0.0
      %v3064 = vand.u32 %v400, 4294901760
      %3065 = vmatmul.mubr.f32.gmra.mxu0 %v3064
      %v3066 = vpop.f32.mrf.mxu0
      %v3067 = vadd.f32 %v2588, %v3066
      %v3068 = vpop.f32.mrf.mxu0
      %3069 = vmatprep.mubr.f32.mxu0 0.0
      %v3070 = vand.u32 %v403, 4294901760
      %3071 = vmatmul.mubr.f32.gmra.mxu0 %v3070
      %v3072 = vpop.f32.mrf.mxu0
      %v3073 = vadd.f32 %v2596, %v3072
      %v3074 = vpop.f32.mrf.mxu0
      %3075 = vmatprep.mubr.f32.mxu0 0.0
      %v3076 = vand.u32 %v406, 4294901760
      %3077 = vmatmul.mubr.f32.gmra.mxu0 %v3076
      %v3078 = vpop.f32.mrf.mxu0
      %v3079 = vadd.f32 %v2604, %v3078
      %v3080 = vpop.f32.mrf.mxu0
      %3081 = vmatprep.mubr.f32.mxu0 0.0
      %v3082 = vand.u32 %v409, 4294901760
      %3083 = vmatmul.mubr.f32.gmra.mxu0 %v3082
      %v3084 = vpop.f32.mrf.mxu0
      %v3085 = vadd.f32 %v2612, %v3084
      %v3086 = vpop.f32.mrf.mxu0
      %3087 = vmatprep.mubr.f32.mxu0 0.0
      %v3088 = vand.u32 %v412, 4294901760
      %3089 = vmatmul.mubr.f32.gmra.mxu0 %v3088
      %v3090 = vpop.f32.mrf.mxu0
      %v3091 = vadd.f32 %v2620, %v3090
      %v3092 = vpop.f32.mrf.mxu0
      %3093 = vmatprep.mubr.f32.mxu0 0.0
      %v3094 = vand.u32 %v415, 4294901760
      %3095 = vmatmul.mubr.f32.gmra.mxu0 %v3094
      %v3096 = vpop.f32.mrf.mxu0
      %v3097 = vadd.f32 %v2628, %v3096
      %v3098 = vpop.f32.mrf.mxu0
      %3099 = vmatprep.mubr.f32.mxu0 0.0
      %v3100 = vand.u32 %v418, 4294901760
      %3101 = vmatmul.mubr.f32.gmra.mxu0 %v3100
      %v3102 = vpop.f32.mrf.mxu0
      %v3103 = vadd.f32 %v2636, %v3102
      %v3104 = vpop.f32.mrf.mxu0
      %3105 = vmatprep.mubr.f32.mxu0 0.0
      %v3106 = vand.u32 %v421, 4294901760
      %3107 = vmatmul.mubr.f32.gmra.mxu0 %v3106
      %v3108 = vpop.f32.mrf.mxu0
      %v3109 = vadd.f32 %v2644, %v3108
      %v3110 = vpop.f32.mrf.mxu0
      %3111 = vmatprep.mubr.f32.mxu0 0.0
      %v3112 = vand.u32 %v424, 4294901760
      %3113 = vmatmul.mubr.f32.gmra.mxu0 %v3112
      %v3114 = vpop.f32.mrf.mxu0
      %v3115 = vadd.f32 %v2652, %v3114
      %v3116 = vpop.f32.mrf.mxu0
      %3117 = vmatprep.mubr.f32.mxu0 0.0
      %v3118 = vand.u32 %v427, 4294901760
      %3119 = vmatmul.mubr.f32.gmra.mxu0 %v3118
      %v3120 = vpop.f32.mrf.mxu0
      %v3121 = vadd.f32 %v2660, %v3120
      %v3122 = vpop.f32.mrf.mxu0
      %3123 = vmatprep.mubr.f32.mxu0 0.0
      %v3124 = vand.u32 %v430, 4294901760
      %3125 = vmatmul.mubr.f32.gmra.mxu0 %v3124
      %v3126 = vpop.f32.mrf.mxu0
      %v3127 = vadd.f32 %v2668, %v3126
      %v3128 = vpop.f32.mrf.mxu0
      %3129 = vmatprep.mubr.f32.mxu0 0.0
      %v3130 = vand.u32 %v433, 4294901760
      %3131 = vmatmul.mubr.f32.gmra.mxu0 %v3130
      %v3132 = vpop.f32.mrf.mxu0
      %v3133 = vadd.f32 %v2676, %v3132
      %v3134 = vpop.f32.mrf.mxu0
      %3135 = vmatprep.mubr.f32.mxu0 0.0
      %v3136 = vand.u32 %v436, 4294901760
      %3137 = vmatmul.mubr.f32.gmra.mxu0 %v3136
      %v3138 = vpop.f32.mrf.mxu0
      %v3139 = vadd.f32 %v2684, %v3138
      %v3140 = vpop.f32.mrf.mxu0
      %3141 = vdwg.mxu0
      %3142 = vmatprep.subr.mxu0 0.0
      %3143 = vmatpush1.msra.mxu0 0.0
      %3144 = vmatprep.subr.mxu0 0.0
      %3145 = vmatpush1.msra.mxu0 0.0
      %3146 = vmatprep.subr.mxu0 0.0
      %3147 = vmatpush1.msra.mxu0 0.0
      %3148 = vmatprep.subr.mxu0 0.0
      %3149 = vmatpush1.msra.mxu0 0.0
      %3150 = vmatprep.subr.mxu0 0.0
      %3151 = vmatpush1.msra.mxu0 0.0
      %3152 = vmatprep.subr.mxu0 0.0
      %3153 = vmatpush1.msra.mxu0 0.0
      %3154 = vmatprep.subr.mxu0 0.0
      %3155 = vmatpush1.msra.mxu0 0.0
      %3156 = vmatprep.subr.mxu0 0.0
      %3157 = vmatpush1.msra.mxu0 0.0
      %3158 = vmatprep.subr.mxu0 0.0
      %3159 = vmatpush1.msra.mxu0 0.0
      %3160 = vmatprep.subr.mxu0 0.0
      %3161 = vmatpush1.msra.mxu0 0.0
      %3162 = vmatprep.subr.mxu0 0.0
      %3163 = vmatpush1.msra.mxu0 0.0
      %3164 = vmatprep.subr.mxu0 0.0
      %3165 = vmatpush1.msra.mxu0 0.0
      %3166 = vmatprep.subr.mxu0 0.0
      %v3167 = vand.u32 %v240, 4294901760
      %3168 = vmatpush1.msra.mxu0 %v3167
      %3169 = vmatprep.subr.mxu0 0.0
      %v3170 = vand.u32 %v239, 4294901760
      %3171 = vmatpush1.msra.mxu0 %v3170
      %3172 = vmatprep.subr.mxu0 0.0
      %v3173 = vand.u32 %v238, 4294901760
      %3174 = vmatpush1.msra.mxu0 %v3173
      %3175 = vmatprep.subr.mxu0 0.0
      %v3176 = vand.u32 %v237, 4294901760
      %3177 = vmatpush1.msra.mxu0 %v3176
      %3178 = vmatprep.subr.mxu0 0.0
      %3179 = vmatpush2.msra.mxu0 0.0
      %3180 = vmatprep.subr.mxu0 0.0
      %3181 = vmatpush2.msra.mxu0 0.0
      %3182 = vmatprep.subr.mxu0 0.0
      %3183 = vmatpush2.msra.mxu0 0.0
      %3184 = vmatprep.subr.mxu0 0.0
      %3185 = vmatpush2.msra.mxu0 0.0
      %3186 = vmatprep.subr.mxu0 0.0
      %3187 = vmatpush2.msra.mxu0 0.0
      %3188 = vmatprep.subr.mxu0 0.0
      %3189 = vmatpush2.msra.mxu0 0.0
      %3190 = vmatprep.subr.mxu0 0.0
      %3191 = vmatpush2.msra.mxu0 0.0
      %3192 = vmatprep.subr.mxu0 0.0
      %3193 = vmatpush2.msra.mxu0 0.0
      %3194 = vmatprep.subr.mxu0 0.0
      %3195 = vmatpush2.msra.mxu0 0.0
      %3196 = vmatprep.subr.mxu0 0.0
      %3197 = vmatpush2.msra.mxu0 0.0
      %3198 = vmatprep.subr.mxu0 0.0
      %3199 = vmatpush2.msra.mxu0 0.0
      %3200 = vmatprep.subr.mxu0 0.0
      %3201 = vmatpush2.msra.mxu0 0.0
      %3202 = vmatprep.subr.mxu0 0.0
      %3203 = vmatpush2.msra.mxu0 0.0
      %3204 = vmatprep.subr.mxu0 0.0
      %3205 = vmatpush2.msra.mxu0 0.0
      %3206 = vmatprep.subr.mxu0 0.0
      %3207 = vmatpush2.msra.mxu0 0.0
      %3208 = vmatprep.subr.mxu0 0.0
      %3209 = vmatpush2.msra.mxu0 0.0
      %3210 = vmatprep.mubr.f32.mxu0 0.0
      %v3211 = vand.u32 %v250, 4294901760
      %3212 = vmatmul.mubr.f32.gmra.mxu0 %v3211
      %v3213 = vpop.f32.mrf.mxu0
      %v3214 = vadd.f32 %v2767, %v3213
      %v3215 = vpop.f32.mrf.mxu0
      %3216 = vmatprep.mubr.f32.mxu0 0.0
      %v3217 = vand.u32 %v253, 4294901760
      %3218 = vmatmul.mubr.f32.gmra.mxu0 %v3217
      %v3219 = vpop.f32.mrf.mxu0
      %v3220 = vadd.f32 %v2773, %v3219
      %v3221 = vpop.f32.mrf.mxu0
      %3222 = vmatprep.mubr.f32.mxu0 0.0
      %v3223 = vand.u32 %v256, 4294901760
      %3224 = vmatmul.mubr.f32.gmra.mxu0 %v3223
      %v3225 = vpop.f32.mrf.mxu0
      %v3226 = vadd.f32 %v2779, %v3225
      %v3227 = vpop.f32.mrf.mxu0
      %3228 = vmatprep.mubr.f32.mxu0 0.0
      %v3229 = vand.u32 %v259, 4294901760
      %3230 = vmatmul.mubr.f32.gmra.mxu0 %v3229
      %v3231 = vpop.f32.mrf.mxu0
      %v3232 = vadd.f32 %v2785, %v3231
      %v3233 = vpop.f32.mrf.mxu0
      %3234 = vmatprep.mubr.f32.mxu0 0.0
      %v3235 = vand.u32 %v262, 4294901760
      %3236 = vmatmul.mubr.f32.gmra.mxu0 %v3235
      %v3237 = vpop.f32.mrf.mxu0
      %v3238 = vadd.f32 %v2791, %v3237
      %v3239 = vpop.f32.mrf.mxu0
      %3240 = vmatprep.mubr.f32.mxu0 0.0
      %v3241 = vand.u32 %v265, 4294901760
      %3242 = vmatmul.mubr.f32.gmra.mxu0 %v3241
      %v3243 = vpop.f32.mrf.mxu0
      %v3244 = vadd.f32 %v2797, %v3243
      %v3245 = vpop.f32.mrf.mxu0
      %3246 = vmatprep.mubr.f32.mxu0 0.0
      %v3247 = vand.u32 %v268, 4294901760
      %3248 = vmatmul.mubr.f32.gmra.mxu0 %v3247
      %v3249 = vpop.f32.mrf.mxu0
      %v3250 = vadd.f32 %v2803, %v3249
      %v3251 = vpop.f32.mrf.mxu0
      %3252 = vmatprep.mubr.f32.mxu0 0.0
      %v3253 = vand.u32 %v271, 4294901760
      %3254 = vmatmul.mubr.f32.gmra.mxu0 %v3253
      %v3255 = vpop.f32.mrf.mxu0
      %v3256 = vadd.f32 %v2809, %v3255
      %v3257 = vpop.f32.mrf.mxu0
      %3258 = vmatprep.mubr.f32.mxu0 0.0
      %v3259 = vand.u32 %v274, 4294901760
      %3260 = vmatmul.mubr.f32.gmra.mxu0 %v3259
      %v3261 = vpop.f32.mrf.mxu0
      %v3262 = vadd.f32 %v2815, %v3261
      %v3263 = vpop.f32.mrf.mxu0
      %3264 = vmatprep.mubr.f32.mxu0 0.0
      %v3265 = vand.u32 %v277, 4294901760
      %3266 = vmatmul.mubr.f32.gmra.mxu0 %v3265
      %v3267 = vpop.f32.mrf.mxu0
      %v3268 = vadd.f32 %v2821, %v3267
      %v3269 = vpop.f32.mrf.mxu0
      %3270 = vmatprep.mubr.f32.mxu0 0.0
      %v3271 = vand.u32 %v280, 4294901760
      %3272 = vmatmul.mubr.f32.gmra.mxu0 %v3271
      %v3273 = vpop.f32.mrf.mxu0
      %v3274 = vadd.f32 %v2827, %v3273
      %v3275 = vpop.f32.mrf.mxu0
      %3276 = vmatprep.mubr.f32.mxu0 0.0
      %v3277 = vand.u32 %v283, 4294901760
      %3278 = vmatmul.mubr.f32.gmra.mxu0 %v3277
      %v3279 = vpop.f32.mrf.mxu0
      %v3280 = vadd.f32 %v2833, %v3279
      %v3281 = vpop.f32.mrf.mxu0
      %3282 = vmatprep.mubr.f32.mxu0 0.0
      %v3283 = vand.u32 %v286, 4294901760
      %3284 = vmatmul.mubr.f32.gmra.mxu0 %v3283
      %v3285 = vpop.f32.mrf.mxu0
      %v3286 = vadd.f32 %v2839, %v3285
      %v3287 = vpop.f32.mrf.mxu0
      %3288 = vmatprep.mubr.f32.mxu0 0.0
      %v3289 = vand.u32 %v289, 4294901760
      %3290 = vmatmul.mubr.f32.gmra.mxu0 %v3289
      %v3291 = vpop.f32.mrf.mxu0
      %v3292 = vadd.f32 %v2845, %v3291
      %v3293 = vpop.f32.mrf.mxu0
      %3294 = vmatprep.mubr.f32.mxu0 0.0
      %v3295 = vand.u32 %v292, 4294901760
      %3296 = vmatmul.mubr.f32.gmra.mxu0 %v3295
      %v3297 = vpop.f32.mrf.mxu0
      %v3298 = vadd.f32 %v2851, %v3297
      %v3299 = vpop.f32.mrf.mxu0
      %3300 = vmatprep.mubr.f32.mxu0 0.0
      %v3301 = vand.u32 %v295, 4294901760
      %3302 = vmatmul.mubr.f32.gmra.mxu0 %v3301
      %v3303 = vpop.f32.mrf.mxu0
      %v3304 = vadd.f32 %v2857, %v3303
      %v3305 = vpop.f32.mrf.mxu0
      %3306 = vmatprep.mubr.f32.mxu0 0.0
      %v3307 = vand.u32 %v298, 4294901760
      %3308 = vmatmul.mubr.f32.gmra.mxu0 %v3307
      %v3309 = vpop.f32.mrf.mxu0
      %v3310 = vadd.f32 %v2863, %v3309
      %v3311 = vpop.f32.mrf.mxu0
      %3312 = vmatprep.mubr.f32.mxu0 0.0
      %v3313 = vand.u32 %v301, 4294901760
      %3314 = vmatmul.mubr.f32.gmra.mxu0 %v3313
      %v3315 = vpop.f32.mrf.mxu0
      %v3316 = vadd.f32 %v2869, %v3315
      %v3317 = vpop.f32.mrf.mxu0
      %3318 = vmatprep.mubr.f32.mxu0 0.0
      %v3319 = vand.u32 %v304, 4294901760
      %3320 = vmatmul.mubr.f32.gmra.mxu0 %v3319
      %v3321 = vpop.f32.mrf.mxu0
      %v3322 = vadd.f32 %v2875, %v3321
      %v3323 = vpop.f32.mrf.mxu0
      %3324 = vmatprep.mubr.f32.mxu0 0.0
      %v3325 = vand.u32 %v307, 4294901760
      %3326 = vmatmul.mubr.f32.gmra.mxu0 %v3325
      %v3327 = vpop.f32.mrf.mxu0
      %v3328 = vadd.f32 %v2881, %v3327
      %v3329 = vpop.f32.mrf.mxu0
      %3330 = vmatprep.mubr.f32.mxu0 0.0
      %v3331 = vand.u32 %v310, 4294901760
      %3332 = vmatmul.mubr.f32.gmra.mxu0 %v3331
      %v3333 = vpop.f32.mrf.mxu0
      %v3334 = vadd.f32 %v2887, %v3333
      %v3335 = vpop.f32.mrf.mxu0
      %3336 = vmatprep.mubr.f32.mxu0 0.0
      %v3337 = vand.u32 %v313, 4294901760
      %3338 = vmatmul.mubr.f32.gmra.mxu0 %v3337
      %v3339 = vpop.f32.mrf.mxu0
      %v3340 = vadd.f32 %v2893, %v3339
      %v3341 = vpop.f32.mrf.mxu0
      %3342 = vmatprep.mubr.f32.mxu0 0.0
      %v3343 = vand.u32 %v316, 4294901760
      %3344 = vmatmul.mubr.f32.gmra.mxu0 %v3343
      %v3345 = vpop.f32.mrf.mxu0
      %v3346 = vadd.f32 %v2899, %v3345
      %v3347 = vpop.f32.mrf.mxu0
      %3348 = vmatprep.mubr.f32.mxu0 0.0
      %v3349 = vand.u32 %v319, 4294901760
      %3350 = vmatmul.mubr.f32.gmra.mxu0 %v3349
      %v3351 = vpop.f32.mrf.mxu0
      %v3352 = vadd.f32 %v2905, %v3351
      %v3353 = vpop.f32.mrf.mxu0
      %3354 = vmatprep.mubr.f32.mxu0 0.0
      %v3355 = vand.u32 %v322, 4294901760
      %3356 = vmatmul.mubr.f32.gmra.mxu0 %v3355
      %v3357 = vpop.f32.mrf.mxu0
      %v3358 = vadd.f32 %v2911, %v3357
      %v3359 = vpop.f32.mrf.mxu0
      %3360 = vmatprep.mubr.f32.mxu0 0.0
      %v3361 = vand.u32 %v325, 4294901760
      %3362 = vmatmul.mubr.f32.gmra.mxu0 %v3361
      %v3363 = vpop.f32.mrf.mxu0
      %v3364 = vadd.f32 %v2917, %v3363
      %v3365 = vpop.f32.mrf.mxu0
      %3366 = vmatprep.mubr.f32.mxu0 0.0
      %v3367 = vand.u32 %v328, 4294901760
      %3368 = vmatmul.mubr.f32.gmra.mxu0 %v3367
      %v3369 = vpop.f32.mrf.mxu0
      %v3370 = vadd.f32 %v2923, %v3369
      %v3371 = vpop.f32.mrf.mxu0
      %3372 = vmatprep.mubr.f32.mxu0 0.0
      %v3373 = vand.u32 %v331, 4294901760
      %3374 = vmatmul.mubr.f32.gmra.mxu0 %v3373
      %v3375 = vpop.f32.mrf.mxu0
      %v3376 = vadd.f32 %v2929, %v3375
      %v3377 = vpop.f32.mrf.mxu0
      %3378 = vmatprep.mubr.f32.mxu0 0.0
      %v3379 = vand.u32 %v334, 4294901760
      %3380 = vmatmul.mubr.f32.gmra.mxu0 %v3379
      %v3381 = vpop.f32.mrf.mxu0
      %v3382 = vadd.f32 %v2935, %v3381
      %v3383 = vpop.f32.mrf.mxu0
      %3384 = vmatprep.mubr.f32.mxu0 0.0
      %v3385 = vand.u32 %v337, 4294901760
      %3386 = vmatmul.mubr.f32.gmra.mxu0 %v3385
      %v3387 = vpop.f32.mrf.mxu0
      %v3388 = vadd.f32 %v2941, %v3387
      %v3389 = vpop.f32.mrf.mxu0
      %3390 = vmatprep.mubr.f32.mxu0 0.0
      %v3391 = vand.u32 %v340, 4294901760
      %3392 = vmatmul.mubr.f32.gmra.mxu0 %v3391
      %v3393 = vpop.f32.mrf.mxu0
      %v3394 = vadd.f32 %v2947, %v3393
      %v3395 = vpop.f32.mrf.mxu0
      %3396 = vmatprep.mubr.f32.mxu0 0.0
      %v3397 = vand.u32 %v343, 4294901760
      %3398 = vmatmul.mubr.f32.gmra.mxu0 %v3397
      %v3399 = vpop.f32.mrf.mxu0
      %v3400 = vadd.f32 %v2953, %v3399
      %v3401 = vpop.f32.mrf.mxu0
      %3402 = vmatprep.mubr.f32.mxu0 0.0
      %v3403 = vand.u32 %v346, 4294901760
      %3404 = vmatmul.mubr.f32.gmra.mxu0 %v3403
      %v3405 = vpop.f32.mrf.mxu0
      %v3406 = vadd.f32 %v2959, %v3405
      %v3407 = vpop.f32.mrf.mxu0
      %3408 = vmatprep.mubr.f32.mxu0 0.0
      %v3409 = vand.u32 %v349, 4294901760
      %3410 = vmatmul.mubr.f32.gmra.mxu0 %v3409
      %v3411 = vpop.f32.mrf.mxu0
      %v3412 = vadd.f32 %v2965, %v3411
      %v3413 = vpop.f32.mrf.mxu0
      %3414 = vmatprep.mubr.f32.mxu0 0.0
      %v3415 = vand.u32 %v352, 4294901760
      %3416 = vmatmul.mubr.f32.gmra.mxu0 %v3415
      %v3417 = vpop.f32.mrf.mxu0
      %v3418 = vadd.f32 %v2971, %v3417
      %v3419 = vpop.f32.mrf.mxu0
      %3420 = vmatprep.mubr.f32.mxu0 0.0
      %v3421 = vand.u32 %v355, 4294901760
      %3422 = vmatmul.mubr.f32.gmra.mxu0 %v3421
      %v3423 = vpop.f32.mrf.mxu0
      %v3424 = vadd.f32 %v2977, %v3423
      %v3425 = vpop.f32.mrf.mxu0
      %3426 = vmatprep.mubr.f32.mxu0 0.0
      %v3427 = vand.u32 %v358, 4294901760
      %3428 = vmatmul.mubr.f32.gmra.mxu0 %v3427
      %v3429 = vpop.f32.mrf.mxu0
      %v3430 = vadd.f32 %v2983, %v3429
      %v3431 = vpop.f32.mrf.mxu0
      %3432 = vmatprep.mubr.f32.mxu0 0.0
      %v3433 = vand.u32 %v361, 4294901760
      %3434 = vmatmul.mubr.f32.gmra.mxu0 %v3433
      %v3435 = vpop.f32.mrf.mxu0
      %v3436 = vadd.f32 %v2989, %v3435
      %v3437 = vpop.f32.mrf.mxu0
      %3438 = vmatprep.mubr.f32.mxu0 0.0
      %v3439 = vand.u32 %v364, 4294901760
      %3440 = vmatmul.mubr.f32.gmra.mxu0 %v3439
      %v3441 = vpop.f32.mrf.mxu0
      %v3442 = vadd.f32 %v2995, %v3441
      %v3443 = vpop.f32.mrf.mxu0
      %3444 = vmatprep.mubr.f32.mxu0 0.0
      %v3445 = vand.u32 %v367, 4294901760
      %3446 = vmatmul.mubr.f32.gmra.mxu0 %v3445
      %v3447 = vpop.f32.mrf.mxu0
      %v3448 = vadd.f32 %v3001, %v3447
      %v3449 = vpop.f32.mrf.mxu0
      %3450 = vmatprep.mubr.f32.mxu0 0.0
      %v3451 = vand.u32 %v370, 4294901760
      %3452 = vmatmul.mubr.f32.gmra.mxu0 %v3451
      %v3453 = vpop.f32.mrf.mxu0
      %v3454 = vadd.f32 %v3007, %v3453
      %v3455 = vpop.f32.mrf.mxu0
      %3456 = vmatprep.mubr.f32.mxu0 0.0
      %v3457 = vand.u32 %v373, 4294901760
      %3458 = vmatmul.mubr.f32.gmra.mxu0 %v3457
      %v3459 = vpop.f32.mrf.mxu0
      %v3460 = vadd.f32 %v3013, %v3459
      %v3461 = vpop.f32.mrf.mxu0
      %3462 = vmatprep.mubr.f32.mxu0 0.0
      %v3463 = vand.u32 %v376, 4294901760
      %3464 = vmatmul.mubr.f32.gmra.mxu0 %v3463
      %v3465 = vpop.f32.mrf.mxu0
      %v3466 = vadd.f32 %v3019, %v3465
      %v3467 = vpop.f32.mrf.mxu0
      %3468 = vmatprep.mubr.f32.mxu0 0.0
      %v3469 = vand.u32 %v379, 4294901760
      %3470 = vmatmul.mubr.f32.gmra.mxu0 %v3469
      %v3471 = vpop.f32.mrf.mxu0
      %v3472 = vadd.f32 %v3025, %v3471
      %v3473 = vpop.f32.mrf.mxu0
      %3474 = vmatprep.mubr.f32.mxu0 0.0
      %v3475 = vand.u32 %v382, 4294901760
      %3476 = vmatmul.mubr.f32.gmra.mxu0 %v3475
      %v3477 = vpop.f32.mrf.mxu0
      %v3478 = vadd.f32 %v3031, %v3477
      %v3479 = vpop.f32.mrf.mxu0
      %3480 = vmatprep.mubr.f32.mxu0 0.0
      %v3481 = vand.u32 %v385, 4294901760
      %3482 = vmatmul.mubr.f32.gmra.mxu0 %v3481
      %v3483 = vpop.f32.mrf.mxu0
      %v3484 = vadd.f32 %v3037, %v3483
      %v3485 = vpop.f32.mrf.mxu0
      %3486 = vmatprep.mubr.f32.mxu0 0.0
      %v3487 = vand.u32 %v388, 4294901760
      %3488 = vmatmul.mubr.f32.gmra.mxu0 %v3487
      %v3489 = vpop.f32.mrf.mxu0
      %v3490 = vadd.f32 %v3043, %v3489
      %v3491 = vpop.f32.mrf.mxu0
      %3492 = vmatprep.mubr.f32.mxu0 0.0
      %v3493 = vand.u32 %v391, 4294901760
      %3494 = vmatmul.mubr.f32.gmra.mxu0 %v3493
      %v3495 = vpop.f32.mrf.mxu0
      %v3496 = vadd.f32 %v3049, %v3495
      %v3497 = vpop.f32.mrf.mxu0
      %3498 = vmatprep.mubr.f32.mxu0 0.0
      %v3499 = vand.u32 %v394, 4294901760
      %3500 = vmatmul.mubr.f32.gmra.mxu0 %v3499
      %v3501 = vpop.f32.mrf.mxu0
      %v3502 = vadd.f32 %v3055, %v3501
      %v3503 = vpop.f32.mrf.mxu0
      %3504 = vmatprep.mubr.f32.mxu0 0.0
      %v3505 = vand.u32 %v397, 4294901760
      %3506 = vmatmul.mubr.f32.gmra.mxu0 %v3505
      %v3507 = vpop.f32.mrf.mxu0
      %v3508 = vadd.f32 %v3061, %v3507
      %v3509 = vpop.f32.mrf.mxu0
      %3510 = vmatprep.mubr.f32.mxu0 0.0
      %v3511 = vand.u32 %v400, 4294901760
      %3512 = vmatmul.mubr.f32.gmra.mxu0 %v3511
      %v3513 = vpop.f32.mrf.mxu0
      %v3514 = vadd.f32 %v3067, %v3513
      %v3515 = vpop.f32.mrf.mxu0
      %3516 = vmatprep.mubr.f32.mxu0 0.0
      %v3517 = vand.u32 %v403, 4294901760
      %3518 = vmatmul.mubr.f32.gmra.mxu0 %v3517
      %v3519 = vpop.f32.mrf.mxu0
      %v3520 = vadd.f32 %v3073, %v3519
      %v3521 = vpop.f32.mrf.mxu0
      %3522 = vmatprep.mubr.f32.mxu0 0.0
      %v3523 = vand.u32 %v406, 4294901760
      %3524 = vmatmul.mubr.f32.gmra.mxu0 %v3523
      %v3525 = vpop.f32.mrf.mxu0
      %v3526 = vadd.f32 %v3079, %v3525
      %v3527 = vpop.f32.mrf.mxu0
      %3528 = vmatprep.mubr.f32.mxu0 0.0
      %v3529 = vand.u32 %v409, 4294901760
      %3530 = vmatmul.mubr.f32.gmra.mxu0 %v3529
      %v3531 = vpop.f32.mrf.mxu0
      %v3532 = vadd.f32 %v3085, %v3531
      %v3533 = vpop.f32.mrf.mxu0
      %3534 = vmatprep.mubr.f32.mxu0 0.0
      %v3535 = vand.u32 %v412, 4294901760
      %3536 = vmatmul.mubr.f32.gmra.mxu0 %v3535
      %v3537 = vpop.f32.mrf.mxu0
      %v3538 = vadd.f32 %v3091, %v3537
      %v3539 = vpop.f32.mrf.mxu0
      %3540 = vmatprep.mubr.f32.mxu0 0.0
      %v3541 = vand.u32 %v415, 4294901760
      %3542 = vmatmul.mubr.f32.gmra.mxu0 %v3541
      %v3543 = vpop.f32.mrf.mxu0
      %v3544 = vadd.f32 %v3097, %v3543
      %v3545 = vpop.f32.mrf.mxu0
      %3546 = vmatprep.mubr.f32.mxu0 0.0
      %v3547 = vand.u32 %v418, 4294901760
      %3548 = vmatmul.mubr.f32.gmra.mxu0 %v3547
      %v3549 = vpop.f32.mrf.mxu0
      %v3550 = vadd.f32 %v3103, %v3549
      %v3551 = vpop.f32.mrf.mxu0
      %3552 = vmatprep.mubr.f32.mxu0 0.0
      %v3553 = vand.u32 %v421, 4294901760
      %3554 = vmatmul.mubr.f32.gmra.mxu0 %v3553
      %v3555 = vpop.f32.mrf.mxu0
      %v3556 = vadd.f32 %v3109, %v3555
      %v3557 = vpop.f32.mrf.mxu0
      %3558 = vmatprep.mubr.f32.mxu0 0.0
      %v3559 = vand.u32 %v424, 4294901760
      %3560 = vmatmul.mubr.f32.gmra.mxu0 %v3559
      %v3561 = vpop.f32.mrf.mxu0
      %v3562 = vadd.f32 %v3115, %v3561
      %v3563 = vpop.f32.mrf.mxu0
      %3564 = vmatprep.mubr.f32.mxu0 0.0
      %v3565 = vand.u32 %v427, 4294901760
      %3566 = vmatmul.mubr.f32.gmra.mxu0 %v3565
      %v3567 = vpop.f32.mrf.mxu0
      %v3568 = vadd.f32 %v3121, %v3567
      %v3569 = vpop.f32.mrf.mxu0
      %3570 = vmatprep.mubr.f32.mxu0 0.0
      %v3571 = vand.u32 %v430, 4294901760
      %3572 = vmatmul.mubr.f32.gmra.mxu0 %v3571
      %v3573 = vpop.f32.mrf.mxu0
      %v3574 = vadd.f32 %v3127, %v3573
      %v3575 = vpop.f32.mrf.mxu0
      %3576 = vmatprep.mubr.f32.mxu0 0.0
      %v3577 = vand.u32 %v433, 4294901760
      %3578 = vmatmul.mubr.f32.gmra.mxu0 %v3577
      %v3579 = vpop.f32.mrf.mxu0
      %v3580 = vadd.f32 %v3133, %v3579
      %v3581 = vpop.f32.mrf.mxu0
      %3582 = vmatprep.mubr.f32.mxu0 0.0
      %v3583 = vand.u32 %v436, 4294901760
      %3584 = vmatmul.mubr.f32.gmra.mxu0 %v3583
      %v3585 = vpop.f32.mrf.mxu0
      %v3586 = vadd.f32 %v3139, %v3585
      %v3587 = vpop.f32.mrf.mxu0
      %3588 = vdwg.mxu0
      %v3589 = vand.u32 2147483647, %v3214
      %vm3590 = vcmp.le.f32.partialorder %v3589, 0.7853982
      %vm3591 = vcmp.lt.s32.totalorder %v3214, 0
      %v3592 = vand.u32 %v3214, 2139095040
      %v3593 = vshrl.u32 %v3592, 23
      %v3594 = vsub.s32 %v3593, 127
      %v3595 = vand.u32 2147483647, %v3214
      %v3596 = vand.u32 %v3595, 8388607
      %v3597 = vor.u32 %v3596, 8388608
      %v3598 = vsub.s32 0, %v3597
      %v3599 = vadd.s32 %v3594, 1
      %vm3600 = vcmp.gt.s32.totalorder %v3599, 0
      %v3601 = vsel %vm3600, %v3599, 0
      %v3602 = vshrl.u32 %v3601, 5
      %v3603 = vand.u32 %v3601, 31
      %v3604 = vsub.s32 32, %v3603
      %v3605 = vshrl.u32 683565275, %v3604
      %v3606 = vshll.u32 683565275, %v3603
      %v3607 = vshrl.u32 2475754826, %v3604
      %v3608 = vor.u32 %v3606, %v3607
      %v3609 = vshll.u32 2475754826, %v3603
      %v3610 = vshrl.u32 2131351028, %v3604
      %v3611 = vor.u32 %v3609, %v3610
      %v3612 = vshll.u32 2131351028, %v3603
      %v3613 = vshrl.u32 2102212464, %v3604
      %v3614 = vor.u32 %v3612, %v3613
      %v3615 = vshll.u32 2102212464, %v3603
      %v3616 = vshrl.u32 920167782, %v3604
      %v3617 = vor.u32 %v3615, %v3616
      %v3618 = vshll.u32 920167782, %v3603
      %v3619 = vshrl.u32 1326507024, %v3604
      %v3620 = vor.u32 %v3618, %v3619
      %vm3621 = vcmp.lt.s32.totalorder %v3602, 1
      %vm3622 = vcmp.lt.s32.totalorder %v3602, 2
      %vm3623 = vcmp.lt.s32.totalorder %v3602, 3
      %vm3624 = vcmp.lt.s32.totalorder %v3602, 4
      %v3625 = vsel %vm3621, %v3605, %v3608
      %v3626 = vsel %vm3624, %v3614, 2102212464
      %v3627 = vsel %vm3623, %v3611, %v3626
      %v3628 = vsel %vm3622, %v3625, %v3627
      %v3629 = vsel %vm3621, %v3608, %v3611
      %v3630 = vsel %vm3624, %v3617, 920167782
      %v3631 = vsel %vm3623, %v3614, %v3630
      %v3632 = vsel %vm3622, %v3629, %v3631
      %v3633 = vsel %vm3621, %v3611, %v3614
      %v3634 = vsel %vm3624, %v3620, 1326507024
      %v3635 = vsel %vm3623, %v3617, %v3634
      %v3636 = vsel %vm3622, %v3633, %v3635
      %v3637 = vshll.u32 %v3597, 8
      %v3638 = vmul.u32.u64.compose %v3637, %v3636
      %v3639 = vextract.low.u32 %v3638
      %v3640 = vextract.high.u32 %v3638
      %v3641 = vmul.u32.u64.compose %v3637, %v3632
      %v3642 = vextract.low.u32 %v3641
      %v3643 = vextract.high.u32 %v3641
      %v3644 = vmul.u32 %v3637, %v3628
      %v3645 = vadd.s32 %v3640, %v3642
      %vm3646 = vc.u32 %v3640, %v3642
      %v3647 = vadd.s32 %v3643, 1
      %v3648 = vsel %vm3646, %v3647, %v3643
      %v3649 = vadd.s32 %v3644, %v3648
      %v3650 = vadd.s32 %v3649, 536870912
      %v3651 = vshrl.u32 %v3650, 30
      %v3652 = vshll.u32 %v3651, 30
      %v3653 = vsub.s32 %v3649, %v3652
      %vm3654 = vcmp.lt.s32.totalorder %v3653, 0
      %v3655 = vsub.s32 0, %v3653
      %v3656 = vsel %vm3654, %v3655, %v3653
      %v3657 = vclz %v3656
      %v3658 = vsub.s32 %v3657, 2
      %vm3659 = vcmp.gt.s32.totalorder 0, %v3658
      %v3660 = vsel %vm3659, 0, %v3658
      %v3661 = vsub.s32 32, %v3660
      %v3662 = vshll.u32 %v3653, %v3660
      %v3663 = vshrl.u32 %v3645, %v3661
      %v3664 = vor.u32 %v3662, %v3663
      %v3665 = vsub.s32 4294967266, %v3660
      %v3666 = vadd.s32 %v3665, 127
      %v3667 = vshll.u32 %v3666, 23
      %v3668 = vor.u32 4788187, %v3667
      %v3669 = vand.u32 2147483647, %v3668
      %v3671 = vcvt.s32.f32 %v3664
      %v3672 = vmul.f32 %v3671, %v3669
      %v3673 = vxor.u32 %v3672, 2147483648
      %v3674 = vsel %vm3591, %v3673, %v3672
      %v3675 = vsub.s32 4, %v3651
      %v3676 = vsel %vm3591, %v3675, %v3651
      %v3677 = vsel %vm3590, %v3214, %v3674
      %v3678 = vsel %vm3590, 0, %v3676
      %v3679 = vcosq.f32.pop %v3677
      %v3680 = vsinq.f32.pop %v3677
      %vm3681 = vweird.f32 %v3214
      %v3682 = vadd.s32 %v3678, 3
      %v3683 = vand.u32 %v3682, 3
      %vm3684 = vcmp.lt.s32.totalorder %v3683, 2
      %vm3685 = vcmp.eq.s32.totalorder %v3683, 0
      %v3686 = vxor.u32 %v3680, 2147483648
      %v3687 = vsel %vm3685, %v3679, %v3686
      %vm3688 = vcmp.eq.s32.totalorder %v3683, 2
      %v3689 = vxor.u32 %v3679, 2147483648
      %v3690 = vsel %vm3688, %v3689, %v3680
      %v3691 = vsel %vm3684, %v3687, %v3690
      %v3692 = vsel %vm3681, nan, %v3691
      %v3693 = vand.u32 2147483647, %v3220
      %vm3694 = vcmp.le.f32.partialorder %v3693, 0.7853982
      %vm3695 = vcmp.lt.s32.totalorder %v3220, 0
      %v3696 = vand.u32 %v3220, 2139095040
      %v3697 = vshrl.u32 %v3696, 23
      %v3698 = vsub.s32 %v3697, 127
      %v3699 = vand.u32 2147483647, %v3220
      %v3700 = vand.u32 %v3699, 8388607
      %v3701 = vor.u32 %v3700, 8388608
      %v3702 = vsub.s32 0, %v3701
      %v3703 = vadd.s32 %v3698, 1
      %vm3704 = vcmp.gt.s32.totalorder %v3703, 0
      %v3705 = vsel %vm3704, %v3703, 0
      %v3706 = vshrl.u32 %v3705, 5
      %v3707 = vand.u32 %v3705, 31
      %v3708 = vsub.s32 32, %v3707
      %v3709 = vshrl.u32 683565275, %v3708
      %v3710 = vshll.u32 683565275, %v3707
      %v3711 = vshrl.u32 2475754826, %v3708
      %v3712 = vor.u32 %v3710, %v3711
      %v3713 = vshll.u32 2475754826, %v3707
      %v3714 = vshrl.u32 2131351028, %v3708
      %v3715 = vor.u32 %v3713, %v3714
      %v3716 = vshll.u32 2131351028, %v3707
      %v3717 = vshrl.u32 2102212464, %v3708
      %v3718 = vor.u32 %v3716, %v3717
      %v3719 = vshll.u32 2102212464, %v3707
      %v3720 = vshrl.u32 920167782, %v3708
      %v3721 = vor.u32 %v3719, %v3720
      %v3722 = vshll.u32 920167782, %v3707
      %v3723 = vshrl.u32 1326507024, %v3708
      %v3724 = vor.u32 %v3722, %v3723
      %vm3725 = vcmp.lt.s32.totalorder %v3706, 1
      %vm3726 = vcmp.lt.s32.totalorder %v3706, 2
      %vm3727 = vcmp.lt.s32.totalorder %v3706, 3
      %vm3728 = vcmp.lt.s32.totalorder %v3706, 4
      %v3729 = vsel %vm3725, %v3709, %v3712
      %v3730 = vsel %vm3728, %v3718, 2102212464
      %v3731 = vsel %vm3727, %v3715, %v3730
      %v3732 = vsel %vm3726, %v3729, %v3731
      %v3733 = vsel %vm3725, %v3712, %v3715
      %v3734 = vsel %vm3728, %v3721, 920167782
      %v3735 = vsel %vm3727, %v3718, %v3734
      %v3736 = vsel %vm3726, %v3733, %v3735
      %v3737 = vsel %vm3725, %v3715, %v3718
      %v3738 = vsel %vm3728, %v3724, 1326507024
      %v3739 = vsel %vm3727, %v3721, %v3738
      %v3740 = vsel %vm3726, %v3737, %v3739
      %v3741 = vshll.u32 %v3701, 8
      %v3742 = vmul.u32.u64.compose %v3741, %v3740
      %v3743 = vextract.low.u32 %v3742
      %v3744 = vextract.high.u32 %v3742
      %v3745 = vmul.u32.u64.compose %v3741, %v3736
      %v3746 = vextract.low.u32 %v3745
      %v3747 = vextract.high.u32 %v3745
      %v3748 = vmul.u32 %v3741, %v3732
      %v3749 = vadd.s32 %v3744, %v3746
      %vm3750 = vc.u32 %v3744, %v3746
      %v3751 = vadd.s32 %v3747, 1
      %v3752 = vsel %vm3750, %v3751, %v3747
      %v3753 = vadd.s32 %v3748, %v3752
      %v3754 = vadd.s32 %v3753, 536870912
      %v3755 = vshrl.u32 %v3754, 30
      %v3756 = vshll.u32 %v3755, 30
      %v3757 = vsub.s32 %v3753, %v3756
      %vm3758 = vcmp.lt.s32.totalorder %v3757, 0
      %v3759 = vsub.s32 0, %v3757
      %v3760 = vsel %vm3758, %v3759, %v3757
      %v3761 = vclz %v3760
      %v3762 = vsub.s32 %v3761, 2
      %vm3763 = vcmp.gt.s32.totalorder 0, %v3762
      %v3764 = vsel %vm3763, 0, %v3762
      %v3765 = vsub.s32 32, %v3764
      %v3766 = vshll.u32 %v3757, %v3764
      %v3767 = vshrl.u32 %v3749, %v3765
      %v3768 = vor.u32 %v3766, %v3767
      %v3769 = vsub.s32 4294967266, %v3764
      %v3770 = vadd.s32 %v3769, 127
      %v3771 = vshll.u32 %v3770, 23
      %v3772 = vor.u32 4788187, %v3771
      %v3773 = vand.u32 2147483647, %v3772
      %v3775 = vcvt.s32.f32 %v3768
      %v3776 = vmul.f32 %v3775, %v3773
      %v3777 = vxor.u32 %v3776, 2147483648
      %v3778 = vsel %vm3695, %v3777, %v3776
      %v3779 = vsub.s32 4, %v3755
      %v3780 = vsel %vm3695, %v3779, %v3755
      %v3781 = vsel %vm3694, %v3220, %v3778
      %v3782 = vsel %vm3694, 0, %v3780
      %v3783 = vcosq.f32.pop %v3781
      %v3784 = vsinq.f32.pop %v3781
      %vm3785 = vweird.f32 %v3220
      %v3786 = vadd.s32 %v3782, 3
      %v3787 = vand.u32 %v3786, 3
      %vm3788 = vcmp.lt.s32.totalorder %v3787, 2
      %vm3789 = vcmp.eq.s32.totalorder %v3787, 0
      %v3790 = vxor.u32 %v3784, 2147483648
      %v3791 = vsel %vm3789, %v3783, %v3790
      %vm3792 = vcmp.eq.s32.totalorder %v3787, 2
      %v3793 = vxor.u32 %v3783, 2147483648
      %v3794 = vsel %vm3792, %v3793, %v3784
      %v3795 = vsel %vm3788, %v3791, %v3794
      %v3796 = vsel %vm3785, nan, %v3795
      %v3797 = vand.u32 2147483647, %v3226
      %vm3798 = vcmp.le.f32.partialorder %v3797, 0.7853982
      %vm3799 = vcmp.lt.s32.totalorder %v3226, 0
      %v3800 = vand.u32 %v3226, 2139095040
      %v3801 = vshrl.u32 %v3800, 23
      %v3802 = vsub.s32 %v3801, 127
      %v3803 = vand.u32 2147483647, %v3226
      %v3804 = vand.u32 %v3803, 8388607
      %v3805 = vor.u32 %v3804, 8388608
      %v3806 = vsub.s32 0, %v3805
      %v3807 = vadd.s32 %v3802, 1
      %vm3808 = vcmp.gt.s32.totalorder %v3807, 0
      %v3809 = vsel %vm3808, %v3807, 0
      %v3810 = vshrl.u32 %v3809, 5
      %v3811 = vand.u32 %v3809, 31
      %v3812 = vsub.s32 32, %v3811
      %v3813 = vshrl.u32 683565275, %v3812
      %v3814 = vshll.u32 683565275, %v3811
      %v3815 = vshrl.u32 2475754826, %v3812
      %v3816 = vor.u32 %v3814, %v3815
      %v3817 = vshll.u32 2475754826, %v3811
      %v3818 = vshrl.u32 2131351028, %v3812
      %v3819 = vor.u32 %v3817, %v3818
      %v3820 = vshll.u32 2131351028, %v3811
      %v3821 = vshrl.u32 2102212464, %v3812
      %v3822 = vor.u32 %v3820, %v3821
      %v3823 = vshll.u32 2102212464, %v3811
      %v3824 = vshrl.u32 920167782, %v3812
      %v3825 = vor.u32 %v3823, %v3824
      %v3826 = vshll.u32 920167782, %v3811
      %v3827 = vshrl.u32 1326507024, %v3812
      %v3828 = vor.u32 %v3826, %v3827
      %vm3829 = vcmp.lt.s32.totalorder %v3810, 1
      %vm3830 = vcmp.lt.s32.totalorder %v3810, 2
      %vm3831 = vcmp.lt.s32.totalorder %v3810, 3
      %vm3832 = vcmp.lt.s32.totalorder %v3810, 4
      %v3833 = vsel %vm3829, %v3813, %v3816
      %v3834 = vsel %vm3832, %v3822, 2102212464
      %v3835 = vsel %vm3831, %v3819, %v3834
      %v3836 = vsel %vm3830, %v3833, %v3835
      %v3837 = vsel %vm3829, %v3816, %v3819
      %v3838 = vsel %vm3832, %v3825, 920167782
      %v3839 = vsel %vm3831, %v3822, %v3838
      %v3840 = vsel %vm3830, %v3837, %v3839
      %v3841 = vsel %vm3829, %v3819, %v3822
      %v3842 = vsel %vm3832, %v3828, 1326507024
      %v3843 = vsel %vm3831, %v3825, %v3842
      %v3844 = vsel %vm3830, %v3841, %v3843
      %v3845 = vshll.u32 %v3805, 8
      %v3846 = vmul.u32.u64.compose %v3845, %v3844
      %v3847 = vextract.low.u32 %v3846
      %v3848 = vextract.high.u32 %v3846
      %v3849 = vmul.u32.u64.compose %v3845, %v3840
      %v3850 = vextract.low.u32 %v3849
      %v3851 = vextract.high.u32 %v3849
      %v3852 = vmul.u32 %v3845, %v3836
      %v3853 = vadd.s32 %v3848, %v3850
      %vm3854 = vc.u32 %v3848, %v3850
      %v3855 = vadd.s32 %v3851, 1
      %v3856 = vsel %vm3854, %v3855, %v3851
      %v3857 = vadd.s32 %v3852, %v3856
      %v3858 = vadd.s32 %v3857, 536870912
      %v3859 = vshrl.u32 %v3858, 30
      %v3860 = vshll.u32 %v3859, 30
      %v3861 = vsub.s32 %v3857, %v3860
      %vm3862 = vcmp.lt.s32.totalorder %v3861, 0
      %v3863 = vsub.s32 0, %v3861
      %v3864 = vsel %vm3862, %v3863, %v3861
      %v3865 = vclz %v3864
      %v3866 = vsub.s32 %v3865, 2
      %vm3867 = vcmp.gt.s32.totalorder 0, %v3866
      %v3868 = vsel %vm3867, 0, %v3866
      %v3869 = vsub.s32 32, %v3868
      %v3870 = vshll.u32 %v3861, %v3868
      %v3871 = vshrl.u32 %v3853, %v3869
      %v3872 = vor.u32 %v3870, %v3871
      %v3873 = vsub.s32 4294967266, %v3868
      %v3874 = vadd.s32 %v3873, 127
      %v3875 = vshll.u32 %v3874, 23
      %v3876 = vor.u32 4788187, %v3875
      %v3877 = vand.u32 2147483647, %v3876
      %v3879 = vcvt.s32.f32 %v3872
      %v3880 = vmul.f32 %v3879, %v3877
      %v3881 = vxor.u32 %v3880, 2147483648
      %v3882 = vsel %vm3799, %v3881, %v3880
      %v3883 = vsub.s32 4, %v3859
      %v3884 = vsel %vm3799, %v3883, %v3859
      %v3885 = vsel %vm3798, %v3226, %v3882
      %v3886 = vsel %vm3798, 0, %v3884
      %v3887 = vcosq.f32.pop %v3885
      %v3888 = vsinq.f32.pop %v3885
      %vm3889 = vweird.f32 %v3226
      %v3890 = vadd.s32 %v3886, 3
      %v3891 = vand.u32 %v3890, 3
      %vm3892 = vcmp.lt.s32.totalorder %v3891, 2
      %vm3893 = vcmp.eq.s32.totalorder %v3891, 0
      %v3894 = vxor.u32 %v3888, 2147483648
      %v3895 = vsel %vm3893, %v3887, %v3894
      %vm3896 = vcmp.eq.s32.totalorder %v3891, 2
      %v3897 = vxor.u32 %v3887, 2147483648
      %v3898 = vsel %vm3896, %v3897, %v3888
      %v3899 = vsel %vm3892, %v3895, %v3898
      %v3900 = vsel %vm3889, nan, %v3899
      %v3901 = vand.u32 2147483647, %v3232
      %vm3902 = vcmp.le.f32.partialorder %v3901, 0.7853982
      %vm3903 = vcmp.lt.s32.totalorder %v3232, 0
      %v3904 = vand.u32 %v3232, 2139095040
      %v3905 = vshrl.u32 %v3904, 23
      %v3906 = vsub.s32 %v3905, 127
      %v3907 = vand.u32 2147483647, %v3232
      %v3908 = vand.u32 %v3907, 8388607
      %v3909 = vor.u32 %v3908, 8388608
      %v3910 = vsub.s32 0, %v3909
      %v3911 = vadd.s32 %v3906, 1
      %vm3912 = vcmp.gt.s32.totalorder %v3911, 0
      %v3913 = vsel %vm3912, %v3911, 0
      %v3914 = vshrl.u32 %v3913, 5
      %v3915 = vand.u32 %v3913, 31
      %v3916 = vsub.s32 32, %v3915
      %v3917 = vshrl.u32 683565275, %v3916
      %v3918 = vshll.u32 683565275, %v3915
      %v3919 = vshrl.u32 2475754826, %v3916
      %v3920 = vor.u32 %v3918, %v3919
      %v3921 = vshll.u32 2475754826, %v3915
      %v3922 = vshrl.u32 2131351028, %v3916
      %v3923 = vor.u32 %v3921, %v3922
      %v3924 = vshll.u32 2131351028, %v3915
      %v3925 = vshrl.u32 2102212464, %v3916
      %v3926 = vor.u32 %v3924, %v3925
      %v3927 = vshll.u32 2102212464, %v3915
      %v3928 = vshrl.u32 920167782, %v3916
      %v3929 = vor.u32 %v3927, %v3928
      %v3930 = vshll.u32 920167782, %v3915
      %v3931 = vshrl.u32 1326507024, %v3916
      %v3932 = vor.u32 %v3930, %v3931
      %vm3933 = vcmp.lt.s32.totalorder %v3914, 1
      %vm3934 = vcmp.lt.s32.totalorder %v3914, 2
      %vm3935 = vcmp.lt.s32.totalorder %v3914, 3
      %vm3936 = vcmp.lt.s32.totalorder %v3914, 4
      %v3937 = vsel %vm3933, %v3917, %v3920
      %v3938 = vsel %vm3936, %v3926, 2102212464
      %v3939 = vsel %vm3935, %v3923, %v3938
      %v3940 = vsel %vm3934, %v3937, %v3939
      %v3941 = vsel %vm3933, %v3920, %v3923
      %v3942 = vsel %vm3936, %v3929, 920167782
      %v3943 = vsel %vm3935, %v3926, %v3942
      %v3944 = vsel %vm3934, %v3941, %v3943
      %v3945 = vsel %vm3933, %v3923, %v3926
      %v3946 = vsel %vm3936, %v3932, 1326507024
      %v3947 = vsel %vm3935, %v3929, %v3946
      %v3948 = vsel %vm3934, %v3945, %v3947
      %v3949 = vshll.u32 %v3909, 8
      %v3950 = vmul.u32.u64.compose %v3949, %v3948
      %v3951 = vextract.low.u32 %v3950
      %v3952 = vextract.high.u32 %v3950
      %v3953 = vmul.u32.u64.compose %v3949, %v3944
      %v3954 = vextract.low.u32 %v3953
      %v3955 = vextract.high.u32 %v3953
      %v3956 = vmul.u32 %v3949, %v3940
      %v3957 = vadd.s32 %v3952, %v3954
      %vm3958 = vc.u32 %v3952, %v3954
      %v3959 = vadd.s32 %v3955, 1
      %v3960 = vsel %vm3958, %v3959, %v3955
      %v3961 = vadd.s32 %v3956, %v3960
      %v3962 = vadd.s32 %v3961, 536870912
      %v3963 = vshrl.u32 %v3962, 30
      %v3964 = vshll.u32 %v3963, 30
      %v3965 = vsub.s32 %v3961, %v3964
      %vm3966 = vcmp.lt.s32.totalorder %v3965, 0
      %v3967 = vsub.s32 0, %v3965
      %v3968 = vsel %vm3966, %v3967, %v3965
      %v3969 = vclz %v3968
      %v3970 = vsub.s32 %v3969, 2
      %vm3971 = vcmp.gt.s32.totalorder 0, %v3970
      %v3972 = vsel %vm3971, 0, %v3970
      %v3973 = vsub.s32 32, %v3972
      %v3974 = vshll.u32 %v3965, %v3972
      %v3975 = vshrl.u32 %v3957, %v3973
      %v3976 = vor.u32 %v3974, %v3975
      %v3977 = vsub.s32 4294967266, %v3972
      %v3978 = vadd.s32 %v3977, 127
      %v3979 = vshll.u32 %v3978, 23
      %v3980 = vor.u32 4788187, %v3979
      %v3981 = vand.u32 2147483647, %v3980
      %v3983 = vcvt.s32.f32 %v3976
      %v3984 = vmul.f32 %v3983, %v3981
      %v3985 = vxor.u32 %v3984, 2147483648
      %v3986 = vsel %vm3903, %v3985, %v3984
      %v3987 = vsub.s32 4, %v3963
      %v3988 = vsel %vm3903, %v3987, %v3963
      %v3989 = vsel %vm3902, %v3232, %v3986
      %v3990 = vsel %vm3902, 0, %v3988
      %v3991 = vcosq.f32.pop %v3989
      %v3992 = vsinq.f32.pop %v3989
      %vm3993 = vweird.f32 %v3232
      %v3994 = vadd.s32 %v3990, 3
      %v3995 = vand.u32 %v3994, 3
      %vm3996 = vcmp.lt.s32.totalorder %v3995, 2
      %vm3997 = vcmp.eq.s32.totalorder %v3995, 0
      %v3998 = vxor.u32 %v3992, 2147483648
      %v3999 = vsel %vm3997, %v3991, %v3998
      %vm4000 = vcmp.eq.s32.totalorder %v3995, 2
      %v4001 = vxor.u32 %v3991, 2147483648
      %v4002 = vsel %vm4000, %v4001, %v3992
      %v4003 = vsel %vm3996, %v3999, %v4002
      %v4004 = vsel %vm3993, nan, %v4003
      %v4005 = vand.u32 2147483647, %v3238
      %vm4006 = vcmp.le.f32.partialorder %v4005, 0.7853982
      %vm4007 = vcmp.lt.s32.totalorder %v3238, 0
      %v4008 = vand.u32 %v3238, 2139095040
      %v4009 = vshrl.u32 %v4008, 23
      %v4010 = vsub.s32 %v4009, 127
      %v4011 = vand.u32 2147483647, %v3238
      %v4012 = vand.u32 %v4011, 8388607
      %v4013 = vor.u32 %v4012, 8388608
      %v4014 = vsub.s32 0, %v4013
      %v4015 = vadd.s32 %v4010, 1
      %vm4016 = vcmp.gt.s32.totalorder %v4015, 0
      %v4017 = vsel %vm4016, %v4015, 0
      %v4018 = vshrl.u32 %v4017, 5
      %v4019 = vand.u32 %v4017, 31
      %v4020 = vsub.s32 32, %v4019
      %v4021 = vshrl.u32 683565275, %v4020
      %v4022 = vshll.u32 683565275, %v4019
      %v4023 = vshrl.u32 2475754826, %v4020
      %v4024 = vor.u32 %v4022, %v4023
      %v4025 = vshll.u32 2475754826, %v4019
      %v4026 = vshrl.u32 2131351028, %v4020
      %v4027 = vor.u32 %v4025, %v4026
      %v4028 = vshll.u32 2131351028, %v4019
      %v4029 = vshrl.u32 2102212464, %v4020
      %v4030 = vor.u32 %v4028, %v4029
      %v4031 = vshll.u32 2102212464, %v4019
      %v4032 = vshrl.u32 920167782, %v4020
      %v4033 = vor.u32 %v4031, %v4032
      %v4034 = vshll.u32 920167782, %v4019
      %v4035 = vshrl.u32 1326507024, %v4020
      %v4036 = vor.u32 %v4034, %v4035
      %vm4037 = vcmp.lt.s32.totalorder %v4018, 1
      %vm4038 = vcmp.lt.s32.totalorder %v4018, 2
      %vm4039 = vcmp.lt.s32.totalorder %v4018, 3
      %vm4040 = vcmp.lt.s32.totalorder %v4018, 4
      %v4041 = vsel %vm4037, %v4021, %v4024
      %v4042 = vsel %vm4040, %v4030, 2102212464
      %v4043 = vsel %vm4039, %v4027, %v4042
      %v4044 = vsel %vm4038, %v4041, %v4043
      %v4045 = vsel %vm4037, %v4024, %v4027
      %v4046 = vsel %vm4040, %v4033, 920167782
      %v4047 = vsel %vm4039, %v4030, %v4046
      %v4048 = vsel %vm4038, %v4045, %v4047
      %v4049 = vsel %vm4037, %v4027, %v4030
      %v4050 = vsel %vm4040, %v4036, 1326507024
      %v4051 = vsel %vm4039, %v4033, %v4050
      %v4052 = vsel %vm4038, %v4049, %v4051
      %v4053 = vshll.u32 %v4013, 8
      %v4054 = vmul.u32.u64.compose %v4053, %v4052
      %v4055 = vextract.low.u32 %v4054
      %v4056 = vextract.high.u32 %v4054
      %v4057 = vmul.u32.u64.compose %v4053, %v4048
      %v4058 = vextract.low.u32 %v4057
      %v4059 = vextract.high.u32 %v4057
      %v4060 = vmul.u32 %v4053, %v4044
      %v4061 = vadd.s32 %v4056, %v4058
      %vm4062 = vc.u32 %v4056, %v4058
      %v4063 = vadd.s32 %v4059, 1
      %v4064 = vsel %vm4062, %v4063, %v4059
      %v4065 = vadd.s32 %v4060, %v4064
      %v4066 = vadd.s32 %v4065, 536870912
      %v4067 = vshrl.u32 %v4066, 30
      %v4068 = vshll.u32 %v4067, 30
      %v4069 = vsub.s32 %v4065, %v4068
      %vm4070 = vcmp.lt.s32.totalorder %v4069, 0
      %v4071 = vsub.s32 0, %v4069
      %v4072 = vsel %vm4070, %v4071, %v4069
      %v4073 = vclz %v4072
      %v4074 = vsub.s32 %v4073, 2
      %vm4075 = vcmp.gt.s32.totalorder 0, %v4074
      %v4076 = vsel %vm4075, 0, %v4074
      %v4077 = vsub.s32 32, %v4076
      %v4078 = vshll.u32 %v4069, %v4076
      %v4079 = vshrl.u32 %v4061, %v4077
      %v4080 = vor.u32 %v4078, %v4079
      %v4081 = vsub.s32 4294967266, %v4076
      %v4082 = vadd.s32 %v4081, 127
      %v4083 = vshll.u32 %v4082, 23
      %v4084 = vor.u32 4788187, %v4083
      %v4085 = vand.u32 2147483647, %v4084
      %v4087 = vcvt.s32.f32 %v4080
      %v4088 = vmul.f32 %v4087, %v4085
      %v4089 = vxor.u32 %v4088, 2147483648
      %v4090 = vsel %vm4007, %v4089, %v4088
      %v4091 = vsub.s32 4, %v4067
      %v4092 = vsel %vm4007, %v4091, %v4067
      %v4093 = vsel %vm4006, %v3238, %v4090
      %v4094 = vsel %vm4006, 0, %v4092
      %v4095 = vcosq.f32.pop %v4093
      %v4096 = vsinq.f32.pop %v4093
      %vm4097 = vweird.f32 %v3238
      %v4098 = vadd.s32 %v4094, 3
      %v4099 = vand.u32 %v4098, 3
      %vm4100 = vcmp.lt.s32.totalorder %v4099, 2
      %vm4101 = vcmp.eq.s32.totalorder %v4099, 0
      %v4102 = vxor.u32 %v4096, 2147483648
      %v4103 = vsel %vm4101, %v4095, %v4102
      %vm4104 = vcmp.eq.s32.totalorder %v4099, 2
      %v4105 = vxor.u32 %v4095, 2147483648
      %v4106 = vsel %vm4104, %v4105, %v4096
      %v4107 = vsel %vm4100, %v4103, %v4106
      %v4108 = vsel %vm4097, nan, %v4107
      %v4109 = vand.u32 2147483647, %v3244
      %vm4110 = vcmp.le.f32.partialorder %v4109, 0.7853982
      %vm4111 = vcmp.lt.s32.totalorder %v3244, 0
      %v4112 = vand.u32 %v3244, 2139095040
      %v4113 = vshrl.u32 %v4112, 23
      %v4114 = vsub.s32 %v4113, 127
      %v4115 = vand.u32 2147483647, %v3244
      %v4116 = vand.u32 %v4115, 8388607
      %v4117 = vor.u32 %v4116, 8388608
      %v4118 = vsub.s32 0, %v4117
      %v4119 = vadd.s32 %v4114, 1
      %vm4120 = vcmp.gt.s32.totalorder %v4119, 0
      %v4121 = vsel %vm4120, %v4119, 0
      %v4122 = vshrl.u32 %v4121, 5
      %v4123 = vand.u32 %v4121, 31
      %v4124 = vsub.s32 32, %v4123
      %v4125 = vshrl.u32 683565275, %v4124
      %v4126 = vshll.u32 683565275, %v4123
      %v4127 = vshrl.u32 2475754826, %v4124
      %v4128 = vor.u32 %v4126, %v4127
      %v4129 = vshll.u32 2475754826, %v4123
      %v4130 = vshrl.u32 2131351028, %v4124
      %v4131 = vor.u32 %v4129, %v4130
      %v4132 = vshll.u32 2131351028, %v4123
      %v4133 = vshrl.u32 2102212464, %v4124
      %v4134 = vor.u32 %v4132, %v4133
      %v4135 = vshll.u32 2102212464, %v4123
      %v4136 = vshrl.u32 920167782, %v4124
      %v4137 = vor.u32 %v4135, %v4136
      %v4138 = vshll.u32 920167782, %v4123
      %v4139 = vshrl.u32 1326507024, %v4124
      %v4140 = vor.u32 %v4138, %v4139
      %vm4141 = vcmp.lt.s32.totalorder %v4122, 1
      %vm4142 = vcmp.lt.s32.totalorder %v4122, 2
      %vm4143 = vcmp.lt.s32.totalorder %v4122, 3
      %vm4144 = vcmp.lt.s32.totalorder %v4122, 4
      %v4145 = vsel %vm4141, %v4125, %v4128
      %v4146 = vsel %vm4144, %v4134, 2102212464
      %v4147 = vsel %vm4143, %v4131, %v4146
      %v4148 = vsel %vm4142, %v4145, %v4147
      %v4149 = vsel %vm4141, %v4128, %v4131
      %v4150 = vsel %vm4144, %v4137, 920167782
      %v4151 = vsel %vm4143, %v4134, %v4150
      %v4152 = vsel %vm4142, %v4149, %v4151
      %v4153 = vsel %vm4141, %v4131, %v4134
      %v4154 = vsel %vm4144, %v4140, 1326507024
      %v4155 = vsel %vm4143, %v4137, %v4154
      %v4156 = vsel %vm4142, %v4153, %v4155
      %v4157 = vshll.u32 %v4117, 8
      %v4158 = vmul.u32.u64.compose %v4157, %v4156
      %v4159 = vextract.low.u32 %v4158
      %v4160 = vextract.high.u32 %v4158
      %v4161 = vmul.u32.u64.compose %v4157, %v4152
      %v4162 = vextract.low.u32 %v4161
      %v4163 = vextract.high.u32 %v4161
      %v4164 = vmul.u32 %v4157, %v4148
      %v4165 = vadd.s32 %v4160, %v4162
      %vm4166 = vc.u32 %v4160, %v4162
      %v4167 = vadd.s32 %v4163, 1
      %v4168 = vsel %vm4166, %v4167, %v4163
      %v4169 = vadd.s32 %v4164, %v4168
      %v4170 = vadd.s32 %v4169, 536870912
      %v4171 = vshrl.u32 %v4170, 30
      %v4172 = vshll.u32 %v4171, 30
      %v4173 = vsub.s32 %v4169, %v4172
      %vm4174 = vcmp.lt.s32.totalorder %v4173, 0
      %v4175 = vsub.s32 0, %v4173
      %v4176 = vsel %vm4174, %v4175, %v4173
      %v4177 = vclz %v4176
      %v4178 = vsub.s32 %v4177, 2
      %vm4179 = vcmp.gt.s32.totalorder 0, %v4178
      %v4180 = vsel %vm4179, 0, %v4178
      %v4181 = vsub.s32 32, %v4180
      %v4182 = vshll.u32 %v4173, %v4180
      %v4183 = vshrl.u32 %v4165, %v4181
      %v4184 = vor.u32 %v4182, %v4183
      %v4185 = vsub.s32 4294967266, %v4180
      %v4186 = vadd.s32 %v4185, 127
      %v4187 = vshll.u32 %v4186, 23
      %v4188 = vor.u32 4788187, %v4187
      %v4189 = vand.u32 2147483647, %v4188
      %v4191 = vcvt.s32.f32 %v4184
      %v4192 = vmul.f32 %v4191, %v4189
      %v4193 = vxor.u32 %v4192, 2147483648
      %v4194 = vsel %vm4111, %v4193, %v4192
      %v4195 = vsub.s32 4, %v4171
      %v4196 = vsel %vm4111, %v4195, %v4171
      %v4197 = vsel %vm4110, %v3244, %v4194
      %v4198 = vsel %vm4110, 0, %v4196
      %v4199 = vcosq.f32.pop %v4197
      %v4200 = vsinq.f32.pop %v4197
      %vm4201 = vweird.f32 %v3244
      %v4202 = vadd.s32 %v4198, 3
      %v4203 = vand.u32 %v4202, 3
      %vm4204 = vcmp.lt.s32.totalorder %v4203, 2
      %vm4205 = vcmp.eq.s32.totalorder %v4203, 0
      %v4206 = vxor.u32 %v4200, 2147483648
      %v4207 = vsel %vm4205, %v4199, %v4206
      %vm4208 = vcmp.eq.s32.totalorder %v4203, 2
      %v4209 = vxor.u32 %v4199, 2147483648
      %v4210 = vsel %vm4208, %v4209, %v4200
      %v4211 = vsel %vm4204, %v4207, %v4210
      %v4212 = vsel %vm4201, nan, %v4211
      %v4213 = vand.u32 2147483647, %v3250
      %vm4214 = vcmp.le.f32.partialorder %v4213, 0.7853982
      %vm4215 = vcmp.lt.s32.totalorder %v3250, 0
      %v4216 = vand.u32 %v3250, 2139095040
      %v4217 = vshrl.u32 %v4216, 23
      %v4218 = vsub.s32 %v4217, 127
      %v4219 = vand.u32 2147483647, %v3250
      %v4220 = vand.u32 %v4219, 8388607
      %v4221 = vor.u32 %v4220, 8388608
      %v4222 = vsub.s32 0, %v4221
      %v4223 = vadd.s32 %v4218, 1
      %vm4224 = vcmp.gt.s32.totalorder %v4223, 0
      %v4225 = vsel %vm4224, %v4223, 0
      %v4226 = vshrl.u32 %v4225, 5
      %v4227 = vand.u32 %v4225, 31
      %v4228 = vsub.s32 32, %v4227
      %v4229 = vshrl.u32 683565275, %v4228
      %v4230 = vshll.u32 683565275, %v4227
      %v4231 = vshrl.u32 2475754826, %v4228
      %v4232 = vor.u32 %v4230, %v4231
      %v4233 = vshll.u32 2475754826, %v4227
      %v4234 = vshrl.u32 2131351028, %v4228
      %v4235 = vor.u32 %v4233, %v4234
      %v4236 = vshll.u32 2131351028, %v4227
      %v4237 = vshrl.u32 2102212464, %v4228
      %v4238 = vor.u32 %v4236, %v4237
      %v4239 = vshll.u32 2102212464, %v4227
      %v4240 = vshrl.u32 920167782, %v4228
      %v4241 = vor.u32 %v4239, %v4240
      %v4242 = vshll.u32 920167782, %v4227
      %v4243 = vshrl.u32 1326507024, %v4228
      %v4244 = vor.u32 %v4242, %v4243
      %vm4245 = vcmp.lt.s32.totalorder %v4226, 1
      %vm4246 = vcmp.lt.s32.totalorder %v4226, 2
      %vm4247 = vcmp.lt.s32.totalorder %v4226, 3
      %vm4248 = vcmp.lt.s32.totalorder %v4226, 4
      %v4249 = vsel %vm4245, %v4229, %v4232
      %v4250 = vsel %vm4248, %v4238, 2102212464
      %v4251 = vsel %vm4247, %v4235, %v4250
      %v4252 = vsel %vm4246, %v4249, %v4251
      %v4253 = vsel %vm4245, %v4232, %v4235
      %v4254 = vsel %vm4248, %v4241, 920167782
      %v4255 = vsel %vm4247, %v4238, %v4254
      %v4256 = vsel %vm4246, %v4253, %v4255
      %v4257 = vsel %vm4245, %v4235, %v4238
      %v4258 = vsel %vm4248, %v4244, 1326507024
      %v4259 = vsel %vm4247, %v4241, %v4258
      %v4260 = vsel %vm4246, %v4257, %v4259
      %v4261 = vshll.u32 %v4221, 8
      %v4262 = vmul.u32.u64.compose %v4261, %v4260
      %v4263 = vextract.low.u32 %v4262
      %v4264 = vextract.high.u32 %v4262
      %v4265 = vmul.u32.u64.compose %v4261, %v4256
      %v4266 = vextract.low.u32 %v4265
      %v4267 = vextract.high.u32 %v4265
      %v4268 = vmul.u32 %v4261, %v4252
      %v4269 = vadd.s32 %v4264, %v4266
      %vm4270 = vc.u32 %v4264, %v4266
      %v4271 = vadd.s32 %v4267, 1
      %v4272 = vsel %vm4270, %v4271, %v4267
      %v4273 = vadd.s32 %v4268, %v4272
      %v4274 = vadd.s32 %v4273, 536870912
      %v4275 = vshrl.u32 %v4274, 30
      %v4276 = vshll.u32 %v4275, 30
      %v4277 = vsub.s32 %v4273, %v4276
      %vm4278 = vcmp.lt.s32.totalorder %v4277, 0
      %v4279 = vsub.s32 0, %v4277
      %v4280 = vsel %vm4278, %v4279, %v4277
      %v4281 = vclz %v4280
      %v4282 = vsub.s32 %v4281, 2
      %vm4283 = vcmp.gt.s32.totalorder 0, %v4282
      %v4284 = vsel %vm4283, 0, %v4282
      %v4285 = vsub.s32 32, %v4284
      %v4286 = vshll.u32 %v4277, %v4284
      %v4287 = vshrl.u32 %v4269, %v4285
      %v4288 = vor.u32 %v4286, %v4287
      %v4289 = vsub.s32 4294967266, %v4284
      %v4290 = vadd.s32 %v4289, 127
      %v4291 = vshll.u32 %v4290, 23
      %v4292 = vor.u32 4788187, %v4291
      %v4293 = vand.u32 2147483647, %v4292
      %v4295 = vcvt.s32.f32 %v4288
      %v4296 = vmul.f32 %v4295, %v4293
      %v4297 = vxor.u32 %v4296, 2147483648
      %v4298 = vsel %vm4215, %v4297, %v4296
      %v4299 = vsub.s32 4, %v4275
      %v4300 = vsel %vm4215, %v4299, %v4275
      %v4301 = vsel %vm4214, %v3250, %v4298
      %v4302 = vsel %vm4214, 0, %v4300
      %v4303 = vcosq.f32.pop %v4301
      %v4304 = vsinq.f32.pop %v4301
      %vm4305 = vweird.f32 %v3250
      %v4306 = vadd.s32 %v4302, 3
      %v4307 = vand.u32 %v4306, 3
      %vm4308 = vcmp.lt.s32.totalorder %v4307, 2
      %vm4309 = vcmp.eq.s32.totalorder %v4307, 0
      %v4310 = vxor.u32 %v4304, 2147483648
      %v4311 = vsel %vm4309, %v4303, %v4310
      %vm4312 = vcmp.eq.s32.totalorder %v4307, 2
      %v4313 = vxor.u32 %v4303, 2147483648
      %v4314 = vsel %vm4312, %v4313, %v4304
      %v4315 = vsel %vm4308, %v4311, %v4314
      %v4316 = vsel %vm4305, nan, %v4315
      %v4317 = vand.u32 2147483647, %v3256
      %vm4318 = vcmp.le.f32.partialorder %v4317, 0.7853982
      %vm4319 = vcmp.lt.s32.totalorder %v3256, 0
      %v4320 = vand.u32 %v3256, 2139095040
      %v4321 = vshrl.u32 %v4320, 23
      %v4322 = vsub.s32 %v4321, 127
      %v4323 = vand.u32 2147483647, %v3256
      %v4324 = vand.u32 %v4323, 8388607
      %v4325 = vor.u32 %v4324, 8388608
      %v4326 = vsub.s32 0, %v4325
      %v4327 = vadd.s32 %v4322, 1
      %vm4328 = vcmp.gt.s32.totalorder %v4327, 0
      %v4329 = vsel %vm4328, %v4327, 0
      %v4330 = vshrl.u32 %v4329, 5
      %v4331 = vand.u32 %v4329, 31
      %v4332 = vsub.s32 32, %v4331
      %v4333 = vshrl.u32 683565275, %v4332
      %v4334 = vshll.u32 683565275, %v4331
      %v4335 = vshrl.u32 2475754826, %v4332
      %v4336 = vor.u32 %v4334, %v4335
      %v4337 = vshll.u32 2475754826, %v4331
      %v4338 = vshrl.u32 2131351028, %v4332
      %v4339 = vor.u32 %v4337, %v4338
      %v4340 = vshll.u32 2131351028, %v4331
      %v4341 = vshrl.u32 2102212464, %v4332
      %v4342 = vor.u32 %v4340, %v4341
      %v4343 = vshll.u32 2102212464, %v4331
      %v4344 = vshrl.u32 920167782, %v4332
      %v4345 = vor.u32 %v4343, %v4344
      %v4346 = vshll.u32 920167782, %v4331
      %v4347 = vshrl.u32 1326507024, %v4332
      %v4348 = vor.u32 %v4346, %v4347
      %vm4349 = vcmp.lt.s32.totalorder %v4330, 1
      %vm4350 = vcmp.lt.s32.totalorder %v4330, 2
      %vm4351 = vcmp.lt.s32.totalorder %v4330, 3
      %vm4352 = vcmp.lt.s32.totalorder %v4330, 4
      %v4353 = vsel %vm4349, %v4333, %v4336
      %v4354 = vsel %vm4352, %v4342, 2102212464
      %v4355 = vsel %vm4351, %v4339, %v4354
      %v4356 = vsel %vm4350, %v4353, %v4355
      %v4357 = vsel %vm4349, %v4336, %v4339
      %v4358 = vsel %vm4352, %v4345, 920167782
      %v4359 = vsel %vm4351, %v4342, %v4358
      %v4360 = vsel %vm4350, %v4357, %v4359
      %v4361 = vsel %vm4349, %v4339, %v4342
      %v4362 = vsel %vm4352, %v4348, 1326507024
      %v4363 = vsel %vm4351, %v4345, %v4362
      %v4364 = vsel %vm4350, %v4361, %v4363
      %v4365 = vshll.u32 %v4325, 8
      %v4366 = vmul.u32.u64.compose %v4365, %v4364
      %v4367 = vextract.low.u32 %v4366
      %v4368 = vextract.high.u32 %v4366
      %v4369 = vmul.u32.u64.compose %v4365, %v4360
      %v4370 = vextract.low.u32 %v4369
      %v4371 = vextract.high.u32 %v4369
      %v4372 = vmul.u32 %v4365, %v4356
      %v4373 = vadd.s32 %v4368, %v4370
      %vm4374 = vc.u32 %v4368, %v4370
      %v4375 = vadd.s32 %v4371, 1
      %v4376 = vsel %vm4374, %v4375, %v4371
      %v4377 = vadd.s32 %v4372, %v4376
      %v4378 = vadd.s32 %v4377, 536870912
      %v4379 = vshrl.u32 %v4378, 30
      %v4380 = vshll.u32 %v4379, 30
      %v4381 = vsub.s32 %v4377, %v4380
      %vm4382 = vcmp.lt.s32.totalorder %v4381, 0
      %v4383 = vsub.s32 0, %v4381
      %v4384 = vsel %vm4382, %v4383, %v4381
      %v4385 = vclz %v4384
      %v4386 = vsub.s32 %v4385, 2
      %vm4387 = vcmp.gt.s32.totalorder 0, %v4386
      %v4388 = vsel %vm4387, 0, %v4386
      %v4389 = vsub.s32 32, %v4388
      %v4390 = vshll.u32 %v4381, %v4388
      %v4391 = vshrl.u32 %v4373, %v4389
      %v4392 = vor.u32 %v4390, %v4391
      %v4393 = vsub.s32 4294967266, %v4388
      %v4394 = vadd.s32 %v4393, 127
      %v4395 = vshll.u32 %v4394, 23
      %v4396 = vor.u32 4788187, %v4395
      %v4397 = vand.u32 2147483647, %v4396
      %v4399 = vcvt.s32.f32 %v4392
      %v4400 = vmul.f32 %v4399, %v4397
      %v4401 = vxor.u32 %v4400, 2147483648
      %v4402 = vsel %vm4319, %v4401, %v4400
      %v4403 = vsub.s32 4, %v4379
      %v4404 = vsel %vm4319, %v4403, %v4379
      %v4405 = vsel %vm4318, %v3256, %v4402
      %v4406 = vsel %vm4318, 0, %v4404
      %v4407 = vcosq.f32.pop %v4405
      %v4408 = vsinq.f32.pop %v4405
      %vm4409 = vweird.f32 %v3256
      %v4410 = vadd.s32 %v4406, 3
      %v4411 = vand.u32 %v4410, 3
      %vm4412 = vcmp.lt.s32.totalorder %v4411, 2
      %vm4413 = vcmp.eq.s32.totalorder %v4411, 0
      %v4414 = vxor.u32 %v4408, 2147483648
      %v4415 = vsel %vm4413, %v4407, %v4414
      %vm4416 = vcmp.eq.s32.totalorder %v4411, 2
      %v4417 = vxor.u32 %v4407, 2147483648
      %v4418 = vsel %vm4416, %v4417, %v4408
      %v4419 = vsel %vm4412, %v4415, %v4418
      %v4420 = vsel %vm4409, nan, %v4419
      %v4421 = vand.u32 2147483647, %v3262
      %vm4422 = vcmp.le.f32.partialorder %v4421, 0.7853982
      %vm4423 = vcmp.lt.s32.totalorder %v3262, 0
      %v4424 = vand.u32 %v3262, 2139095040
      %v4425 = vshrl.u32 %v4424, 23
      %v4426 = vsub.s32 %v4425, 127
      %v4427 = vand.u32 2147483647, %v3262
      %v4428 = vand.u32 %v4427, 8388607
      %v4429 = vor.u32 %v4428, 8388608
      %v4430 = vsub.s32 0, %v4429
      %v4431 = vadd.s32 %v4426, 1
      %vm4432 = vcmp.gt.s32.totalorder %v4431, 0
      %v4433 = vsel %vm4432, %v4431, 0
      %v4434 = vshrl.u32 %v4433, 5
      %v4435 = vand.u32 %v4433, 31
      %v4436 = vsub.s32 32, %v4435
      %v4437 = vshrl.u32 683565275, %v4436
      %v4438 = vshll.u32 683565275, %v4435
      %v4439 = vshrl.u32 2475754826, %v4436
      %v4440 = vor.u32 %v4438, %v4439
      %v4441 = vshll.u32 2475754826, %v4435
      %v4442 = vshrl.u32 2131351028, %v4436
      %v4443 = vor.u32 %v4441, %v4442
      %v4444 = vshll.u32 2131351028, %v4435
      %v4445 = vshrl.u32 2102212464, %v4436
      %v4446 = vor.u32 %v4444, %v4445
      %v4447 = vshll.u32 2102212464, %v4435
      %v4448 = vshrl.u32 920167782, %v4436
      %v4449 = vor.u32 %v4447, %v4448
      %v4450 = vshll.u32 920167782, %v4435
      %v4451 = vshrl.u32 1326507024, %v4436
      %v4452 = vor.u32 %v4450, %v4451
      %vm4453 = vcmp.lt.s32.totalorder %v4434, 1
      %vm4454 = vcmp.lt.s32.totalorder %v4434, 2
      %vm4455 = vcmp.lt.s32.totalorder %v4434, 3
      %vm4456 = vcmp.lt.s32.totalorder %v4434, 4
      %v4457 = vsel %vm4453, %v4437, %v4440
      %v4458 = vsel %vm4456, %v4446, 2102212464
      %v4459 = vsel %vm4455, %v4443, %v4458
      %v4460 = vsel %vm4454, %v4457, %v4459
      %v4461 = vsel %vm4453, %v4440, %v4443
      %v4462 = vsel %vm4456, %v4449, 920167782
      %v4463 = vsel %vm4455, %v4446, %v4462
      %v4464 = vsel %vm4454, %v4461, %v4463
      %v4465 = vsel %vm4453, %v4443, %v4446
      %v4466 = vsel %vm4456, %v4452, 1326507024
      %v4467 = vsel %vm4455, %v4449, %v4466
      %v4468 = vsel %vm4454, %v4465, %v4467
      %v4469 = vshll.u32 %v4429, 8
      %v4470 = vmul.u32.u64.compose %v4469, %v4468
      %v4471 = vextract.low.u32 %v4470
      %v4472 = vextract.high.u32 %v4470
      %v4473 = vmul.u32.u64.compose %v4469, %v4464
      %v4474 = vextract.low.u32 %v4473
      %v4475 = vextract.high.u32 %v4473
      %v4476 = vmul.u32 %v4469, %v4460
      %v4477 = vadd.s32 %v4472, %v4474
      %vm4478 = vc.u32 %v4472, %v4474
      %v4479 = vadd.s32 %v4475, 1
      %v4480 = vsel %vm4478, %v4479, %v4475
      %v4481 = vadd.s32 %v4476, %v4480
      %v4482 = vadd.s32 %v4481, 536870912
      %v4483 = vshrl.u32 %v4482, 30
      %v4484 = vshll.u32 %v4483, 30
      %v4485 = vsub.s32 %v4481, %v4484
      %vm4486 = vcmp.lt.s32.totalorder %v4485, 0
      %v4487 = vsub.s32 0, %v4485
      %v4488 = vsel %vm4486, %v4487, %v4485
      %v4489 = vclz %v4488
      %v4490 = vsub.s32 %v4489, 2
      %vm4491 = vcmp.gt.s32.totalorder 0, %v4490
      %v4492 = vsel %vm4491, 0, %v4490
      %v4493 = vsub.s32 32, %v4492
      %v4494 = vshll.u32 %v4485, %v4492
      %v4495 = vshrl.u32 %v4477, %v4493
      %v4496 = vor.u32 %v4494, %v4495
      %v4497 = vsub.s32 4294967266, %v4492
      %v4498 = vadd.s32 %v4497, 127
      %v4499 = vshll.u32 %v4498, 23
      %v4500 = vor.u32 4788187, %v4499
      %v4501 = vand.u32 2147483647, %v4500
      %v4503 = vcvt.s32.f32 %v4496
      %v4504 = vmul.f32 %v4503, %v4501
      %v4505 = vxor.u32 %v4504, 2147483648
      %v4506 = vsel %vm4423, %v4505, %v4504
      %v4507 = vsub.s32 4, %v4483
      %v4508 = vsel %vm4423, %v4507, %v4483
      %v4509 = vsel %vm4422, %v3262, %v4506
      %v4510 = vsel %vm4422, 0, %v4508
      %v4511 = vcosq.f32.pop %v4509
      %v4512 = vsinq.f32.pop %v4509
      %vm4513 = vweird.f32 %v3262
      %v4514 = vadd.s32 %v4510, 3
      %v4515 = vand.u32 %v4514, 3
      %vm4516 = vcmp.lt.s32.totalorder %v4515, 2
      %vm4517 = vcmp.eq.s32.totalorder %v4515, 0
      %v4518 = vxor.u32 %v4512, 2147483648
      %v4519 = vsel %vm4517, %v4511, %v4518
      %vm4520 = vcmp.eq.s32.totalorder %v4515, 2
      %v4521 = vxor.u32 %v4511, 2147483648
      %v4522 = vsel %vm4520, %v4521, %v4512
      %v4523 = vsel %vm4516, %v4519, %v4522
      %v4524 = vsel %vm4513, nan, %v4523
      %v4525 = vand.u32 2147483647, %v3268
      %vm4526 = vcmp.le.f32.partialorder %v4525, 0.7853982
      %vm4527 = vcmp.lt.s32.totalorder %v3268, 0
      %v4528 = vand.u32 %v3268, 2139095040
      %v4529 = vshrl.u32 %v4528, 23
      %v4530 = vsub.s32 %v4529, 127
      %v4531 = vand.u32 2147483647, %v3268
      %v4532 = vand.u32 %v4531, 8388607
      %v4533 = vor.u32 %v4532, 8388608
      %v4534 = vsub.s32 0, %v4533
      %v4535 = vadd.s32 %v4530, 1
      %vm4536 = vcmp.gt.s32.totalorder %v4535, 0
      %v4537 = vsel %vm4536, %v4535, 0
      %v4538 = vshrl.u32 %v4537, 5
      %v4539 = vand.u32 %v4537, 31
      %v4540 = vsub.s32 32, %v4539
      %v4541 = vshrl.u32 683565275, %v4540
      %v4542 = vshll.u32 683565275, %v4539
      %v4543 = vshrl.u32 2475754826, %v4540
      %v4544 = vor.u32 %v4542, %v4543
      %v4545 = vshll.u32 2475754826, %v4539
      %v4546 = vshrl.u32 2131351028, %v4540
      %v4547 = vor.u32 %v4545, %v4546
      %v4548 = vshll.u32 2131351028, %v4539
      %v4549 = vshrl.u32 2102212464, %v4540
      %v4550 = vor.u32 %v4548, %v4549
      %v4551 = vshll.u32 2102212464, %v4539
      %v4552 = vshrl.u32 920167782, %v4540
      %v4553 = vor.u32 %v4551, %v4552
      %v4554 = vshll.u32 920167782, %v4539
      %v4555 = vshrl.u32 1326507024, %v4540
      %v4556 = vor.u32 %v4554, %v4555
      %vm4557 = vcmp.lt.s32.totalorder %v4538, 1
      %vm4558 = vcmp.lt.s32.totalorder %v4538, 2
      %vm4559 = vcmp.lt.s32.totalorder %v4538, 3
      %vm4560 = vcmp.lt.s32.totalorder %v4538, 4
      %v4561 = vsel %vm4557, %v4541, %v4544
      %v4562 = vsel %vm4560, %v4550, 2102212464
      %v4563 = vsel %vm4559, %v4547, %v4562
      %v4564 = vsel %vm4558, %v4561, %v4563
      %v4565 = vsel %vm4557, %v4544, %v4547
      %v4566 = vsel %vm4560, %v4553, 920167782
      %v4567 = vsel %vm4559, %v4550, %v4566
      %v4568 = vsel %vm4558, %v4565, %v4567
      %v4569 = vsel %vm4557, %v4547, %v4550
      %v4570 = vsel %vm4560, %v4556, 1326507024
      %v4571 = vsel %vm4559, %v4553, %v4570
      %v4572 = vsel %vm4558, %v4569, %v4571
      %v4573 = vshll.u32 %v4533, 8
      %v4574 = vmul.u32.u64.compose %v4573, %v4572
      %v4575 = vextract.low.u32 %v4574
      %v4576 = vextract.high.u32 %v4574
      %v4577 = vmul.u32.u64.compose %v4573, %v4568
      %v4578 = vextract.low.u32 %v4577
      %v4579 = vextract.high.u32 %v4577
      %v4580 = vmul.u32 %v4573, %v4564
      %v4581 = vadd.s32 %v4576, %v4578
      %vm4582 = vc.u32 %v4576, %v4578
      %v4583 = vadd.s32 %v4579, 1
      %v4584 = vsel %vm4582, %v4583, %v4579
      %v4585 = vadd.s32 %v4580, %v4584
      %v4586 = vadd.s32 %v4585, 536870912
      %v4587 = vshrl.u32 %v4586, 30
      %v4588 = vshll.u32 %v4587, 30
      %v4589 = vsub.s32 %v4585, %v4588
      %vm4590 = vcmp.lt.s32.totalorder %v4589, 0
      %v4591 = vsub.s32 0, %v4589
      %v4592 = vsel %vm4590, %v4591, %v4589
      %v4593 = vclz %v4592
      %v4594 = vsub.s32 %v4593, 2
      %vm4595 = vcmp.gt.s32.totalorder 0, %v4594
      %v4596 = vsel %vm4595, 0, %v4594
      %v4597 = vsub.s32 32, %v4596
      %v4598 = vshll.u32 %v4589, %v4596
      %v4599 = vshrl.u32 %v4581, %v4597
      %v4600 = vor.u32 %v4598, %v4599
      %v4601 = vsub.s32 4294967266, %v4596
      %v4602 = vadd.s32 %v4601, 127
      %v4603 = vshll.u32 %v4602, 23
      %v4604 = vor.u32 4788187, %v4603
      %v4605 = vand.u32 2147483647, %v4604
      %v4607 = vcvt.s32.f32 %v4600
      %v4608 = vmul.f32 %v4607, %v4605
      %v4609 = vxor.u32 %v4608, 2147483648
      %v4610 = vsel %vm4527, %v4609, %v4608
      %v4611 = vsub.s32 4, %v4587
      %v4612 = vsel %vm4527, %v4611, %v4587
      %v4613 = vsel %vm4526, %v3268, %v4610
      %v4614 = vsel %vm4526, 0, %v4612
      %v4615 = vcosq.f32.pop %v4613
      %v4616 = vsinq.f32.pop %v4613
      %vm4617 = vweird.f32 %v3268
      %v4618 = vadd.s32 %v4614, 3
      %v4619 = vand.u32 %v4618, 3
      %vm4620 = vcmp.lt.s32.totalorder %v4619, 2
      %vm4621 = vcmp.eq.s32.totalorder %v4619, 0
      %v4622 = vxor.u32 %v4616, 2147483648
      %v4623 = vsel %vm4621, %v4615, %v4622
      %vm4624 = vcmp.eq.s32.totalorder %v4619, 2
      %v4625 = vxor.u32 %v4615, 2147483648
      %v4626 = vsel %vm4624, %v4625, %v4616
      %v4627 = vsel %vm4620, %v4623, %v4626
      %v4628 = vsel %vm4617, nan, %v4627
      %v4629 = vand.u32 2147483647, %v3274
      %vm4630 = vcmp.le.f32.partialorder %v4629, 0.7853982
      %vm4631 = vcmp.lt.s32.totalorder %v3274, 0
      %v4632 = vand.u32 %v3274, 2139095040
      %v4633 = vshrl.u32 %v4632, 23
      %v4634 = vsub.s32 %v4633, 127
      %v4635 = vand.u32 2147483647, %v3274
      %v4636 = vand.u32 %v4635, 8388607
      %v4637 = vor.u32 %v4636, 8388608
      %v4638 = vsub.s32 0, %v4637
      %v4639 = vadd.s32 %v4634, 1
      %vm4640 = vcmp.gt.s32.totalorder %v4639, 0
      %v4641 = vsel %vm4640, %v4639, 0
      %v4642 = vshrl.u32 %v4641, 5
      %v4643 = vand.u32 %v4641, 31
      %v4644 = vsub.s32 32, %v4643
      %v4645 = vshrl.u32 683565275, %v4644
      %v4646 = vshll.u32 683565275, %v4643
      %v4647 = vshrl.u32 2475754826, %v4644
      %v4648 = vor.u32 %v4646, %v4647
      %v4649 = vshll.u32 2475754826, %v4643
      %v4650 = vshrl.u32 2131351028, %v4644
      %v4651 = vor.u32 %v4649, %v4650
      %v4652 = vshll.u32 2131351028, %v4643
      %v4653 = vshrl.u32 2102212464, %v4644
      %v4654 = vor.u32 %v4652, %v4653
      %v4655 = vshll.u32 2102212464, %v4643
      %v4656 = vshrl.u32 920167782, %v4644
      %v4657 = vor.u32 %v4655, %v4656
      %v4658 = vshll.u32 920167782, %v4643
      %v4659 = vshrl.u32 1326507024, %v4644
      %v4660 = vor.u32 %v4658, %v4659
      %vm4661 = vcmp.lt.s32.totalorder %v4642, 1
      %vm4662 = vcmp.lt.s32.totalorder %v4642, 2
      %vm4663 = vcmp.lt.s32.totalorder %v4642, 3
      %vm4664 = vcmp.lt.s32.totalorder %v4642, 4
      %v4665 = vsel %vm4661, %v4645, %v4648
      %v4666 = vsel %vm4664, %v4654, 2102212464
      %v4667 = vsel %vm4663, %v4651, %v4666
      %v4668 = vsel %vm4662, %v4665, %v4667
      %v4669 = vsel %vm4661, %v4648, %v4651
      %v4670 = vsel %vm4664, %v4657, 920167782
      %v4671 = vsel %vm4663, %v4654, %v4670
      %v4672 = vsel %vm4662, %v4669, %v4671
      %v4673 = vsel %vm4661, %v4651, %v4654
      %v4674 = vsel %vm4664, %v4660, 1326507024
      %v4675 = vsel %vm4663, %v4657, %v4674
      %v4676 = vsel %vm4662, %v4673, %v4675
      %v4677 = vshll.u32 %v4637, 8
      %v4678 = vmul.u32.u64.compose %v4677, %v4676
      %v4679 = vextract.low.u32 %v4678
      %v4680 = vextract.high.u32 %v4678
      %v4681 = vmul.u32.u64.compose %v4677, %v4672
      %v4682 = vextract.low.u32 %v4681
      %v4683 = vextract.high.u32 %v4681
      %v4684 = vmul.u32 %v4677, %v4668
      %v4685 = vadd.s32 %v4680, %v4682
      %vm4686 = vc.u32 %v4680, %v4682
      %v4687 = vadd.s32 %v4683, 1
      %v4688 = vsel %vm4686, %v4687, %v4683
      %v4689 = vadd.s32 %v4684, %v4688
      %v4690 = vadd.s32 %v4689, 536870912
      %v4691 = vshrl.u32 %v4690, 30
      %v4692 = vshll.u32 %v4691, 30
      %v4693 = vsub.s32 %v4689, %v4692
      %vm4694 = vcmp.lt.s32.totalorder %v4693, 0
      %v4695 = vsub.s32 0, %v4693
      %v4696 = vsel %vm4694, %v4695, %v4693
      %v4697 = vclz %v4696
      %v4698 = vsub.s32 %v4697, 2
      %vm4699 = vcmp.gt.s32.totalorder 0, %v4698
      %v4700 = vsel %vm4699, 0, %v4698
      %v4701 = vsub.s32 32, %v4700
      %v4702 = vshll.u32 %v4693, %v4700
      %v4703 = vshrl.u32 %v4685, %v4701
      %v4704 = vor.u32 %v4702, %v4703
      %v4705 = vsub.s32 4294967266, %v4700
      %v4706 = vadd.s32 %v4705, 127
      %v4707 = vshll.u32 %v4706, 23
      %v4708 = vor.u32 4788187, %v4707
      %v4709 = vand.u32 2147483647, %v4708
      %v4711 = vcvt.s32.f32 %v4704
      %v4712 = vmul.f32 %v4711, %v4709
      %v4713 = vxor.u32 %v4712, 2147483648
      %v4714 = vsel %vm4631, %v4713, %v4712
      %v4715 = vsub.s32 4, %v4691
      %v4716 = vsel %vm4631, %v4715, %v4691
      %v4717 = vsel %vm4630, %v3274, %v4714
      %v4718 = vsel %vm4630, 0, %v4716
      %v4719 = vcosq.f32.pop %v4717
      %v4720 = vsinq.f32.pop %v4717
      %vm4721 = vweird.f32 %v3274
      %v4722 = vadd.s32 %v4718, 3
      %v4723 = vand.u32 %v4722, 3
      %vm4724 = vcmp.lt.s32.totalorder %v4723, 2
      %vm4725 = vcmp.eq.s32.totalorder %v4723, 0
      %v4726 = vxor.u32 %v4720, 2147483648
      %v4727 = vsel %vm4725, %v4719, %v4726
      %vm4728 = vcmp.eq.s32.totalorder %v4723, 2
      %v4729 = vxor.u32 %v4719, 2147483648
      %v4730 = vsel %vm4728, %v4729, %v4720
      %v4731 = vsel %vm4724, %v4727, %v4730
      %v4732 = vsel %vm4721, nan, %v4731
      %v4733 = vand.u32 2147483647, %v3280
      %vm4734 = vcmp.le.f32.partialorder %v4733, 0.7853982
      %vm4735 = vcmp.lt.s32.totalorder %v3280, 0
      %v4736 = vand.u32 %v3280, 2139095040
      %v4737 = vshrl.u32 %v4736, 23
      %v4738 = vsub.s32 %v4737, 127
      %v4739 = vand.u32 2147483647, %v3280
      %v4740 = vand.u32 %v4739, 8388607
      %v4741 = vor.u32 %v4740, 8388608
      %v4742 = vsub.s32 0, %v4741
      %v4743 = vadd.s32 %v4738, 1
      %vm4744 = vcmp.gt.s32.totalorder %v4743, 0
      %v4745 = vsel %vm4744, %v4743, 0
      %v4746 = vshrl.u32 %v4745, 5
      %v4747 = vand.u32 %v4745, 31
      %v4748 = vsub.s32 32, %v4747
      %v4749 = vshrl.u32 683565275, %v4748
      %v4750 = vshll.u32 683565275, %v4747
      %v4751 = vshrl.u32 2475754826, %v4748
      %v4752 = vor.u32 %v4750, %v4751
      %v4753 = vshll.u32 2475754826, %v4747
      %v4754 = vshrl.u32 2131351028, %v4748
      %v4755 = vor.u32 %v4753, %v4754
      %v4756 = vshll.u32 2131351028, %v4747
      %v4757 = vshrl.u32 2102212464, %v4748
      %v4758 = vor.u32 %v4756, %v4757
      %v4759 = vshll.u32 2102212464, %v4747
      %v4760 = vshrl.u32 920167782, %v4748
      %v4761 = vor.u32 %v4759, %v4760
      %v4762 = vshll.u32 920167782, %v4747
      %v4763 = vshrl.u32 1326507024, %v4748
      %v4764 = vor.u32 %v4762, %v4763
      %vm4765 = vcmp.lt.s32.totalorder %v4746, 1
      %vm4766 = vcmp.lt.s32.totalorder %v4746, 2
      %vm4767 = vcmp.lt.s32.totalorder %v4746, 3
      %vm4768 = vcmp.lt.s32.totalorder %v4746, 4
      %v4769 = vsel %vm4765, %v4749, %v4752
      %v4770 = vsel %vm4768, %v4758, 2102212464
      %v4771 = vsel %vm4767, %v4755, %v4770
      %v4772 = vsel %vm4766, %v4769, %v4771
      %v4773 = vsel %vm4765, %v4752, %v4755
      %v4774 = vsel %vm4768, %v4761, 920167782
      %v4775 = vsel %vm4767, %v4758, %v4774
      %v4776 = vsel %vm4766, %v4773, %v4775
      %v4777 = vsel %vm4765, %v4755, %v4758
      %v4778 = vsel %vm4768, %v4764, 1326507024
      %v4779 = vsel %vm4767, %v4761, %v4778
      %v4780 = vsel %vm4766, %v4777, %v4779
      %v4781 = vshll.u32 %v4741, 8
      %v4782 = vmul.u32.u64.compose %v4781, %v4780
      %v4783 = vextract.low.u32 %v4782
      %v4784 = vextract.high.u32 %v4782
      %v4785 = vmul.u32.u64.compose %v4781, %v4776
      %v4786 = vextract.low.u32 %v4785
      %v4787 = vextract.high.u32 %v4785
      %v4788 = vmul.u32 %v4781, %v4772
      %v4789 = vadd.s32 %v4784, %v4786
      %vm4790 = vc.u32 %v4784, %v4786
      %v4791 = vadd.s32 %v4787, 1
      %v4792 = vsel %vm4790, %v4791, %v4787
      %v4793 = vadd.s32 %v4788, %v4792
      %v4794 = vadd.s32 %v4793, 536870912
      %v4795 = vshrl.u32 %v4794, 30
      %v4796 = vshll.u32 %v4795, 30
      %v4797 = vsub.s32 %v4793, %v4796
      %vm4798 = vcmp.lt.s32.totalorder %v4797, 0
      %v4799 = vsub.s32 0, %v4797
      %v4800 = vsel %vm4798, %v4799, %v4797
      %v4801 = vclz %v4800
      %v4802 = vsub.s32 %v4801, 2
      %vm4803 = vcmp.gt.s32.totalorder 0, %v4802
      %v4804 = vsel %vm4803, 0, %v4802
      %v4805 = vsub.s32 32, %v4804
      %v4806 = vshll.u32 %v4797, %v4804
      %v4807 = vshrl.u32 %v4789, %v4805
      %v4808 = vor.u32 %v4806, %v4807
      %v4809 = vsub.s32 4294967266, %v4804
      %v4810 = vadd.s32 %v4809, 127
      %v4811 = vshll.u32 %v4810, 23
      %v4812 = vor.u32 4788187, %v4811
      %v4813 = vand.u32 2147483647, %v4812
      %v4815 = vcvt.s32.f32 %v4808
      %v4816 = vmul.f32 %v4815, %v4813
      %v4817 = vxor.u32 %v4816, 2147483648
      %v4818 = vsel %vm4735, %v4817, %v4816
      %v4819 = vsub.s32 4, %v4795
      %v4820 = vsel %vm4735, %v4819, %v4795
      %v4821 = vsel %vm4734, %v3280, %v4818
      %v4822 = vsel %vm4734, 0, %v4820
      %v4823 = vcosq.f32.pop %v4821
      %v4824 = vsinq.f32.pop %v4821
      %vm4825 = vweird.f32 %v3280
      %v4826 = vadd.s32 %v4822, 3
      %v4827 = vand.u32 %v4826, 3
      %vm4828 = vcmp.lt.s32.totalorder %v4827, 2
      %vm4829 = vcmp.eq.s32.totalorder %v4827, 0
      %v4830 = vxor.u32 %v4824, 2147483648
      %v4831 = vsel %vm4829, %v4823, %v4830
      %vm4832 = vcmp.eq.s32.totalorder %v4827, 2
      %v4833 = vxor.u32 %v4823, 2147483648
      %v4834 = vsel %vm4832, %v4833, %v4824
      %v4835 = vsel %vm4828, %v4831, %v4834
      %v4836 = vsel %vm4825, nan, %v4835
      %v4837 = vand.u32 2147483647, %v3286
      %vm4838 = vcmp.le.f32.partialorder %v4837, 0.7853982
      %vm4839 = vcmp.lt.s32.totalorder %v3286, 0
      %v4840 = vand.u32 %v3286, 2139095040
      %v4841 = vshrl.u32 %v4840, 23
      %v4842 = vsub.s32 %v4841, 127
      %v4843 = vand.u32 2147483647, %v3286
      %v4844 = vand.u32 %v4843, 8388607
      %v4845 = vor.u32 %v4844, 8388608
      %v4846 = vsub.s32 0, %v4845
      %v4847 = vadd.s32 %v4842, 1
      %vm4848 = vcmp.gt.s32.totalorder %v4847, 0
      %v4849 = vsel %vm4848, %v4847, 0
      %v4850 = vshrl.u32 %v4849, 5
      %v4851 = vand.u32 %v4849, 31
      %v4852 = vsub.s32 32, %v4851
      %v4853 = vshrl.u32 683565275, %v4852
      %v4854 = vshll.u32 683565275, %v4851
      %v4855 = vshrl.u32 2475754826, %v4852
      %v4856 = vor.u32 %v4854, %v4855
      %v4857 = vshll.u32 2475754826, %v4851
      %v4858 = vshrl.u32 2131351028, %v4852
      %v4859 = vor.u32 %v4857, %v4858
      %v4860 = vshll.u32 2131351028, %v4851
      %v4861 = vshrl.u32 2102212464, %v4852
      %v4862 = vor.u32 %v4860, %v4861
      %v4863 = vshll.u32 2102212464, %v4851
      %v4864 = vshrl.u32 920167782, %v4852
      %v4865 = vor.u32 %v4863, %v4864
      %v4866 = vshll.u32 920167782, %v4851
      %v4867 = vshrl.u32 1326507024, %v4852
      %v4868 = vor.u32 %v4866, %v4867
      %vm4869 = vcmp.lt.s32.totalorder %v4850, 1
      %vm4870 = vcmp.lt.s32.totalorder %v4850, 2
      %vm4871 = vcmp.lt.s32.totalorder %v4850, 3
      %vm4872 = vcmp.lt.s32.totalorder %v4850, 4
      %v4873 = vsel %vm4869, %v4853, %v4856
      %v4874 = vsel %vm4872, %v4862, 2102212464
      %v4875 = vsel %vm4871, %v4859, %v4874
      %v4876 = vsel %vm4870, %v4873, %v4875
      %v4877 = vsel %vm4869, %v4856, %v4859
      %v4878 = vsel %vm4872, %v4865, 920167782
      %v4879 = vsel %vm4871, %v4862, %v4878
      %v4880 = vsel %vm4870, %v4877, %v4879
      %v4881 = vsel %vm4869, %v4859, %v4862
      %v4882 = vsel %vm4872, %v4868, 1326507024
      %v4883 = vsel %vm4871, %v4865, %v4882
      %v4884 = vsel %vm4870, %v4881, %v4883
      %v4885 = vshll.u32 %v4845, 8
      %v4886 = vmul.u32.u64.compose %v4885, %v4884
      %v4887 = vextract.low.u32 %v4886
      %v4888 = vextract.high.u32 %v4886
      %v4889 = vmul.u32.u64.compose %v4885, %v4880
      %v4890 = vextract.low.u32 %v4889
      %v4891 = vextract.high.u32 %v4889
      %v4892 = vmul.u32 %v4885, %v4876
      %v4893 = vadd.s32 %v4888, %v4890
      %vm4894 = vc.u32 %v4888, %v4890
      %v4895 = vadd.s32 %v4891, 1
      %v4896 = vsel %vm4894, %v4895, %v4891
      %v4897 = vadd.s32 %v4892, %v4896
      %v4898 = vadd.s32 %v4897, 536870912
      %v4899 = vshrl.u32 %v4898, 30
      %v4900 = vshll.u32 %v4899, 30
      %v4901 = vsub.s32 %v4897, %v4900
      %vm4902 = vcmp.lt.s32.totalorder %v4901, 0
      %v4903 = vsub.s32 0, %v4901
      %v4904 = vsel %vm4902, %v4903, %v4901
      %v4905 = vclz %v4904
      %v4906 = vsub.s32 %v4905, 2
      %vm4907 = vcmp.gt.s32.totalorder 0, %v4906
      %v4908 = vsel %vm4907, 0, %v4906
      %v4909 = vsub.s32 32, %v4908
      %v4910 = vshll.u32 %v4901, %v4908
      %v4911 = vshrl.u32 %v4893, %v4909
      %v4912 = vor.u32 %v4910, %v4911
      %v4913 = vsub.s32 4294967266, %v4908
      %v4914 = vadd.s32 %v4913, 127
      %v4915 = vshll.u32 %v4914, 23
      %v4916 = vor.u32 4788187, %v4915
      %v4917 = vand.u32 2147483647, %v4916
      %v4919 = vcvt.s32.f32 %v4912
      %v4920 = vmul.f32 %v4919, %v4917
      %v4921 = vxor.u32 %v4920, 2147483648
      %v4922 = vsel %vm4839, %v4921, %v4920
      %v4923 = vsub.s32 4, %v4899
      %v4924 = vsel %vm4839, %v4923, %v4899
      %v4925 = vsel %vm4838, %v3286, %v4922
      %v4926 = vsel %vm4838, 0, %v4924
      %v4927 = vcosq.f32.pop %v4925
      %v4928 = vsinq.f32.pop %v4925
      %vm4929 = vweird.f32 %v3286
      %v4930 = vadd.s32 %v4926, 3
      %v4931 = vand.u32 %v4930, 3
      %vm4932 = vcmp.lt.s32.totalorder %v4931, 2
      %vm4933 = vcmp.eq.s32.totalorder %v4931, 0
      %v4934 = vxor.u32 %v4928, 2147483648
      %v4935 = vsel %vm4933, %v4927, %v4934
      %vm4936 = vcmp.eq.s32.totalorder %v4931, 2
      %v4937 = vxor.u32 %v4927, 2147483648
      %v4938 = vsel %vm4936, %v4937, %v4928
      %v4939 = vsel %vm4932, %v4935, %v4938
      %v4940 = vsel %vm4929, nan, %v4939
      %v4941 = vand.u32 2147483647, %v3292
      %vm4942 = vcmp.le.f32.partialorder %v4941, 0.7853982
      %vm4943 = vcmp.lt.s32.totalorder %v3292, 0
      %v4944 = vand.u32 %v3292, 2139095040
      %v4945 = vshrl.u32 %v4944, 23
      %v4946 = vsub.s32 %v4945, 127
      %v4947 = vand.u32 2147483647, %v3292
      %v4948 = vand.u32 %v4947, 8388607
      %v4949 = vor.u32 %v4948, 8388608
      %v4950 = vsub.s32 0, %v4949
      %v4951 = vadd.s32 %v4946, 1
      %vm4952 = vcmp.gt.s32.totalorder %v4951, 0
      %v4953 = vsel %vm4952, %v4951, 0
      %v4954 = vshrl.u32 %v4953, 5
      %v4955 = vand.u32 %v4953, 31
      %v4956 = vsub.s32 32, %v4955
      %v4957 = vshrl.u32 683565275, %v4956
      %v4958 = vshll.u32 683565275, %v4955
      %v4959 = vshrl.u32 2475754826, %v4956
      %v4960 = vor.u32 %v4958, %v4959
      %v4961 = vshll.u32 2475754826, %v4955
      %v4962 = vshrl.u32 2131351028, %v4956
      %v4963 = vor.u32 %v4961, %v4962
      %v4964 = vshll.u32 2131351028, %v4955
      %v4965 = vshrl.u32 2102212464, %v4956
      %v4966 = vor.u32 %v4964, %v4965
      %v4967 = vshll.u32 2102212464, %v4955
      %v4968 = vshrl.u32 920167782, %v4956
      %v4969 = vor.u32 %v4967, %v4968
      %v4970 = vshll.u32 920167782, %v4955
      %v4971 = vshrl.u32 1326507024, %v4956
      %v4972 = vor.u32 %v4970, %v4971
      %vm4973 = vcmp.lt.s32.totalorder %v4954, 1
      %vm4974 = vcmp.lt.s32.totalorder %v4954, 2
      %vm4975 = vcmp.lt.s32.totalorder %v4954, 3
      %vm4976 = vcmp.lt.s32.totalorder %v4954, 4
      %v4977 = vsel %vm4973, %v4957, %v4960
      %v4978 = vsel %vm4976, %v4966, 2102212464
      %v4979 = vsel %vm4975, %v4963, %v4978
      %v4980 = vsel %vm4974, %v4977, %v4979
      %v4981 = vsel %vm4973, %v4960, %v4963
      %v4982 = vsel %vm4976, %v4969, 920167782
      %v4983 = vsel %vm4975, %v4966, %v4982
      %v4984 = vsel %vm4974, %v4981, %v4983
      %v4985 = vsel %vm4973, %v4963, %v4966
      %v4986 = vsel %vm4976, %v4972, 1326507024
      %v4987 = vsel %vm4975, %v4969, %v4986
      %v4988 = vsel %vm4974, %v4985, %v4987
      %v4989 = vshll.u32 %v4949, 8
      %v4990 = vmul.u32.u64.compose %v4989, %v4988
      %v4991 = vextract.low.u32 %v4990
      %v4992 = vextract.high.u32 %v4990
      %v4993 = vmul.u32.u64.compose %v4989, %v4984
      %v4994 = vextract.low.u32 %v4993
      %v4995 = vextract.high.u32 %v4993
      %v4996 = vmul.u32 %v4989, %v4980
      %v4997 = vadd.s32 %v4992, %v4994
      %vm4998 = vc.u32 %v4992, %v4994
      %v4999 = vadd.s32 %v4995, 1
      %v5000 = vsel %vm4998, %v4999, %v4995
      %v5001 = vadd.s32 %v4996, %v5000
      %v5002 = vadd.s32 %v5001, 536870912
      %v5003 = vshrl.u32 %v5002, 30
      %v5004 = vshll.u32 %v5003, 30
      %v5005 = vsub.s32 %v5001, %v5004
      %vm5006 = vcmp.lt.s32.totalorder %v5005, 0
      %v5007 = vsub.s32 0, %v5005
      %v5008 = vsel %vm5006, %v5007, %v5005
      %v5009 = vclz %v5008
      %v5010 = vsub.s32 %v5009, 2
      %vm5011 = vcmp.gt.s32.totalorder 0, %v5010
      %v5012 = vsel %vm5011, 0, %v5010
      %v5013 = vsub.s32 32, %v5012
      %v5014 = vshll.u32 %v5005, %v5012
      %v5015 = vshrl.u32 %v4997, %v5013
      %v5016 = vor.u32 %v5014, %v5015
      %v5017 = vsub.s32 4294967266, %v5012
      %v5018 = vadd.s32 %v5017, 127
      %v5019 = vshll.u32 %v5018, 23
      %v5020 = vor.u32 4788187, %v5019
      %v5021 = vand.u32 2147483647, %v5020
      %v5023 = vcvt.s32.f32 %v5016
      %v5024 = vmul.f32 %v5023, %v5021
      %v5025 = vxor.u32 %v5024, 2147483648
      %v5026 = vsel %vm4943, %v5025, %v5024
      %v5027 = vsub.s32 4, %v5003
      %v5028 = vsel %vm4943, %v5027, %v5003
      %v5029 = vsel %vm4942, %v3292, %v5026
      %v5030 = vsel %vm4942, 0, %v5028
      %v5031 = vcosq.f32.pop %v5029
      %v5032 = vsinq.f32.pop %v5029
      %vm5033 = vweird.f32 %v3292
      %v5034 = vadd.s32 %v5030, 3
      %v5035 = vand.u32 %v5034, 3
      %vm5036 = vcmp.lt.s32.totalorder %v5035, 2
      %vm5037 = vcmp.eq.s32.totalorder %v5035, 0
      %v5038 = vxor.u32 %v5032, 2147483648
      %v5039 = vsel %vm5037, %v5031, %v5038
      %vm5040 = vcmp.eq.s32.totalorder %v5035, 2
      %v5041 = vxor.u32 %v5031, 2147483648
      %v5042 = vsel %vm5040, %v5041, %v5032
      %v5043 = vsel %vm5036, %v5039, %v5042
      %v5044 = vsel %vm5033, nan, %v5043
      %v5045 = vand.u32 2147483647, %v3298
      %vm5046 = vcmp.le.f32.partialorder %v5045, 0.7853982
      %vm5047 = vcmp.lt.s32.totalorder %v3298, 0
      %v5048 = vand.u32 %v3298, 2139095040
      %v5049 = vshrl.u32 %v5048, 23
      %v5050 = vsub.s32 %v5049, 127
      %v5051 = vand.u32 2147483647, %v3298
      %v5052 = vand.u32 %v5051, 8388607
      %v5053 = vor.u32 %v5052, 8388608
      %v5054 = vsub.s32 0, %v5053
      %v5055 = vadd.s32 %v5050, 1
      %vm5056 = vcmp.gt.s32.totalorder %v5055, 0
      %v5057 = vsel %vm5056, %v5055, 0
      %v5058 = vshrl.u32 %v5057, 5
      %v5059 = vand.u32 %v5057, 31
      %v5060 = vsub.s32 32, %v5059
      %v5061 = vshrl.u32 683565275, %v5060
      %v5062 = vshll.u32 683565275, %v5059
      %v5063 = vshrl.u32 2475754826, %v5060
      %v5064 = vor.u32 %v5062, %v5063
      %v5065 = vshll.u32 2475754826, %v5059
      %v5066 = vshrl.u32 2131351028, %v5060
      %v5067 = vor.u32 %v5065, %v5066
      %v5068 = vshll.u32 2131351028, %v5059
      %v5069 = vshrl.u32 2102212464, %v5060
      %v5070 = vor.u32 %v5068, %v5069
      %v5071 = vshll.u32 2102212464, %v5059
      %v5072 = vshrl.u32 920167782, %v5060
      %v5073 = vor.u32 %v5071, %v5072
      %v5074 = vshll.u32 920167782, %v5059
      %v5075 = vshrl.u32 1326507024, %v5060
      %v5076 = vor.u32 %v5074, %v5075
      %vm5077 = vcmp.lt.s32.totalorder %v5058, 1
      %vm5078 = vcmp.lt.s32.totalorder %v5058, 2
      %vm5079 = vcmp.lt.s32.totalorder %v5058, 3
      %vm5080 = vcmp.lt.s32.totalorder %v5058, 4
      %v5081 = vsel %vm5077, %v5061, %v5064
      %v5082 = vsel %vm5080, %v5070, 2102212464
      %v5083 = vsel %vm5079, %v5067, %v5082
      %v5084 = vsel %vm5078, %v5081, %v5083
      %v5085 = vsel %vm5077, %v5064, %v5067
      %v5086 = vsel %vm5080, %v5073, 920167782
      %v5087 = vsel %vm5079, %v5070, %v5086
      %v5088 = vsel %vm5078, %v5085, %v5087
      %v5089 = vsel %vm5077, %v5067, %v5070
      %v5090 = vsel %vm5080, %v5076, 1326507024
      %v5091 = vsel %vm5079, %v5073, %v5090
      %v5092 = vsel %vm5078, %v5089, %v5091
      %v5093 = vshll.u32 %v5053, 8
      %v5094 = vmul.u32.u64.compose %v5093, %v5092
      %v5095 = vextract.low.u32 %v5094
      %v5096 = vextract.high.u32 %v5094
      %v5097 = vmul.u32.u64.compose %v5093, %v5088
      %v5098 = vextract.low.u32 %v5097
      %v5099 = vextract.high.u32 %v5097
      %v5100 = vmul.u32 %v5093, %v5084
      %v5101 = vadd.s32 %v5096, %v5098
      %vm5102 = vc.u32 %v5096, %v5098
      %v5103 = vadd.s32 %v5099, 1
      %v5104 = vsel %vm5102, %v5103, %v5099
      %v5105 = vadd.s32 %v5100, %v5104
      %v5106 = vadd.s32 %v5105, 536870912
      %v5107 = vshrl.u32 %v5106, 30
      %v5108 = vshll.u32 %v5107, 30
      %v5109 = vsub.s32 %v5105, %v5108
      %vm5110 = vcmp.lt.s32.totalorder %v5109, 0
      %v5111 = vsub.s32 0, %v5109
      %v5112 = vsel %vm5110, %v5111, %v5109
      %v5113 = vclz %v5112
      %v5114 = vsub.s32 %v5113, 2
      %vm5115 = vcmp.gt.s32.totalorder 0, %v5114
      %v5116 = vsel %vm5115, 0, %v5114
      %v5117 = vsub.s32 32, %v5116
      %v5118 = vshll.u32 %v5109, %v5116
      %v5119 = vshrl.u32 %v5101, %v5117
      %v5120 = vor.u32 %v5118, %v5119
      %v5121 = vsub.s32 4294967266, %v5116
      %v5122 = vadd.s32 %v5121, 127
      %v5123 = vshll.u32 %v5122, 23
      %v5124 = vor.u32 4788187, %v5123
      %v5125 = vand.u32 2147483647, %v5124
      %v5127 = vcvt.s32.f32 %v5120
      %v5128 = vmul.f32 %v5127, %v5125
      %v5129 = vxor.u32 %v5128, 2147483648
      %v5130 = vsel %vm5047, %v5129, %v5128
      %v5131 = vsub.s32 4, %v5107
      %v5132 = vsel %vm5047, %v5131, %v5107
      %v5133 = vsel %vm5046, %v3298, %v5130
      %v5134 = vsel %vm5046, 0, %v5132
      %v5135 = vcosq.f32.pop %v5133
      %v5136 = vsinq.f32.pop %v5133
      %vm5137 = vweird.f32 %v3298
      %v5138 = vadd.s32 %v5134, 3
      %v5139 = vand.u32 %v5138, 3
      %vm5140 = vcmp.lt.s32.totalorder %v5139, 2
      %vm5141 = vcmp.eq.s32.totalorder %v5139, 0
      %v5142 = vxor.u32 %v5136, 2147483648
      %v5143 = vsel %vm5141, %v5135, %v5142
      %vm5144 = vcmp.eq.s32.totalorder %v5139, 2
      %v5145 = vxor.u32 %v5135, 2147483648
      %v5146 = vsel %vm5144, %v5145, %v5136
      %v5147 = vsel %vm5140, %v5143, %v5146
      %v5148 = vsel %vm5137, nan, %v5147
      %v5149 = vand.u32 2147483647, %v3304
      %vm5150 = vcmp.le.f32.partialorder %v5149, 0.7853982
      %vm5151 = vcmp.lt.s32.totalorder %v3304, 0
      %v5152 = vand.u32 %v3304, 2139095040
      %v5153 = vshrl.u32 %v5152, 23
      %v5154 = vsub.s32 %v5153, 127
      %v5155 = vand.u32 2147483647, %v3304
      %v5156 = vand.u32 %v5155, 8388607
      %v5157 = vor.u32 %v5156, 8388608
      %v5158 = vsub.s32 0, %v5157
      %v5159 = vadd.s32 %v5154, 1
      %vm5160 = vcmp.gt.s32.totalorder %v5159, 0
      %v5161 = vsel %vm5160, %v5159, 0
      %v5162 = vshrl.u32 %v5161, 5
      %v5163 = vand.u32 %v5161, 31
      %v5164 = vsub.s32 32, %v5163
      %v5165 = vshrl.u32 683565275, %v5164
      %v5166 = vshll.u32 683565275, %v5163
      %v5167 = vshrl.u32 2475754826, %v5164
      %v5168 = vor.u32 %v5166, %v5167
      %v5169 = vshll.u32 2475754826, %v5163
      %v5170 = vshrl.u32 2131351028, %v5164
      %v5171 = vor.u32 %v5169, %v5170
      %v5172 = vshll.u32 2131351028, %v5163
      %v5173 = vshrl.u32 2102212464, %v5164
      %v5174 = vor.u32 %v5172, %v5173
      %v5175 = vshll.u32 2102212464, %v5163
      %v5176 = vshrl.u32 920167782, %v5164
      %v5177 = vor.u32 %v5175, %v5176
      %v5178 = vshll.u32 920167782, %v5163
      %v5179 = vshrl.u32 1326507024, %v5164
      %v5180 = vor.u32 %v5178, %v5179
      %vm5181 = vcmp.lt.s32.totalorder %v5162, 1
      %vm5182 = vcmp.lt.s32.totalorder %v5162, 2
      %vm5183 = vcmp.lt.s32.totalorder %v5162, 3
      %vm5184 = vcmp.lt.s32.totalorder %v5162, 4
      %v5185 = vsel %vm5181, %v5165, %v5168
      %v5186 = vsel %vm5184, %v5174, 2102212464
      %v5187 = vsel %vm5183, %v5171, %v5186
      %v5188 = vsel %vm5182, %v5185, %v5187
      %v5189 = vsel %vm5181, %v5168, %v5171
      %v5190 = vsel %vm5184, %v5177, 920167782
      %v5191 = vsel %vm5183, %v5174, %v5190
      %v5192 = vsel %vm5182, %v5189, %v5191
      %v5193 = vsel %vm5181, %v5171, %v5174
      %v5194 = vsel %vm5184, %v5180, 1326507024
      %v5195 = vsel %vm5183, %v5177, %v5194
      %v5196 = vsel %vm5182, %v5193, %v5195
      %v5197 = vshll.u32 %v5157, 8
      %v5198 = vmul.u32.u64.compose %v5197, %v5196
      %v5199 = vextract.low.u32 %v5198
      %v5200 = vextract.high.u32 %v5198
      %v5201 = vmul.u32.u64.compose %v5197, %v5192
      %v5202 = vextract.low.u32 %v5201
      %v5203 = vextract.high.u32 %v5201
      %v5204 = vmul.u32 %v5197, %v5188
      %v5205 = vadd.s32 %v5200, %v5202
      %vm5206 = vc.u32 %v5200, %v5202
      %v5207 = vadd.s32 %v5203, 1
      %v5208 = vsel %vm5206, %v5207, %v5203
      %v5209 = vadd.s32 %v5204, %v5208
      %v5210 = vadd.s32 %v5209, 536870912
      %v5211 = vshrl.u32 %v5210, 30
      %v5212 = vshll.u32 %v5211, 30
      %v5213 = vsub.s32 %v5209, %v5212
      %vm5214 = vcmp.lt.s32.totalorder %v5213, 0
      %v5215 = vsub.s32 0, %v5213
      %v5216 = vsel %vm5214, %v5215, %v5213
      %v5217 = vclz %v5216
      %v5218 = vsub.s32 %v5217, 2
      %vm5219 = vcmp.gt.s32.totalorder 0, %v5218
      %v5220 = vsel %vm5219, 0, %v5218
      %v5221 = vsub.s32 32, %v5220
      %v5222 = vshll.u32 %v5213, %v5220
      %v5223 = vshrl.u32 %v5205, %v5221
      %v5224 = vor.u32 %v5222, %v5223
      %v5225 = vsub.s32 4294967266, %v5220
      %v5226 = vadd.s32 %v5225, 127
      %v5227 = vshll.u32 %v5226, 23
      %v5228 = vor.u32 4788187, %v5227
      %v5229 = vand.u32 2147483647, %v5228
      %v5231 = vcvt.s32.f32 %v5224
      %v5232 = vmul.f32 %v5231, %v5229
      %v5233 = vxor.u32 %v5232, 2147483648
      %v5234 = vsel %vm5151, %v5233, %v5232
      %v5235 = vsub.s32 4, %v5211
      %v5236 = vsel %vm5151, %v5235, %v5211
      %v5237 = vsel %vm5150, %v3304, %v5234
      %v5238 = vsel %vm5150, 0, %v5236
      %v5239 = vcosq.f32.pop %v5237
      %v5240 = vsinq.f32.pop %v5237
      %vm5241 = vweird.f32 %v3304
      %v5242 = vadd.s32 %v5238, 3
      %v5243 = vand.u32 %v5242, 3
      %vm5244 = vcmp.lt.s32.totalorder %v5243, 2
      %vm5245 = vcmp.eq.s32.totalorder %v5243, 0
      %v5246 = vxor.u32 %v5240, 2147483648
      %v5247 = vsel %vm5245, %v5239, %v5246
      %vm5248 = vcmp.eq.s32.totalorder %v5243, 2
      %v5249 = vxor.u32 %v5239, 2147483648
      %v5250 = vsel %vm5248, %v5249, %v5240
      %v5251 = vsel %vm5244, %v5247, %v5250
      %v5252 = vsel %vm5241, nan, %v5251
      %v5253 = vand.u32 2147483647, %v3310
      %vm5254 = vcmp.le.f32.partialorder %v5253, 0.7853982
      %vm5255 = vcmp.lt.s32.totalorder %v3310, 0
      %v5256 = vand.u32 %v3310, 2139095040
      %v5257 = vshrl.u32 %v5256, 23
      %v5258 = vsub.s32 %v5257, 127
      %v5259 = vand.u32 2147483647, %v3310
      %v5260 = vand.u32 %v5259, 8388607
      %v5261 = vor.u32 %v5260, 8388608
      %v5262 = vsub.s32 0, %v5261
      %v5263 = vadd.s32 %v5258, 1
      %vm5264 = vcmp.gt.s32.totalorder %v5263, 0
      %v5265 = vsel %vm5264, %v5263, 0
      %v5266 = vshrl.u32 %v5265, 5
      %v5267 = vand.u32 %v5265, 31
      %v5268 = vsub.s32 32, %v5267
      %v5269 = vshrl.u32 683565275, %v5268
      %v5270 = vshll.u32 683565275, %v5267
      %v5271 = vshrl.u32 2475754826, %v5268
      %v5272 = vor.u32 %v5270, %v5271
      %v5273 = vshll.u32 2475754826, %v5267
      %v5274 = vshrl.u32 2131351028, %v5268
      %v5275 = vor.u32 %v5273, %v5274
      %v5276 = vshll.u32 2131351028, %v5267
      %v5277 = vshrl.u32 2102212464, %v5268
      %v5278 = vor.u32 %v5276, %v5277
      %v5279 = vshll.u32 2102212464, %v5267
      %v5280 = vshrl.u32 920167782, %v5268
      %v5281 = vor.u32 %v5279, %v5280
      %v5282 = vshll.u32 920167782, %v5267
      %v5283 = vshrl.u32 1326507024, %v5268
      %v5284 = vor.u32 %v5282, %v5283
      %vm5285 = vcmp.lt.s32.totalorder %v5266, 1
      %vm5286 = vcmp.lt.s32.totalorder %v5266, 2
      %vm5287 = vcmp.lt.s32.totalorder %v5266, 3
      %vm5288 = vcmp.lt.s32.totalorder %v5266, 4
      %v5289 = vsel %vm5285, %v5269, %v5272
      %v5290 = vsel %vm5288, %v5278, 2102212464
      %v5291 = vsel %vm5287, %v5275, %v5290
      %v5292 = vsel %vm5286, %v5289, %v5291
      %v5293 = vsel %vm5285, %v5272, %v5275
      %v5294 = vsel %vm5288, %v5281, 920167782
      %v5295 = vsel %vm5287, %v5278, %v5294
      %v5296 = vsel %vm5286, %v5293, %v5295
      %v5297 = vsel %vm5285, %v5275, %v5278
      %v5298 = vsel %vm5288, %v5284, 1326507024
      %v5299 = vsel %vm5287, %v5281, %v5298
      %v5300 = vsel %vm5286, %v5297, %v5299
      %v5301 = vshll.u32 %v5261, 8
      %v5302 = vmul.u32.u64.compose %v5301, %v5300
      %v5303 = vextract.low.u32 %v5302
      %v5304 = vextract.high.u32 %v5302
      %v5305 = vmul.u32.u64.compose %v5301, %v5296
      %v5306 = vextract.low.u32 %v5305
      %v5307 = vextract.high.u32 %v5305
      %v5308 = vmul.u32 %v5301, %v5292
      %v5309 = vadd.s32 %v5304, %v5306
      %vm5310 = vc.u32 %v5304, %v5306
      %v5311 = vadd.s32 %v5307, 1
      %v5312 = vsel %vm5310, %v5311, %v5307
      %v5313 = vadd.s32 %v5308, %v5312
      %v5314 = vadd.s32 %v5313, 536870912
      %v5315 = vshrl.u32 %v5314, 30
      %v5316 = vshll.u32 %v5315, 30
      %v5317 = vsub.s32 %v5313, %v5316
      %vm5318 = vcmp.lt.s32.totalorder %v5317, 0
      %v5319 = vsub.s32 0, %v5317
      %v5320 = vsel %vm5318, %v5319, %v5317
      %v5321 = vclz %v5320
      %v5322 = vsub.s32 %v5321, 2
      %vm5323 = vcmp.gt.s32.totalorder 0, %v5322
      %v5324 = vsel %vm5323, 0, %v5322
      %v5325 = vsub.s32 32, %v5324
      %v5326 = vshll.u32 %v5317, %v5324
      %v5327 = vshrl.u32 %v5309, %v5325
      %v5328 = vor.u32 %v5326, %v5327
      %v5329 = vsub.s32 4294967266, %v5324
      %v5330 = vadd.s32 %v5329, 127
      %v5331 = vshll.u32 %v5330, 23
      %v5332 = vor.u32 4788187, %v5331
      %v5333 = vand.u32 2147483647, %v5332
      %v5335 = vcvt.s32.f32 %v5328
      %v5336 = vmul.f32 %v5335, %v5333
      %v5337 = vxor.u32 %v5336, 2147483648
      %v5338 = vsel %vm5255, %v5337, %v5336
      %v5339 = vsub.s32 4, %v5315
      %v5340 = vsel %vm5255, %v5339, %v5315
      %v5341 = vsel %vm5254, %v3310, %v5338
      %v5342 = vsel %vm5254, 0, %v5340
      %v5343 = vcosq.f32.pop %v5341
      %v5344 = vsinq.f32.pop %v5341
      %vm5345 = vweird.f32 %v3310
      %v5346 = vadd.s32 %v5342, 3
      %v5347 = vand.u32 %v5346, 3
      %vm5348 = vcmp.lt.s32.totalorder %v5347, 2
      %vm5349 = vcmp.eq.s32.totalorder %v5347, 0
      %v5350 = vxor.u32 %v5344, 2147483648
      %v5351 = vsel %vm5349, %v5343, %v5350
      %vm5352 = vcmp.eq.s32.totalorder %v5347, 2
      %v5353 = vxor.u32 %v5343, 2147483648
      %v5354 = vsel %vm5352, %v5353, %v5344
      %v5355 = vsel %vm5348, %v5351, %v5354
      %v5356 = vsel %vm5345, nan, %v5355
      %v5357 = vand.u32 2147483647, %v3316
      %vm5358 = vcmp.le.f32.partialorder %v5357, 0.7853982
      %vm5359 = vcmp.lt.s32.totalorder %v3316, 0
      %v5360 = vand.u32 %v3316, 2139095040
      %v5361 = vshrl.u32 %v5360, 23
      %v5362 = vsub.s32 %v5361, 127
      %v5363 = vand.u32 2147483647, %v3316
      %v5364 = vand.u32 %v5363, 8388607
      %v5365 = vor.u32 %v5364, 8388608
      %v5366 = vsub.s32 0, %v5365
      %v5367 = vadd.s32 %v5362, 1
      %vm5368 = vcmp.gt.s32.totalorder %v5367, 0
      %v5369 = vsel %vm5368, %v5367, 0
      %v5370 = vshrl.u32 %v5369, 5
      %v5371 = vand.u32 %v5369, 31
      %v5372 = vsub.s32 32, %v5371
      %v5373 = vshrl.u32 683565275, %v5372
      %v5374 = vshll.u32 683565275, %v5371
      %v5375 = vshrl.u32 2475754826, %v5372
      %v5376 = vor.u32 %v5374, %v5375
      %v5377 = vshll.u32 2475754826, %v5371
      %v5378 = vshrl.u32 2131351028, %v5372
      %v5379 = vor.u32 %v5377, %v5378
      %v5380 = vshll.u32 2131351028, %v5371
      %v5381 = vshrl.u32 2102212464, %v5372
      %v5382 = vor.u32 %v5380, %v5381
      %v5383 = vshll.u32 2102212464, %v5371
      %v5384 = vshrl.u32 920167782, %v5372
      %v5385 = vor.u32 %v5383, %v5384
      %v5386 = vshll.u32 920167782, %v5371
      %v5387 = vshrl.u32 1326507024, %v5372
      %v5388 = vor.u32 %v5386, %v5387
      %vm5389 = vcmp.lt.s32.totalorder %v5370, 1
      %vm5390 = vcmp.lt.s32.totalorder %v5370, 2
      %vm5391 = vcmp.lt.s32.totalorder %v5370, 3
      %vm5392 = vcmp.lt.s32.totalorder %v5370, 4
      %v5393 = vsel %vm5389, %v5373, %v5376
      %v5394 = vsel %vm5392, %v5382, 2102212464
      %v5395 = vsel %vm5391, %v5379, %v5394
      %v5396 = vsel %vm5390, %v5393, %v5395
      %v5397 = vsel %vm5389, %v5376, %v5379
      %v5398 = vsel %vm5392, %v5385, 920167782
      %v5399 = vsel %vm5391, %v5382, %v5398
      %v5400 = vsel %vm5390, %v5397, %v5399
      %v5401 = vsel %vm5389, %v5379, %v5382
      %v5402 = vsel %vm5392, %v5388, 1326507024
      %v5403 = vsel %vm5391, %v5385, %v5402
      %v5404 = vsel %vm5390, %v5401, %v5403
      %v5405 = vshll.u32 %v5365, 8
      %v5406 = vmul.u32.u64.compose %v5405, %v5404
      %v5407 = vextract.low.u32 %v5406
      %v5408 = vextract.high.u32 %v5406
      %v5409 = vmul.u32.u64.compose %v5405, %v5400
      %v5410 = vextract.low.u32 %v5409
      %v5411 = vextract.high.u32 %v5409
      %v5412 = vmul.u32 %v5405, %v5396
      %v5413 = vadd.s32 %v5408, %v5410
      %vm5414 = vc.u32 %v5408, %v5410
      %v5415 = vadd.s32 %v5411, 1
      %v5416 = vsel %vm5414, %v5415, %v5411
      %v5417 = vadd.s32 %v5412, %v5416
      %v5418 = vadd.s32 %v5417, 536870912
      %v5419 = vshrl.u32 %v5418, 30
      %v5420 = vshll.u32 %v5419, 30
      %v5421 = vsub.s32 %v5417, %v5420
      %vm5422 = vcmp.lt.s32.totalorder %v5421, 0
      %v5423 = vsub.s32 0, %v5421
      %v5424 = vsel %vm5422, %v5423, %v5421
      %v5425 = vclz %v5424
      %v5426 = vsub.s32 %v5425, 2
      %vm5427 = vcmp.gt.s32.totalorder 0, %v5426
      %v5428 = vsel %vm5427, 0, %v5426
      %v5429 = vsub.s32 32, %v5428
      %v5430 = vshll.u32 %v5421, %v5428
      %v5431 = vshrl.u32 %v5413, %v5429
      %v5432 = vor.u32 %v5430, %v5431
      %v5433 = vsub.s32 4294967266, %v5428
      %v5434 = vadd.s32 %v5433, 127
      %v5435 = vshll.u32 %v5434, 23
      %v5436 = vor.u32 4788187, %v5435
      %v5437 = vand.u32 2147483647, %v5436
      %v5439 = vcvt.s32.f32 %v5432
      %v5440 = vmul.f32 %v5439, %v5437
      %v5441 = vxor.u32 %v5440, 2147483648
      %v5442 = vsel %vm5359, %v5441, %v5440
      %v5443 = vsub.s32 4, %v5419
      %v5444 = vsel %vm5359, %v5443, %v5419
      %v5445 = vsel %vm5358, %v3316, %v5442
      %v5446 = vsel %vm5358, 0, %v5444
      %v5447 = vcosq.f32.pop %v5445
      %v5448 = vsinq.f32.pop %v5445
      %vm5449 = vweird.f32 %v3316
      %v5450 = vadd.s32 %v5446, 3
      %v5451 = vand.u32 %v5450, 3
      %vm5452 = vcmp.lt.s32.totalorder %v5451, 2
      %vm5453 = vcmp.eq.s32.totalorder %v5451, 0
      %v5454 = vxor.u32 %v5448, 2147483648
      %v5455 = vsel %vm5453, %v5447, %v5454
      %vm5456 = vcmp.eq.s32.totalorder %v5451, 2
      %v5457 = vxor.u32 %v5447, 2147483648
      %v5458 = vsel %vm5456, %v5457, %v5448
      %v5459 = vsel %vm5452, %v5455, %v5458
      %v5460 = vsel %vm5449, nan, %v5459
      %v5461 = vand.u32 2147483647, %v3322
      %vm5462 = vcmp.le.f32.partialorder %v5461, 0.7853982
      %vm5463 = vcmp.lt.s32.totalorder %v3322, 0
      %v5464 = vand.u32 %v3322, 2139095040
      %v5465 = vshrl.u32 %v5464, 23
      %v5466 = vsub.s32 %v5465, 127
      %v5467 = vand.u32 2147483647, %v3322
      %v5468 = vand.u32 %v5467, 8388607
      %v5469 = vor.u32 %v5468, 8388608
      %v5470 = vsub.s32 0, %v5469
      %v5471 = vadd.s32 %v5466, 1
      %vm5472 = vcmp.gt.s32.totalorder %v5471, 0
      %v5473 = vsel %vm5472, %v5471, 0
      %v5474 = vshrl.u32 %v5473, 5
      %v5475 = vand.u32 %v5473, 31
      %v5476 = vsub.s32 32, %v5475
      %v5477 = vshrl.u32 683565275, %v5476
      %v5478 = vshll.u32 683565275, %v5475
      %v5479 = vshrl.u32 2475754826, %v5476
      %v5480 = vor.u32 %v5478, %v5479
      %v5481 = vshll.u32 2475754826, %v5475
      %v5482 = vshrl.u32 2131351028, %v5476
      %v5483 = vor.u32 %v5481, %v5482
      %v5484 = vshll.u32 2131351028, %v5475
      %v5485 = vshrl.u32 2102212464, %v5476
      %v5486 = vor.u32 %v5484, %v5485
      %v5487 = vshll.u32 2102212464, %v5475
      %v5488 = vshrl.u32 920167782, %v5476
      %v5489 = vor.u32 %v5487, %v5488
      %v5490 = vshll.u32 920167782, %v5475
      %v5491 = vshrl.u32 1326507024, %v5476
      %v5492 = vor.u32 %v5490, %v5491
      %vm5493 = vcmp.lt.s32.totalorder %v5474, 1
      %vm5494 = vcmp.lt.s32.totalorder %v5474, 2
      %vm5495 = vcmp.lt.s32.totalorder %v5474, 3
      %vm5496 = vcmp.lt.s32.totalorder %v5474, 4
      %v5497 = vsel %vm5493, %v5477, %v5480
      %v5498 = vsel %vm5496, %v5486, 2102212464
      %v5499 = vsel %vm5495, %v5483, %v5498
      %v5500 = vsel %vm5494, %v5497, %v5499
      %v5501 = vsel %vm5493, %v5480, %v5483
      %v5502 = vsel %vm5496, %v5489, 920167782
      %v5503 = vsel %vm5495, %v5486, %v5502
      %v5504 = vsel %vm5494, %v5501, %v5503
      %v5505 = vsel %vm5493, %v5483, %v5486
      %v5506 = vsel %vm5496, %v5492, 1326507024
      %v5507 = vsel %vm5495, %v5489, %v5506
      %v5508 = vsel %vm5494, %v5505, %v5507
      %v5509 = vshll.u32 %v5469, 8
      %v5510 = vmul.u32.u64.compose %v5509, %v5508
      %v5511 = vextract.low.u32 %v5510
      %v5512 = vextract.high.u32 %v5510
      %v5513 = vmul.u32.u64.compose %v5509, %v5504
      %v5514 = vextract.low.u32 %v5513
      %v5515 = vextract.high.u32 %v5513
      %v5516 = vmul.u32 %v5509, %v5500
      %v5517 = vadd.s32 %v5512, %v5514
      %vm5518 = vc.u32 %v5512, %v5514
      %v5519 = vadd.s32 %v5515, 1
      %v5520 = vsel %vm5518, %v5519, %v5515
      %v5521 = vadd.s32 %v5516, %v5520
      %v5522 = vadd.s32 %v5521, 536870912
      %v5523 = vshrl.u32 %v5522, 30
      %v5524 = vshll.u32 %v5523, 30
      %v5525 = vsub.s32 %v5521, %v5524
      %vm5526 = vcmp.lt.s32.totalorder %v5525, 0
      %v5527 = vsub.s32 0, %v5525
      %v5528 = vsel %vm5526, %v5527, %v5525
      %v5529 = vclz %v5528
      %v5530 = vsub.s32 %v5529, 2
      %vm5531 = vcmp.gt.s32.totalorder 0, %v5530
      %v5532 = vsel %vm5531, 0, %v5530
      %v5533 = vsub.s32 32, %v5532
      %v5534 = vshll.u32 %v5525, %v5532
      %v5535 = vshrl.u32 %v5517, %v5533
      %v5536 = vor.u32 %v5534, %v5535
      %v5537 = vsub.s32 4294967266, %v5532
      %v5538 = vadd.s32 %v5537, 127
      %v5539 = vshll.u32 %v5538, 23
      %v5540 = vor.u32 4788187, %v5539
      %v5541 = vand.u32 2147483647, %v5540
      %v5543 = vcvt.s32.f32 %v5536
      %v5544 = vmul.f32 %v5543, %v5541
      %v5545 = vxor.u32 %v5544, 2147483648
      %v5546 = vsel %vm5463, %v5545, %v5544
      %v5547 = vsub.s32 4, %v5523
      %v5548 = vsel %vm5463, %v5547, %v5523
      %v5549 = vsel %vm5462, %v3322, %v5546
      %v5550 = vsel %vm5462, 0, %v5548
      %v5551 = vcosq.f32.pop %v5549
      %v5552 = vsinq.f32.pop %v5549
      %vm5553 = vweird.f32 %v3322
      %v5554 = vadd.s32 %v5550, 3
      %v5555 = vand.u32 %v5554, 3
      %vm5556 = vcmp.lt.s32.totalorder %v5555, 2
      %vm5557 = vcmp.eq.s32.totalorder %v5555, 0
      %v5558 = vxor.u32 %v5552, 2147483648
      %v5559 = vsel %vm5557, %v5551, %v5558
      %vm5560 = vcmp.eq.s32.totalorder %v5555, 2
      %v5561 = vxor.u32 %v5551, 2147483648
      %v5562 = vsel %vm5560, %v5561, %v5552
      %v5563 = vsel %vm5556, %v5559, %v5562
      %v5564 = vsel %vm5553, nan, %v5563
      %v5565 = vand.u32 2147483647, %v3328
      %vm5566 = vcmp.le.f32.partialorder %v5565, 0.7853982
      %vm5567 = vcmp.lt.s32.totalorder %v3328, 0
      %v5568 = vand.u32 %v3328, 2139095040
      %v5569 = vshrl.u32 %v5568, 23
      %v5570 = vsub.s32 %v5569, 127
      %v5571 = vand.u32 2147483647, %v3328
      %v5572 = vand.u32 %v5571, 8388607
      %v5573 = vor.u32 %v5572, 8388608
      %v5574 = vsub.s32 0, %v5573
      %v5575 = vadd.s32 %v5570, 1
      %vm5576 = vcmp.gt.s32.totalorder %v5575, 0
      %v5577 = vsel %vm5576, %v5575, 0
      %v5578 = vshrl.u32 %v5577, 5
      %v5579 = vand.u32 %v5577, 31
      %v5580 = vsub.s32 32, %v5579
      %v5581 = vshrl.u32 683565275, %v5580
      %v5582 = vshll.u32 683565275, %v5579
      %v5583 = vshrl.u32 2475754826, %v5580
      %v5584 = vor.u32 %v5582, %v5583
      %v5585 = vshll.u32 2475754826, %v5579
      %v5586 = vshrl.u32 2131351028, %v5580
      %v5587 = vor.u32 %v5585, %v5586
      %v5588 = vshll.u32 2131351028, %v5579
      %v5589 = vshrl.u32 2102212464, %v5580
      %v5590 = vor.u32 %v5588, %v5589
      %v5591 = vshll.u32 2102212464, %v5579
      %v5592 = vshrl.u32 920167782, %v5580
      %v5593 = vor.u32 %v5591, %v5592
      %v5594 = vshll.u32 920167782, %v5579
      %v5595 = vshrl.u32 1326507024, %v5580
      %v5596 = vor.u32 %v5594, %v5595
      %vm5597 = vcmp.lt.s32.totalorder %v5578, 1
      %vm5598 = vcmp.lt.s32.totalorder %v5578, 2
      %vm5599 = vcmp.lt.s32.totalorder %v5578, 3
      %vm5600 = vcmp.lt.s32.totalorder %v5578, 4
      %v5601 = vsel %vm5597, %v5581, %v5584
      %v5602 = vsel %vm5600, %v5590, 2102212464
      %v5603 = vsel %vm5599, %v5587, %v5602
      %v5604 = vsel %vm5598, %v5601, %v5603
      %v5605 = vsel %vm5597, %v5584, %v5587
      %v5606 = vsel %vm5600, %v5593, 920167782
      %v5607 = vsel %vm5599, %v5590, %v5606
      %v5608 = vsel %vm5598, %v5605, %v5607
      %v5609 = vsel %vm5597, %v5587, %v5590
      %v5610 = vsel %vm5600, %v5596, 1326507024
      %v5611 = vsel %vm5599, %v5593, %v5610
      %v5612 = vsel %vm5598, %v5609, %v5611
      %v5613 = vshll.u32 %v5573, 8
      %v5614 = vmul.u32.u64.compose %v5613, %v5612
      %v5615 = vextract.low.u32 %v5614
      %v5616 = vextract.high.u32 %v5614
      %v5617 = vmul.u32.u64.compose %v5613, %v5608
      %v5618 = vextract.low.u32 %v5617
      %v5619 = vextract.high.u32 %v5617
      %v5620 = vmul.u32 %v5613, %v5604
      %v5621 = vadd.s32 %v5616, %v5618
      %vm5622 = vc.u32 %v5616, %v5618
      %v5623 = vadd.s32 %v5619, 1
      %v5624 = vsel %vm5622, %v5623, %v5619
      %v5625 = vadd.s32 %v5620, %v5624
      %v5626 = vadd.s32 %v5625, 536870912
      %v5627 = vshrl.u32 %v5626, 30
      %v5628 = vshll.u32 %v5627, 30
      %v5629 = vsub.s32 %v5625, %v5628
      %vm5630 = vcmp.lt.s32.totalorder %v5629, 0
      %v5631 = vsub.s32 0, %v5629
      %v5632 = vsel %vm5630, %v5631, %v5629
      %v5633 = vclz %v5632
      %v5634 = vsub.s32 %v5633, 2
      %vm5635 = vcmp.gt.s32.totalorder 0, %v5634
      %v5636 = vsel %vm5635, 0, %v5634
      %v5637 = vsub.s32 32, %v5636
      %v5638 = vshll.u32 %v5629, %v5636
      %v5639 = vshrl.u32 %v5621, %v5637
      %v5640 = vor.u32 %v5638, %v5639
      %v5641 = vsub.s32 4294967266, %v5636
      %v5642 = vadd.s32 %v5641, 127
      %v5643 = vshll.u32 %v5642, 23
      %v5644 = vor.u32 4788187, %v5643
      %v5645 = vand.u32 2147483647, %v5644
      %v5647 = vcvt.s32.f32 %v5640
      %v5648 = vmul.f32 %v5647, %v5645
      %v5649 = vxor.u32 %v5648, 2147483648
      %v5650 = vsel %vm5567, %v5649, %v5648
      %v5651 = vsub.s32 4, %v5627
      %v5652 = vsel %vm5567, %v5651, %v5627
      %v5653 = vsel %vm5566, %v3328, %v5650
      %v5654 = vsel %vm5566, 0, %v5652
      %v5655 = vcosq.f32.pop %v5653
      %v5656 = vsinq.f32.pop %v5653
      %vm5657 = vweird.f32 %v3328
      %v5658 = vadd.s32 %v5654, 3
      %v5659 = vand.u32 %v5658, 3
      %vm5660 = vcmp.lt.s32.totalorder %v5659, 2
      %vm5661 = vcmp.eq.s32.totalorder %v5659, 0
      %v5662 = vxor.u32 %v5656, 2147483648
      %v5663 = vsel %vm5661, %v5655, %v5662
      %vm5664 = vcmp.eq.s32.totalorder %v5659, 2
      %v5665 = vxor.u32 %v5655, 2147483648
      %v5666 = vsel %vm5664, %v5665, %v5656
      %v5667 = vsel %vm5660, %v5663, %v5666
      %v5668 = vsel %vm5657, nan, %v5667
      %v5669 = vand.u32 2147483647, %v3334
      %vm5670 = vcmp.le.f32.partialorder %v5669, 0.7853982
      %vm5671 = vcmp.lt.s32.totalorder %v3334, 0
      %v5672 = vand.u32 %v3334, 2139095040
      %v5673 = vshrl.u32 %v5672, 23
      %v5674 = vsub.s32 %v5673, 127
      %v5675 = vand.u32 2147483647, %v3334
      %v5676 = vand.u32 %v5675, 8388607
      %v5677 = vor.u32 %v5676, 8388608
      %v5678 = vsub.s32 0, %v5677
      %v5679 = vadd.s32 %v5674, 1
      %vm5680 = vcmp.gt.s32.totalorder %v5679, 0
      %v5681 = vsel %vm5680, %v5679, 0
      %v5682 = vshrl.u32 %v5681, 5
      %v5683 = vand.u32 %v5681, 31
      %v5684 = vsub.s32 32, %v5683
      %v5685 = vshrl.u32 683565275, %v5684
      %v5686 = vshll.u32 683565275, %v5683
      %v5687 = vshrl.u32 2475754826, %v5684
      %v5688 = vor.u32 %v5686, %v5687
      %v5689 = vshll.u32 2475754826, %v5683
      %v5690 = vshrl.u32 2131351028, %v5684
      %v5691 = vor.u32 %v5689, %v5690
      %v5692 = vshll.u32 2131351028, %v5683
      %v5693 = vshrl.u32 2102212464, %v5684
      %v5694 = vor.u32 %v5692, %v5693
      %v5695 = vshll.u32 2102212464, %v5683
      %v5696 = vshrl.u32 920167782, %v5684
      %v5697 = vor.u32 %v5695, %v5696
      %v5698 = vshll.u32 920167782, %v5683
      %v5699 = vshrl.u32 1326507024, %v5684
      %v5700 = vor.u32 %v5698, %v5699
      %vm5701 = vcmp.lt.s32.totalorder %v5682, 1
      %vm5702 = vcmp.lt.s32.totalorder %v5682, 2
      %vm5703 = vcmp.lt.s32.totalorder %v5682, 3
      %vm5704 = vcmp.lt.s32.totalorder %v5682, 4
      %v5705 = vsel %vm5701, %v5685, %v5688
      %v5706 = vsel %vm5704, %v5694, 2102212464
      %v5707 = vsel %vm5703, %v5691, %v5706
      %v5708 = vsel %vm5702, %v5705, %v5707
      %v5709 = vsel %vm5701, %v5688, %v5691
      %v5710 = vsel %vm5704, %v5697, 920167782
      %v5711 = vsel %vm5703, %v5694, %v5710
      %v5712 = vsel %vm5702, %v5709, %v5711
      %v5713 = vsel %vm5701, %v5691, %v5694
      %v5714 = vsel %vm5704, %v5700, 1326507024
      %v5715 = vsel %vm5703, %v5697, %v5714
      %v5716 = vsel %vm5702, %v5713, %v5715
      %v5717 = vshll.u32 %v5677, 8
      %v5718 = vmul.u32.u64.compose %v5717, %v5716
      %v5719 = vextract.low.u32 %v5718
      %v5720 = vextract.high.u32 %v5718
      %v5721 = vmul.u32.u64.compose %v5717, %v5712
      %v5722 = vextract.low.u32 %v5721
      %v5723 = vextract.high.u32 %v5721
      %v5724 = vmul.u32 %v5717, %v5708
      %v5725 = vadd.s32 %v5720, %v5722
      %vm5726 = vc.u32 %v5720, %v5722
      %v5727 = vadd.s32 %v5723, 1
      %v5728 = vsel %vm5726, %v5727, %v5723
      %v5729 = vadd.s32 %v5724, %v5728
      %v5730 = vadd.s32 %v5729, 536870912
      %v5731 = vshrl.u32 %v5730, 30
      %v5732 = vshll.u32 %v5731, 30
      %v5733 = vsub.s32 %v5729, %v5732
      %vm5734 = vcmp.lt.s32.totalorder %v5733, 0
      %v5735 = vsub.s32 0, %v5733
      %v5736 = vsel %vm5734, %v5735, %v5733
      %v5737 = vclz %v5736
      %v5738 = vsub.s32 %v5737, 2
      %vm5739 = vcmp.gt.s32.totalorder 0, %v5738
      %v5740 = vsel %vm5739, 0, %v5738
      %v5741 = vsub.s32 32, %v5740
      %v5742 = vshll.u32 %v5733, %v5740
      %v5743 = vshrl.u32 %v5725, %v5741
      %v5744 = vor.u32 %v5742, %v5743
      %v5745 = vsub.s32 4294967266, %v5740
      %v5746 = vadd.s32 %v5745, 127
      %v5747 = vshll.u32 %v5746, 23
      %v5748 = vor.u32 4788187, %v5747
      %v5749 = vand.u32 2147483647, %v5748
      %v5751 = vcvt.s32.f32 %v5744
      %v5752 = vmul.f32 %v5751, %v5749
      %v5753 = vxor.u32 %v5752, 2147483648
      %v5754 = vsel %vm5671, %v5753, %v5752
      %v5755 = vsub.s32 4, %v5731
      %v5756 = vsel %vm5671, %v5755, %v5731
      %v5757 = vsel %vm5670, %v3334, %v5754
      %v5758 = vsel %vm5670, 0, %v5756
      %v5759 = vcosq.f32.pop %v5757
      %v5760 = vsinq.f32.pop %v5757
      %vm5761 = vweird.f32 %v3334
      %v5762 = vadd.s32 %v5758, 3
      %v5763 = vand.u32 %v5762, 3
      %vm5764 = vcmp.lt.s32.totalorder %v5763, 2
      %vm5765 = vcmp.eq.s32.totalorder %v5763, 0
      %v5766 = vxor.u32 %v5760, 2147483648
      %v5767 = vsel %vm5765, %v5759, %v5766
      %vm5768 = vcmp.eq.s32.totalorder %v5763, 2
      %v5769 = vxor.u32 %v5759, 2147483648
      %v5770 = vsel %vm5768, %v5769, %v5760
      %v5771 = vsel %vm5764, %v5767, %v5770
      %v5772 = vsel %vm5761, nan, %v5771
      %v5773 = vand.u32 2147483647, %v3340
      %vm5774 = vcmp.le.f32.partialorder %v5773, 0.7853982
      %vm5775 = vcmp.lt.s32.totalorder %v3340, 0
      %v5776 = vand.u32 %v3340, 2139095040
      %v5777 = vshrl.u32 %v5776, 23
      %v5778 = vsub.s32 %v5777, 127
      %v5779 = vand.u32 2147483647, %v3340
      %v5780 = vand.u32 %v5779, 8388607
      %v5781 = vor.u32 %v5780, 8388608
      %v5782 = vsub.s32 0, %v5781
      %v5783 = vadd.s32 %v5778, 1
      %vm5784 = vcmp.gt.s32.totalorder %v5783, 0
      %v5785 = vsel %vm5784, %v5783, 0
      %v5786 = vshrl.u32 %v5785, 5
      %v5787 = vand.u32 %v5785, 31
      %v5788 = vsub.s32 32, %v5787
      %v5789 = vshrl.u32 683565275, %v5788
      %v5790 = vshll.u32 683565275, %v5787
      %v5791 = vshrl.u32 2475754826, %v5788
      %v5792 = vor.u32 %v5790, %v5791
      %v5793 = vshll.u32 2475754826, %v5787
      %v5794 = vshrl.u32 2131351028, %v5788
      %v5795 = vor.u32 %v5793, %v5794
      %v5796 = vshll.u32 2131351028, %v5787
      %v5797 = vshrl.u32 2102212464, %v5788
      %v5798 = vor.u32 %v5796, %v5797
      %v5799 = vshll.u32 2102212464, %v5787
      %v5800 = vshrl.u32 920167782, %v5788
      %v5801 = vor.u32 %v5799, %v5800
      %v5802 = vshll.u32 920167782, %v5787
      %v5803 = vshrl.u32 1326507024, %v5788
      %v5804 = vor.u32 %v5802, %v5803
      %vm5805 = vcmp.lt.s32.totalorder %v5786, 1
      %vm5806 = vcmp.lt.s32.totalorder %v5786, 2
      %vm5807 = vcmp.lt.s32.totalorder %v5786, 3
      %vm5808 = vcmp.lt.s32.totalorder %v5786, 4
      %v5809 = vsel %vm5805, %v5789, %v5792
      %v5810 = vsel %vm5808, %v5798, 2102212464
      %v5811 = vsel %vm5807, %v5795, %v5810
      %v5812 = vsel %vm5806, %v5809, %v5811
      %v5813 = vsel %vm5805, %v5792, %v5795
      %v5814 = vsel %vm5808, %v5801, 920167782
      %v5815 = vsel %vm5807, %v5798, %v5814
      %v5816 = vsel %vm5806, %v5813, %v5815
      %v5817 = vsel %vm5805, %v5795, %v5798
      %v5818 = vsel %vm5808, %v5804, 1326507024
      %v5819 = vsel %vm5807, %v5801, %v5818
      %v5820 = vsel %vm5806, %v5817, %v5819
      %v5821 = vshll.u32 %v5781, 8
      %v5822 = vmul.u32.u64.compose %v5821, %v5820
      %v5823 = vextract.low.u32 %v5822
      %v5824 = vextract.high.u32 %v5822
      %v5825 = vmul.u32.u64.compose %v5821, %v5816
      %v5826 = vextract.low.u32 %v5825
      %v5827 = vextract.high.u32 %v5825
      %v5828 = vmul.u32 %v5821, %v5812
      %v5829 = vadd.s32 %v5824, %v5826
      %vm5830 = vc.u32 %v5824, %v5826
      %v5831 = vadd.s32 %v5827, 1
      %v5832 = vsel %vm5830, %v5831, %v5827
      %v5833 = vadd.s32 %v5828, %v5832
      %v5834 = vadd.s32 %v5833, 536870912
      %v5835 = vshrl.u32 %v5834, 30
      %v5836 = vshll.u32 %v5835, 30
      %v5837 = vsub.s32 %v5833, %v5836
      %vm5838 = vcmp.lt.s32.totalorder %v5837, 0
      %v5839 = vsub.s32 0, %v5837
      %v5840 = vsel %vm5838, %v5839, %v5837
      %v5841 = vclz %v5840
      %v5842 = vsub.s32 %v5841, 2
      %vm5843 = vcmp.gt.s32.totalorder 0, %v5842
      %v5844 = vsel %vm5843, 0, %v5842
      %v5845 = vsub.s32 32, %v5844
      %v5846 = vshll.u32 %v5837, %v5844
      %v5847 = vshrl.u32 %v5829, %v5845
      %v5848 = vor.u32 %v5846, %v5847
      %v5849 = vsub.s32 4294967266, %v5844
      %v5850 = vadd.s32 %v5849, 127
      %v5851 = vshll.u32 %v5850, 23
      %v5852 = vor.u32 4788187, %v5851
      %v5853 = vand.u32 2147483647, %v5852
      %v5855 = vcvt.s32.f32 %v5848
      %v5856 = vmul.f32 %v5855, %v5853
      %v5857 = vxor.u32 %v5856, 2147483648
      %v5858 = vsel %vm5775, %v5857, %v5856
      %v5859 = vsub.s32 4, %v5835
      %v5860 = vsel %vm5775, %v5859, %v5835
      %v5861 = vsel %vm5774, %v3340, %v5858
      %v5862 = vsel %vm5774, 0, %v5860
      %v5863 = vcosq.f32.pop %v5861
      %v5864 = vsinq.f32.pop %v5861
      %vm5865 = vweird.f32 %v3340
      %v5866 = vadd.s32 %v5862, 3
      %v5867 = vand.u32 %v5866, 3
      %vm5868 = vcmp.lt.s32.totalorder %v5867, 2
      %vm5869 = vcmp.eq.s32.totalorder %v5867, 0
      %v5870 = vxor.u32 %v5864, 2147483648
      %v5871 = vsel %vm5869, %v5863, %v5870
      %vm5872 = vcmp.eq.s32.totalorder %v5867, 2
      %v5873 = vxor.u32 %v5863, 2147483648
      %v5874 = vsel %vm5872, %v5873, %v5864
      %v5875 = vsel %vm5868, %v5871, %v5874
      %v5876 = vsel %vm5865, nan, %v5875
      %v5877 = vand.u32 2147483647, %v3346
      %vm5878 = vcmp.le.f32.partialorder %v5877, 0.7853982
      %vm5879 = vcmp.lt.s32.totalorder %v3346, 0
      %v5880 = vand.u32 %v3346, 2139095040
      %v5881 = vshrl.u32 %v5880, 23
      %v5882 = vsub.s32 %v5881, 127
      %v5883 = vand.u32 2147483647, %v3346
      %v5884 = vand.u32 %v5883, 8388607
      %v5885 = vor.u32 %v5884, 8388608
      %v5886 = vsub.s32 0, %v5885
      %v5887 = vadd.s32 %v5882, 1
      %vm5888 = vcmp.gt.s32.totalorder %v5887, 0
      %v5889 = vsel %vm5888, %v5887, 0
      %v5890 = vshrl.u32 %v5889, 5
      %v5891 = vand.u32 %v5889, 31
      %v5892 = vsub.s32 32, %v5891
      %v5893 = vshrl.u32 683565275, %v5892
      %v5894 = vshll.u32 683565275, %v5891
      %v5895 = vshrl.u32 2475754826, %v5892
      %v5896 = vor.u32 %v5894, %v5895
      %v5897 = vshll.u32 2475754826, %v5891
      %v5898 = vshrl.u32 2131351028, %v5892
      %v5899 = vor.u32 %v5897, %v5898
      %v5900 = vshll.u32 2131351028, %v5891
      %v5901 = vshrl.u32 2102212464, %v5892
      %v5902 = vor.u32 %v5900, %v5901
      %v5903 = vshll.u32 2102212464, %v5891
      %v5904 = vshrl.u32 920167782, %v5892
      %v5905 = vor.u32 %v5903, %v5904
      %v5906 = vshll.u32 920167782, %v5891
      %v5907 = vshrl.u32 1326507024, %v5892
      %v5908 = vor.u32 %v5906, %v5907
      %vm5909 = vcmp.lt.s32.totalorder %v5890, 1
      %vm5910 = vcmp.lt.s32.totalorder %v5890, 2
      %vm5911 = vcmp.lt.s32.totalorder %v5890, 3
      %vm5912 = vcmp.lt.s32.totalorder %v5890, 4
      %v5913 = vsel %vm5909, %v5893, %v5896
      %v5914 = vsel %vm5912, %v5902, 2102212464
      %v5915 = vsel %vm5911, %v5899, %v5914
      %v5916 = vsel %vm5910, %v5913, %v5915
      %v5917 = vsel %vm5909, %v5896, %v5899
      %v5918 = vsel %vm5912, %v5905, 920167782
      %v5919 = vsel %vm5911, %v5902, %v5918
      %v5920 = vsel %vm5910, %v5917, %v5919
      %v5921 = vsel %vm5909, %v5899, %v5902
      %v5922 = vsel %vm5912, %v5908, 1326507024
      %v5923 = vsel %vm5911, %v5905, %v5922
      %v5924 = vsel %vm5910, %v5921, %v5923
      %v5925 = vshll.u32 %v5885, 8
      %v5926 = vmul.u32.u64.compose %v5925, %v5924
      %v5927 = vextract.low.u32 %v5926
      %v5928 = vextract.high.u32 %v5926
      %v5929 = vmul.u32.u64.compose %v5925, %v5920
      %v5930 = vextract.low.u32 %v5929
      %v5931 = vextract.high.u32 %v5929
      %v5932 = vmul.u32 %v5925, %v5916
      %v5933 = vadd.s32 %v5928, %v5930
      %vm5934 = vc.u32 %v5928, %v5930
      %v5935 = vadd.s32 %v5931, 1
      %v5936 = vsel %vm5934, %v5935, %v5931
      %v5937 = vadd.s32 %v5932, %v5936
      %v5938 = vadd.s32 %v5937, 536870912
      %v5939 = vshrl.u32 %v5938, 30
      %v5940 = vshll.u32 %v5939, 30
      %v5941 = vsub.s32 %v5937, %v5940
      %vm5942 = vcmp.lt.s32.totalorder %v5941, 0
      %v5943 = vsub.s32 0, %v5941
      %v5944 = vsel %vm5942, %v5943, %v5941
      %v5945 = vclz %v5944
      %v5946 = vsub.s32 %v5945, 2
      %vm5947 = vcmp.gt.s32.totalorder 0, %v5946
      %v5948 = vsel %vm5947, 0, %v5946
      %v5949 = vsub.s32 32, %v5948
      %v5950 = vshll.u32 %v5941, %v5948
      %v5951 = vshrl.u32 %v5933, %v5949
      %v5952 = vor.u32 %v5950, %v5951
      %v5953 = vsub.s32 4294967266, %v5948
      %v5954 = vadd.s32 %v5953, 127
      %v5955 = vshll.u32 %v5954, 23
      %v5956 = vor.u32 4788187, %v5955
      %v5957 = vand.u32 2147483647, %v5956
      %v5959 = vcvt.s32.f32 %v5952
      %v5960 = vmul.f32 %v5959, %v5957
      %v5961 = vxor.u32 %v5960, 2147483648
      %v5962 = vsel %vm5879, %v5961, %v5960
      %v5963 = vsub.s32 4, %v5939
      %v5964 = vsel %vm5879, %v5963, %v5939
      %v5965 = vsel %vm5878, %v3346, %v5962
      %v5966 = vsel %vm5878, 0, %v5964
      %v5967 = vcosq.f32.pop %v5965
      %v5968 = vsinq.f32.pop %v5965
      %vm5969 = vweird.f32 %v3346
      %v5970 = vadd.s32 %v5966, 3
      %v5971 = vand.u32 %v5970, 3
      %vm5972 = vcmp.lt.s32.totalorder %v5971, 2
      %vm5973 = vcmp.eq.s32.totalorder %v5971, 0
      %v5974 = vxor.u32 %v5968, 2147483648
      %v5975 = vsel %vm5973, %v5967, %v5974
      %vm5976 = vcmp.eq.s32.totalorder %v5971, 2
      %v5977 = vxor.u32 %v5967, 2147483648
      %v5978 = vsel %vm5976, %v5977, %v5968
      %v5979 = vsel %vm5972, %v5975, %v5978
      %v5980 = vsel %vm5969, nan, %v5979
      %v5981 = vand.u32 2147483647, %v3352
      %vm5982 = vcmp.le.f32.partialorder %v5981, 0.7853982
      %vm5983 = vcmp.lt.s32.totalorder %v3352, 0
      %v5984 = vand.u32 %v3352, 2139095040
      %v5985 = vshrl.u32 %v5984, 23
      %v5986 = vsub.s32 %v5985, 127
      %v5987 = vand.u32 2147483647, %v3352
      %v5988 = vand.u32 %v5987, 8388607
      %v5989 = vor.u32 %v5988, 8388608
      %v5990 = vsub.s32 0, %v5989
      %v5991 = vadd.s32 %v5986, 1
      %vm5992 = vcmp.gt.s32.totalorder %v5991, 0
      %v5993 = vsel %vm5992, %v5991, 0
      %v5994 = vshrl.u32 %v5993, 5
      %v5995 = vand.u32 %v5993, 31
      %v5996 = vsub.s32 32, %v5995
      %v5997 = vshrl.u32 683565275, %v5996
      %v5998 = vshll.u32 683565275, %v5995
      %v5999 = vshrl.u32 2475754826, %v5996
      %v6000 = vor.u32 %v5998, %v5999
      %v6001 = vshll.u32 2475754826, %v5995
      %v6002 = vshrl.u32 2131351028, %v5996
      %v6003 = vor.u32 %v6001, %v6002
      %v6004 = vshll.u32 2131351028, %v5995
      %v6005 = vshrl.u32 2102212464, %v5996
      %v6006 = vor.u32 %v6004, %v6005
      %v6007 = vshll.u32 2102212464, %v5995
      %v6008 = vshrl.u32 920167782, %v5996
      %v6009 = vor.u32 %v6007, %v6008
      %v6010 = vshll.u32 920167782, %v5995
      %v6011 = vshrl.u32 1326507024, %v5996
      %v6012 = vor.u32 %v6010, %v6011
      %vm6013 = vcmp.lt.s32.totalorder %v5994, 1
      %vm6014 = vcmp.lt.s32.totalorder %v5994, 2
      %vm6015 = vcmp.lt.s32.totalorder %v5994, 3
      %vm6016 = vcmp.lt.s32.totalorder %v5994, 4
      %v6017 = vsel %vm6013, %v5997, %v6000
      %v6018 = vsel %vm6016, %v6006, 2102212464
      %v6019 = vsel %vm6015, %v6003, %v6018
      %v6020 = vsel %vm6014, %v6017, %v6019
      %v6021 = vsel %vm6013, %v6000, %v6003
      %v6022 = vsel %vm6016, %v6009, 920167782
      %v6023 = vsel %vm6015, %v6006, %v6022
      %v6024 = vsel %vm6014, %v6021, %v6023
      %v6025 = vsel %vm6013, %v6003, %v6006
      %v6026 = vsel %vm6016, %v6012, 1326507024
      %v6027 = vsel %vm6015, %v6009, %v6026
      %v6028 = vsel %vm6014, %v6025, %v6027
      %v6029 = vshll.u32 %v5989, 8
      %v6030 = vmul.u32.u64.compose %v6029, %v6028
      %v6031 = vextract.low.u32 %v6030
      %v6032 = vextract.high.u32 %v6030
      %v6033 = vmul.u32.u64.compose %v6029, %v6024
      %v6034 = vextract.low.u32 %v6033
      %v6035 = vextract.high.u32 %v6033
      %v6036 = vmul.u32 %v6029, %v6020
      %v6037 = vadd.s32 %v6032, %v6034
      %vm6038 = vc.u32 %v6032, %v6034
      %v6039 = vadd.s32 %v6035, 1
      %v6040 = vsel %vm6038, %v6039, %v6035
      %v6041 = vadd.s32 %v6036, %v6040
      %v6042 = vadd.s32 %v6041, 536870912
      %v6043 = vshrl.u32 %v6042, 30
      %v6044 = vshll.u32 %v6043, 30
      %v6045 = vsub.s32 %v6041, %v6044
      %vm6046 = vcmp.lt.s32.totalorder %v6045, 0
      %v6047 = vsub.s32 0, %v6045
      %v6048 = vsel %vm6046, %v6047, %v6045
      %v6049 = vclz %v6048
      %v6050 = vsub.s32 %v6049, 2
      %vm6051 = vcmp.gt.s32.totalorder 0, %v6050
      %v6052 = vsel %vm6051, 0, %v6050
      %v6053 = vsub.s32 32, %v6052
      %v6054 = vshll.u32 %v6045, %v6052
      %v6055 = vshrl.u32 %v6037, %v6053
      %v6056 = vor.u32 %v6054, %v6055
      %v6057 = vsub.s32 4294967266, %v6052
      %v6058 = vadd.s32 %v6057, 127
      %v6059 = vshll.u32 %v6058, 23
      %v6060 = vor.u32 4788187, %v6059
      %v6061 = vand.u32 2147483647, %v6060
      %v6063 = vcvt.s32.f32 %v6056
      %v6064 = vmul.f32 %v6063, %v6061
      %v6065 = vxor.u32 %v6064, 2147483648
      %v6066 = vsel %vm5983, %v6065, %v6064
      %v6067 = vsub.s32 4, %v6043
      %v6068 = vsel %vm5983, %v6067, %v6043
      %v6069 = vsel %vm5982, %v3352, %v6066
      %v6070 = vsel %vm5982, 0, %v6068
      %v6071 = vcosq.f32.pop %v6069
      %v6072 = vsinq.f32.pop %v6069
      %vm6073 = vweird.f32 %v3352
      %v6074 = vadd.s32 %v6070, 3
      %v6075 = vand.u32 %v6074, 3
      %vm6076 = vcmp.lt.s32.totalorder %v6075, 2
      %vm6077 = vcmp.eq.s32.totalorder %v6075, 0
      %v6078 = vxor.u32 %v6072, 2147483648
      %v6079 = vsel %vm6077, %v6071, %v6078
      %vm6080 = vcmp.eq.s32.totalorder %v6075, 2
      %v6081 = vxor.u32 %v6071, 2147483648
      %v6082 = vsel %vm6080, %v6081, %v6072
      %v6083 = vsel %vm6076, %v6079, %v6082
      %v6084 = vsel %vm6073, nan, %v6083
      %v6085 = vand.u32 2147483647, %v3358
      %vm6086 = vcmp.le.f32.partialorder %v6085, 0.7853982
      %vm6087 = vcmp.lt.s32.totalorder %v3358, 0
      %v6088 = vand.u32 %v3358, 2139095040
      %v6089 = vshrl.u32 %v6088, 23
      %v6090 = vsub.s32 %v6089, 127
      %v6091 = vand.u32 2147483647, %v3358
      %v6092 = vand.u32 %v6091, 8388607
      %v6093 = vor.u32 %v6092, 8388608
      %v6094 = vsub.s32 0, %v6093
      %v6095 = vadd.s32 %v6090, 1
      %vm6096 = vcmp.gt.s32.totalorder %v6095, 0
      %v6097 = vsel %vm6096, %v6095, 0
      %v6098 = vshrl.u32 %v6097, 5
      %v6099 = vand.u32 %v6097, 31
      %v6100 = vsub.s32 32, %v6099
      %v6101 = vshrl.u32 683565275, %v6100
      %v6102 = vshll.u32 683565275, %v6099
      %v6103 = vshrl.u32 2475754826, %v6100
      %v6104 = vor.u32 %v6102, %v6103
      %v6105 = vshll.u32 2475754826, %v6099
      %v6106 = vshrl.u32 2131351028, %v6100
      %v6107 = vor.u32 %v6105, %v6106
      %v6108 = vshll.u32 2131351028, %v6099
      %v6109 = vshrl.u32 2102212464, %v6100
      %v6110 = vor.u32 %v6108, %v6109
      %v6111 = vshll.u32 2102212464, %v6099
      %v6112 = vshrl.u32 920167782, %v6100
      %v6113 = vor.u32 %v6111, %v6112
      %v6114 = vshll.u32 920167782, %v6099
      %v6115 = vshrl.u32 1326507024, %v6100
      %v6116 = vor.u32 %v6114, %v6115
      %vm6117 = vcmp.lt.s32.totalorder %v6098, 1
      %vm6118 = vcmp.lt.s32.totalorder %v6098, 2
      %vm6119 = vcmp.lt.s32.totalorder %v6098, 3
      %vm6120 = vcmp.lt.s32.totalorder %v6098, 4
      %v6121 = vsel %vm6117, %v6101, %v6104
      %v6122 = vsel %vm6120, %v6110, 2102212464
      %v6123 = vsel %vm6119, %v6107, %v6122
      %v6124 = vsel %vm6118, %v6121, %v6123
      %v6125 = vsel %vm6117, %v6104, %v6107
      %v6126 = vsel %vm6120, %v6113, 920167782
      %v6127 = vsel %vm6119, %v6110, %v6126
      %v6128 = vsel %vm6118, %v6125, %v6127
      %v6129 = vsel %vm6117, %v6107, %v6110
      %v6130 = vsel %vm6120, %v6116, 1326507024
      %v6131 = vsel %vm6119, %v6113, %v6130
      %v6132 = vsel %vm6118, %v6129, %v6131
      %v6133 = vshll.u32 %v6093, 8
      %v6134 = vmul.u32.u64.compose %v6133, %v6132
      %v6135 = vextract.low.u32 %v6134
      %v6136 = vextract.high.u32 %v6134
      %v6137 = vmul.u32.u64.compose %v6133, %v6128
      %v6138 = vextract.low.u32 %v6137
      %v6139 = vextract.high.u32 %v6137
      %v6140 = vmul.u32 %v6133, %v6124
      %v6141 = vadd.s32 %v6136, %v6138
      %vm6142 = vc.u32 %v6136, %v6138
      %v6143 = vadd.s32 %v6139, 1
      %v6144 = vsel %vm6142, %v6143, %v6139
      %v6145 = vadd.s32 %v6140, %v6144
      %v6146 = vadd.s32 %v6145, 536870912
      %v6147 = vshrl.u32 %v6146, 30
      %v6148 = vshll.u32 %v6147, 30
      %v6149 = vsub.s32 %v6145, %v6148
      %vm6150 = vcmp.lt.s32.totalorder %v6149, 0
      %v6151 = vsub.s32 0, %v6149
      %v6152 = vsel %vm6150, %v6151, %v6149
      %v6153 = vclz %v6152
      %v6154 = vsub.s32 %v6153, 2
      %vm6155 = vcmp.gt.s32.totalorder 0, %v6154
      %v6156 = vsel %vm6155, 0, %v6154
      %v6157 = vsub.s32 32, %v6156
      %v6158 = vshll.u32 %v6149, %v6156
      %v6159 = vshrl.u32 %v6141, %v6157
      %v6160 = vor.u32 %v6158, %v6159
      %v6161 = vsub.s32 4294967266, %v6156
      %v6162 = vadd.s32 %v6161, 127
      %v6163 = vshll.u32 %v6162, 23
      %v6164 = vor.u32 4788187, %v6163
      %v6165 = vand.u32 2147483647, %v6164
      %v6167 = vcvt.s32.f32 %v6160
      %v6168 = vmul.f32 %v6167, %v6165
      %v6169 = vxor.u32 %v6168, 2147483648
      %v6170 = vsel %vm6087, %v6169, %v6168
      %v6171 = vsub.s32 4, %v6147
      %v6172 = vsel %vm6087, %v6171, %v6147
      %v6173 = vsel %vm6086, %v3358, %v6170
      %v6174 = vsel %vm6086, 0, %v6172
      %v6175 = vcosq.f32.pop %v6173
      %v6176 = vsinq.f32.pop %v6173
      %vm6177 = vweird.f32 %v3358
      %v6178 = vadd.s32 %v6174, 3
      %v6179 = vand.u32 %v6178, 3
      %vm6180 = vcmp.lt.s32.totalorder %v6179, 2
      %vm6181 = vcmp.eq.s32.totalorder %v6179, 0
      %v6182 = vxor.u32 %v6176, 2147483648
      %v6183 = vsel %vm6181, %v6175, %v6182
      %vm6184 = vcmp.eq.s32.totalorder %v6179, 2
      %v6185 = vxor.u32 %v6175, 2147483648
      %v6186 = vsel %vm6184, %v6185, %v6176
      %v6187 = vsel %vm6180, %v6183, %v6186
      %v6188 = vsel %vm6177, nan, %v6187
      %v6189 = vand.u32 2147483647, %v3364
      %vm6190 = vcmp.le.f32.partialorder %v6189, 0.7853982
      %vm6191 = vcmp.lt.s32.totalorder %v3364, 0
      %v6192 = vand.u32 %v3364, 2139095040
      %v6193 = vshrl.u32 %v6192, 23
      %v6194 = vsub.s32 %v6193, 127
      %v6195 = vand.u32 2147483647, %v3364
      %v6196 = vand.u32 %v6195, 8388607
      %v6197 = vor.u32 %v6196, 8388608
      %v6198 = vsub.s32 0, %v6197
      %v6199 = vadd.s32 %v6194, 1
      %vm6200 = vcmp.gt.s32.totalorder %v6199, 0
      %v6201 = vsel %vm6200, %v6199, 0
      %v6202 = vshrl.u32 %v6201, 5
      %v6203 = vand.u32 %v6201, 31
      %v6204 = vsub.s32 32, %v6203
      %v6205 = vshrl.u32 683565275, %v6204
      %v6206 = vshll.u32 683565275, %v6203
      %v6207 = vshrl.u32 2475754826, %v6204
      %v6208 = vor.u32 %v6206, %v6207
      %v6209 = vshll.u32 2475754826, %v6203
      %v6210 = vshrl.u32 2131351028, %v6204
      %v6211 = vor.u32 %v6209, %v6210
      %v6212 = vshll.u32 2131351028, %v6203
      %v6213 = vshrl.u32 2102212464, %v6204
      %v6214 = vor.u32 %v6212, %v6213
      %v6215 = vshll.u32 2102212464, %v6203
      %v6216 = vshrl.u32 920167782, %v6204
      %v6217 = vor.u32 %v6215, %v6216
      %v6218 = vshll.u32 920167782, %v6203
      %v6219 = vshrl.u32 1326507024, %v6204
      %v6220 = vor.u32 %v6218, %v6219
      %vm6221 = vcmp.lt.s32.totalorder %v6202, 1
      %vm6222 = vcmp.lt.s32.totalorder %v6202, 2
      %vm6223 = vcmp.lt.s32.totalorder %v6202, 3
      %vm6224 = vcmp.lt.s32.totalorder %v6202, 4
      %v6225 = vsel %vm6221, %v6205, %v6208
      %v6226 = vsel %vm6224, %v6214, 2102212464
      %v6227 = vsel %vm6223, %v6211, %v6226
      %v6228 = vsel %vm6222, %v6225, %v6227
      %v6229 = vsel %vm6221, %v6208, %v6211
      %v6230 = vsel %vm6224, %v6217, 920167782
      %v6231 = vsel %vm6223, %v6214, %v6230
      %v6232 = vsel %vm6222, %v6229, %v6231
      %v6233 = vsel %vm6221, %v6211, %v6214
      %v6234 = vsel %vm6224, %v6220, 1326507024
      %v6235 = vsel %vm6223, %v6217, %v6234
      %v6236 = vsel %vm6222, %v6233, %v6235
      %v6237 = vshll.u32 %v6197, 8
      %v6238 = vmul.u32.u64.compose %v6237, %v6236
      %v6239 = vextract.low.u32 %v6238
      %v6240 = vextract.high.u32 %v6238
      %v6241 = vmul.u32.u64.compose %v6237, %v6232
      %v6242 = vextract.low.u32 %v6241
      %v6243 = vextract.high.u32 %v6241
      %v6244 = vmul.u32 %v6237, %v6228
      %v6245 = vadd.s32 %v6240, %v6242
      %vm6246 = vc.u32 %v6240, %v6242
      %v6247 = vadd.s32 %v6243, 1
      %v6248 = vsel %vm6246, %v6247, %v6243
      %v6249 = vadd.s32 %v6244, %v6248
      %v6250 = vadd.s32 %v6249, 536870912
      %v6251 = vshrl.u32 %v6250, 30
      %v6252 = vshll.u32 %v6251, 30
      %v6253 = vsub.s32 %v6249, %v6252
      %vm6254 = vcmp.lt.s32.totalorder %v6253, 0
      %v6255 = vsub.s32 0, %v6253
      %v6256 = vsel %vm6254, %v6255, %v6253
      %v6257 = vclz %v6256
      %v6258 = vsub.s32 %v6257, 2
      %vm6259 = vcmp.gt.s32.totalorder 0, %v6258
      %v6260 = vsel %vm6259, 0, %v6258
      %v6261 = vsub.s32 32, %v6260
      %v6262 = vshll.u32 %v6253, %v6260
      %v6263 = vshrl.u32 %v6245, %v6261
      %v6264 = vor.u32 %v6262, %v6263
      %v6265 = vsub.s32 4294967266, %v6260
      %v6266 = vadd.s32 %v6265, 127
      %v6267 = vshll.u32 %v6266, 23
      %v6268 = vor.u32 4788187, %v6267
      %v6269 = vand.u32 2147483647, %v6268
      %v6271 = vcvt.s32.f32 %v6264
      %v6272 = vmul.f32 %v6271, %v6269
      %v6273 = vxor.u32 %v6272, 2147483648
      %v6274 = vsel %vm6191, %v6273, %v6272
      %v6275 = vsub.s32 4, %v6251
      %v6276 = vsel %vm6191, %v6275, %v6251
      %v6277 = vsel %vm6190, %v3364, %v6274
      %v6278 = vsel %vm6190, 0, %v6276
      %v6279 = vcosq.f32.pop %v6277
      %v6280 = vsinq.f32.pop %v6277
      %vm6281 = vweird.f32 %v3364
      %v6282 = vadd.s32 %v6278, 3
      %v6283 = vand.u32 %v6282, 3
      %vm6284 = vcmp.lt.s32.totalorder %v6283, 2
      %vm6285 = vcmp.eq.s32.totalorder %v6283, 0
      %v6286 = vxor.u32 %v6280, 2147483648
      %v6287 = vsel %vm6285, %v6279, %v6286
      %vm6288 = vcmp.eq.s32.totalorder %v6283, 2
      %v6289 = vxor.u32 %v6279, 2147483648
      %v6290 = vsel %vm6288, %v6289, %v6280
      %v6291 = vsel %vm6284, %v6287, %v6290
      %v6292 = vsel %vm6281, nan, %v6291
      %v6293 = vand.u32 2147483647, %v3370
      %vm6294 = vcmp.le.f32.partialorder %v6293, 0.7853982
      %vm6295 = vcmp.lt.s32.totalorder %v3370, 0
      %v6296 = vand.u32 %v3370, 2139095040
      %v6297 = vshrl.u32 %v6296, 23
      %v6298 = vsub.s32 %v6297, 127
      %v6299 = vand.u32 2147483647, %v3370
      %v6300 = vand.u32 %v6299, 8388607
      %v6301 = vor.u32 %v6300, 8388608
      %v6302 = vsub.s32 0, %v6301
      %v6303 = vadd.s32 %v6298, 1
      %vm6304 = vcmp.gt.s32.totalorder %v6303, 0
      %v6305 = vsel %vm6304, %v6303, 0
      %v6306 = vshrl.u32 %v6305, 5
      %v6307 = vand.u32 %v6305, 31
      %v6308 = vsub.s32 32, %v6307
      %v6309 = vshrl.u32 683565275, %v6308
      %v6310 = vshll.u32 683565275, %v6307
      %v6311 = vshrl.u32 2475754826, %v6308
      %v6312 = vor.u32 %v6310, %v6311
      %v6313 = vshll.u32 2475754826, %v6307
      %v6314 = vshrl.u32 2131351028, %v6308
      %v6315 = vor.u32 %v6313, %v6314
      %v6316 = vshll.u32 2131351028, %v6307
      %v6317 = vshrl.u32 2102212464, %v6308
      %v6318 = vor.u32 %v6316, %v6317
      %v6319 = vshll.u32 2102212464, %v6307
      %v6320 = vshrl.u32 920167782, %v6308
      %v6321 = vor.u32 %v6319, %v6320
      %v6322 = vshll.u32 920167782, %v6307
      %v6323 = vshrl.u32 1326507024, %v6308
      %v6324 = vor.u32 %v6322, %v6323
      %vm6325 = vcmp.lt.s32.totalorder %v6306, 1
      %vm6326 = vcmp.lt.s32.totalorder %v6306, 2
      %vm6327 = vcmp.lt.s32.totalorder %v6306, 3
      %vm6328 = vcmp.lt.s32.totalorder %v6306, 4
      %v6329 = vsel %vm6325, %v6309, %v6312
      %v6330 = vsel %vm6328, %v6318, 2102212464
      %v6331 = vsel %vm6327, %v6315, %v6330
      %v6332 = vsel %vm6326, %v6329, %v6331
      %v6333 = vsel %vm6325, %v6312, %v6315
      %v6334 = vsel %vm6328, %v6321, 920167782
      %v6335 = vsel %vm6327, %v6318, %v6334
      %v6336 = vsel %vm6326, %v6333, %v6335
      %v6337 = vsel %vm6325, %v6315, %v6318
      %v6338 = vsel %vm6328, %v6324, 1326507024
      %v6339 = vsel %vm6327, %v6321, %v6338
      %v6340 = vsel %vm6326, %v6337, %v6339
      %v6341 = vshll.u32 %v6301, 8
      %v6342 = vmul.u32.u64.compose %v6341, %v6340
      %v6343 = vextract.low.u32 %v6342
      %v6344 = vextract.high.u32 %v6342
      %v6345 = vmul.u32.u64.compose %v6341, %v6336
      %v6346 = vextract.low.u32 %v6345
      %v6347 = vextract.high.u32 %v6345
      %v6348 = vmul.u32 %v6341, %v6332
      %v6349 = vadd.s32 %v6344, %v6346
      %vm6350 = vc.u32 %v6344, %v6346
      %v6351 = vadd.s32 %v6347, 1
      %v6352 = vsel %vm6350, %v6351, %v6347
      %v6353 = vadd.s32 %v6348, %v6352
      %v6354 = vadd.s32 %v6353, 536870912
      %v6355 = vshrl.u32 %v6354, 30
      %v6356 = vshll.u32 %v6355, 30
      %v6357 = vsub.s32 %v6353, %v6356
      %vm6358 = vcmp.lt.s32.totalorder %v6357, 0
      %v6359 = vsub.s32 0, %v6357
      %v6360 = vsel %vm6358, %v6359, %v6357
      %v6361 = vclz %v6360
      %v6362 = vsub.s32 %v6361, 2
      %vm6363 = vcmp.gt.s32.totalorder 0, %v6362
      %v6364 = vsel %vm6363, 0, %v6362
      %v6365 = vsub.s32 32, %v6364
      %v6366 = vshll.u32 %v6357, %v6364
      %v6367 = vshrl.u32 %v6349, %v6365
      %v6368 = vor.u32 %v6366, %v6367
      %v6369 = vsub.s32 4294967266, %v6364
      %v6370 = vadd.s32 %v6369, 127
      %v6371 = vshll.u32 %v6370, 23
      %v6372 = vor.u32 4788187, %v6371
      %v6373 = vand.u32 2147483647, %v6372
      %v6375 = vcvt.s32.f32 %v6368
      %v6376 = vmul.f32 %v6375, %v6373
      %v6377 = vxor.u32 %v6376, 2147483648
      %v6378 = vsel %vm6295, %v6377, %v6376
      %v6379 = vsub.s32 4, %v6355
      %v6380 = vsel %vm6295, %v6379, %v6355
      %v6381 = vsel %vm6294, %v3370, %v6378
      %v6382 = vsel %vm6294, 0, %v6380
      %v6383 = vcosq.f32.pop %v6381
      %v6384 = vsinq.f32.pop %v6381
      %vm6385 = vweird.f32 %v3370
      %v6386 = vadd.s32 %v6382, 3
      %v6387 = vand.u32 %v6386, 3
      %vm6388 = vcmp.lt.s32.totalorder %v6387, 2
      %vm6389 = vcmp.eq.s32.totalorder %v6387, 0
      %v6390 = vxor.u32 %v6384, 2147483648
      %v6391 = vsel %vm6389, %v6383, %v6390
      %vm6392 = vcmp.eq.s32.totalorder %v6387, 2
      %v6393 = vxor.u32 %v6383, 2147483648
      %v6394 = vsel %vm6392, %v6393, %v6384
      %v6395 = vsel %vm6388, %v6391, %v6394
      %v6396 = vsel %vm6385, nan, %v6395
      %v6397 = vand.u32 2147483647, %v3376
      %vm6398 = vcmp.le.f32.partialorder %v6397, 0.7853982
      %vm6399 = vcmp.lt.s32.totalorder %v3376, 0
      %v6400 = vand.u32 %v3376, 2139095040
      %v6401 = vshrl.u32 %v6400, 23
      %v6402 = vsub.s32 %v6401, 127
      %v6403 = vand.u32 2147483647, %v3376
      %v6404 = vand.u32 %v6403, 8388607
      %v6405 = vor.u32 %v6404, 8388608
      %v6406 = vsub.s32 0, %v6405
      %v6407 = vadd.s32 %v6402, 1
      %vm6408 = vcmp.gt.s32.totalorder %v6407, 0
      %v6409 = vsel %vm6408, %v6407, 0
      %v6410 = vshrl.u32 %v6409, 5
      %v6411 = vand.u32 %v6409, 31
      %v6412 = vsub.s32 32, %v6411
      %v6413 = vshrl.u32 683565275, %v6412
      %v6414 = vshll.u32 683565275, %v6411
      %v6415 = vshrl.u32 2475754826, %v6412
      %v6416 = vor.u32 %v6414, %v6415
      %v6417 = vshll.u32 2475754826, %v6411
      %v6418 = vshrl.u32 2131351028, %v6412
      %v6419 = vor.u32 %v6417, %v6418
      %v6420 = vshll.u32 2131351028, %v6411
      %v6421 = vshrl.u32 2102212464, %v6412
      %v6422 = vor.u32 %v6420, %v6421
      %v6423 = vshll.u32 2102212464, %v6411
      %v6424 = vshrl.u32 920167782, %v6412
      %v6425 = vor.u32 %v6423, %v6424
      %v6426 = vshll.u32 920167782, %v6411
      %v6427 = vshrl.u32 1326507024, %v6412
      %v6428 = vor.u32 %v6426, %v6427
      %vm6429 = vcmp.lt.s32.totalorder %v6410, 1
      %vm6430 = vcmp.lt.s32.totalorder %v6410, 2
      %vm6431 = vcmp.lt.s32.totalorder %v6410, 3
      %vm6432 = vcmp.lt.s32.totalorder %v6410, 4
      %v6433 = vsel %vm6429, %v6413, %v6416
      %v6434 = vsel %vm6432, %v6422, 2102212464
      %v6435 = vsel %vm6431, %v6419, %v6434
      %v6436 = vsel %vm6430, %v6433, %v6435
      %v6437 = vsel %vm6429, %v6416, %v6419
      %v6438 = vsel %vm6432, %v6425, 920167782
      %v6439 = vsel %vm6431, %v6422, %v6438
      %v6440 = vsel %vm6430, %v6437, %v6439
      %v6441 = vsel %vm6429, %v6419, %v6422
      %v6442 = vsel %vm6432, %v6428, 1326507024
      %v6443 = vsel %vm6431, %v6425, %v6442
      %v6444 = vsel %vm6430, %v6441, %v6443
      %v6445 = vshll.u32 %v6405, 8
      %v6446 = vmul.u32.u64.compose %v6445, %v6444
      %v6447 = vextract.low.u32 %v6446
      %v6448 = vextract.high.u32 %v6446
      %v6449 = vmul.u32.u64.compose %v6445, %v6440
      %v6450 = vextract.low.u32 %v6449
      %v6451 = vextract.high.u32 %v6449
      %v6452 = vmul.u32 %v6445, %v6436
      %v6453 = vadd.s32 %v6448, %v6450
      %vm6454 = vc.u32 %v6448, %v6450
      %v6455 = vadd.s32 %v6451, 1
      %v6456 = vsel %vm6454, %v6455, %v6451
      %v6457 = vadd.s32 %v6452, %v6456
      %v6458 = vadd.s32 %v6457, 536870912
      %v6459 = vshrl.u32 %v6458, 30
      %v6460 = vshll.u32 %v6459, 30
      %v6461 = vsub.s32 %v6457, %v6460
      %vm6462 = vcmp.lt.s32.totalorder %v6461, 0
      %v6463 = vsub.s32 0, %v6461
      %v6464 = vsel %vm6462, %v6463, %v6461
      %v6465 = vclz %v6464
      %v6466 = vsub.s32 %v6465, 2
      %vm6467 = vcmp.gt.s32.totalorder 0, %v6466
      %v6468 = vsel %vm6467, 0, %v6466
      %v6469 = vsub.s32 32, %v6468
      %v6470 = vshll.u32 %v6461, %v6468
      %v6471 = vshrl.u32 %v6453, %v6469
      %v6472 = vor.u32 %v6470, %v6471
      %v6473 = vsub.s32 4294967266, %v6468
      %v6474 = vadd.s32 %v6473, 127
      %v6475 = vshll.u32 %v6474, 23
      %v6476 = vor.u32 4788187, %v6475
      %v6477 = vand.u32 2147483647, %v6476
      %v6479 = vcvt.s32.f32 %v6472
      %v6480 = vmul.f32 %v6479, %v6477
      %v6481 = vxor.u32 %v6480, 2147483648
      %v6482 = vsel %vm6399, %v6481, %v6480
      %v6483 = vsub.s32 4, %v6459
      %v6484 = vsel %vm6399, %v6483, %v6459
      %v6485 = vsel %vm6398, %v3376, %v6482
      %v6486 = vsel %vm6398, 0, %v6484
      %v6487 = vcosq.f32.pop %v6485
      %v6488 = vsinq.f32.pop %v6485
      %vm6489 = vweird.f32 %v3376
      %v6490 = vadd.s32 %v6486, 3
      %v6491 = vand.u32 %v6490, 3
      %vm6492 = vcmp.lt.s32.totalorder %v6491, 2
      %vm6493 = vcmp.eq.s32.totalorder %v6491, 0
      %v6494 = vxor.u32 %v6488, 2147483648
      %v6495 = vsel %vm6493, %v6487, %v6494
      %vm6496 = vcmp.eq.s32.totalorder %v6491, 2
      %v6497 = vxor.u32 %v6487, 2147483648
      %v6498 = vsel %vm6496, %v6497, %v6488
      %v6499 = vsel %vm6492, %v6495, %v6498
      %v6500 = vsel %vm6489, nan, %v6499
      %v6501 = vand.u32 2147483647, %v3382
      %vm6502 = vcmp.le.f32.partialorder %v6501, 0.7853982
      %vm6503 = vcmp.lt.s32.totalorder %v3382, 0
      %v6504 = vand.u32 %v3382, 2139095040
      %v6505 = vshrl.u32 %v6504, 23
      %v6506 = vsub.s32 %v6505, 127
      %v6507 = vand.u32 2147483647, %v3382
      %v6508 = vand.u32 %v6507, 8388607
      %v6509 = vor.u32 %v6508, 8388608
      %v6510 = vsub.s32 0, %v6509
      %v6511 = vadd.s32 %v6506, 1
      %vm6512 = vcmp.gt.s32.totalorder %v6511, 0
      %v6513 = vsel %vm6512, %v6511, 0
      %v6514 = vshrl.u32 %v6513, 5
      %v6515 = vand.u32 %v6513, 31
      %v6516 = vsub.s32 32, %v6515
      %v6517 = vshrl.u32 683565275, %v6516
      %v6518 = vshll.u32 683565275, %v6515
      %v6519 = vshrl.u32 2475754826, %v6516
      %v6520 = vor.u32 %v6518, %v6519
      %v6521 = vshll.u32 2475754826, %v6515
      %v6522 = vshrl.u32 2131351028, %v6516
      %v6523 = vor.u32 %v6521, %v6522
      %v6524 = vshll.u32 2131351028, %v6515
      %v6525 = vshrl.u32 2102212464, %v6516
      %v6526 = vor.u32 %v6524, %v6525
      %v6527 = vshll.u32 2102212464, %v6515
      %v6528 = vshrl.u32 920167782, %v6516
      %v6529 = vor.u32 %v6527, %v6528
      %v6530 = vshll.u32 920167782, %v6515
      %v6531 = vshrl.u32 1326507024, %v6516
      %v6532 = vor.u32 %v6530, %v6531
      %vm6533 = vcmp.lt.s32.totalorder %v6514, 1
      %vm6534 = vcmp.lt.s32.totalorder %v6514, 2
      %vm6535 = vcmp.lt.s32.totalorder %v6514, 3
      %vm6536 = vcmp.lt.s32.totalorder %v6514, 4
      %v6537 = vsel %vm6533, %v6517, %v6520
      %v6538 = vsel %vm6536, %v6526, 2102212464
      %v6539 = vsel %vm6535, %v6523, %v6538
      %v6540 = vsel %vm6534, %v6537, %v6539
      %v6541 = vsel %vm6533, %v6520, %v6523
      %v6542 = vsel %vm6536, %v6529, 920167782
      %v6543 = vsel %vm6535, %v6526, %v6542
      %v6544 = vsel %vm6534, %v6541, %v6543
      %v6545 = vsel %vm6533, %v6523, %v6526
      %v6546 = vsel %vm6536, %v6532, 1326507024
      %v6547 = vsel %vm6535, %v6529, %v6546
      %v6548 = vsel %vm6534, %v6545, %v6547
      %v6549 = vshll.u32 %v6509, 8
      %v6550 = vmul.u32.u64.compose %v6549, %v6548
      %v6551 = vextract.low.u32 %v6550
      %v6552 = vextract.high.u32 %v6550
      %v6553 = vmul.u32.u64.compose %v6549, %v6544
      %v6554 = vextract.low.u32 %v6553
      %v6555 = vextract.high.u32 %v6553
      %v6556 = vmul.u32 %v6549, %v6540
      %v6557 = vadd.s32 %v6552, %v6554
      %vm6558 = vc.u32 %v6552, %v6554
      %v6559 = vadd.s32 %v6555, 1
      %v6560 = vsel %vm6558, %v6559, %v6555
      %v6561 = vadd.s32 %v6556, %v6560
      %v6562 = vadd.s32 %v6561, 536870912
      %v6563 = vshrl.u32 %v6562, 30
      %v6564 = vshll.u32 %v6563, 30
      %v6565 = vsub.s32 %v6561, %v6564
      %vm6566 = vcmp.lt.s32.totalorder %v6565, 0
      %v6567 = vsub.s32 0, %v6565
      %v6568 = vsel %vm6566, %v6567, %v6565
      %v6569 = vclz %v6568
      %v6570 = vsub.s32 %v6569, 2
      %vm6571 = vcmp.gt.s32.totalorder 0, %v6570
      %v6572 = vsel %vm6571, 0, %v6570
      %v6573 = vsub.s32 32, %v6572
      %v6574 = vshll.u32 %v6565, %v6572
      %v6575 = vshrl.u32 %v6557, %v6573
      %v6576 = vor.u32 %v6574, %v6575
      %v6577 = vsub.s32 4294967266, %v6572
      %v6578 = vadd.s32 %v6577, 127
      %v6579 = vshll.u32 %v6578, 23
      %v6580 = vor.u32 4788187, %v6579
      %v6581 = vand.u32 2147483647, %v6580
      %v6583 = vcvt.s32.f32 %v6576
      %v6584 = vmul.f32 %v6583, %v6581
      %v6585 = vxor.u32 %v6584, 2147483648
      %v6586 = vsel %vm6503, %v6585, %v6584
      %v6587 = vsub.s32 4, %v6563
      %v6588 = vsel %vm6503, %v6587, %v6563
      %v6589 = vsel %vm6502, %v3382, %v6586
      %v6590 = vsel %vm6502, 0, %v6588
      %v6591 = vcosq.f32.pop %v6589
      %v6592 = vsinq.f32.pop %v6589
      %vm6593 = vweird.f32 %v3382
      %v6594 = vadd.s32 %v6590, 3
      %v6595 = vand.u32 %v6594, 3
      %vm6596 = vcmp.lt.s32.totalorder %v6595, 2
      %vm6597 = vcmp.eq.s32.totalorder %v6595, 0
      %v6598 = vxor.u32 %v6592, 2147483648
      %v6599 = vsel %vm6597, %v6591, %v6598
      %vm6600 = vcmp.eq.s32.totalorder %v6595, 2
      %v6601 = vxor.u32 %v6591, 2147483648
      %v6602 = vsel %vm6600, %v6601, %v6592
      %v6603 = vsel %vm6596, %v6599, %v6602
      %v6604 = vsel %vm6593, nan, %v6603
      %v6605 = vand.u32 2147483647, %v3388
      %vm6606 = vcmp.le.f32.partialorder %v6605, 0.7853982
      %vm6607 = vcmp.lt.s32.totalorder %v3388, 0
      %v6608 = vand.u32 %v3388, 2139095040
      %v6609 = vshrl.u32 %v6608, 23
      %v6610 = vsub.s32 %v6609, 127
      %v6611 = vand.u32 2147483647, %v3388
      %v6612 = vand.u32 %v6611, 8388607
      %v6613 = vor.u32 %v6612, 8388608
      %v6614 = vsub.s32 0, %v6613
      %v6615 = vadd.s32 %v6610, 1
      %vm6616 = vcmp.gt.s32.totalorder %v6615, 0
      %v6617 = vsel %vm6616, %v6615, 0
      %v6618 = vshrl.u32 %v6617, 5
      %v6619 = vand.u32 %v6617, 31
      %v6620 = vsub.s32 32, %v6619
      %v6621 = vshrl.u32 683565275, %v6620
      %v6622 = vshll.u32 683565275, %v6619
      %v6623 = vshrl.u32 2475754826, %v6620
      %v6624 = vor.u32 %v6622, %v6623
      %v6625 = vshll.u32 2475754826, %v6619
      %v6626 = vshrl.u32 2131351028, %v6620
      %v6627 = vor.u32 %v6625, %v6626
      %v6628 = vshll.u32 2131351028, %v6619
      %v6629 = vshrl.u32 2102212464, %v6620
      %v6630 = vor.u32 %v6628, %v6629
      %v6631 = vshll.u32 2102212464, %v6619
      %v6632 = vshrl.u32 920167782, %v6620
      %v6633 = vor.u32 %v6631, %v6632
      %v6634 = vshll.u32 920167782, %v6619
      %v6635 = vshrl.u32 1326507024, %v6620
      %v6636 = vor.u32 %v6634, %v6635
      %vm6637 = vcmp.lt.s32.totalorder %v6618, 1
      %vm6638 = vcmp.lt.s32.totalorder %v6618, 2
      %vm6639 = vcmp.lt.s32.totalorder %v6618, 3
      %vm6640 = vcmp.lt.s32.totalorder %v6618, 4
      %v6641 = vsel %vm6637, %v6621, %v6624
      %v6642 = vsel %vm6640, %v6630, 2102212464
      %v6643 = vsel %vm6639, %v6627, %v6642
      %v6644 = vsel %vm6638, %v6641, %v6643
      %v6645 = vsel %vm6637, %v6624, %v6627
      %v6646 = vsel %vm6640, %v6633, 920167782
      %v6647 = vsel %vm6639, %v6630, %v6646
      %v6648 = vsel %vm6638, %v6645, %v6647
      %v6649 = vsel %vm6637, %v6627, %v6630
      %v6650 = vsel %vm6640, %v6636, 1326507024
      %v6651 = vsel %vm6639, %v6633, %v6650
      %v6652 = vsel %vm6638, %v6649, %v6651
      %v6653 = vshll.u32 %v6613, 8
      %v6654 = vmul.u32.u64.compose %v6653, %v6652
      %v6655 = vextract.low.u32 %v6654
      %v6656 = vextract.high.u32 %v6654
      %v6657 = vmul.u32.u64.compose %v6653, %v6648
      %v6658 = vextract.low.u32 %v6657
      %v6659 = vextract.high.u32 %v6657
      %v6660 = vmul.u32 %v6653, %v6644
      %v6661 = vadd.s32 %v6656, %v6658
      %vm6662 = vc.u32 %v6656, %v6658
      %v6663 = vadd.s32 %v6659, 1
      %v6664 = vsel %vm6662, %v6663, %v6659
      %v6665 = vadd.s32 %v6660, %v6664
      %v6666 = vadd.s32 %v6665, 536870912
      %v6667 = vshrl.u32 %v6666, 30
      %v6668 = vshll.u32 %v6667, 30
      %v6669 = vsub.s32 %v6665, %v6668
      %vm6670 = vcmp.lt.s32.totalorder %v6669, 0
      %v6671 = vsub.s32 0, %v6669
      %v6672 = vsel %vm6670, %v6671, %v6669
      %v6673 = vclz %v6672
      %v6674 = vsub.s32 %v6673, 2
      %vm6675 = vcmp.gt.s32.totalorder 0, %v6674
      %v6676 = vsel %vm6675, 0, %v6674
      %v6677 = vsub.s32 32, %v6676
      %v6678 = vshll.u32 %v6669, %v6676
      %v6679 = vshrl.u32 %v6661, %v6677
      %v6680 = vor.u32 %v6678, %v6679
      %v6681 = vsub.s32 4294967266, %v6676
      %v6682 = vadd.s32 %v6681, 127
      %v6683 = vshll.u32 %v6682, 23
      %v6684 = vor.u32 4788187, %v6683
      %v6685 = vand.u32 2147483647, %v6684
      %v6687 = vcvt.s32.f32 %v6680
      %v6688 = vmul.f32 %v6687, %v6685
      %v6689 = vxor.u32 %v6688, 2147483648
      %v6690 = vsel %vm6607, %v6689, %v6688
      %v6691 = vsub.s32 4, %v6667
      %v6692 = vsel %vm6607, %v6691, %v6667
      %v6693 = vsel %vm6606, %v3388, %v6690
      %v6694 = vsel %vm6606, 0, %v6692
      %v6695 = vcosq.f32.pop %v6693
      %v6696 = vsinq.f32.pop %v6693
      %vm6697 = vweird.f32 %v3388
      %v6698 = vadd.s32 %v6694, 3
      %v6699 = vand.u32 %v6698, 3
      %vm6700 = vcmp.lt.s32.totalorder %v6699, 2
      %vm6701 = vcmp.eq.s32.totalorder %v6699, 0
      %v6702 = vxor.u32 %v6696, 2147483648
      %v6703 = vsel %vm6701, %v6695, %v6702
      %vm6704 = vcmp.eq.s32.totalorder %v6699, 2
      %v6705 = vxor.u32 %v6695, 2147483648
      %v6706 = vsel %vm6704, %v6705, %v6696
      %v6707 = vsel %vm6700, %v6703, %v6706
      %v6708 = vsel %vm6697, nan, %v6707
      %v6709 = vand.u32 2147483647, %v3394
      %vm6710 = vcmp.le.f32.partialorder %v6709, 0.7853982
      %vm6711 = vcmp.lt.s32.totalorder %v3394, 0
      %v6712 = vand.u32 %v3394, 2139095040
      %v6713 = vshrl.u32 %v6712, 23
      %v6714 = vsub.s32 %v6713, 127
      %v6715 = vand.u32 2147483647, %v3394
      %v6716 = vand.u32 %v6715, 8388607
      %v6717 = vor.u32 %v6716, 8388608
      %v6718 = vsub.s32 0, %v6717
      %v6719 = vadd.s32 %v6714, 1
      %vm6720 = vcmp.gt.s32.totalorder %v6719, 0
      %v6721 = vsel %vm6720, %v6719, 0
      %v6722 = vshrl.u32 %v6721, 5
      %v6723 = vand.u32 %v6721, 31
      %v6724 = vsub.s32 32, %v6723
      %v6725 = vshrl.u32 683565275, %v6724
      %v6726 = vshll.u32 683565275, %v6723
      %v6727 = vshrl.u32 2475754826, %v6724
      %v6728 = vor.u32 %v6726, %v6727
      %v6729 = vshll.u32 2475754826, %v6723
      %v6730 = vshrl.u32 2131351028, %v6724
      %v6731 = vor.u32 %v6729, %v6730
      %v6732 = vshll.u32 2131351028, %v6723
      %v6733 = vshrl.u32 2102212464, %v6724
      %v6734 = vor.u32 %v6732, %v6733
      %v6735 = vshll.u32 2102212464, %v6723
      %v6736 = vshrl.u32 920167782, %v6724
      %v6737 = vor.u32 %v6735, %v6736
      %v6738 = vshll.u32 920167782, %v6723
      %v6739 = vshrl.u32 1326507024, %v6724
      %v6740 = vor.u32 %v6738, %v6739
      %vm6741 = vcmp.lt.s32.totalorder %v6722, 1
      %vm6742 = vcmp.lt.s32.totalorder %v6722, 2
      %vm6743 = vcmp.lt.s32.totalorder %v6722, 3
      %vm6744 = vcmp.lt.s32.totalorder %v6722, 4
      %v6745 = vsel %vm6741, %v6725, %v6728
      %v6746 = vsel %vm6744, %v6734, 2102212464
      %v6747 = vsel %vm6743, %v6731, %v6746
      %v6748 = vsel %vm6742, %v6745, %v6747
      %v6749 = vsel %vm6741, %v6728, %v6731
      %v6750 = vsel %vm6744, %v6737, 920167782
      %v6751 = vsel %vm6743, %v6734, %v6750
      %v6752 = vsel %vm6742, %v6749, %v6751
      %v6753 = vsel %vm6741, %v6731, %v6734
      %v6754 = vsel %vm6744, %v6740, 1326507024
      %v6755 = vsel %vm6743, %v6737, %v6754
      %v6756 = vsel %vm6742, %v6753, %v6755
      %v6757 = vshll.u32 %v6717, 8
      %v6758 = vmul.u32.u64.compose %v6757, %v6756
      %v6759 = vextract.low.u32 %v6758
      %v6760 = vextract.high.u32 %v6758
      %v6761 = vmul.u32.u64.compose %v6757, %v6752
      %v6762 = vextract.low.u32 %v6761
      %v6763 = vextract.high.u32 %v6761
      %v6764 = vmul.u32 %v6757, %v6748
      %v6765 = vadd.s32 %v6760, %v6762
      %vm6766 = vc.u32 %v6760, %v6762
      %v6767 = vadd.s32 %v6763, 1
      %v6768 = vsel %vm6766, %v6767, %v6763
      %v6769 = vadd.s32 %v6764, %v6768
      %v6770 = vadd.s32 %v6769, 536870912
      %v6771 = vshrl.u32 %v6770, 30
      %v6772 = vshll.u32 %v6771, 30
      %v6773 = vsub.s32 %v6769, %v6772
      %vm6774 = vcmp.lt.s32.totalorder %v6773, 0
      %v6775 = vsub.s32 0, %v6773
      %v6776 = vsel %vm6774, %v6775, %v6773
      %v6777 = vclz %v6776
      %v6778 = vsub.s32 %v6777, 2
      %vm6779 = vcmp.gt.s32.totalorder 0, %v6778
      %v6780 = vsel %vm6779, 0, %v6778
      %v6781 = vsub.s32 32, %v6780
      %v6782 = vshll.u32 %v6773, %v6780
      %v6783 = vshrl.u32 %v6765, %v6781
      %v6784 = vor.u32 %v6782, %v6783
      %v6785 = vsub.s32 4294967266, %v6780
      %v6786 = vadd.s32 %v6785, 127
      %v6787 = vshll.u32 %v6786, 23
      %v6788 = vor.u32 4788187, %v6787
      %v6789 = vand.u32 2147483647, %v6788
      %v6791 = vcvt.s32.f32 %v6784
      %v6792 = vmul.f32 %v6791, %v6789
      %v6793 = vxor.u32 %v6792, 2147483648
      %v6794 = vsel %vm6711, %v6793, %v6792
      %v6795 = vsub.s32 4, %v6771
      %v6796 = vsel %vm6711, %v6795, %v6771
      %v6797 = vsel %vm6710, %v3394, %v6794
      %v6798 = vsel %vm6710, 0, %v6796
      %v6799 = vcosq.f32.pop %v6797
      %v6800 = vsinq.f32.pop %v6797
      %vm6801 = vweird.f32 %v3394
      %v6802 = vadd.s32 %v6798, 3
      %v6803 = vand.u32 %v6802, 3
      %vm6804 = vcmp.lt.s32.totalorder %v6803, 2
      %vm6805 = vcmp.eq.s32.totalorder %v6803, 0
      %v6806 = vxor.u32 %v6800, 2147483648
      %v6807 = vsel %vm6805, %v6799, %v6806
      %vm6808 = vcmp.eq.s32.totalorder %v6803, 2
      %v6809 = vxor.u32 %v6799, 2147483648
      %v6810 = vsel %vm6808, %v6809, %v6800
      %v6811 = vsel %vm6804, %v6807, %v6810
      %v6812 = vsel %vm6801, nan, %v6811
      %v6813 = vand.u32 2147483647, %v3400
      %vm6814 = vcmp.le.f32.partialorder %v6813, 0.7853982
      %vm6815 = vcmp.lt.s32.totalorder %v3400, 0
      %v6816 = vand.u32 %v3400, 2139095040
      %v6817 = vshrl.u32 %v6816, 23
      %v6818 = vsub.s32 %v6817, 127
      %v6819 = vand.u32 2147483647, %v3400
      %v6820 = vand.u32 %v6819, 8388607
      %v6821 = vor.u32 %v6820, 8388608
      %v6822 = vsub.s32 0, %v6821
      %v6823 = vadd.s32 %v6818, 1
      %vm6824 = vcmp.gt.s32.totalorder %v6823, 0
      %v6825 = vsel %vm6824, %v6823, 0
      %v6826 = vshrl.u32 %v6825, 5
      %v6827 = vand.u32 %v6825, 31
      %v6828 = vsub.s32 32, %v6827
      %v6829 = vshrl.u32 683565275, %v6828
      %v6830 = vshll.u32 683565275, %v6827
      %v6831 = vshrl.u32 2475754826, %v6828
      %v6832 = vor.u32 %v6830, %v6831
      %v6833 = vshll.u32 2475754826, %v6827
      %v6834 = vshrl.u32 2131351028, %v6828
      %v6835 = vor.u32 %v6833, %v6834
      %v6836 = vshll.u32 2131351028, %v6827
      %v6837 = vshrl.u32 2102212464, %v6828
      %v6838 = vor.u32 %v6836, %v6837
      %v6839 = vshll.u32 2102212464, %v6827
      %v6840 = vshrl.u32 920167782, %v6828
      %v6841 = vor.u32 %v6839, %v6840
      %v6842 = vshll.u32 920167782, %v6827
      %v6843 = vshrl.u32 1326507024, %v6828
      %v6844 = vor.u32 %v6842, %v6843
      %vm6845 = vcmp.lt.s32.totalorder %v6826, 1
      %vm6846 = vcmp.lt.s32.totalorder %v6826, 2
      %vm6847 = vcmp.lt.s32.totalorder %v6826, 3
      %vm6848 = vcmp.lt.s32.totalorder %v6826, 4
      %v6849 = vsel %vm6845, %v6829, %v6832
      %v6850 = vsel %vm6848, %v6838, 2102212464
      %v6851 = vsel %vm6847, %v6835, %v6850
      %v6852 = vsel %vm6846, %v6849, %v6851
      %v6853 = vsel %vm6845, %v6832, %v6835
      %v6854 = vsel %vm6848, %v6841, 920167782
      %v6855 = vsel %vm6847, %v6838, %v6854
      %v6856 = vsel %vm6846, %v6853, %v6855
      %v6857 = vsel %vm6845, %v6835, %v6838
      %v6858 = vsel %vm6848, %v6844, 1326507024
      %v6859 = vsel %vm6847, %v6841, %v6858
      %v6860 = vsel %vm6846, %v6857, %v6859
      %v6861 = vshll.u32 %v6821, 8
      %v6862 = vmul.u32.u64.compose %v6861, %v6860
      %v6863 = vextract.low.u32 %v6862
      %v6864 = vextract.high.u32 %v6862
      %v6865 = vmul.u32.u64.compose %v6861, %v6856
      %v6866 = vextract.low.u32 %v6865
      %v6867 = vextract.high.u32 %v6865
      %v6868 = vmul.u32 %v6861, %v6852
      %v6869 = vadd.s32 %v6864, %v6866
      %vm6870 = vc.u32 %v6864, %v6866
      %v6871 = vadd.s32 %v6867, 1
      %v6872 = vsel %vm6870, %v6871, %v6867
      %v6873 = vadd.s32 %v6868, %v6872
      %v6874 = vadd.s32 %v6873, 536870912
      %v6875 = vshrl.u32 %v6874, 30
      %v6876 = vshll.u32 %v6875, 30
      %v6877 = vsub.s32 %v6873, %v6876
      %vm6878 = vcmp.lt.s32.totalorder %v6877, 0
      %v6879 = vsub.s32 0, %v6877
      %v6880 = vsel %vm6878, %v6879, %v6877
      %v6881 = vclz %v6880
      %v6882 = vsub.s32 %v6881, 2
      %vm6883 = vcmp.gt.s32.totalorder 0, %v6882
      %v6884 = vsel %vm6883, 0, %v6882
      %v6885 = vsub.s32 32, %v6884
      %v6886 = vshll.u32 %v6877, %v6884
      %v6887 = vshrl.u32 %v6869, %v6885
      %v6888 = vor.u32 %v6886, %v6887
      %v6889 = vsub.s32 4294967266, %v6884
      %v6890 = vadd.s32 %v6889, 127
      %v6891 = vshll.u32 %v6890, 23
      %v6892 = vor.u32 4788187, %v6891
      %v6893 = vand.u32 2147483647, %v6892
      %v6895 = vcvt.s32.f32 %v6888
      %v6896 = vmul.f32 %v6895, %v6893
      %v6897 = vxor.u32 %v6896, 2147483648
      %v6898 = vsel %vm6815, %v6897, %v6896
      %v6899 = vsub.s32 4, %v6875
      %v6900 = vsel %vm6815, %v6899, %v6875
      %v6901 = vsel %vm6814, %v3400, %v6898
      %v6902 = vsel %vm6814, 0, %v6900
      %v6903 = vcosq.f32.pop %v6901
      %v6904 = vsinq.f32.pop %v6901
      %vm6905 = vweird.f32 %v3400
      %v6906 = vadd.s32 %v6902, 3
      %v6907 = vand.u32 %v6906, 3
      %vm6908 = vcmp.lt.s32.totalorder %v6907, 2
      %vm6909 = vcmp.eq.s32.totalorder %v6907, 0
      %v6910 = vxor.u32 %v6904, 2147483648
      %v6911 = vsel %vm6909, %v6903, %v6910
      %vm6912 = vcmp.eq.s32.totalorder %v6907, 2
      %v6913 = vxor.u32 %v6903, 2147483648
      %v6914 = vsel %vm6912, %v6913, %v6904
      %v6915 = vsel %vm6908, %v6911, %v6914
      %v6916 = vsel %vm6905, nan, %v6915
      %v6917 = vand.u32 2147483647, %v3406
      %vm6918 = vcmp.le.f32.partialorder %v6917, 0.7853982
      %vm6919 = vcmp.lt.s32.totalorder %v3406, 0
      %v6920 = vand.u32 %v3406, 2139095040
      %v6921 = vshrl.u32 %v6920, 23
      %v6922 = vsub.s32 %v6921, 127
      %v6923 = vand.u32 2147483647, %v3406
      %v6924 = vand.u32 %v6923, 8388607
      %v6925 = vor.u32 %v6924, 8388608
      %v6926 = vsub.s32 0, %v6925
      %v6927 = vadd.s32 %v6922, 1
      %vm6928 = vcmp.gt.s32.totalorder %v6927, 0
      %v6929 = vsel %vm6928, %v6927, 0
      %v6930 = vshrl.u32 %v6929, 5
      %v6931 = vand.u32 %v6929, 31
      %v6932 = vsub.s32 32, %v6931
      %v6933 = vshrl.u32 683565275, %v6932
      %v6934 = vshll.u32 683565275, %v6931
      %v6935 = vshrl.u32 2475754826, %v6932
      %v6936 = vor.u32 %v6934, %v6935
      %v6937 = vshll.u32 2475754826, %v6931
      %v6938 = vshrl.u32 2131351028, %v6932
      %v6939 = vor.u32 %v6937, %v6938
      %v6940 = vshll.u32 2131351028, %v6931
      %v6941 = vshrl.u32 2102212464, %v6932
      %v6942 = vor.u32 %v6940, %v6941
      %v6943 = vshll.u32 2102212464, %v6931
      %v6944 = vshrl.u32 920167782, %v6932
      %v6945 = vor.u32 %v6943, %v6944
      %v6946 = vshll.u32 920167782, %v6931
      %v6947 = vshrl.u32 1326507024, %v6932
      %v6948 = vor.u32 %v6946, %v6947
      %vm6949 = vcmp.lt.s32.totalorder %v6930, 1
      %vm6950 = vcmp.lt.s32.totalorder %v6930, 2
      %vm6951 = vcmp.lt.s32.totalorder %v6930, 3
      %vm6952 = vcmp.lt.s32.totalorder %v6930, 4
      %v6953 = vsel %vm6949, %v6933, %v6936
      %v6954 = vsel %vm6952, %v6942, 2102212464
      %v6955 = vsel %vm6951, %v6939, %v6954
      %v6956 = vsel %vm6950, %v6953, %v6955
      %v6957 = vsel %vm6949, %v6936, %v6939
      %v6958 = vsel %vm6952, %v6945, 920167782
      %v6959 = vsel %vm6951, %v6942, %v6958
      %v6960 = vsel %vm6950, %v6957, %v6959
      %v6961 = vsel %vm6949, %v6939, %v6942
      %v6962 = vsel %vm6952, %v6948, 1326507024
      %v6963 = vsel %vm6951, %v6945, %v6962
      %v6964 = vsel %vm6950, %v6961, %v6963
      %v6965 = vshll.u32 %v6925, 8
      %v6966 = vmul.u32.u64.compose %v6965, %v6964
      %v6967 = vextract.low.u32 %v6966
      %v6968 = vextract.high.u32 %v6966
      %v6969 = vmul.u32.u64.compose %v6965, %v6960
      %v6970 = vextract.low.u32 %v6969
      %v6971 = vextract.high.u32 %v6969
      %v6972 = vmul.u32 %v6965, %v6956
      %v6973 = vadd.s32 %v6968, %v6970
      %vm6974 = vc.u32 %v6968, %v6970
      %v6975 = vadd.s32 %v6971, 1
      %v6976 = vsel %vm6974, %v6975, %v6971
      %v6977 = vadd.s32 %v6972, %v6976
      %v6978 = vadd.s32 %v6977, 536870912
      %v6979 = vshrl.u32 %v6978, 30
      %v6980 = vshll.u32 %v6979, 30
      %v6981 = vsub.s32 %v6977, %v6980
      %vm6982 = vcmp.lt.s32.totalorder %v6981, 0
      %v6983 = vsub.s32 0, %v6981
      %v6984 = vsel %vm6982, %v6983, %v6981
      %v6985 = vclz %v6984
      %v6986 = vsub.s32 %v6985, 2
      %vm6987 = vcmp.gt.s32.totalorder 0, %v6986
      %v6988 = vsel %vm6987, 0, %v6986
      %v6989 = vsub.s32 32, %v6988
      %v6990 = vshll.u32 %v6981, %v6988
      %v6991 = vshrl.u32 %v6973, %v6989
      %v6992 = vor.u32 %v6990, %v6991
      %v6993 = vsub.s32 4294967266, %v6988
      %v6994 = vadd.s32 %v6993, 127
      %v6995 = vshll.u32 %v6994, 23
      %v6996 = vor.u32 4788187, %v6995
      %v6997 = vand.u32 2147483647, %v6996
      %v6999 = vcvt.s32.f32 %v6992
      %v7000 = vmul.f32 %v6999, %v6997
      %v7001 = vxor.u32 %v7000, 2147483648
      %v7002 = vsel %vm6919, %v7001, %v7000
      %v7003 = vsub.s32 4, %v6979
      %v7004 = vsel %vm6919, %v7003, %v6979
      %v7005 = vsel %vm6918, %v3406, %v7002
      %v7006 = vsel %vm6918, 0, %v7004
      %v7007 = vcosq.f32.pop %v7005
      %v7008 = vsinq.f32.pop %v7005
      %vm7009 = vweird.f32 %v3406
      %v7010 = vadd.s32 %v7006, 3
      %v7011 = vand.u32 %v7010, 3
      %vm7012 = vcmp.lt.s32.totalorder %v7011, 2
      %vm7013 = vcmp.eq.s32.totalorder %v7011, 0
      %v7014 = vxor.u32 %v7008, 2147483648
      %v7015 = vsel %vm7013, %v7007, %v7014
      %vm7016 = vcmp.eq.s32.totalorder %v7011, 2
      %v7017 = vxor.u32 %v7007, 2147483648
      %v7018 = vsel %vm7016, %v7017, %v7008
      %v7019 = vsel %vm7012, %v7015, %v7018
      %v7020 = vsel %vm7009, nan, %v7019
      %v7021 = vand.u32 2147483647, %v3412
      %vm7022 = vcmp.le.f32.partialorder %v7021, 0.7853982
      %vm7023 = vcmp.lt.s32.totalorder %v3412, 0
      %v7024 = vand.u32 %v3412, 2139095040
      %v7025 = vshrl.u32 %v7024, 23
      %v7026 = vsub.s32 %v7025, 127
      %v7027 = vand.u32 2147483647, %v3412
      %v7028 = vand.u32 %v7027, 8388607
      %v7029 = vor.u32 %v7028, 8388608
      %v7030 = vsub.s32 0, %v7029
      %v7031 = vadd.s32 %v7026, 1
      %vm7032 = vcmp.gt.s32.totalorder %v7031, 0
      %v7033 = vsel %vm7032, %v7031, 0
      %v7034 = vshrl.u32 %v7033, 5
      %v7035 = vand.u32 %v7033, 31
      %v7036 = vsub.s32 32, %v7035
      %v7037 = vshrl.u32 683565275, %v7036
      %v7038 = vshll.u32 683565275, %v7035
      %v7039 = vshrl.u32 2475754826, %v7036
      %v7040 = vor.u32 %v7038, %v7039
      %v7041 = vshll.u32 2475754826, %v7035
      %v7042 = vshrl.u32 2131351028, %v7036
      %v7043 = vor.u32 %v7041, %v7042
      %v7044 = vshll.u32 2131351028, %v7035
      %v7045 = vshrl.u32 2102212464, %v7036
      %v7046 = vor.u32 %v7044, %v7045
      %v7047 = vshll.u32 2102212464, %v7035
      %v7048 = vshrl.u32 920167782, %v7036
      %v7049 = vor.u32 %v7047, %v7048
      %v7050 = vshll.u32 920167782, %v7035
      %v7051 = vshrl.u32 1326507024, %v7036
      %v7052 = vor.u32 %v7050, %v7051
      %vm7053 = vcmp.lt.s32.totalorder %v7034, 1
      %vm7054 = vcmp.lt.s32.totalorder %v7034, 2
      %vm7055 = vcmp.lt.s32.totalorder %v7034, 3
      %vm7056 = vcmp.lt.s32.totalorder %v7034, 4
      %v7057 = vsel %vm7053, %v7037, %v7040
      %v7058 = vsel %vm7056, %v7046, 2102212464
      %v7059 = vsel %vm7055, %v7043, %v7058
      %v7060 = vsel %vm7054, %v7057, %v7059
      %v7061 = vsel %vm7053, %v7040, %v7043
      %v7062 = vsel %vm7056, %v7049, 920167782
      %v7063 = vsel %vm7055, %v7046, %v7062
      %v7064 = vsel %vm7054, %v7061, %v7063
      %v7065 = vsel %vm7053, %v7043, %v7046
      %v7066 = vsel %vm7056, %v7052, 1326507024
      %v7067 = vsel %vm7055, %v7049, %v7066
      %v7068 = vsel %vm7054, %v7065, %v7067
      %v7069 = vshll.u32 %v7029, 8
      %v7070 = vmul.u32.u64.compose %v7069, %v7068
      %v7071 = vextract.low.u32 %v7070
      %v7072 = vextract.high.u32 %v7070
      %v7073 = vmul.u32.u64.compose %v7069, %v7064
      %v7074 = vextract.low.u32 %v7073
      %v7075 = vextract.high.u32 %v7073
      %v7076 = vmul.u32 %v7069, %v7060
      %v7077 = vadd.s32 %v7072, %v7074
      %vm7078 = vc.u32 %v7072, %v7074
      %v7079 = vadd.s32 %v7075, 1
      %v7080 = vsel %vm7078, %v7079, %v7075
      %v7081 = vadd.s32 %v7076, %v7080
      %v7082 = vadd.s32 %v7081, 536870912
      %v7083 = vshrl.u32 %v7082, 30
      %v7084 = vshll.u32 %v7083, 30
      %v7085 = vsub.s32 %v7081, %v7084
      %vm7086 = vcmp.lt.s32.totalorder %v7085, 0
      %v7087 = vsub.s32 0, %v7085
      %v7088 = vsel %vm7086, %v7087, %v7085
      %v7089 = vclz %v7088
      %v7090 = vsub.s32 %v7089, 2
      %vm7091 = vcmp.gt.s32.totalorder 0, %v7090
      %v7092 = vsel %vm7091, 0, %v7090
      %v7093 = vsub.s32 32, %v7092
      %v7094 = vshll.u32 %v7085, %v7092
      %v7095 = vshrl.u32 %v7077, %v7093
      %v7096 = vor.u32 %v7094, %v7095
      %v7097 = vsub.s32 4294967266, %v7092
      %v7098 = vadd.s32 %v7097, 127
      %v7099 = vshll.u32 %v7098, 23
      %v7100 = vor.u32 4788187, %v7099
      %v7101 = vand.u32 2147483647, %v7100
      %v7103 = vcvt.s32.f32 %v7096
      %v7104 = vmul.f32 %v7103, %v7101
      %v7105 = vxor.u32 %v7104, 2147483648
      %v7106 = vsel %vm7023, %v7105, %v7104
      %v7107 = vsub.s32 4, %v7083
      %v7108 = vsel %vm7023, %v7107, %v7083
      %v7109 = vsel %vm7022, %v3412, %v7106
      %v7110 = vsel %vm7022, 0, %v7108
      %v7111 = vcosq.f32.pop %v7109
      %v7112 = vsinq.f32.pop %v7109
      %vm7113 = vweird.f32 %v3412
      %v7114 = vadd.s32 %v7110, 3
      %v7115 = vand.u32 %v7114, 3
      %vm7116 = vcmp.lt.s32.totalorder %v7115, 2
      %vm7117 = vcmp.eq.s32.totalorder %v7115, 0
      %v7118 = vxor.u32 %v7112, 2147483648
      %v7119 = vsel %vm7117, %v7111, %v7118
      %vm7120 = vcmp.eq.s32.totalorder %v7115, 2
      %v7121 = vxor.u32 %v7111, 2147483648
      %v7122 = vsel %vm7120, %v7121, %v7112
      %v7123 = vsel %vm7116, %v7119, %v7122
      %v7124 = vsel %vm7113, nan, %v7123
      %v7125 = vand.u32 2147483647, %v3418
      %vm7126 = vcmp.le.f32.partialorder %v7125, 0.7853982
      %vm7127 = vcmp.lt.s32.totalorder %v3418, 0
      %v7128 = vand.u32 %v3418, 2139095040
      %v7129 = vshrl.u32 %v7128, 23
      %v7130 = vsub.s32 %v7129, 127
      %v7131 = vand.u32 2147483647, %v3418
      %v7132 = vand.u32 %v7131, 8388607
      %v7133 = vor.u32 %v7132, 8388608
      %v7134 = vsub.s32 0, %v7133
      %v7135 = vadd.s32 %v7130, 1
      %vm7136 = vcmp.gt.s32.totalorder %v7135, 0
      %v7137 = vsel %vm7136, %v7135, 0
      %v7138 = vshrl.u32 %v7137, 5
      %v7139 = vand.u32 %v7137, 31
      %v7140 = vsub.s32 32, %v7139
      %v7141 = vshrl.u32 683565275, %v7140
      %v7142 = vshll.u32 683565275, %v7139
      %v7143 = vshrl.u32 2475754826, %v7140
      %v7144 = vor.u32 %v7142, %v7143
      %v7145 = vshll.u32 2475754826, %v7139
      %v7146 = vshrl.u32 2131351028, %v7140
      %v7147 = vor.u32 %v7145, %v7146
      %v7148 = vshll.u32 2131351028, %v7139
      %v7149 = vshrl.u32 2102212464, %v7140
      %v7150 = vor.u32 %v7148, %v7149
      %v7151 = vshll.u32 2102212464, %v7139
      %v7152 = vshrl.u32 920167782, %v7140
      %v7153 = vor.u32 %v7151, %v7152
      %v7154 = vshll.u32 920167782, %v7139
      %v7155 = vshrl.u32 1326507024, %v7140
      %v7156 = vor.u32 %v7154, %v7155
      %vm7157 = vcmp.lt.s32.totalorder %v7138, 1
      %vm7158 = vcmp.lt.s32.totalorder %v7138, 2
      %vm7159 = vcmp.lt.s32.totalorder %v7138, 3
      %vm7160 = vcmp.lt.s32.totalorder %v7138, 4
      %v7161 = vsel %vm7157, %v7141, %v7144
      %v7162 = vsel %vm7160, %v7150, 2102212464
      %v7163 = vsel %vm7159, %v7147, %v7162
      %v7164 = vsel %vm7158, %v7161, %v7163
      %v7165 = vsel %vm7157, %v7144, %v7147
      %v7166 = vsel %vm7160, %v7153, 920167782
      %v7167 = vsel %vm7159, %v7150, %v7166
      %v7168 = vsel %vm7158, %v7165, %v7167
      %v7169 = vsel %vm7157, %v7147, %v7150
      %v7170 = vsel %vm7160, %v7156, 1326507024
      %v7171 = vsel %vm7159, %v7153, %v7170
      %v7172 = vsel %vm7158, %v7169, %v7171
      %v7173 = vshll.u32 %v7133, 8
      %v7174 = vmul.u32.u64.compose %v7173, %v7172
      %v7175 = vextract.low.u32 %v7174
      %v7176 = vextract.high.u32 %v7174
      %v7177 = vmul.u32.u64.compose %v7173, %v7168
      %v7178 = vextract.low.u32 %v7177
      %v7179 = vextract.high.u32 %v7177
      %v7180 = vmul.u32 %v7173, %v7164
      %v7181 = vadd.s32 %v7176, %v7178
      %vm7182 = vc.u32 %v7176, %v7178
      %v7183 = vadd.s32 %v7179, 1
      %v7184 = vsel %vm7182, %v7183, %v7179
      %v7185 = vadd.s32 %v7180, %v7184
      %v7186 = vadd.s32 %v7185, 536870912
      %v7187 = vshrl.u32 %v7186, 30
      %v7188 = vshll.u32 %v7187, 30
      %v7189 = vsub.s32 %v7185, %v7188
      %vm7190 = vcmp.lt.s32.totalorder %v7189, 0
      %v7191 = vsub.s32 0, %v7189
      %v7192 = vsel %vm7190, %v7191, %v7189
      %v7193 = vclz %v7192
      %v7194 = vsub.s32 %v7193, 2
      %vm7195 = vcmp.gt.s32.totalorder 0, %v7194
      %v7196 = vsel %vm7195, 0, %v7194
      %v7197 = vsub.s32 32, %v7196
      %v7198 = vshll.u32 %v7189, %v7196
      %v7199 = vshrl.u32 %v7181, %v7197
      %v7200 = vor.u32 %v7198, %v7199
      %v7201 = vsub.s32 4294967266, %v7196
      %v7202 = vadd.s32 %v7201, 127
      %v7203 = vshll.u32 %v7202, 23
      %v7204 = vor.u32 4788187, %v7203
      %v7205 = vand.u32 2147483647, %v7204
      %v7207 = vcvt.s32.f32 %v7200
      %v7208 = vmul.f32 %v7207, %v7205
      %v7209 = vxor.u32 %v7208, 2147483648
      %v7210 = vsel %vm7127, %v7209, %v7208
      %v7211 = vsub.s32 4, %v7187
      %v7212 = vsel %vm7127, %v7211, %v7187
      %v7213 = vsel %vm7126, %v3418, %v7210
      %v7214 = vsel %vm7126, 0, %v7212
      %v7215 = vcosq.f32.pop %v7213
      %v7216 = vsinq.f32.pop %v7213
      %vm7217 = vweird.f32 %v3418
      %v7218 = vadd.s32 %v7214, 3
      %v7219 = vand.u32 %v7218, 3
      %vm7220 = vcmp.lt.s32.totalorder %v7219, 2
      %vm7221 = vcmp.eq.s32.totalorder %v7219, 0
      %v7222 = vxor.u32 %v7216, 2147483648
      %v7223 = vsel %vm7221, %v7215, %v7222
      %vm7224 = vcmp.eq.s32.totalorder %v7219, 2
      %v7225 = vxor.u32 %v7215, 2147483648
      %v7226 = vsel %vm7224, %v7225, %v7216
      %v7227 = vsel %vm7220, %v7223, %v7226
      %v7228 = vsel %vm7217, nan, %v7227
      %v7229 = vand.u32 2147483647, %v3424
      %vm7230 = vcmp.le.f32.partialorder %v7229, 0.7853982
      %vm7231 = vcmp.lt.s32.totalorder %v3424, 0
      %v7232 = vand.u32 %v3424, 2139095040
      %v7233 = vshrl.u32 %v7232, 23
      %v7234 = vsub.s32 %v7233, 127
      %v7235 = vand.u32 2147483647, %v3424
      %v7236 = vand.u32 %v7235, 8388607
      %v7237 = vor.u32 %v7236, 8388608
      %v7238 = vsub.s32 0, %v7237
      %v7239 = vadd.s32 %v7234, 1
      %vm7240 = vcmp.gt.s32.totalorder %v7239, 0
      %v7241 = vsel %vm7240, %v7239, 0
      %v7242 = vshrl.u32 %v7241, 5
      %v7243 = vand.u32 %v7241, 31
      %v7244 = vsub.s32 32, %v7243
      %v7245 = vshrl.u32 683565275, %v7244
      %v7246 = vshll.u32 683565275, %v7243
      %v7247 = vshrl.u32 2475754826, %v7244
      %v7248 = vor.u32 %v7246, %v7247
      %v7249 = vshll.u32 2475754826, %v7243
      %v7250 = vshrl.u32 2131351028, %v7244
      %v7251 = vor.u32 %v7249, %v7250
      %v7252 = vshll.u32 2131351028, %v7243
      %v7253 = vshrl.u32 2102212464, %v7244
      %v7254 = vor.u32 %v7252, %v7253
      %v7255 = vshll.u32 2102212464, %v7243
      %v7256 = vshrl.u32 920167782, %v7244
      %v7257 = vor.u32 %v7255, %v7256
      %v7258 = vshll.u32 920167782, %v7243
      %v7259 = vshrl.u32 1326507024, %v7244
      %v7260 = vor.u32 %v7258, %v7259
      %vm7261 = vcmp.lt.s32.totalorder %v7242, 1
      %vm7262 = vcmp.lt.s32.totalorder %v7242, 2
      %vm7263 = vcmp.lt.s32.totalorder %v7242, 3
      %vm7264 = vcmp.lt.s32.totalorder %v7242, 4
      %v7265 = vsel %vm7261, %v7245, %v7248
      %v7266 = vsel %vm7264, %v7254, 2102212464
      %v7267 = vsel %vm7263, %v7251, %v7266
      %v7268 = vsel %vm7262, %v7265, %v7267
      %v7269 = vsel %vm7261, %v7248, %v7251
      %v7270 = vsel %vm7264, %v7257, 920167782
      %v7271 = vsel %vm7263, %v7254, %v7270
      %v7272 = vsel %vm7262, %v7269, %v7271
      %v7273 = vsel %vm7261, %v7251, %v7254
      %v7274 = vsel %vm7264, %v7260, 1326507024
      %v7275 = vsel %vm7263, %v7257, %v7274
      %v7276 = vsel %vm7262, %v7273, %v7275
      %v7277 = vshll.u32 %v7237, 8
      %v7278 = vmul.u32.u64.compose %v7277, %v7276
      %v7279 = vextract.low.u32 %v7278
      %v7280 = vextract.high.u32 %v7278
      %v7281 = vmul.u32.u64.compose %v7277, %v7272
      %v7282 = vextract.low.u32 %v7281
      %v7283 = vextract.high.u32 %v7281
      %v7284 = vmul.u32 %v7277, %v7268
      %v7285 = vadd.s32 %v7280, %v7282
      %vm7286 = vc.u32 %v7280, %v7282
      %v7287 = vadd.s32 %v7283, 1
      %v7288 = vsel %vm7286, %v7287, %v7283
      %v7289 = vadd.s32 %v7284, %v7288
      %v7290 = vadd.s32 %v7289, 536870912
      %v7291 = vshrl.u32 %v7290, 30
      %v7292 = vshll.u32 %v7291, 30
      %v7293 = vsub.s32 %v7289, %v7292
      %vm7294 = vcmp.lt.s32.totalorder %v7293, 0
      %v7295 = vsub.s32 0, %v7293
      %v7296 = vsel %vm7294, %v7295, %v7293
      %v7297 = vclz %v7296
      %v7298 = vsub.s32 %v7297, 2
      %vm7299 = vcmp.gt.s32.totalorder 0, %v7298
      %v7300 = vsel %vm7299, 0, %v7298
      %v7301 = vsub.s32 32, %v7300
      %v7302 = vshll.u32 %v7293, %v7300
      %v7303 = vshrl.u32 %v7285, %v7301
      %v7304 = vor.u32 %v7302, %v7303
      %v7305 = vsub.s32 4294967266, %v7300
      %v7306 = vadd.s32 %v7305, 127
      %v7307 = vshll.u32 %v7306, 23
      %v7308 = vor.u32 4788187, %v7307
      %v7309 = vand.u32 2147483647, %v7308
      %v7311 = vcvt.s32.f32 %v7304
      %v7312 = vmul.f32 %v7311, %v7309
      %v7313 = vxor.u32 %v7312, 2147483648
      %v7314 = vsel %vm7231, %v7313, %v7312
      %v7315 = vsub.s32 4, %v7291
      %v7316 = vsel %vm7231, %v7315, %v7291
      %v7317 = vsel %vm7230, %v3424, %v7314
      %v7318 = vsel %vm7230, 0, %v7316
      %v7319 = vcosq.f32.pop %v7317
      %v7320 = vsinq.f32.pop %v7317
      %vm7321 = vweird.f32 %v3424
      %v7322 = vadd.s32 %v7318, 3
      %v7323 = vand.u32 %v7322, 3
      %vm7324 = vcmp.lt.s32.totalorder %v7323, 2
      %vm7325 = vcmp.eq.s32.totalorder %v7323, 0
      %v7326 = vxor.u32 %v7320, 2147483648
      %v7327 = vsel %vm7325, %v7319, %v7326
      %vm7328 = vcmp.eq.s32.totalorder %v7323, 2
      %v7329 = vxor.u32 %v7319, 2147483648
      %v7330 = vsel %vm7328, %v7329, %v7320
      %v7331 = vsel %vm7324, %v7327, %v7330
      %v7332 = vsel %vm7321, nan, %v7331
      %v7333 = vand.u32 2147483647, %v3430
      %vm7334 = vcmp.le.f32.partialorder %v7333, 0.7853982
      %vm7335 = vcmp.lt.s32.totalorder %v3430, 0
      %v7336 = vand.u32 %v3430, 2139095040
      %v7337 = vshrl.u32 %v7336, 23
      %v7338 = vsub.s32 %v7337, 127
      %v7339 = vand.u32 2147483647, %v3430
      %v7340 = vand.u32 %v7339, 8388607
      %v7341 = vor.u32 %v7340, 8388608
      %v7342 = vsub.s32 0, %v7341
      %v7343 = vadd.s32 %v7338, 1
      %vm7344 = vcmp.gt.s32.totalorder %v7343, 0
      %v7345 = vsel %vm7344, %v7343, 0
      %v7346 = vshrl.u32 %v7345, 5
      %v7347 = vand.u32 %v7345, 31
      %v7348 = vsub.s32 32, %v7347
      %v7349 = vshrl.u32 683565275, %v7348
      %v7350 = vshll.u32 683565275, %v7347
      %v7351 = vshrl.u32 2475754826, %v7348
      %v7352 = vor.u32 %v7350, %v7351
      %v7353 = vshll.u32 2475754826, %v7347
      %v7354 = vshrl.u32 2131351028, %v7348
      %v7355 = vor.u32 %v7353, %v7354
      %v7356 = vshll.u32 2131351028, %v7347
      %v7357 = vshrl.u32 2102212464, %v7348
      %v7358 = vor.u32 %v7356, %v7357
      %v7359 = vshll.u32 2102212464, %v7347
      %v7360 = vshrl.u32 920167782, %v7348
      %v7361 = vor.u32 %v7359, %v7360
      %v7362 = vshll.u32 920167782, %v7347
      %v7363 = vshrl.u32 1326507024, %v7348
      %v7364 = vor.u32 %v7362, %v7363
      %vm7365 = vcmp.lt.s32.totalorder %v7346, 1
      %vm7366 = vcmp.lt.s32.totalorder %v7346, 2
      %vm7367 = vcmp.lt.s32.totalorder %v7346, 3
      %vm7368 = vcmp.lt.s32.totalorder %v7346, 4
      %v7369 = vsel %vm7365, %v7349, %v7352
      %v7370 = vsel %vm7368, %v7358, 2102212464
      %v7371 = vsel %vm7367, %v7355, %v7370
      %v7372 = vsel %vm7366, %v7369, %v7371
      %v7373 = vsel %vm7365, %v7352, %v7355
      %v7374 = vsel %vm7368, %v7361, 920167782
      %v7375 = vsel %vm7367, %v7358, %v7374
      %v7376 = vsel %vm7366, %v7373, %v7375
      %v7377 = vsel %vm7365, %v7355, %v7358
      %v7378 = vsel %vm7368, %v7364, 1326507024
      %v7379 = vsel %vm7367, %v7361, %v7378
      %v7380 = vsel %vm7366, %v7377, %v7379
      %v7381 = vshll.u32 %v7341, 8
      %v7382 = vmul.u32.u64.compose %v7381, %v7380
      %v7383 = vextract.low.u32 %v7382
      %v7384 = vextract.high.u32 %v7382
      %v7385 = vmul.u32.u64.compose %v7381, %v7376
      %v7386 = vextract.low.u32 %v7385
      %v7387 = vextract.high.u32 %v7385
      %v7388 = vmul.u32 %v7381, %v7372
      %v7389 = vadd.s32 %v7384, %v7386
      %vm7390 = vc.u32 %v7384, %v7386
      %v7391 = vadd.s32 %v7387, 1
      %v7392 = vsel %vm7390, %v7391, %v7387
      %v7393 = vadd.s32 %v7388, %v7392
      %v7394 = vadd.s32 %v7393, 536870912
      %v7395 = vshrl.u32 %v7394, 30
      %v7396 = vshll.u32 %v7395, 30
      %v7397 = vsub.s32 %v7393, %v7396
      %vm7398 = vcmp.lt.s32.totalorder %v7397, 0
      %v7399 = vsub.s32 0, %v7397
      %v7400 = vsel %vm7398, %v7399, %v7397
      %v7401 = vclz %v7400
      %v7402 = vsub.s32 %v7401, 2
      %vm7403 = vcmp.gt.s32.totalorder 0, %v7402
      %v7404 = vsel %vm7403, 0, %v7402
      %v7405 = vsub.s32 32, %v7404
      %v7406 = vshll.u32 %v7397, %v7404
      %v7407 = vshrl.u32 %v7389, %v7405
      %v7408 = vor.u32 %v7406, %v7407
      %v7409 = vsub.s32 4294967266, %v7404
      %v7410 = vadd.s32 %v7409, 127
      %v7411 = vshll.u32 %v7410, 23
      %v7412 = vor.u32 4788187, %v7411
      %v7413 = vand.u32 2147483647, %v7412
      %v7415 = vcvt.s32.f32 %v7408
      %v7416 = vmul.f32 %v7415, %v7413
      %v7417 = vxor.u32 %v7416, 2147483648
      %v7418 = vsel %vm7335, %v7417, %v7416
      %v7419 = vsub.s32 4, %v7395
      %v7420 = vsel %vm7335, %v7419, %v7395
      %v7421 = vsel %vm7334, %v3430, %v7418
      %v7422 = vsel %vm7334, 0, %v7420
      %v7423 = vcosq.f32.pop %v7421
      %v7424 = vsinq.f32.pop %v7421
      %vm7425 = vweird.f32 %v3430
      %v7426 = vadd.s32 %v7422, 3
      %v7427 = vand.u32 %v7426, 3
      %vm7428 = vcmp.lt.s32.totalorder %v7427, 2
      %vm7429 = vcmp.eq.s32.totalorder %v7427, 0
      %v7430 = vxor.u32 %v7424, 2147483648
      %v7431 = vsel %vm7429, %v7423, %v7430
      %vm7432 = vcmp.eq.s32.totalorder %v7427, 2
      %v7433 = vxor.u32 %v7423, 2147483648
      %v7434 = vsel %vm7432, %v7433, %v7424
      %v7435 = vsel %vm7428, %v7431, %v7434
      %v7436 = vsel %vm7425, nan, %v7435
      %v7437 = vand.u32 2147483647, %v3436
      %vm7438 = vcmp.le.f32.partialorder %v7437, 0.7853982
      %vm7439 = vcmp.lt.s32.totalorder %v3436, 0
      %v7440 = vand.u32 %v3436, 2139095040
      %v7441 = vshrl.u32 %v7440, 23
      %v7442 = vsub.s32 %v7441, 127
      %v7443 = vand.u32 2147483647, %v3436
      %v7444 = vand.u32 %v7443, 8388607
      %v7445 = vor.u32 %v7444, 8388608
      %v7446 = vsub.s32 0, %v7445
      %v7447 = vadd.s32 %v7442, 1
      %vm7448 = vcmp.gt.s32.totalorder %v7447, 0
      %v7449 = vsel %vm7448, %v7447, 0
      %v7450 = vshrl.u32 %v7449, 5
      %v7451 = vand.u32 %v7449, 31
      %v7452 = vsub.s32 32, %v7451
      %v7453 = vshrl.u32 683565275, %v7452
      %v7454 = vshll.u32 683565275, %v7451
      %v7455 = vshrl.u32 2475754826, %v7452
      %v7456 = vor.u32 %v7454, %v7455
      %v7457 = vshll.u32 2475754826, %v7451
      %v7458 = vshrl.u32 2131351028, %v7452
      %v7459 = vor.u32 %v7457, %v7458
      %v7460 = vshll.u32 2131351028, %v7451
      %v7461 = vshrl.u32 2102212464, %v7452
      %v7462 = vor.u32 %v7460, %v7461
      %v7463 = vshll.u32 2102212464, %v7451
      %v7464 = vshrl.u32 920167782, %v7452
      %v7465 = vor.u32 %v7463, %v7464
      %v7466 = vshll.u32 920167782, %v7451
      %v7467 = vshrl.u32 1326507024, %v7452
      %v7468 = vor.u32 %v7466, %v7467
      %vm7469 = vcmp.lt.s32.totalorder %v7450, 1
      %vm7470 = vcmp.lt.s32.totalorder %v7450, 2
      %vm7471 = vcmp.lt.s32.totalorder %v7450, 3
      %vm7472 = vcmp.lt.s32.totalorder %v7450, 4
      %v7473 = vsel %vm7469, %v7453, %v7456
      %v7474 = vsel %vm7472, %v7462, 2102212464
      %v7475 = vsel %vm7471, %v7459, %v7474
      %v7476 = vsel %vm7470, %v7473, %v7475
      %v7477 = vsel %vm7469, %v7456, %v7459
      %v7478 = vsel %vm7472, %v7465, 920167782
      %v7479 = vsel %vm7471, %v7462, %v7478
      %v7480 = vsel %vm7470, %v7477, %v7479
      %v7481 = vsel %vm7469, %v7459, %v7462
      %v7482 = vsel %vm7472, %v7468, 1326507024
      %v7483 = vsel %vm7471, %v7465, %v7482
      %v7484 = vsel %vm7470, %v7481, %v7483
      %v7485 = vshll.u32 %v7445, 8
      %v7486 = vmul.u32.u64.compose %v7485, %v7484
      %v7487 = vextract.low.u32 %v7486
      %v7488 = vextract.high.u32 %v7486
      %v7489 = vmul.u32.u64.compose %v7485, %v7480
      %v7490 = vextract.low.u32 %v7489
      %v7491 = vextract.high.u32 %v7489
      %v7492 = vmul.u32 %v7485, %v7476
      %v7493 = vadd.s32 %v7488, %v7490
      %vm7494 = vc.u32 %v7488, %v7490
      %v7495 = vadd.s32 %v7491, 1
      %v7496 = vsel %vm7494, %v7495, %v7491
      %v7497 = vadd.s32 %v7492, %v7496
      %v7498 = vadd.s32 %v7497, 536870912
      %v7499 = vshrl.u32 %v7498, 30
      %v7500 = vshll.u32 %v7499, 30
      %v7501 = vsub.s32 %v7497, %v7500
      %vm7502 = vcmp.lt.s32.totalorder %v7501, 0
      %v7503 = vsub.s32 0, %v7501
      %v7504 = vsel %vm7502, %v7503, %v7501
      %v7505 = vclz %v7504
      %v7506 = vsub.s32 %v7505, 2
      %vm7507 = vcmp.gt.s32.totalorder 0, %v7506
      %v7508 = vsel %vm7507, 0, %v7506
      %v7509 = vsub.s32 32, %v7508
      %v7510 = vshll.u32 %v7501, %v7508
      %v7511 = vshrl.u32 %v7493, %v7509
      %v7512 = vor.u32 %v7510, %v7511
      %v7513 = vsub.s32 4294967266, %v7508
      %v7514 = vadd.s32 %v7513, 127
      %v7515 = vshll.u32 %v7514, 23
      %v7516 = vor.u32 4788187, %v7515
      %v7517 = vand.u32 2147483647, %v7516
      %v7519 = vcvt.s32.f32 %v7512
      %v7520 = vmul.f32 %v7519, %v7517
      %v7521 = vxor.u32 %v7520, 2147483648
      %v7522 = vsel %vm7439, %v7521, %v7520
      %v7523 = vsub.s32 4, %v7499
      %v7524 = vsel %vm7439, %v7523, %v7499
      %v7525 = vsel %vm7438, %v3436, %v7522
      %v7526 = vsel %vm7438, 0, %v7524
      %v7527 = vcosq.f32.pop %v7525
      %v7528 = vsinq.f32.pop %v7525
      %vm7529 = vweird.f32 %v3436
      %v7530 = vadd.s32 %v7526, 3
      %v7531 = vand.u32 %v7530, 3
      %vm7532 = vcmp.lt.s32.totalorder %v7531, 2
      %vm7533 = vcmp.eq.s32.totalorder %v7531, 0
      %v7534 = vxor.u32 %v7528, 2147483648
      %v7535 = vsel %vm7533, %v7527, %v7534
      %vm7536 = vcmp.eq.s32.totalorder %v7531, 2
      %v7537 = vxor.u32 %v7527, 2147483648
      %v7538 = vsel %vm7536, %v7537, %v7528
      %v7539 = vsel %vm7532, %v7535, %v7538
      %v7540 = vsel %vm7529, nan, %v7539
      %v7541 = vand.u32 2147483647, %v3442
      %vm7542 = vcmp.le.f32.partialorder %v7541, 0.7853982
      %vm7543 = vcmp.lt.s32.totalorder %v3442, 0
      %v7544 = vand.u32 %v3442, 2139095040
      %v7545 = vshrl.u32 %v7544, 23
      %v7546 = vsub.s32 %v7545, 127
      %v7547 = vand.u32 2147483647, %v3442
      %v7548 = vand.u32 %v7547, 8388607
      %v7549 = vor.u32 %v7548, 8388608
      %v7550 = vsub.s32 0, %v7549
      %v7551 = vadd.s32 %v7546, 1
      %vm7552 = vcmp.gt.s32.totalorder %v7551, 0
      %v7553 = vsel %vm7552, %v7551, 0
      %v7554 = vshrl.u32 %v7553, 5
      %v7555 = vand.u32 %v7553, 31
      %v7556 = vsub.s32 32, %v7555
      %v7557 = vshrl.u32 683565275, %v7556
      %v7558 = vshll.u32 683565275, %v7555
      %v7559 = vshrl.u32 2475754826, %v7556
      %v7560 = vor.u32 %v7558, %v7559
      %v7561 = vshll.u32 2475754826, %v7555
      %v7562 = vshrl.u32 2131351028, %v7556
      %v7563 = vor.u32 %v7561, %v7562
      %v7564 = vshll.u32 2131351028, %v7555
      %v7565 = vshrl.u32 2102212464, %v7556
      %v7566 = vor.u32 %v7564, %v7565
      %v7567 = vshll.u32 2102212464, %v7555
      %v7568 = vshrl.u32 920167782, %v7556
      %v7569 = vor.u32 %v7567, %v7568
      %v7570 = vshll.u32 920167782, %v7555
      %v7571 = vshrl.u32 1326507024, %v7556
      %v7572 = vor.u32 %v7570, %v7571
      %vm7573 = vcmp.lt.s32.totalorder %v7554, 1
      %vm7574 = vcmp.lt.s32.totalorder %v7554, 2
      %vm7575 = vcmp.lt.s32.totalorder %v7554, 3
      %vm7576 = vcmp.lt.s32.totalorder %v7554, 4
      %v7577 = vsel %vm7573, %v7557, %v7560
      %v7578 = vsel %vm7576, %v7566, 2102212464
      %v7579 = vsel %vm7575, %v7563, %v7578
      %v7580 = vsel %vm7574, %v7577, %v7579
      %v7581 = vsel %vm7573, %v7560, %v7563
      %v7582 = vsel %vm7576, %v7569, 920167782
      %v7583 = vsel %vm7575, %v7566, %v7582
      %v7584 = vsel %vm7574, %v7581, %v7583
      %v7585 = vsel %vm7573, %v7563, %v7566
      %v7586 = vsel %vm7576, %v7572, 1326507024
      %v7587 = vsel %vm7575, %v7569, %v7586
      %v7588 = vsel %vm7574, %v7585, %v7587
      %v7589 = vshll.u32 %v7549, 8
      %v7590 = vmul.u32.u64.compose %v7589, %v7588
      %v7591 = vextract.low.u32 %v7590
      %v7592 = vextract.high.u32 %v7590
      %v7593 = vmul.u32.u64.compose %v7589, %v7584
      %v7594 = vextract.low.u32 %v7593
      %v7595 = vextract.high.u32 %v7593
      %v7596 = vmul.u32 %v7589, %v7580
      %v7597 = vadd.s32 %v7592, %v7594
      %vm7598 = vc.u32 %v7592, %v7594
      %v7599 = vadd.s32 %v7595, 1
      %v7600 = vsel %vm7598, %v7599, %v7595
      %v7601 = vadd.s32 %v7596, %v7600
      %v7602 = vadd.s32 %v7601, 536870912
      %v7603 = vshrl.u32 %v7602, 30
      %v7604 = vshll.u32 %v7603, 30
      %v7605 = vsub.s32 %v7601, %v7604
      %vm7606 = vcmp.lt.s32.totalorder %v7605, 0
      %v7607 = vsub.s32 0, %v7605
      %v7608 = vsel %vm7606, %v7607, %v7605
      %v7609 = vclz %v7608
      %v7610 = vsub.s32 %v7609, 2
      %vm7611 = vcmp.gt.s32.totalorder 0, %v7610
      %v7612 = vsel %vm7611, 0, %v7610
      %v7613 = vsub.s32 32, %v7612
      %v7614 = vshll.u32 %v7605, %v7612
      %v7615 = vshrl.u32 %v7597, %v7613
      %v7616 = vor.u32 %v7614, %v7615
      %v7617 = vsub.s32 4294967266, %v7612
      %v7618 = vadd.s32 %v7617, 127
      %v7619 = vshll.u32 %v7618, 23
      %v7620 = vor.u32 4788187, %v7619
      %v7621 = vand.u32 2147483647, %v7620
      %v7623 = vcvt.s32.f32 %v7616
      %v7624 = vmul.f32 %v7623, %v7621
      %v7625 = vxor.u32 %v7624, 2147483648
      %v7626 = vsel %vm7543, %v7625, %v7624
      %v7627 = vsub.s32 4, %v7603
      %v7628 = vsel %vm7543, %v7627, %v7603
      %v7629 = vsel %vm7542, %v3442, %v7626
      %v7630 = vsel %vm7542, 0, %v7628
      %v7631 = vcosq.f32.pop %v7629
      %v7632 = vsinq.f32.pop %v7629
      %vm7633 = vweird.f32 %v3442
      %v7634 = vadd.s32 %v7630, 3
      %v7635 = vand.u32 %v7634, 3
      %vm7636 = vcmp.lt.s32.totalorder %v7635, 2
      %vm7637 = vcmp.eq.s32.totalorder %v7635, 0
      %v7638 = vxor.u32 %v7632, 2147483648
      %v7639 = vsel %vm7637, %v7631, %v7638
      %vm7640 = vcmp.eq.s32.totalorder %v7635, 2
      %v7641 = vxor.u32 %v7631, 2147483648
      %v7642 = vsel %vm7640, %v7641, %v7632
      %v7643 = vsel %vm7636, %v7639, %v7642
      %v7644 = vsel %vm7633, nan, %v7643
      %v7645 = vand.u32 2147483647, %v3448
      %vm7646 = vcmp.le.f32.partialorder %v7645, 0.7853982
      %vm7647 = vcmp.lt.s32.totalorder %v3448, 0
      %v7648 = vand.u32 %v3448, 2139095040
      %v7649 = vshrl.u32 %v7648, 23
      %v7650 = vsub.s32 %v7649, 127
      %v7651 = vand.u32 2147483647, %v3448
      %v7652 = vand.u32 %v7651, 8388607
      %v7653 = vor.u32 %v7652, 8388608
      %v7654 = vsub.s32 0, %v7653
      %v7655 = vadd.s32 %v7650, 1
      %vm7656 = vcmp.gt.s32.totalorder %v7655, 0
      %v7657 = vsel %vm7656, %v7655, 0
      %v7658 = vshrl.u32 %v7657, 5
      %v7659 = vand.u32 %v7657, 31
      %v7660 = vsub.s32 32, %v7659
      %v7661 = vshrl.u32 683565275, %v7660
      %v7662 = vshll.u32 683565275, %v7659
      %v7663 = vshrl.u32 2475754826, %v7660
      %v7664 = vor.u32 %v7662, %v7663
      %v7665 = vshll.u32 2475754826, %v7659
      %v7666 = vshrl.u32 2131351028, %v7660
      %v7667 = vor.u32 %v7665, %v7666
      %v7668 = vshll.u32 2131351028, %v7659
      %v7669 = vshrl.u32 2102212464, %v7660
      %v7670 = vor.u32 %v7668, %v7669
      %v7671 = vshll.u32 2102212464, %v7659
      %v7672 = vshrl.u32 920167782, %v7660
      %v7673 = vor.u32 %v7671, %v7672
      %v7674 = vshll.u32 920167782, %v7659
      %v7675 = vshrl.u32 1326507024, %v7660
      %v7676 = vor.u32 %v7674, %v7675
      %vm7677 = vcmp.lt.s32.totalorder %v7658, 1
      %vm7678 = vcmp.lt.s32.totalorder %v7658, 2
      %vm7679 = vcmp.lt.s32.totalorder %v7658, 3
      %vm7680 = vcmp.lt.s32.totalorder %v7658, 4
      %v7681 = vsel %vm7677, %v7661, %v7664
      %v7682 = vsel %vm7680, %v7670, 2102212464
      %v7683 = vsel %vm7679, %v7667, %v7682
      %v7684 = vsel %vm7678, %v7681, %v7683
      %v7685 = vsel %vm7677, %v7664, %v7667
      %v7686 = vsel %vm7680, %v7673, 920167782
      %v7687 = vsel %vm7679, %v7670, %v7686
      %v7688 = vsel %vm7678, %v7685, %v7687
      %v7689 = vsel %vm7677, %v7667, %v7670
      %v7690 = vsel %vm7680, %v7676, 1326507024
      %v7691 = vsel %vm7679, %v7673, %v7690
      %v7692 = vsel %vm7678, %v7689, %v7691
      %v7693 = vshll.u32 %v7653, 8
      %v7694 = vmul.u32.u64.compose %v7693, %v7692
      %v7695 = vextract.low.u32 %v7694
      %v7696 = vextract.high.u32 %v7694
      %v7697 = vmul.u32.u64.compose %v7693, %v7688
      %v7698 = vextract.low.u32 %v7697
      %v7699 = vextract.high.u32 %v7697
      %v7700 = vmul.u32 %v7693, %v7684
      %v7701 = vadd.s32 %v7696, %v7698
      %vm7702 = vc.u32 %v7696, %v7698
      %v7703 = vadd.s32 %v7699, 1
      %v7704 = vsel %vm7702, %v7703, %v7699
      %v7705 = vadd.s32 %v7700, %v7704
      %v7706 = vadd.s32 %v7705, 536870912
      %v7707 = vshrl.u32 %v7706, 30
      %v7708 = vshll.u32 %v7707, 30
      %v7709 = vsub.s32 %v7705, %v7708
      %vm7710 = vcmp.lt.s32.totalorder %v7709, 0
      %v7711 = vsub.s32 0, %v7709
      %v7712 = vsel %vm7710, %v7711, %v7709
      %v7713 = vclz %v7712
      %v7714 = vsub.s32 %v7713, 2
      %vm7715 = vcmp.gt.s32.totalorder 0, %v7714
      %v7716 = vsel %vm7715, 0, %v7714
      %v7717 = vsub.s32 32, %v7716
      %v7718 = vshll.u32 %v7709, %v7716
      %v7719 = vshrl.u32 %v7701, %v7717
      %v7720 = vor.u32 %v7718, %v7719
      %v7721 = vsub.s32 4294967266, %v7716
      %v7722 = vadd.s32 %v7721, 127
      %v7723 = vshll.u32 %v7722, 23
      %v7724 = vor.u32 4788187, %v7723
      %v7725 = vand.u32 2147483647, %v7724
      %v7727 = vcvt.s32.f32 %v7720
      %v7728 = vmul.f32 %v7727, %v7725
      %v7729 = vxor.u32 %v7728, 2147483648
      %v7730 = vsel %vm7647, %v7729, %v7728
      %v7731 = vsub.s32 4, %v7707
      %v7732 = vsel %vm7647, %v7731, %v7707
      %v7733 = vsel %vm7646, %v3448, %v7730
      %v7734 = vsel %vm7646, 0, %v7732
      %v7735 = vcosq.f32.pop %v7733
      %v7736 = vsinq.f32.pop %v7733
      %vm7737 = vweird.f32 %v3448
      %v7738 = vadd.s32 %v7734, 3
      %v7739 = vand.u32 %v7738, 3
      %vm7740 = vcmp.lt.s32.totalorder %v7739, 2
      %vm7741 = vcmp.eq.s32.totalorder %v7739, 0
      %v7742 = vxor.u32 %v7736, 2147483648
      %v7743 = vsel %vm7741, %v7735, %v7742
      %vm7744 = vcmp.eq.s32.totalorder %v7739, 2
      %v7745 = vxor.u32 %v7735, 2147483648
      %v7746 = vsel %vm7744, %v7745, %v7736
      %v7747 = vsel %vm7740, %v7743, %v7746
      %v7748 = vsel %vm7737, nan, %v7747
      %v7749 = vand.u32 2147483647, %v3454
      %vm7750 = vcmp.le.f32.partialorder %v7749, 0.7853982
      %vm7751 = vcmp.lt.s32.totalorder %v3454, 0
      %v7752 = vand.u32 %v3454, 2139095040
      %v7753 = vshrl.u32 %v7752, 23
      %v7754 = vsub.s32 %v7753, 127
      %v7755 = vand.u32 2147483647, %v3454
      %v7756 = vand.u32 %v7755, 8388607
      %v7757 = vor.u32 %v7756, 8388608
      %v7758 = vsub.s32 0, %v7757
      %v7759 = vadd.s32 %v7754, 1
      %vm7760 = vcmp.gt.s32.totalorder %v7759, 0
      %v7761 = vsel %vm7760, %v7759, 0
      %v7762 = vshrl.u32 %v7761, 5
      %v7763 = vand.u32 %v7761, 31
      %v7764 = vsub.s32 32, %v7763
      %v7765 = vshrl.u32 683565275, %v7764
      %v7766 = vshll.u32 683565275, %v7763
      %v7767 = vshrl.u32 2475754826, %v7764
      %v7768 = vor.u32 %v7766, %v7767
      %v7769 = vshll.u32 2475754826, %v7763
      %v7770 = vshrl.u32 2131351028, %v7764
      %v7771 = vor.u32 %v7769, %v7770
      %v7772 = vshll.u32 2131351028, %v7763
      %v7773 = vshrl.u32 2102212464, %v7764
      %v7774 = vor.u32 %v7772, %v7773
      %v7775 = vshll.u32 2102212464, %v7763
      %v7776 = vshrl.u32 920167782, %v7764
      %v7777 = vor.u32 %v7775, %v7776
      %v7778 = vshll.u32 920167782, %v7763
      %v7779 = vshrl.u32 1326507024, %v7764
      %v7780 = vor.u32 %v7778, %v7779
      %vm7781 = vcmp.lt.s32.totalorder %v7762, 1
      %vm7782 = vcmp.lt.s32.totalorder %v7762, 2
      %vm7783 = vcmp.lt.s32.totalorder %v7762, 3
      %vm7784 = vcmp.lt.s32.totalorder %v7762, 4
      %v7785 = vsel %vm7781, %v7765, %v7768
      %v7786 = vsel %vm7784, %v7774, 2102212464
      %v7787 = vsel %vm7783, %v7771, %v7786
      %v7788 = vsel %vm7782, %v7785, %v7787
      %v7789 = vsel %vm7781, %v7768, %v7771
      %v7790 = vsel %vm7784, %v7777, 920167782
      %v7791 = vsel %vm7783, %v7774, %v7790
      %v7792 = vsel %vm7782, %v7789, %v7791
      %v7793 = vsel %vm7781, %v7771, %v7774
      %v7794 = vsel %vm7784, %v7780, 1326507024
      %v7795 = vsel %vm7783, %v7777, %v7794
      %v7796 = vsel %vm7782, %v7793, %v7795
      %v7797 = vshll.u32 %v7757, 8
      %v7798 = vmul.u32.u64.compose %v7797, %v7796
      %v7799 = vextract.low.u32 %v7798
      %v7800 = vextract.high.u32 %v7798
      %v7801 = vmul.u32.u64.compose %v7797, %v7792
      %v7802 = vextract.low.u32 %v7801
      %v7803 = vextract.high.u32 %v7801
      %v7804 = vmul.u32 %v7797, %v7788
      %v7805 = vadd.s32 %v7800, %v7802
      %vm7806 = vc.u32 %v7800, %v7802
      %v7807 = vadd.s32 %v7803, 1
      %v7808 = vsel %vm7806, %v7807, %v7803
      %v7809 = vadd.s32 %v7804, %v7808
      %v7810 = vadd.s32 %v7809, 536870912
      %v7811 = vshrl.u32 %v7810, 30
      %v7812 = vshll.u32 %v7811, 30
      %v7813 = vsub.s32 %v7809, %v7812
      %vm7814 = vcmp.lt.s32.totalorder %v7813, 0
      %v7815 = vsub.s32 0, %v7813
      %v7816 = vsel %vm7814, %v7815, %v7813
      %v7817 = vclz %v7816
      %v7818 = vsub.s32 %v7817, 2
      %vm7819 = vcmp.gt.s32.totalorder 0, %v7818
      %v7820 = vsel %vm7819, 0, %v7818
      %v7821 = vsub.s32 32, %v7820
      %v7822 = vshll.u32 %v7813, %v7820
      %v7823 = vshrl.u32 %v7805, %v7821
      %v7824 = vor.u32 %v7822, %v7823
      %v7825 = vsub.s32 4294967266, %v7820
      %v7826 = vadd.s32 %v7825, 127
      %v7827 = vshll.u32 %v7826, 23
      %v7828 = vor.u32 4788187, %v7827
      %v7829 = vand.u32 2147483647, %v7828
      %v7831 = vcvt.s32.f32 %v7824
      %v7832 = vmul.f32 %v7831, %v7829
      %v7833 = vxor.u32 %v7832, 2147483648
      %v7834 = vsel %vm7751, %v7833, %v7832
      %v7835 = vsub.s32 4, %v7811
      %v7836 = vsel %vm7751, %v7835, %v7811
      %v7837 = vsel %vm7750, %v3454, %v7834
      %v7838 = vsel %vm7750, 0, %v7836
      %v7839 = vcosq.f32.pop %v7837
      %v7840 = vsinq.f32.pop %v7837
      %vm7841 = vweird.f32 %v3454
      %v7842 = vadd.s32 %v7838, 3
      %v7843 = vand.u32 %v7842, 3
      %vm7844 = vcmp.lt.s32.totalorder %v7843, 2
      %vm7845 = vcmp.eq.s32.totalorder %v7843, 0
      %v7846 = vxor.u32 %v7840, 2147483648
      %v7847 = vsel %vm7845, %v7839, %v7846
      %vm7848 = vcmp.eq.s32.totalorder %v7843, 2
      %v7849 = vxor.u32 %v7839, 2147483648
      %v7850 = vsel %vm7848, %v7849, %v7840
      %v7851 = vsel %vm7844, %v7847, %v7850
      %v7852 = vsel %vm7841, nan, %v7851
      %v7853 = vand.u32 2147483647, %v3460
      %vm7854 = vcmp.le.f32.partialorder %v7853, 0.7853982
      %vm7855 = vcmp.lt.s32.totalorder %v3460, 0
      %v7856 = vand.u32 %v3460, 2139095040
      %v7857 = vshrl.u32 %v7856, 23
      %v7858 = vsub.s32 %v7857, 127
      %v7859 = vand.u32 2147483647, %v3460
      %v7860 = vand.u32 %v7859, 8388607
      %v7861 = vor.u32 %v7860, 8388608
      %v7862 = vsub.s32 0, %v7861
      %v7863 = vadd.s32 %v7858, 1
      %vm7864 = vcmp.gt.s32.totalorder %v7863, 0
      %v7865 = vsel %vm7864, %v7863, 0
      %v7866 = vshrl.u32 %v7865, 5
      %v7867 = vand.u32 %v7865, 31
      %v7868 = vsub.s32 32, %v7867
      %v7869 = vshrl.u32 683565275, %v7868
      %v7870 = vshll.u32 683565275, %v7867
      %v7871 = vshrl.u32 2475754826, %v7868
      %v7872 = vor.u32 %v7870, %v7871
      %v7873 = vshll.u32 2475754826, %v7867
      %v7874 = vshrl.u32 2131351028, %v7868
      %v7875 = vor.u32 %v7873, %v7874
      %v7876 = vshll.u32 2131351028, %v7867
      %v7877 = vshrl.u32 2102212464, %v7868
      %v7878 = vor.u32 %v7876, %v7877
      %v7879 = vshll.u32 2102212464, %v7867
      %v7880 = vshrl.u32 920167782, %v7868
      %v7881 = vor.u32 %v7879, %v7880
      %v7882 = vshll.u32 920167782, %v7867
      %v7883 = vshrl.u32 1326507024, %v7868
      %v7884 = vor.u32 %v7882, %v7883
      %vm7885 = vcmp.lt.s32.totalorder %v7866, 1
      %vm7886 = vcmp.lt.s32.totalorder %v7866, 2
      %vm7887 = vcmp.lt.s32.totalorder %v7866, 3
      %vm7888 = vcmp.lt.s32.totalorder %v7866, 4
      %v7889 = vsel %vm7885, %v7869, %v7872
      %v7890 = vsel %vm7888, %v7878, 2102212464
      %v7891 = vsel %vm7887, %v7875, %v7890
      %v7892 = vsel %vm7886, %v7889, %v7891
      %v7893 = vsel %vm7885, %v7872, %v7875
      %v7894 = vsel %vm7888, %v7881, 920167782
      %v7895 = vsel %vm7887, %v7878, %v7894
      %v7896 = vsel %vm7886, %v7893, %v7895
      %v7897 = vsel %vm7885, %v7875, %v7878
      %v7898 = vsel %vm7888, %v7884, 1326507024
      %v7899 = vsel %vm7887, %v7881, %v7898
      %v7900 = vsel %vm7886, %v7897, %v7899
      %v7901 = vshll.u32 %v7861, 8
      %v7902 = vmul.u32.u64.compose %v7901, %v7900
      %v7903 = vextract.low.u32 %v7902
      %v7904 = vextract.high.u32 %v7902
      %v7905 = vmul.u32.u64.compose %v7901, %v7896
      %v7906 = vextract.low.u32 %v7905
      %v7907 = vextract.high.u32 %v7905
      %v7908 = vmul.u32 %v7901, %v7892
      %v7909 = vadd.s32 %v7904, %v7906
      %vm7910 = vc.u32 %v7904, %v7906
      %v7911 = vadd.s32 %v7907, 1
      %v7912 = vsel %vm7910, %v7911, %v7907
      %v7913 = vadd.s32 %v7908, %v7912
      %v7914 = vadd.s32 %v7913, 536870912
      %v7915 = vshrl.u32 %v7914, 30
      %v7916 = vshll.u32 %v7915, 30
      %v7917 = vsub.s32 %v7913, %v7916
      %vm7918 = vcmp.lt.s32.totalorder %v7917, 0
      %v7919 = vsub.s32 0, %v7917
      %v7920 = vsel %vm7918, %v7919, %v7917
      %v7921 = vclz %v7920
      %v7922 = vsub.s32 %v7921, 2
      %vm7923 = vcmp.gt.s32.totalorder 0, %v7922
      %v7924 = vsel %vm7923, 0, %v7922
      %v7925 = vsub.s32 32, %v7924
      %v7926 = vshll.u32 %v7917, %v7924
      %v7927 = vshrl.u32 %v7909, %v7925
      %v7928 = vor.u32 %v7926, %v7927
      %v7929 = vsub.s32 4294967266, %v7924
      %v7930 = vadd.s32 %v7929, 127
      %v7931 = vshll.u32 %v7930, 23
      %v7932 = vor.u32 4788187, %v7931
      %v7933 = vand.u32 2147483647, %v7932
      %v7935 = vcvt.s32.f32 %v7928
      %v7936 = vmul.f32 %v7935, %v7933
      %v7937 = vxor.u32 %v7936, 2147483648
      %v7938 = vsel %vm7855, %v7937, %v7936
      %v7939 = vsub.s32 4, %v7915
      %v7940 = vsel %vm7855, %v7939, %v7915
      %v7941 = vsel %vm7854, %v3460, %v7938
      %v7942 = vsel %vm7854, 0, %v7940
      %v7943 = vcosq.f32.pop %v7941
      %v7944 = vsinq.f32.pop %v7941
      %vm7945 = vweird.f32 %v3460
      %v7946 = vadd.s32 %v7942, 3
      %v7947 = vand.u32 %v7946, 3
      %vm7948 = vcmp.lt.s32.totalorder %v7947, 2
      %vm7949 = vcmp.eq.s32.totalorder %v7947, 0
      %v7950 = vxor.u32 %v7944, 2147483648
      %v7951 = vsel %vm7949, %v7943, %v7950
      %vm7952 = vcmp.eq.s32.totalorder %v7947, 2
      %v7953 = vxor.u32 %v7943, 2147483648
      %v7954 = vsel %vm7952, %v7953, %v7944
      %v7955 = vsel %vm7948, %v7951, %v7954
      %v7956 = vsel %vm7945, nan, %v7955
      %v7957 = vand.u32 2147483647, %v3466
      %vm7958 = vcmp.le.f32.partialorder %v7957, 0.7853982
      %vm7959 = vcmp.lt.s32.totalorder %v3466, 0
      %v7960 = vand.u32 %v3466, 2139095040
      %v7961 = vshrl.u32 %v7960, 23
      %v7962 = vsub.s32 %v7961, 127
      %v7963 = vand.u32 2147483647, %v3466
      %v7964 = vand.u32 %v7963, 8388607
      %v7965 = vor.u32 %v7964, 8388608
      %v7966 = vsub.s32 0, %v7965
      %v7967 = vadd.s32 %v7962, 1
      %vm7968 = vcmp.gt.s32.totalorder %v7967, 0
      %v7969 = vsel %vm7968, %v7967, 0
      %v7970 = vshrl.u32 %v7969, 5
      %v7971 = vand.u32 %v7969, 31
      %v7972 = vsub.s32 32, %v7971
      %v7973 = vshrl.u32 683565275, %v7972
      %v7974 = vshll.u32 683565275, %v7971
      %v7975 = vshrl.u32 2475754826, %v7972
      %v7976 = vor.u32 %v7974, %v7975
      %v7977 = vshll.u32 2475754826, %v7971
      %v7978 = vshrl.u32 2131351028, %v7972
      %v7979 = vor.u32 %v7977, %v7978
      %v7980 = vshll.u32 2131351028, %v7971
      %v7981 = vshrl.u32 2102212464, %v7972
      %v7982 = vor.u32 %v7980, %v7981
      %v7983 = vshll.u32 2102212464, %v7971
      %v7984 = vshrl.u32 920167782, %v7972
      %v7985 = vor.u32 %v7983, %v7984
      %v7986 = vshll.u32 920167782, %v7971
      %v7987 = vshrl.u32 1326507024, %v7972
      %v7988 = vor.u32 %v7986, %v7987
      %vm7989 = vcmp.lt.s32.totalorder %v7970, 1
      %vm7990 = vcmp.lt.s32.totalorder %v7970, 2
      %vm7991 = vcmp.lt.s32.totalorder %v7970, 3
      %vm7992 = vcmp.lt.s32.totalorder %v7970, 4
      %v7993 = vsel %vm7989, %v7973, %v7976
      %v7994 = vsel %vm7992, %v7982, 2102212464
      %v7995 = vsel %vm7991, %v7979, %v7994
      %v7996 = vsel %vm7990, %v7993, %v7995
      %v7997 = vsel %vm7989, %v7976, %v7979
      %v7998 = vsel %vm7992, %v7985, 920167782
      %v7999 = vsel %vm7991, %v7982, %v7998
      %v8000 = vsel %vm7990, %v7997, %v7999
      %v8001 = vsel %vm7989, %v7979, %v7982
      %v8002 = vsel %vm7992, %v7988, 1326507024
      %v8003 = vsel %vm7991, %v7985, %v8002
      %v8004 = vsel %vm7990, %v8001, %v8003
      %v8005 = vshll.u32 %v7965, 8
      %v8006 = vmul.u32.u64.compose %v8005, %v8004
      %v8007 = vextract.low.u32 %v8006
      %v8008 = vextract.high.u32 %v8006
      %v8009 = vmul.u32.u64.compose %v8005, %v8000
      %v8010 = vextract.low.u32 %v8009
      %v8011 = vextract.high.u32 %v8009
      %v8012 = vmul.u32 %v8005, %v7996
      %v8013 = vadd.s32 %v8008, %v8010
      %vm8014 = vc.u32 %v8008, %v8010
      %v8015 = vadd.s32 %v8011, 1
      %v8016 = vsel %vm8014, %v8015, %v8011
      %v8017 = vadd.s32 %v8012, %v8016
      %v8018 = vadd.s32 %v8017, 536870912
      %v8019 = vshrl.u32 %v8018, 30
      %v8020 = vshll.u32 %v8019, 30
      %v8021 = vsub.s32 %v8017, %v8020
      %vm8022 = vcmp.lt.s32.totalorder %v8021, 0
      %v8023 = vsub.s32 0, %v8021
      %v8024 = vsel %vm8022, %v8023, %v8021
      %v8025 = vclz %v8024
      %v8026 = vsub.s32 %v8025, 2
      %vm8027 = vcmp.gt.s32.totalorder 0, %v8026
      %v8028 = vsel %vm8027, 0, %v8026
      %v8029 = vsub.s32 32, %v8028
      %v8030 = vshll.u32 %v8021, %v8028
      %v8031 = vshrl.u32 %v8013, %v8029
      %v8032 = vor.u32 %v8030, %v8031
      %v8033 = vsub.s32 4294967266, %v8028
      %v8034 = vadd.s32 %v8033, 127
      %v8035 = vshll.u32 %v8034, 23
      %v8036 = vor.u32 4788187, %v8035
      %v8037 = vand.u32 2147483647, %v8036
      %v8039 = vcvt.s32.f32 %v8032
      %v8040 = vmul.f32 %v8039, %v8037
      %v8041 = vxor.u32 %v8040, 2147483648
      %v8042 = vsel %vm7959, %v8041, %v8040
      %v8043 = vsub.s32 4, %v8019
      %v8044 = vsel %vm7959, %v8043, %v8019
      %v8045 = vsel %vm7958, %v3466, %v8042
      %v8046 = vsel %vm7958, 0, %v8044
      %v8047 = vcosq.f32.pop %v8045
      %v8048 = vsinq.f32.pop %v8045
      %vm8049 = vweird.f32 %v3466
      %v8050 = vadd.s32 %v8046, 3
      %v8051 = vand.u32 %v8050, 3
      %vm8052 = vcmp.lt.s32.totalorder %v8051, 2
      %vm8053 = vcmp.eq.s32.totalorder %v8051, 0
      %v8054 = vxor.u32 %v8048, 2147483648
      %v8055 = vsel %vm8053, %v8047, %v8054
      %vm8056 = vcmp.eq.s32.totalorder %v8051, 2
      %v8057 = vxor.u32 %v8047, 2147483648
      %v8058 = vsel %vm8056, %v8057, %v8048
      %v8059 = vsel %vm8052, %v8055, %v8058
      %v8060 = vsel %vm8049, nan, %v8059
      %v8061 = vand.u32 2147483647, %v3472
      %vm8062 = vcmp.le.f32.partialorder %v8061, 0.7853982
      %vm8063 = vcmp.lt.s32.totalorder %v3472, 0
      %v8064 = vand.u32 %v3472, 2139095040
      %v8065 = vshrl.u32 %v8064, 23
      %v8066 = vsub.s32 %v8065, 127
      %v8067 = vand.u32 2147483647, %v3472
      %v8068 = vand.u32 %v8067, 8388607
      %v8069 = vor.u32 %v8068, 8388608
      %v8070 = vsub.s32 0, %v8069
      %v8071 = vadd.s32 %v8066, 1
      %vm8072 = vcmp.gt.s32.totalorder %v8071, 0
      %v8073 = vsel %vm8072, %v8071, 0
      %v8074 = vshrl.u32 %v8073, 5
      %v8075 = vand.u32 %v8073, 31
      %v8076 = vsub.s32 32, %v8075
      %v8077 = vshrl.u32 683565275, %v8076
      %v8078 = vshll.u32 683565275, %v8075
      %v8079 = vshrl.u32 2475754826, %v8076
      %v8080 = vor.u32 %v8078, %v8079
      %v8081 = vshll.u32 2475754826, %v8075
      %v8082 = vshrl.u32 2131351028, %v8076
      %v8083 = vor.u32 %v8081, %v8082
      %v8084 = vshll.u32 2131351028, %v8075
      %v8085 = vshrl.u32 2102212464, %v8076
      %v8086 = vor.u32 %v8084, %v8085
      %v8087 = vshll.u32 2102212464, %v8075
      %v8088 = vshrl.u32 920167782, %v8076
      %v8089 = vor.u32 %v8087, %v8088
      %v8090 = vshll.u32 920167782, %v8075
      %v8091 = vshrl.u32 1326507024, %v8076
      %v8092 = vor.u32 %v8090, %v8091
      %vm8093 = vcmp.lt.s32.totalorder %v8074, 1
      %vm8094 = vcmp.lt.s32.totalorder %v8074, 2
      %vm8095 = vcmp.lt.s32.totalorder %v8074, 3
      %vm8096 = vcmp.lt.s32.totalorder %v8074, 4
      %v8097 = vsel %vm8093, %v8077, %v8080
      %v8098 = vsel %vm8096, %v8086, 2102212464
      %v8099 = vsel %vm8095, %v8083, %v8098
      %v8100 = vsel %vm8094, %v8097, %v8099
      %v8101 = vsel %vm8093, %v8080, %v8083
      %v8102 = vsel %vm8096, %v8089, 920167782
      %v8103 = vsel %vm8095, %v8086, %v8102
      %v8104 = vsel %vm8094, %v8101, %v8103
      %v8105 = vsel %vm8093, %v8083, %v8086
      %v8106 = vsel %vm8096, %v8092, 1326507024
      %v8107 = vsel %vm8095, %v8089, %v8106
      %v8108 = vsel %vm8094, %v8105, %v8107
      %v8109 = vshll.u32 %v8069, 8
      %v8110 = vmul.u32.u64.compose %v8109, %v8108
      %v8111 = vextract.low.u32 %v8110
      %v8112 = vextract.high.u32 %v8110
      %v8113 = vmul.u32.u64.compose %v8109, %v8104
      %v8114 = vextract.low.u32 %v8113
      %v8115 = vextract.high.u32 %v8113
      %v8116 = vmul.u32 %v8109, %v8100
      %v8117 = vadd.s32 %v8112, %v8114
      %vm8118 = vc.u32 %v8112, %v8114
      %v8119 = vadd.s32 %v8115, 1
      %v8120 = vsel %vm8118, %v8119, %v8115
      %v8121 = vadd.s32 %v8116, %v8120
      %v8122 = vadd.s32 %v8121, 536870912
      %v8123 = vshrl.u32 %v8122, 30
      %v8124 = vshll.u32 %v8123, 30
      %v8125 = vsub.s32 %v8121, %v8124
      %vm8126 = vcmp.lt.s32.totalorder %v8125, 0
      %v8127 = vsub.s32 0, %v8125
      %v8128 = vsel %vm8126, %v8127, %v8125
      %v8129 = vclz %v8128
      %v8130 = vsub.s32 %v8129, 2
      %vm8131 = vcmp.gt.s32.totalorder 0, %v8130
      %v8132 = vsel %vm8131, 0, %v8130
      %v8133 = vsub.s32 32, %v8132
      %v8134 = vshll.u32 %v8125, %v8132
      %v8135 = vshrl.u32 %v8117, %v8133
      %v8136 = vor.u32 %v8134, %v8135
      %v8137 = vsub.s32 4294967266, %v8132
      %v8138 = vadd.s32 %v8137, 127
      %v8139 = vshll.u32 %v8138, 23
      %v8140 = vor.u32 4788187, %v8139
      %v8141 = vand.u32 2147483647, %v8140
      %v8143 = vcvt.s32.f32 %v8136
      %v8144 = vmul.f32 %v8143, %v8141
      %v8145 = vxor.u32 %v8144, 2147483648
      %v8146 = vsel %vm8063, %v8145, %v8144
      %v8147 = vsub.s32 4, %v8123
      %v8148 = vsel %vm8063, %v8147, %v8123
      %v8149 = vsel %vm8062, %v3472, %v8146
      %v8150 = vsel %vm8062, 0, %v8148
      %v8151 = vcosq.f32.pop %v8149
      %v8152 = vsinq.f32.pop %v8149
      %vm8153 = vweird.f32 %v3472
      %v8154 = vadd.s32 %v8150, 3
      %v8155 = vand.u32 %v8154, 3
      %vm8156 = vcmp.lt.s32.totalorder %v8155, 2
      %vm8157 = vcmp.eq.s32.totalorder %v8155, 0
      %v8158 = vxor.u32 %v8152, 2147483648
      %v8159 = vsel %vm8157, %v8151, %v8158
      %vm8160 = vcmp.eq.s32.totalorder %v8155, 2
      %v8161 = vxor.u32 %v8151, 2147483648
      %v8162 = vsel %vm8160, %v8161, %v8152
      %v8163 = vsel %vm8156, %v8159, %v8162
      %v8164 = vsel %vm8153, nan, %v8163
      %v8165 = vand.u32 2147483647, %v3478
      %vm8166 = vcmp.le.f32.partialorder %v8165, 0.7853982
      %vm8167 = vcmp.lt.s32.totalorder %v3478, 0
      %v8168 = vand.u32 %v3478, 2139095040
      %v8169 = vshrl.u32 %v8168, 23
      %v8170 = vsub.s32 %v8169, 127
      %v8171 = vand.u32 2147483647, %v3478
      %v8172 = vand.u32 %v8171, 8388607
      %v8173 = vor.u32 %v8172, 8388608
      %v8174 = vsub.s32 0, %v8173
      %v8175 = vadd.s32 %v8170, 1
      %vm8176 = vcmp.gt.s32.totalorder %v8175, 0
      %v8177 = vsel %vm8176, %v8175, 0
      %v8178 = vshrl.u32 %v8177, 5
      %v8179 = vand.u32 %v8177, 31
      %v8180 = vsub.s32 32, %v8179
      %v8181 = vshrl.u32 683565275, %v8180
      %v8182 = vshll.u32 683565275, %v8179
      %v8183 = vshrl.u32 2475754826, %v8180
      %v8184 = vor.u32 %v8182, %v8183
      %v8185 = vshll.u32 2475754826, %v8179
      %v8186 = vshrl.u32 2131351028, %v8180
      %v8187 = vor.u32 %v8185, %v8186
      %v8188 = vshll.u32 2131351028, %v8179
      %v8189 = vshrl.u32 2102212464, %v8180
      %v8190 = vor.u32 %v8188, %v8189
      %v8191 = vshll.u32 2102212464, %v8179
      %v8192 = vshrl.u32 920167782, %v8180
      %v8193 = vor.u32 %v8191, %v8192
      %v8194 = vshll.u32 920167782, %v8179
      %v8195 = vshrl.u32 1326507024, %v8180
      %v8196 = vor.u32 %v8194, %v8195
      %vm8197 = vcmp.lt.s32.totalorder %v8178, 1
      %vm8198 = vcmp.lt.s32.totalorder %v8178, 2
      %vm8199 = vcmp.lt.s32.totalorder %v8178, 3
      %vm8200 = vcmp.lt.s32.totalorder %v8178, 4
      %v8201 = vsel %vm8197, %v8181, %v8184
      %v8202 = vsel %vm8200, %v8190, 2102212464
      %v8203 = vsel %vm8199, %v8187, %v8202
      %v8204 = vsel %vm8198, %v8201, %v8203
      %v8205 = vsel %vm8197, %v8184, %v8187
      %v8206 = vsel %vm8200, %v8193, 920167782
      %v8207 = vsel %vm8199, %v8190, %v8206
      %v8208 = vsel %vm8198, %v8205, %v8207
      %v8209 = vsel %vm8197, %v8187, %v8190
      %v8210 = vsel %vm8200, %v8196, 1326507024
      %v8211 = vsel %vm8199, %v8193, %v8210
      %v8212 = vsel %vm8198, %v8209, %v8211
      %v8213 = vshll.u32 %v8173, 8
      %v8214 = vmul.u32.u64.compose %v8213, %v8212
      %v8215 = vextract.low.u32 %v8214
      %v8216 = vextract.high.u32 %v8214
      %v8217 = vmul.u32.u64.compose %v8213, %v8208
      %v8218 = vextract.low.u32 %v8217
      %v8219 = vextract.high.u32 %v8217
      %v8220 = vmul.u32 %v8213, %v8204
      %v8221 = vadd.s32 %v8216, %v8218
      %vm8222 = vc.u32 %v8216, %v8218
      %v8223 = vadd.s32 %v8219, 1
      %v8224 = vsel %vm8222, %v8223, %v8219
      %v8225 = vadd.s32 %v8220, %v8224
      %v8226 = vadd.s32 %v8225, 536870912
      %v8227 = vshrl.u32 %v8226, 30
      %v8228 = vshll.u32 %v8227, 30
      %v8229 = vsub.s32 %v8225, %v8228
      %vm8230 = vcmp.lt.s32.totalorder %v8229, 0
      %v8231 = vsub.s32 0, %v8229
      %v8232 = vsel %vm8230, %v8231, %v8229
      %v8233 = vclz %v8232
      %v8234 = vsub.s32 %v8233, 2
      %vm8235 = vcmp.gt.s32.totalorder 0, %v8234
      %v8236 = vsel %vm8235, 0, %v8234
      %v8237 = vsub.s32 32, %v8236
      %v8238 = vshll.u32 %v8229, %v8236
      %v8239 = vshrl.u32 %v8221, %v8237
      %v8240 = vor.u32 %v8238, %v8239
      %v8241 = vsub.s32 4294967266, %v8236
      %v8242 = vadd.s32 %v8241, 127
      %v8243 = vshll.u32 %v8242, 23
      %v8244 = vor.u32 4788187, %v8243
      %v8245 = vand.u32 2147483647, %v8244
      %v8247 = vcvt.s32.f32 %v8240
      %v8248 = vmul.f32 %v8247, %v8245
      %v8249 = vxor.u32 %v8248, 2147483648
      %v8250 = vsel %vm8167, %v8249, %v8248
      %v8251 = vsub.s32 4, %v8227
      %v8252 = vsel %vm8167, %v8251, %v8227
      %v8253 = vsel %vm8166, %v3478, %v8250
      %v8254 = vsel %vm8166, 0, %v8252
      %v8255 = vcosq.f32.pop %v8253
      %v8256 = vsinq.f32.pop %v8253
      %vm8257 = vweird.f32 %v3478
      %v8258 = vadd.s32 %v8254, 3
      %v8259 = vand.u32 %v8258, 3
      %vm8260 = vcmp.lt.s32.totalorder %v8259, 2
      %vm8261 = vcmp.eq.s32.totalorder %v8259, 0
      %v8262 = vxor.u32 %v8256, 2147483648
      %v8263 = vsel %vm8261, %v8255, %v8262
      %vm8264 = vcmp.eq.s32.totalorder %v8259, 2
      %v8265 = vxor.u32 %v8255, 2147483648
      %v8266 = vsel %vm8264, %v8265, %v8256
      %v8267 = vsel %vm8260, %v8263, %v8266
      %v8268 = vsel %vm8257, nan, %v8267
      %v8269 = vand.u32 2147483647, %v3484
      %vm8270 = vcmp.le.f32.partialorder %v8269, 0.7853982
      %vm8271 = vcmp.lt.s32.totalorder %v3484, 0
      %v8272 = vand.u32 %v3484, 2139095040
      %v8273 = vshrl.u32 %v8272, 23
      %v8274 = vsub.s32 %v8273, 127
      %v8275 = vand.u32 2147483647, %v3484
      %v8276 = vand.u32 %v8275, 8388607
      %v8277 = vor.u32 %v8276, 8388608
      %v8278 = vsub.s32 0, %v8277
      %v8279 = vadd.s32 %v8274, 1
      %vm8280 = vcmp.gt.s32.totalorder %v8279, 0
      %v8281 = vsel %vm8280, %v8279, 0
      %v8282 = vshrl.u32 %v8281, 5
      %v8283 = vand.u32 %v8281, 31
      %v8284 = vsub.s32 32, %v8283
      %v8285 = vshrl.u32 683565275, %v8284
      %v8286 = vshll.u32 683565275, %v8283
      %v8287 = vshrl.u32 2475754826, %v8284
      %v8288 = vor.u32 %v8286, %v8287
      %v8289 = vshll.u32 2475754826, %v8283
      %v8290 = vshrl.u32 2131351028, %v8284
      %v8291 = vor.u32 %v8289, %v8290
      %v8292 = vshll.u32 2131351028, %v8283
      %v8293 = vshrl.u32 2102212464, %v8284
      %v8294 = vor.u32 %v8292, %v8293
      %v8295 = vshll.u32 2102212464, %v8283
      %v8296 = vshrl.u32 920167782, %v8284
      %v8297 = vor.u32 %v8295, %v8296
      %v8298 = vshll.u32 920167782, %v8283
      %v8299 = vshrl.u32 1326507024, %v8284
      %v8300 = vor.u32 %v8298, %v8299
      %vm8301 = vcmp.lt.s32.totalorder %v8282, 1
      %vm8302 = vcmp.lt.s32.totalorder %v8282, 2
      %vm8303 = vcmp.lt.s32.totalorder %v8282, 3
      %vm8304 = vcmp.lt.s32.totalorder %v8282, 4
      %v8305 = vsel %vm8301, %v8285, %v8288
      %v8306 = vsel %vm8304, %v8294, 2102212464
      %v8307 = vsel %vm8303, %v8291, %v8306
      %v8308 = vsel %vm8302, %v8305, %v8307
      %v8309 = vsel %vm8301, %v8288, %v8291
      %v8310 = vsel %vm8304, %v8297, 920167782
      %v8311 = vsel %vm8303, %v8294, %v8310
      %v8312 = vsel %vm8302, %v8309, %v8311
      %v8313 = vsel %vm8301, %v8291, %v8294
      %v8314 = vsel %vm8304, %v8300, 1326507024
      %v8315 = vsel %vm8303, %v8297, %v8314
      %v8316 = vsel %vm8302, %v8313, %v8315
      %v8317 = vshll.u32 %v8277, 8
      %v8318 = vmul.u32.u64.compose %v8317, %v8316
      %v8319 = vextract.low.u32 %v8318
      %v8320 = vextract.high.u32 %v8318
      %v8321 = vmul.u32.u64.compose %v8317, %v8312
      %v8322 = vextract.low.u32 %v8321
      %v8323 = vextract.high.u32 %v8321
      %v8324 = vmul.u32 %v8317, %v8308
      %v8325 = vadd.s32 %v8320, %v8322
      %vm8326 = vc.u32 %v8320, %v8322
      %v8327 = vadd.s32 %v8323, 1
      %v8328 = vsel %vm8326, %v8327, %v8323
      %v8329 = vadd.s32 %v8324, %v8328
      %v8330 = vadd.s32 %v8329, 536870912
      %v8331 = vshrl.u32 %v8330, 30
      %v8332 = vshll.u32 %v8331, 30
      %v8333 = vsub.s32 %v8329, %v8332
      %vm8334 = vcmp.lt.s32.totalorder %v8333, 0
      %v8335 = vsub.s32 0, %v8333
      %v8336 = vsel %vm8334, %v8335, %v8333
      %v8337 = vclz %v8336
      %v8338 = vsub.s32 %v8337, 2
      %vm8339 = vcmp.gt.s32.totalorder 0, %v8338
      %v8340 = vsel %vm8339, 0, %v8338
      %v8341 = vsub.s32 32, %v8340
      %v8342 = vshll.u32 %v8333, %v8340
      %v8343 = vshrl.u32 %v8325, %v8341
      %v8344 = vor.u32 %v8342, %v8343
      %v8345 = vsub.s32 4294967266, %v8340
      %v8346 = vadd.s32 %v8345, 127
      %v8347 = vshll.u32 %v8346, 23
      %v8348 = vor.u32 4788187, %v8347
      %v8349 = vand.u32 2147483647, %v8348
      %v8351 = vcvt.s32.f32 %v8344
      %v8352 = vmul.f32 %v8351, %v8349
      %v8353 = vxor.u32 %v8352, 2147483648
      %v8354 = vsel %vm8271, %v8353, %v8352
      %v8355 = vsub.s32 4, %v8331
      %v8356 = vsel %vm8271, %v8355, %v8331
      %v8357 = vsel %vm8270, %v3484, %v8354
      %v8358 = vsel %vm8270, 0, %v8356
      %v8359 = vcosq.f32.pop %v8357
      %v8360 = vsinq.f32.pop %v8357
      %vm8361 = vweird.f32 %v3484
      %v8362 = vadd.s32 %v8358, 3
      %v8363 = vand.u32 %v8362, 3
      %vm8364 = vcmp.lt.s32.totalorder %v8363, 2
      %vm8365 = vcmp.eq.s32.totalorder %v8363, 0
      %v8366 = vxor.u32 %v8360, 2147483648
      %v8367 = vsel %vm8365, %v8359, %v8366
      %vm8368 = vcmp.eq.s32.totalorder %v8363, 2
      %v8369 = vxor.u32 %v8359, 2147483648
      %v8370 = vsel %vm8368, %v8369, %v8360
      %v8371 = vsel %vm8364, %v8367, %v8370
      %v8372 = vsel %vm8361, nan, %v8371
      %v8373 = vand.u32 2147483647, %v3490
      %vm8374 = vcmp.le.f32.partialorder %v8373, 0.7853982
      %vm8375 = vcmp.lt.s32.totalorder %v3490, 0
      %v8376 = vand.u32 %v3490, 2139095040
      %v8377 = vshrl.u32 %v8376, 23
      %v8378 = vsub.s32 %v8377, 127
      %v8379 = vand.u32 2147483647, %v3490
      %v8380 = vand.u32 %v8379, 8388607
      %v8381 = vor.u32 %v8380, 8388608
      %v8382 = vsub.s32 0, %v8381
      %v8383 = vadd.s32 %v8378, 1
      %vm8384 = vcmp.gt.s32.totalorder %v8383, 0
      %v8385 = vsel %vm8384, %v8383, 0
      %v8386 = vshrl.u32 %v8385, 5
      %v8387 = vand.u32 %v8385, 31
      %v8388 = vsub.s32 32, %v8387
      %v8389 = vshrl.u32 683565275, %v8388
      %v8390 = vshll.u32 683565275, %v8387
      %v8391 = vshrl.u32 2475754826, %v8388
      %v8392 = vor.u32 %v8390, %v8391
      %v8393 = vshll.u32 2475754826, %v8387
      %v8394 = vshrl.u32 2131351028, %v8388
      %v8395 = vor.u32 %v8393, %v8394
      %v8396 = vshll.u32 2131351028, %v8387
      %v8397 = vshrl.u32 2102212464, %v8388
      %v8398 = vor.u32 %v8396, %v8397
      %v8399 = vshll.u32 2102212464, %v8387
      %v8400 = vshrl.u32 920167782, %v8388
      %v8401 = vor.u32 %v8399, %v8400
      %v8402 = vshll.u32 920167782, %v8387
      %v8403 = vshrl.u32 1326507024, %v8388
      %v8404 = vor.u32 %v8402, %v8403
      %vm8405 = vcmp.lt.s32.totalorder %v8386, 1
      %vm8406 = vcmp.lt.s32.totalorder %v8386, 2
      %vm8407 = vcmp.lt.s32.totalorder %v8386, 3
      %vm8408 = vcmp.lt.s32.totalorder %v8386, 4
      %v8409 = vsel %vm8405, %v8389, %v8392
      %v8410 = vsel %vm8408, %v8398, 2102212464
      %v8411 = vsel %vm8407, %v8395, %v8410
      %v8412 = vsel %vm8406, %v8409, %v8411
      %v8413 = vsel %vm8405, %v8392, %v8395
      %v8414 = vsel %vm8408, %v8401, 920167782
      %v8415 = vsel %vm8407, %v8398, %v8414
      %v8416 = vsel %vm8406, %v8413, %v8415
      %v8417 = vsel %vm8405, %v8395, %v8398
      %v8418 = vsel %vm8408, %v8404, 1326507024
      %v8419 = vsel %vm8407, %v8401, %v8418
      %v8420 = vsel %vm8406, %v8417, %v8419
      %v8421 = vshll.u32 %v8381, 8
      %v8422 = vmul.u32.u64.compose %v8421, %v8420
      %v8423 = vextract.low.u32 %v8422
      %v8424 = vextract.high.u32 %v8422
      %v8425 = vmul.u32.u64.compose %v8421, %v8416
      %v8426 = vextract.low.u32 %v8425
      %v8427 = vextract.high.u32 %v8425
      %v8428 = vmul.u32 %v8421, %v8412
      %v8429 = vadd.s32 %v8424, %v8426
      %vm8430 = vc.u32 %v8424, %v8426
      %v8431 = vadd.s32 %v8427, 1
      %v8432 = vsel %vm8430, %v8431, %v8427
      %v8433 = vadd.s32 %v8428, %v8432
      %v8434 = vadd.s32 %v8433, 536870912
      %v8435 = vshrl.u32 %v8434, 30
      %v8436 = vshll.u32 %v8435, 30
      %v8437 = vsub.s32 %v8433, %v8436
      %vm8438 = vcmp.lt.s32.totalorder %v8437, 0
      %v8439 = vsub.s32 0, %v8437
      %v8440 = vsel %vm8438, %v8439, %v8437
      %v8441 = vclz %v8440
      %v8442 = vsub.s32 %v8441, 2
      %vm8443 = vcmp.gt.s32.totalorder 0, %v8442
      %v8444 = vsel %vm8443, 0, %v8442
      %v8445 = vsub.s32 32, %v8444
      %v8446 = vshll.u32 %v8437, %v8444
      %v8447 = vshrl.u32 %v8429, %v8445
      %v8448 = vor.u32 %v8446, %v8447
      %v8449 = vsub.s32 4294967266, %v8444
      %v8450 = vadd.s32 %v8449, 127
      %v8451 = vshll.u32 %v8450, 23
      %v8452 = vor.u32 4788187, %v8451
      %v8453 = vand.u32 2147483647, %v8452
      %v8455 = vcvt.s32.f32 %v8448
      %v8456 = vmul.f32 %v8455, %v8453
      %v8457 = vxor.u32 %v8456, 2147483648
      %v8458 = vsel %vm8375, %v8457, %v8456
      %v8459 = vsub.s32 4, %v8435
      %v8460 = vsel %vm8375, %v8459, %v8435
      %v8461 = vsel %vm8374, %v3490, %v8458
      %v8462 = vsel %vm8374, 0, %v8460
      %v8463 = vcosq.f32.pop %v8461
      %v8464 = vsinq.f32.pop %v8461
      %vm8465 = vweird.f32 %v3490
      %v8466 = vadd.s32 %v8462, 3
      %v8467 = vand.u32 %v8466, 3
      %vm8468 = vcmp.lt.s32.totalorder %v8467, 2
      %vm8469 = vcmp.eq.s32.totalorder %v8467, 0
      %v8470 = vxor.u32 %v8464, 2147483648
      %v8471 = vsel %vm8469, %v8463, %v8470
      %vm8472 = vcmp.eq.s32.totalorder %v8467, 2
      %v8473 = vxor.u32 %v8463, 2147483648
      %v8474 = vsel %vm8472, %v8473, %v8464
      %v8475 = vsel %vm8468, %v8471, %v8474
      %v8476 = vsel %vm8465, nan, %v8475
      %v8477 = vand.u32 2147483647, %v3496
      %vm8478 = vcmp.le.f32.partialorder %v8477, 0.7853982
      %vm8479 = vcmp.lt.s32.totalorder %v3496, 0
      %v8480 = vand.u32 %v3496, 2139095040
      %v8481 = vshrl.u32 %v8480, 23
      %v8482 = vsub.s32 %v8481, 127
      %v8483 = vand.u32 2147483647, %v3496
      %v8484 = vand.u32 %v8483, 8388607
      %v8485 = vor.u32 %v8484, 8388608
      %v8486 = vsub.s32 0, %v8485
      %v8487 = vadd.s32 %v8482, 1
      %vm8488 = vcmp.gt.s32.totalorder %v8487, 0
      %v8489 = vsel %vm8488, %v8487, 0
      %v8490 = vshrl.u32 %v8489, 5
      %v8491 = vand.u32 %v8489, 31
      %v8492 = vsub.s32 32, %v8491
      %v8493 = vshrl.u32 683565275, %v8492
      %v8494 = vshll.u32 683565275, %v8491
      %v8495 = vshrl.u32 2475754826, %v8492
      %v8496 = vor.u32 %v8494, %v8495
      %v8497 = vshll.u32 2475754826, %v8491
      %v8498 = vshrl.u32 2131351028, %v8492
      %v8499 = vor.u32 %v8497, %v8498
      %v8500 = vshll.u32 2131351028, %v8491
      %v8501 = vshrl.u32 2102212464, %v8492
      %v8502 = vor.u32 %v8500, %v8501
      %v8503 = vshll.u32 2102212464, %v8491
      %v8504 = vshrl.u32 920167782, %v8492
      %v8505 = vor.u32 %v8503, %v8504
      %v8506 = vshll.u32 920167782, %v8491
      %v8507 = vshrl.u32 1326507024, %v8492
      %v8508 = vor.u32 %v8506, %v8507
      %vm8509 = vcmp.lt.s32.totalorder %v8490, 1
      %vm8510 = vcmp.lt.s32.totalorder %v8490, 2
      %vm8511 = vcmp.lt.s32.totalorder %v8490, 3
      %vm8512 = vcmp.lt.s32.totalorder %v8490, 4
      %v8513 = vsel %vm8509, %v8493, %v8496
      %v8514 = vsel %vm8512, %v8502, 2102212464
      %v8515 = vsel %vm8511, %v8499, %v8514
      %v8516 = vsel %vm8510, %v8513, %v8515
      %v8517 = vsel %vm8509, %v8496, %v8499
      %v8518 = vsel %vm8512, %v8505, 920167782
      %v8519 = vsel %vm8511, %v8502, %v8518
      %v8520 = vsel %vm8510, %v8517, %v8519
      %v8521 = vsel %vm8509, %v8499, %v8502
      %v8522 = vsel %vm8512, %v8508, 1326507024
      %v8523 = vsel %vm8511, %v8505, %v8522
      %v8524 = vsel %vm8510, %v8521, %v8523
      %v8525 = vshll.u32 %v8485, 8
      %v8526 = vmul.u32.u64.compose %v8525, %v8524
      %v8527 = vextract.low.u32 %v8526
      %v8528 = vextract.high.u32 %v8526
      %v8529 = vmul.u32.u64.compose %v8525, %v8520
      %v8530 = vextract.low.u32 %v8529
      %v8531 = vextract.high.u32 %v8529
      %v8532 = vmul.u32 %v8525, %v8516
      %v8533 = vadd.s32 %v8528, %v8530
      %vm8534 = vc.u32 %v8528, %v8530
      %v8535 = vadd.s32 %v8531, 1
      %v8536 = vsel %vm8534, %v8535, %v8531
      %v8537 = vadd.s32 %v8532, %v8536
      %v8538 = vadd.s32 %v8537, 536870912
      %v8539 = vshrl.u32 %v8538, 30
      %v8540 = vshll.u32 %v8539, 30
      %v8541 = vsub.s32 %v8537, %v8540
      %vm8542 = vcmp.lt.s32.totalorder %v8541, 0
      %v8543 = vsub.s32 0, %v8541
      %v8544 = vsel %vm8542, %v8543, %v8541
      %v8545 = vclz %v8544
      %v8546 = vsub.s32 %v8545, 2
      %vm8547 = vcmp.gt.s32.totalorder 0, %v8546
      %v8548 = vsel %vm8547, 0, %v8546
      %v8549 = vsub.s32 32, %v8548
      %v8550 = vshll.u32 %v8541, %v8548
      %v8551 = vshrl.u32 %v8533, %v8549
      %v8552 = vor.u32 %v8550, %v8551
      %v8553 = vsub.s32 4294967266, %v8548
      %v8554 = vadd.s32 %v8553, 127
      %v8555 = vshll.u32 %v8554, 23
      %v8556 = vor.u32 4788187, %v8555
      %v8557 = vand.u32 2147483647, %v8556
      %v8559 = vcvt.s32.f32 %v8552
      %v8560 = vmul.f32 %v8559, %v8557
      %v8561 = vxor.u32 %v8560, 2147483648
      %v8562 = vsel %vm8479, %v8561, %v8560
      %v8563 = vsub.s32 4, %v8539
      %v8564 = vsel %vm8479, %v8563, %v8539
      %v8565 = vsel %vm8478, %v3496, %v8562
      %v8566 = vsel %vm8478, 0, %v8564
      %v8567 = vcosq.f32.pop %v8565
      %v8568 = vsinq.f32.pop %v8565
      %vm8569 = vweird.f32 %v3496
      %v8570 = vadd.s32 %v8566, 3
      %v8571 = vand.u32 %v8570, 3
      %vm8572 = vcmp.lt.s32.totalorder %v8571, 2
      %vm8573 = vcmp.eq.s32.totalorder %v8571, 0
      %v8574 = vxor.u32 %v8568, 2147483648
      %v8575 = vsel %vm8573, %v8567, %v8574
      %vm8576 = vcmp.eq.s32.totalorder %v8571, 2
      %v8577 = vxor.u32 %v8567, 2147483648
      %v8578 = vsel %vm8576, %v8577, %v8568
      %v8579 = vsel %vm8572, %v8575, %v8578
      %v8580 = vsel %vm8569, nan, %v8579
      %v8581 = vand.u32 2147483647, %v3502
      %vm8582 = vcmp.le.f32.partialorder %v8581, 0.7853982
      %vm8583 = vcmp.lt.s32.totalorder %v3502, 0
      %v8584 = vand.u32 %v3502, 2139095040
      %v8585 = vshrl.u32 %v8584, 23
      %v8586 = vsub.s32 %v8585, 127
      %v8587 = vand.u32 2147483647, %v3502
      %v8588 = vand.u32 %v8587, 8388607
      %v8589 = vor.u32 %v8588, 8388608
      %v8590 = vsub.s32 0, %v8589
      %v8591 = vadd.s32 %v8586, 1
      %vm8592 = vcmp.gt.s32.totalorder %v8591, 0
      %v8593 = vsel %vm8592, %v8591, 0
      %v8594 = vshrl.u32 %v8593, 5
      %v8595 = vand.u32 %v8593, 31
      %v8596 = vsub.s32 32, %v8595
      %v8597 = vshrl.u32 683565275, %v8596
      %v8598 = vshll.u32 683565275, %v8595
      %v8599 = vshrl.u32 2475754826, %v8596
      %v8600 = vor.u32 %v8598, %v8599
      %v8601 = vshll.u32 2475754826, %v8595
      %v8602 = vshrl.u32 2131351028, %v8596
      %v8603 = vor.u32 %v8601, %v8602
      %v8604 = vshll.u32 2131351028, %v8595
      %v8605 = vshrl.u32 2102212464, %v8596
      %v8606 = vor.u32 %v8604, %v8605
      %v8607 = vshll.u32 2102212464, %v8595
      %v8608 = vshrl.u32 920167782, %v8596
      %v8609 = vor.u32 %v8607, %v8608
      %v8610 = vshll.u32 920167782, %v8595
      %v8611 = vshrl.u32 1326507024, %v8596
      %v8612 = vor.u32 %v8610, %v8611
      %vm8613 = vcmp.lt.s32.totalorder %v8594, 1
      %vm8614 = vcmp.lt.s32.totalorder %v8594, 2
      %vm8615 = vcmp.lt.s32.totalorder %v8594, 3
      %vm8616 = vcmp.lt.s32.totalorder %v8594, 4
      %v8617 = vsel %vm8613, %v8597, %v8600
      %v8618 = vsel %vm8616, %v8606, 2102212464
      %v8619 = vsel %vm8615, %v8603, %v8618
      %v8620 = vsel %vm8614, %v8617, %v8619
      %v8621 = vsel %vm8613, %v8600, %v8603
      %v8622 = vsel %vm8616, %v8609, 920167782
      %v8623 = vsel %vm8615, %v8606, %v8622
      %v8624 = vsel %vm8614, %v8621, %v8623
      %v8625 = vsel %vm8613, %v8603, %v8606
      %v8626 = vsel %vm8616, %v8612, 1326507024
      %v8627 = vsel %vm8615, %v8609, %v8626
      %v8628 = vsel %vm8614, %v8625, %v8627
      %v8629 = vshll.u32 %v8589, 8
      %v8630 = vmul.u32.u64.compose %v8629, %v8628
      %v8631 = vextract.low.u32 %v8630
      %v8632 = vextract.high.u32 %v8630
      %v8633 = vmul.u32.u64.compose %v8629, %v8624
      %v8634 = vextract.low.u32 %v8633
      %v8635 = vextract.high.u32 %v8633
      %v8636 = vmul.u32 %v8629, %v8620
      %v8637 = vadd.s32 %v8632, %v8634
      %vm8638 = vc.u32 %v8632, %v8634
      %v8639 = vadd.s32 %v8635, 1
      %v8640 = vsel %vm8638, %v8639, %v8635
      %v8641 = vadd.s32 %v8636, %v8640
      %v8642 = vadd.s32 %v8641, 536870912
      %v8643 = vshrl.u32 %v8642, 30
      %v8644 = vshll.u32 %v8643, 30
      %v8645 = vsub.s32 %v8641, %v8644
      %vm8646 = vcmp.lt.s32.totalorder %v8645, 0
      %v8647 = vsub.s32 0, %v8645
      %v8648 = vsel %vm8646, %v8647, %v8645
      %v8649 = vclz %v8648
      %v8650 = vsub.s32 %v8649, 2
      %vm8651 = vcmp.gt.s32.totalorder 0, %v8650
      %v8652 = vsel %vm8651, 0, %v8650
      %v8653 = vsub.s32 32, %v8652
      %v8654 = vshll.u32 %v8645, %v8652
      %v8655 = vshrl.u32 %v8637, %v8653
      %v8656 = vor.u32 %v8654, %v8655
      %v8657 = vsub.s32 4294967266, %v8652
      %v8658 = vadd.s32 %v8657, 127
      %v8659 = vshll.u32 %v8658, 23
      %v8660 = vor.u32 4788187, %v8659
      %v8661 = vand.u32 2147483647, %v8660
      %v8663 = vcvt.s32.f32 %v8656
      %v8664 = vmul.f32 %v8663, %v8661
      %v8665 = vxor.u32 %v8664, 2147483648
      %v8666 = vsel %vm8583, %v8665, %v8664
      %v8667 = vsub.s32 4, %v8643
      %v8668 = vsel %vm8583, %v8667, %v8643
      %v8669 = vsel %vm8582, %v3502, %v8666
      %v8670 = vsel %vm8582, 0, %v8668
      %v8671 = vcosq.f32.pop %v8669
      %v8672 = vsinq.f32.pop %v8669
      %vm8673 = vweird.f32 %v3502
      %v8674 = vadd.s32 %v8670, 3
      %v8675 = vand.u32 %v8674, 3
      %vm8676 = vcmp.lt.s32.totalorder %v8675, 2
      %vm8677 = vcmp.eq.s32.totalorder %v8675, 0
      %v8678 = vxor.u32 %v8672, 2147483648
      %v8679 = vsel %vm8677, %v8671, %v8678
      %vm8680 = vcmp.eq.s32.totalorder %v8675, 2
      %v8681 = vxor.u32 %v8671, 2147483648
      %v8682 = vsel %vm8680, %v8681, %v8672
      %v8683 = vsel %vm8676, %v8679, %v8682
      %v8684 = vsel %vm8673, nan, %v8683
      %v8685 = vand.u32 2147483647, %v3508
      %vm8686 = vcmp.le.f32.partialorder %v8685, 0.7853982
      %vm8687 = vcmp.lt.s32.totalorder %v3508, 0
      %v8688 = vand.u32 %v3508, 2139095040
      %v8689 = vshrl.u32 %v8688, 23
      %v8690 = vsub.s32 %v8689, 127
      %v8691 = vand.u32 2147483647, %v3508
      %v8692 = vand.u32 %v8691, 8388607
      %v8693 = vor.u32 %v8692, 8388608
      %v8694 = vsub.s32 0, %v8693
      %v8695 = vadd.s32 %v8690, 1
      %vm8696 = vcmp.gt.s32.totalorder %v8695, 0
      %v8697 = vsel %vm8696, %v8695, 0
      %v8698 = vshrl.u32 %v8697, 5
      %v8699 = vand.u32 %v8697, 31
      %v8700 = vsub.s32 32, %v8699
      %v8701 = vshrl.u32 683565275, %v8700
      %v8702 = vshll.u32 683565275, %v8699
      %v8703 = vshrl.u32 2475754826, %v8700
      %v8704 = vor.u32 %v8702, %v8703
      %v8705 = vshll.u32 2475754826, %v8699
      %v8706 = vshrl.u32 2131351028, %v8700
      %v8707 = vor.u32 %v8705, %v8706
      %v8708 = vshll.u32 2131351028, %v8699
      %v8709 = vshrl.u32 2102212464, %v8700
      %v8710 = vor.u32 %v8708, %v8709
      %v8711 = vshll.u32 2102212464, %v8699
      %v8712 = vshrl.u32 920167782, %v8700
      %v8713 = vor.u32 %v8711, %v8712
      %v8714 = vshll.u32 920167782, %v8699
      %v8715 = vshrl.u32 1326507024, %v8700
      %v8716 = vor.u32 %v8714, %v8715
      %vm8717 = vcmp.lt.s32.totalorder %v8698, 1
      %vm8718 = vcmp.lt.s32.totalorder %v8698, 2
      %vm8719 = vcmp.lt.s32.totalorder %v8698, 3
      %vm8720 = vcmp.lt.s32.totalorder %v8698, 4
      %v8721 = vsel %vm8717, %v8701, %v8704
      %v8722 = vsel %vm8720, %v8710, 2102212464
      %v8723 = vsel %vm8719, %v8707, %v8722
      %v8724 = vsel %vm8718, %v8721, %v8723
      %v8725 = vsel %vm8717, %v8704, %v8707
      %v8726 = vsel %vm8720, %v8713, 920167782
      %v8727 = vsel %vm8719, %v8710, %v8726
      %v8728 = vsel %vm8718, %v8725, %v8727
      %v8729 = vsel %vm8717, %v8707, %v8710
      %v8730 = vsel %vm8720, %v8716, 1326507024
      %v8731 = vsel %vm8719, %v8713, %v8730
      %v8732 = vsel %vm8718, %v8729, %v8731
      %v8733 = vshll.u32 %v8693, 8
      %v8734 = vmul.u32.u64.compose %v8733, %v8732
      %v8735 = vextract.low.u32 %v8734
      %v8736 = vextract.high.u32 %v8734
      %v8737 = vmul.u32.u64.compose %v8733, %v8728
      %v8738 = vextract.low.u32 %v8737
      %v8739 = vextract.high.u32 %v8737
      %v8740 = vmul.u32 %v8733, %v8724
      %v8741 = vadd.s32 %v8736, %v8738
      %vm8742 = vc.u32 %v8736, %v8738
      %v8743 = vadd.s32 %v8739, 1
      %v8744 = vsel %vm8742, %v8743, %v8739
      %v8745 = vadd.s32 %v8740, %v8744
      %v8746 = vadd.s32 %v8745, 536870912
      %v8747 = vshrl.u32 %v8746, 30
      %v8748 = vshll.u32 %v8747, 30
      %v8749 = vsub.s32 %v8745, %v8748
      %vm8750 = vcmp.lt.s32.totalorder %v8749, 0
      %v8751 = vsub.s32 0, %v8749
      %v8752 = vsel %vm8750, %v8751, %v8749
      %v8753 = vclz %v8752
      %v8754 = vsub.s32 %v8753, 2
      %vm8755 = vcmp.gt.s32.totalorder 0, %v8754
      %v8756 = vsel %vm8755, 0, %v8754
      %v8757 = vsub.s32 32, %v8756
      %v8758 = vshll.u32 %v8749, %v8756
      %v8759 = vshrl.u32 %v8741, %v8757
      %v8760 = vor.u32 %v8758, %v8759
      %v8761 = vsub.s32 4294967266, %v8756
      %v8762 = vadd.s32 %v8761, 127
      %v8763 = vshll.u32 %v8762, 23
      %v8764 = vor.u32 4788187, %v8763
      %v8765 = vand.u32 2147483647, %v8764
      %v8767 = vcvt.s32.f32 %v8760
      %v8768 = vmul.f32 %v8767, %v8765
      %v8769 = vxor.u32 %v8768, 2147483648
      %v8770 = vsel %vm8687, %v8769, %v8768
      %v8771 = vsub.s32 4, %v8747
      %v8772 = vsel %vm8687, %v8771, %v8747
      %v8773 = vsel %vm8686, %v3508, %v8770
      %v8774 = vsel %vm8686, 0, %v8772
      %v8775 = vcosq.f32.pop %v8773
      %v8776 = vsinq.f32.pop %v8773
      %vm8777 = vweird.f32 %v3508
      %v8778 = vadd.s32 %v8774, 3
      %v8779 = vand.u32 %v8778, 3
      %vm8780 = vcmp.lt.s32.totalorder %v8779, 2
      %vm8781 = vcmp.eq.s32.totalorder %v8779, 0
      %v8782 = vxor.u32 %v8776, 2147483648
      %v8783 = vsel %vm8781, %v8775, %v8782
      %vm8784 = vcmp.eq.s32.totalorder %v8779, 2
      %v8785 = vxor.u32 %v8775, 2147483648
      %v8786 = vsel %vm8784, %v8785, %v8776
      %v8787 = vsel %vm8780, %v8783, %v8786
      %v8788 = vsel %vm8777, nan, %v8787
      %v8789 = vand.u32 2147483647, %v3514
      %vm8790 = vcmp.le.f32.partialorder %v8789, 0.7853982
      %vm8791 = vcmp.lt.s32.totalorder %v3514, 0
      %v8792 = vand.u32 %v3514, 2139095040
      %v8793 = vshrl.u32 %v8792, 23
      %v8794 = vsub.s32 %v8793, 127
      %v8795 = vand.u32 2147483647, %v3514
      %v8796 = vand.u32 %v8795, 8388607
      %v8797 = vor.u32 %v8796, 8388608
      %v8798 = vsub.s32 0, %v8797
      %v8799 = vadd.s32 %v8794, 1
      %vm8800 = vcmp.gt.s32.totalorder %v8799, 0
      %v8801 = vsel %vm8800, %v8799, 0
      %v8802 = vshrl.u32 %v8801, 5
      %v8803 = vand.u32 %v8801, 31
      %v8804 = vsub.s32 32, %v8803
      %v8805 = vshrl.u32 683565275, %v8804
      %v8806 = vshll.u32 683565275, %v8803
      %v8807 = vshrl.u32 2475754826, %v8804
      %v8808 = vor.u32 %v8806, %v8807
      %v8809 = vshll.u32 2475754826, %v8803
      %v8810 = vshrl.u32 2131351028, %v8804
      %v8811 = vor.u32 %v8809, %v8810
      %v8812 = vshll.u32 2131351028, %v8803
      %v8813 = vshrl.u32 2102212464, %v8804
      %v8814 = vor.u32 %v8812, %v8813
      %v8815 = vshll.u32 2102212464, %v8803
      %v8816 = vshrl.u32 920167782, %v8804
      %v8817 = vor.u32 %v8815, %v8816
      %v8818 = vshll.u32 920167782, %v8803
      %v8819 = vshrl.u32 1326507024, %v8804
      %v8820 = vor.u32 %v8818, %v8819
      %vm8821 = vcmp.lt.s32.totalorder %v8802, 1
      %vm8822 = vcmp.lt.s32.totalorder %v8802, 2
      %vm8823 = vcmp.lt.s32.totalorder %v8802, 3
      %vm8824 = vcmp.lt.s32.totalorder %v8802, 4
      %v8825 = vsel %vm8821, %v8805, %v8808
      %v8826 = vsel %vm8824, %v8814, 2102212464
      %v8827 = vsel %vm8823, %v8811, %v8826
      %v8828 = vsel %vm8822, %v8825, %v8827
      %v8829 = vsel %vm8821, %v8808, %v8811
      %v8830 = vsel %vm8824, %v8817, 920167782
      %v8831 = vsel %vm8823, %v8814, %v8830
      %v8832 = vsel %vm8822, %v8829, %v8831
      %v8833 = vsel %vm8821, %v8811, %v8814
      %v8834 = vsel %vm8824, %v8820, 1326507024
      %v8835 = vsel %vm8823, %v8817, %v8834
      %v8836 = vsel %vm8822, %v8833, %v8835
      %v8837 = vshll.u32 %v8797, 8
      %v8838 = vmul.u32.u64.compose %v8837, %v8836
      %v8839 = vextract.low.u32 %v8838
      %v8840 = vextract.high.u32 %v8838
      %v8841 = vmul.u32.u64.compose %v8837, %v8832
      %v8842 = vextract.low.u32 %v8841
      %v8843 = vextract.high.u32 %v8841
      %v8844 = vmul.u32 %v8837, %v8828
      %v8845 = vadd.s32 %v8840, %v8842
      %vm8846 = vc.u32 %v8840, %v8842
      %v8847 = vadd.s32 %v8843, 1
      %v8848 = vsel %vm8846, %v8847, %v8843
      %v8849 = vadd.s32 %v8844, %v8848
      %v8850 = vadd.s32 %v8849, 536870912
      %v8851 = vshrl.u32 %v8850, 30
      %v8852 = vshll.u32 %v8851, 30
      %v8853 = vsub.s32 %v8849, %v8852
      %vm8854 = vcmp.lt.s32.totalorder %v8853, 0
      %v8855 = vsub.s32 0, %v8853
      %v8856 = vsel %vm8854, %v8855, %v8853
      %v8857 = vclz %v8856
      %v8858 = vsub.s32 %v8857, 2
      %vm8859 = vcmp.gt.s32.totalorder 0, %v8858
      %v8860 = vsel %vm8859, 0, %v8858
      %v8861 = vsub.s32 32, %v8860
      %v8862 = vshll.u32 %v8853, %v8860
      %v8863 = vshrl.u32 %v8845, %v8861
      %v8864 = vor.u32 %v8862, %v8863
      %v8865 = vsub.s32 4294967266, %v8860
      %v8866 = vadd.s32 %v8865, 127
      %v8867 = vshll.u32 %v8866, 23
      %v8868 = vor.u32 4788187, %v8867
      %v8869 = vand.u32 2147483647, %v8868
      %v8871 = vcvt.s32.f32 %v8864
      %v8872 = vmul.f32 %v8871, %v8869
      %v8873 = vxor.u32 %v8872, 2147483648
      %v8874 = vsel %vm8791, %v8873, %v8872
      %v8875 = vsub.s32 4, %v8851
      %v8876 = vsel %vm8791, %v8875, %v8851
      %v8877 = vsel %vm8790, %v3514, %v8874
      %v8878 = vsel %vm8790, 0, %v8876
      %v8879 = vcosq.f32.pop %v8877
      %v8880 = vsinq.f32.pop %v8877
      %vm8881 = vweird.f32 %v3514
      %v8882 = vadd.s32 %v8878, 3
      %v8883 = vand.u32 %v8882, 3
      %vm8884 = vcmp.lt.s32.totalorder %v8883, 2
      %vm8885 = vcmp.eq.s32.totalorder %v8883, 0
      %v8886 = vxor.u32 %v8880, 2147483648
      %v8887 = vsel %vm8885, %v8879, %v8886
      %vm8888 = vcmp.eq.s32.totalorder %v8883, 2
      %v8889 = vxor.u32 %v8879, 2147483648
      %v8890 = vsel %vm8888, %v8889, %v8880
      %v8891 = vsel %vm8884, %v8887, %v8890
      %v8892 = vsel %vm8881, nan, %v8891
      %v8893 = vand.u32 2147483647, %v3520
      %vm8894 = vcmp.le.f32.partialorder %v8893, 0.7853982
      %vm8895 = vcmp.lt.s32.totalorder %v3520, 0
      %v8896 = vand.u32 %v3520, 2139095040
      %v8897 = vshrl.u32 %v8896, 23
      %v8898 = vsub.s32 %v8897, 127
      %v8899 = vand.u32 2147483647, %v3520
      %v8900 = vand.u32 %v8899, 8388607
      %v8901 = vor.u32 %v8900, 8388608
      %v8902 = vsub.s32 0, %v8901
      %v8903 = vadd.s32 %v8898, 1
      %vm8904 = vcmp.gt.s32.totalorder %v8903, 0
      %v8905 = vsel %vm8904, %v8903, 0
      %v8906 = vshrl.u32 %v8905, 5
      %v8907 = vand.u32 %v8905, 31
      %v8908 = vsub.s32 32, %v8907
      %v8909 = vshrl.u32 683565275, %v8908
      %v8910 = vshll.u32 683565275, %v8907
      %v8911 = vshrl.u32 2475754826, %v8908
      %v8912 = vor.u32 %v8910, %v8911
      %v8913 = vshll.u32 2475754826, %v8907
      %v8914 = vshrl.u32 2131351028, %v8908
      %v8915 = vor.u32 %v8913, %v8914
      %v8916 = vshll.u32 2131351028, %v8907
      %v8917 = vshrl.u32 2102212464, %v8908
      %v8918 = vor.u32 %v8916, %v8917
      %v8919 = vshll.u32 2102212464, %v8907
      %v8920 = vshrl.u32 920167782, %v8908
      %v8921 = vor.u32 %v8919, %v8920
      %v8922 = vshll.u32 920167782, %v8907
      %v8923 = vshrl.u32 1326507024, %v8908
      %v8924 = vor.u32 %v8922, %v8923
      %vm8925 = vcmp.lt.s32.totalorder %v8906, 1
      %vm8926 = vcmp.lt.s32.totalorder %v8906, 2
      %vm8927 = vcmp.lt.s32.totalorder %v8906, 3
      %vm8928 = vcmp.lt.s32.totalorder %v8906, 4
      %v8929 = vsel %vm8925, %v8909, %v8912
      %v8930 = vsel %vm8928, %v8918, 2102212464
      %v8931 = vsel %vm8927, %v8915, %v8930
      %v8932 = vsel %vm8926, %v8929, %v8931
      %v8933 = vsel %vm8925, %v8912, %v8915
      %v8934 = vsel %vm8928, %v8921, 920167782
      %v8935 = vsel %vm8927, %v8918, %v8934
      %v8936 = vsel %vm8926, %v8933, %v8935
      %v8937 = vsel %vm8925, %v8915, %v8918
      %v8938 = vsel %vm8928, %v8924, 1326507024
      %v8939 = vsel %vm8927, %v8921, %v8938
      %v8940 = vsel %vm8926, %v8937, %v8939
      %v8941 = vshll.u32 %v8901, 8
      %v8942 = vmul.u32.u64.compose %v8941, %v8940
      %v8943 = vextract.low.u32 %v8942
      %v8944 = vextract.high.u32 %v8942
      %v8945 = vmul.u32.u64.compose %v8941, %v8936
      %v8946 = vextract.low.u32 %v8945
      %v8947 = vextract.high.u32 %v8945
      %v8948 = vmul.u32 %v8941, %v8932
      %v8949 = vadd.s32 %v8944, %v8946
      %vm8950 = vc.u32 %v8944, %v8946
      %v8951 = vadd.s32 %v8947, 1
      %v8952 = vsel %vm8950, %v8951, %v8947
      %v8953 = vadd.s32 %v8948, %v8952
      %v8954 = vadd.s32 %v8953, 536870912
      %v8955 = vshrl.u32 %v8954, 30
      %v8956 = vshll.u32 %v8955, 30
      %v8957 = vsub.s32 %v8953, %v8956
      %vm8958 = vcmp.lt.s32.totalorder %v8957, 0
      %v8959 = vsub.s32 0, %v8957
      %v8960 = vsel %vm8958, %v8959, %v8957
      %v8961 = vclz %v8960
      %v8962 = vsub.s32 %v8961, 2
      %vm8963 = vcmp.gt.s32.totalorder 0, %v8962
      %v8964 = vsel %vm8963, 0, %v8962
      %v8965 = vsub.s32 32, %v8964
      %v8966 = vshll.u32 %v8957, %v8964
      %v8967 = vshrl.u32 %v8949, %v8965
      %v8968 = vor.u32 %v8966, %v8967
      %v8969 = vsub.s32 4294967266, %v8964
      %v8970 = vadd.s32 %v8969, 127
      %v8971 = vshll.u32 %v8970, 23
      %v8972 = vor.u32 4788187, %v8971
      %v8973 = vand.u32 2147483647, %v8972
      %v8975 = vcvt.s32.f32 %v8968
      %v8976 = vmul.f32 %v8975, %v8973
      %v8977 = vxor.u32 %v8976, 2147483648
      %v8978 = vsel %vm8895, %v8977, %v8976
      %v8979 = vsub.s32 4, %v8955
      %v8980 = vsel %vm8895, %v8979, %v8955
      %v8981 = vsel %vm8894, %v3520, %v8978
      %v8982 = vsel %vm8894, 0, %v8980
      %v8983 = vcosq.f32.pop %v8981
      %v8984 = vsinq.f32.pop %v8981
      %vm8985 = vweird.f32 %v3520
      %v8986 = vadd.s32 %v8982, 3
      %v8987 = vand.u32 %v8986, 3
      %vm8988 = vcmp.lt.s32.totalorder %v8987, 2
      %vm8989 = vcmp.eq.s32.totalorder %v8987, 0
      %v8990 = vxor.u32 %v8984, 2147483648
      %v8991 = vsel %vm8989, %v8983, %v8990
      %vm8992 = vcmp.eq.s32.totalorder %v8987, 2
      %v8993 = vxor.u32 %v8983, 2147483648
      %v8994 = vsel %vm8992, %v8993, %v8984
      %v8995 = vsel %vm8988, %v8991, %v8994
      %v8996 = vsel %vm8985, nan, %v8995
      %v8997 = vand.u32 2147483647, %v3526
      %vm8998 = vcmp.le.f32.partialorder %v8997, 0.7853982
      %vm8999 = vcmp.lt.s32.totalorder %v3526, 0
      %v9000 = vand.u32 %v3526, 2139095040
      %v9001 = vshrl.u32 %v9000, 23
      %v9002 = vsub.s32 %v9001, 127
      %v9003 = vand.u32 2147483647, %v3526
      %v9004 = vand.u32 %v9003, 8388607
      %v9005 = vor.u32 %v9004, 8388608
      %v9006 = vsub.s32 0, %v9005
      %v9007 = vadd.s32 %v9002, 1
      %vm9008 = vcmp.gt.s32.totalorder %v9007, 0
      %v9009 = vsel %vm9008, %v9007, 0
      %v9010 = vshrl.u32 %v9009, 5
      %v9011 = vand.u32 %v9009, 31
      %v9012 = vsub.s32 32, %v9011
      %v9013 = vshrl.u32 683565275, %v9012
      %v9014 = vshll.u32 683565275, %v9011
      %v9015 = vshrl.u32 2475754826, %v9012
      %v9016 = vor.u32 %v9014, %v9015
      %v9017 = vshll.u32 2475754826, %v9011
      %v9018 = vshrl.u32 2131351028, %v9012
      %v9019 = vor.u32 %v9017, %v9018
      %v9020 = vshll.u32 2131351028, %v9011
      %v9021 = vshrl.u32 2102212464, %v9012
      %v9022 = vor.u32 %v9020, %v9021
      %v9023 = vshll.u32 2102212464, %v9011
      %v9024 = vshrl.u32 920167782, %v9012
      %v9025 = vor.u32 %v9023, %v9024
      %v9026 = vshll.u32 920167782, %v9011
      %v9027 = vshrl.u32 1326507024, %v9012
      %v9028 = vor.u32 %v9026, %v9027
      %vm9029 = vcmp.lt.s32.totalorder %v9010, 1
      %vm9030 = vcmp.lt.s32.totalorder %v9010, 2
      %vm9031 = vcmp.lt.s32.totalorder %v9010, 3
      %vm9032 = vcmp.lt.s32.totalorder %v9010, 4
      %v9033 = vsel %vm9029, %v9013, %v9016
      %v9034 = vsel %vm9032, %v9022, 2102212464
      %v9035 = vsel %vm9031, %v9019, %v9034
      %v9036 = vsel %vm9030, %v9033, %v9035
      %v9037 = vsel %vm9029, %v9016, %v9019
      %v9038 = vsel %vm9032, %v9025, 920167782
      %v9039 = vsel %vm9031, %v9022, %v9038
      %v9040 = vsel %vm9030, %v9037, %v9039
      %v9041 = vsel %vm9029, %v9019, %v9022
      %v9042 = vsel %vm9032, %v9028, 1326507024
      %v9043 = vsel %vm9031, %v9025, %v9042
      %v9044 = vsel %vm9030, %v9041, %v9043
      %v9045 = vshll.u32 %v9005, 8
      %v9046 = vmul.u32.u64.compose %v9045, %v9044
      %v9047 = vextract.low.u32 %v9046
      %v9048 = vextract.high.u32 %v9046
      %v9049 = vmul.u32.u64.compose %v9045, %v9040
      %v9050 = vextract.low.u32 %v9049
      %v9051 = vextract.high.u32 %v9049
      %v9052 = vmul.u32 %v9045, %v9036
      %v9053 = vadd.s32 %v9048, %v9050
      %vm9054 = vc.u32 %v9048, %v9050
      %v9055 = vadd.s32 %v9051, 1
      %v9056 = vsel %vm9054, %v9055, %v9051
      %v9057 = vadd.s32 %v9052, %v9056
      %v9058 = vadd.s32 %v9057, 536870912
      %v9059 = vshrl.u32 %v9058, 30
      %v9060 = vshll.u32 %v9059, 30
      %v9061 = vsub.s32 %v9057, %v9060
      %vm9062 = vcmp.lt.s32.totalorder %v9061, 0
      %v9063 = vsub.s32 0, %v9061
      %v9064 = vsel %vm9062, %v9063, %v9061
      %v9065 = vclz %v9064
      %v9066 = vsub.s32 %v9065, 2
      %vm9067 = vcmp.gt.s32.totalorder 0, %v9066
      %v9068 = vsel %vm9067, 0, %v9066
      %v9069 = vsub.s32 32, %v9068
      %v9070 = vshll.u32 %v9061, %v9068
      %v9071 = vshrl.u32 %v9053, %v9069
      %v9072 = vor.u32 %v9070, %v9071
      %v9073 = vsub.s32 4294967266, %v9068
      %v9074 = vadd.s32 %v9073, 127
      %v9075 = vshll.u32 %v9074, 23
      %v9076 = vor.u32 4788187, %v9075
      %v9077 = vand.u32 2147483647, %v9076
      %v9079 = vcvt.s32.f32 %v9072
      %v9080 = vmul.f32 %v9079, %v9077
      %v9081 = vxor.u32 %v9080, 2147483648
      %v9082 = vsel %vm8999, %v9081, %v9080
      %v9083 = vsub.s32 4, %v9059
      %v9084 = vsel %vm8999, %v9083, %v9059
      %v9085 = vsel %vm8998, %v3526, %v9082
      %v9086 = vsel %vm8998, 0, %v9084
      %v9087 = vcosq.f32.pop %v9085
      %v9088 = vsinq.f32.pop %v9085
      %vm9089 = vweird.f32 %v3526
      %v9090 = vadd.s32 %v9086, 3
      %v9091 = vand.u32 %v9090, 3
      %vm9092 = vcmp.lt.s32.totalorder %v9091, 2
      %vm9093 = vcmp.eq.s32.totalorder %v9091, 0
      %v9094 = vxor.u32 %v9088, 2147483648
      %v9095 = vsel %vm9093, %v9087, %v9094
      %vm9096 = vcmp.eq.s32.totalorder %v9091, 2
      %v9097 = vxor.u32 %v9087, 2147483648
      %v9098 = vsel %vm9096, %v9097, %v9088
      %v9099 = vsel %vm9092, %v9095, %v9098
      %v9100 = vsel %vm9089, nan, %v9099
      %v9101 = vand.u32 2147483647, %v3532
      %vm9102 = vcmp.le.f32.partialorder %v9101, 0.7853982
      %vm9103 = vcmp.lt.s32.totalorder %v3532, 0
      %v9104 = vand.u32 %v3532, 2139095040
      %v9105 = vshrl.u32 %v9104, 23
      %v9106 = vsub.s32 %v9105, 127
      %v9107 = vand.u32 2147483647, %v3532
      %v9108 = vand.u32 %v9107, 8388607
      %v9109 = vor.u32 %v9108, 8388608
      %v9110 = vsub.s32 0, %v9109
      %v9111 = vadd.s32 %v9106, 1
      %vm9112 = vcmp.gt.s32.totalorder %v9111, 0
      %v9113 = vsel %vm9112, %v9111, 0
      %v9114 = vshrl.u32 %v9113, 5
      %v9115 = vand.u32 %v9113, 31
      %v9116 = vsub.s32 32, %v9115
      %v9117 = vshrl.u32 683565275, %v9116
      %v9118 = vshll.u32 683565275, %v9115
      %v9119 = vshrl.u32 2475754826, %v9116
      %v9120 = vor.u32 %v9118, %v9119
      %v9121 = vshll.u32 2475754826, %v9115
      %v9122 = vshrl.u32 2131351028, %v9116
      %v9123 = vor.u32 %v9121, %v9122
      %v9124 = vshll.u32 2131351028, %v9115
      %v9125 = vshrl.u32 2102212464, %v9116
      %v9126 = vor.u32 %v9124, %v9125
      %v9127 = vshll.u32 2102212464, %v9115
      %v9128 = vshrl.u32 920167782, %v9116
      %v9129 = vor.u32 %v9127, %v9128
      %v9130 = vshll.u32 920167782, %v9115
      %v9131 = vshrl.u32 1326507024, %v9116
      %v9132 = vor.u32 %v9130, %v9131
      %vm9133 = vcmp.lt.s32.totalorder %v9114, 1
      %vm9134 = vcmp.lt.s32.totalorder %v9114, 2
      %vm9135 = vcmp.lt.s32.totalorder %v9114, 3
      %vm9136 = vcmp.lt.s32.totalorder %v9114, 4
      %v9137 = vsel %vm9133, %v9117, %v9120
      %v9138 = vsel %vm9136, %v9126, 2102212464
      %v9139 = vsel %vm9135, %v9123, %v9138
      %v9140 = vsel %vm9134, %v9137, %v9139
      %v9141 = vsel %vm9133, %v9120, %v9123
      %v9142 = vsel %vm9136, %v9129, 920167782
      %v9143 = vsel %vm9135, %v9126, %v9142
      %v9144 = vsel %vm9134, %v9141, %v9143
      %v9145 = vsel %vm9133, %v9123, %v9126
      %v9146 = vsel %vm9136, %v9132, 1326507024
      %v9147 = vsel %vm9135, %v9129, %v9146
      %v9148 = vsel %vm9134, %v9145, %v9147
      %v9149 = vshll.u32 %v9109, 8
      %v9150 = vmul.u32.u64.compose %v9149, %v9148
      %v9151 = vextract.low.u32 %v9150
      %v9152 = vextract.high.u32 %v9150
      %v9153 = vmul.u32.u64.compose %v9149, %v9144
      %v9154 = vextract.low.u32 %v9153
      %v9155 = vextract.high.u32 %v9153
      %v9156 = vmul.u32 %v9149, %v9140
      %v9157 = vadd.s32 %v9152, %v9154
      %vm9158 = vc.u32 %v9152, %v9154
      %v9159 = vadd.s32 %v9155, 1
      %v9160 = vsel %vm9158, %v9159, %v9155
      %v9161 = vadd.s32 %v9156, %v9160
      %v9162 = vadd.s32 %v9161, 536870912
      %v9163 = vshrl.u32 %v9162, 30
      %v9164 = vshll.u32 %v9163, 30
      %v9165 = vsub.s32 %v9161, %v9164
      %vm9166 = vcmp.lt.s32.totalorder %v9165, 0
      %v9167 = vsub.s32 0, %v9165
      %v9168 = vsel %vm9166, %v9167, %v9165
      %v9169 = vclz %v9168
      %v9170 = vsub.s32 %v9169, 2
      %vm9171 = vcmp.gt.s32.totalorder 0, %v9170
      %v9172 = vsel %vm9171, 0, %v9170
      %v9173 = vsub.s32 32, %v9172
      %v9174 = vshll.u32 %v9165, %v9172
      %v9175 = vshrl.u32 %v9157, %v9173
      %v9176 = vor.u32 %v9174, %v9175
      %v9177 = vsub.s32 4294967266, %v9172
      %v9178 = vadd.s32 %v9177, 127
      %v9179 = vshll.u32 %v9178, 23
      %v9180 = vor.u32 4788187, %v9179
      %v9181 = vand.u32 2147483647, %v9180
      %v9183 = vcvt.s32.f32 %v9176
      %v9184 = vmul.f32 %v9183, %v9181
      %v9185 = vxor.u32 %v9184, 2147483648
      %v9186 = vsel %vm9103, %v9185, %v9184
      %v9187 = vsub.s32 4, %v9163
      %v9188 = vsel %vm9103, %v9187, %v9163
      %v9189 = vsel %vm9102, %v3532, %v9186
      %v9190 = vsel %vm9102, 0, %v9188
      %v9191 = vcosq.f32.pop %v9189
      %v9192 = vsinq.f32.pop %v9189
      %vm9193 = vweird.f32 %v3532
      %v9194 = vadd.s32 %v9190, 3
      %v9195 = vand.u32 %v9194, 3
      %vm9196 = vcmp.lt.s32.totalorder %v9195, 2
      %vm9197 = vcmp.eq.s32.totalorder %v9195, 0
      %v9198 = vxor.u32 %v9192, 2147483648
      %v9199 = vsel %vm9197, %v9191, %v9198
      %vm9200 = vcmp.eq.s32.totalorder %v9195, 2
      %v9201 = vxor.u32 %v9191, 2147483648
      %v9202 = vsel %vm9200, %v9201, %v9192
      %v9203 = vsel %vm9196, %v9199, %v9202
      %v9204 = vsel %vm9193, nan, %v9203
      %v9205 = vand.u32 2147483647, %v3538
      %vm9206 = vcmp.le.f32.partialorder %v9205, 0.7853982
      %vm9207 = vcmp.lt.s32.totalorder %v3538, 0
      %v9208 = vand.u32 %v3538, 2139095040
      %v9209 = vshrl.u32 %v9208, 23
      %v9210 = vsub.s32 %v9209, 127
      %v9211 = vand.u32 2147483647, %v3538
      %v9212 = vand.u32 %v9211, 8388607
      %v9213 = vor.u32 %v9212, 8388608
      %v9214 = vsub.s32 0, %v9213
      %v9215 = vadd.s32 %v9210, 1
      %vm9216 = vcmp.gt.s32.totalorder %v9215, 0
      %v9217 = vsel %vm9216, %v9215, 0
      %v9218 = vshrl.u32 %v9217, 5
      %v9219 = vand.u32 %v9217, 31
      %v9220 = vsub.s32 32, %v9219
      %v9221 = vshrl.u32 683565275, %v9220
      %v9222 = vshll.u32 683565275, %v9219
      %v9223 = vshrl.u32 2475754826, %v9220
      %v9224 = vor.u32 %v9222, %v9223
      %v9225 = vshll.u32 2475754826, %v9219
      %v9226 = vshrl.u32 2131351028, %v9220
      %v9227 = vor.u32 %v9225, %v9226
      %v9228 = vshll.u32 2131351028, %v9219
      %v9229 = vshrl.u32 2102212464, %v9220
      %v9230 = vor.u32 %v9228, %v9229
      %v9231 = vshll.u32 2102212464, %v9219
      %v9232 = vshrl.u32 920167782, %v9220
      %v9233 = vor.u32 %v9231, %v9232
      %v9234 = vshll.u32 920167782, %v9219
      %v9235 = vshrl.u32 1326507024, %v9220
      %v9236 = vor.u32 %v9234, %v9235
      %vm9237 = vcmp.lt.s32.totalorder %v9218, 1
      %vm9238 = vcmp.lt.s32.totalorder %v9218, 2
      %vm9239 = vcmp.lt.s32.totalorder %v9218, 3
      %vm9240 = vcmp.lt.s32.totalorder %v9218, 4
      %v9241 = vsel %vm9237, %v9221, %v9224
      %v9242 = vsel %vm9240, %v9230, 2102212464
      %v9243 = vsel %vm9239, %v9227, %v9242
      %v9244 = vsel %vm9238, %v9241, %v9243
      %v9245 = vsel %vm9237, %v9224, %v9227
      %v9246 = vsel %vm9240, %v9233, 920167782
      %v9247 = vsel %vm9239, %v9230, %v9246
      %v9248 = vsel %vm9238, %v9245, %v9247
      %v9249 = vsel %vm9237, %v9227, %v9230
      %v9250 = vsel %vm9240, %v9236, 1326507024
      %v9251 = vsel %vm9239, %v9233, %v9250
      %v9252 = vsel %vm9238, %v9249, %v9251
      %v9253 = vshll.u32 %v9213, 8
      %v9254 = vmul.u32.u64.compose %v9253, %v9252
      %v9255 = vextract.low.u32 %v9254
      %v9256 = vextract.high.u32 %v9254
      %v9257 = vmul.u32.u64.compose %v9253, %v9248
      %v9258 = vextract.low.u32 %v9257
      %v9259 = vextract.high.u32 %v9257
      %v9260 = vmul.u32 %v9253, %v9244
      %v9261 = vadd.s32 %v9256, %v9258
      %vm9262 = vc.u32 %v9256, %v9258
      %v9263 = vadd.s32 %v9259, 1
      %v9264 = vsel %vm9262, %v9263, %v9259
      %v9265 = vadd.s32 %v9260, %v9264
      %v9266 = vadd.s32 %v9265, 536870912
      %v9267 = vshrl.u32 %v9266, 30
      %v9268 = vshll.u32 %v9267, 30
      %v9269 = vsub.s32 %v9265, %v9268
      %vm9270 = vcmp.lt.s32.totalorder %v9269, 0
      %v9271 = vsub.s32 0, %v9269
      %v9272 = vsel %vm9270, %v9271, %v9269
      %v9273 = vclz %v9272
      %v9274 = vsub.s32 %v9273, 2
      %vm9275 = vcmp.gt.s32.totalorder 0, %v9274
      %v9276 = vsel %vm9275, 0, %v9274
      %v9277 = vsub.s32 32, %v9276
      %v9278 = vshll.u32 %v9269, %v9276
      %v9279 = vshrl.u32 %v9261, %v9277
      %v9280 = vor.u32 %v9278, %v9279
      %v9281 = vsub.s32 4294967266, %v9276
      %v9282 = vadd.s32 %v9281, 127
      %v9283 = vshll.u32 %v9282, 23
      %v9284 = vor.u32 4788187, %v9283
      %v9285 = vand.u32 2147483647, %v9284
      %v9287 = vcvt.s32.f32 %v9280
      %v9288 = vmul.f32 %v9287, %v9285
      %v9289 = vxor.u32 %v9288, 2147483648
      %v9290 = vsel %vm9207, %v9289, %v9288
      %v9291 = vsub.s32 4, %v9267
      %v9292 = vsel %vm9207, %v9291, %v9267
      %v9293 = vsel %vm9206, %v3538, %v9290
      %v9294 = vsel %vm9206, 0, %v9292
      %v9295 = vcosq.f32.pop %v9293
      %v9296 = vsinq.f32.pop %v9293
      %vm9297 = vweird.f32 %v3538
      %v9298 = vadd.s32 %v9294, 3
      %v9299 = vand.u32 %v9298, 3
      %vm9300 = vcmp.lt.s32.totalorder %v9299, 2
      %vm9301 = vcmp.eq.s32.totalorder %v9299, 0
      %v9302 = vxor.u32 %v9296, 2147483648
      %v9303 = vsel %vm9301, %v9295, %v9302
      %vm9304 = vcmp.eq.s32.totalorder %v9299, 2
      %v9305 = vxor.u32 %v9295, 2147483648
      %v9306 = vsel %vm9304, %v9305, %v9296
      %v9307 = vsel %vm9300, %v9303, %v9306
      %v9308 = vsel %vm9297, nan, %v9307
      %v9309 = vand.u32 2147483647, %v3544
      %vm9310 = vcmp.le.f32.partialorder %v9309, 0.7853982
      %vm9311 = vcmp.lt.s32.totalorder %v3544, 0
      %v9312 = vand.u32 %v3544, 2139095040
      %v9313 = vshrl.u32 %v9312, 23
      %v9314 = vsub.s32 %v9313, 127
      %v9315 = vand.u32 2147483647, %v3544
      %v9316 = vand.u32 %v9315, 8388607
      %v9317 = vor.u32 %v9316, 8388608
      %v9318 = vsub.s32 0, %v9317
      %v9319 = vadd.s32 %v9314, 1
      %vm9320 = vcmp.gt.s32.totalorder %v9319, 0
      %v9321 = vsel %vm9320, %v9319, 0
      %v9322 = vshrl.u32 %v9321, 5
      %v9323 = vand.u32 %v9321, 31
      %v9324 = vsub.s32 32, %v9323
      %v9325 = vshrl.u32 683565275, %v9324
      %v9326 = vshll.u32 683565275, %v9323
      %v9327 = vshrl.u32 2475754826, %v9324
      %v9328 = vor.u32 %v9326, %v9327
      %v9329 = vshll.u32 2475754826, %v9323
      %v9330 = vshrl.u32 2131351028, %v9324
      %v9331 = vor.u32 %v9329, %v9330
      %v9332 = vshll.u32 2131351028, %v9323
      %v9333 = vshrl.u32 2102212464, %v9324
      %v9334 = vor.u32 %v9332, %v9333
      %v9335 = vshll.u32 2102212464, %v9323
      %v9336 = vshrl.u32 920167782, %v9324
      %v9337 = vor.u32 %v9335, %v9336
      %v9338 = vshll.u32 920167782, %v9323
      %v9339 = vshrl.u32 1326507024, %v9324
      %v9340 = vor.u32 %v9338, %v9339
      %vm9341 = vcmp.lt.s32.totalorder %v9322, 1
      %vm9342 = vcmp.lt.s32.totalorder %v9322, 2
      %vm9343 = vcmp.lt.s32.totalorder %v9322, 3
      %vm9344 = vcmp.lt.s32.totalorder %v9322, 4
      %v9345 = vsel %vm9341, %v9325, %v9328
      %v9346 = vsel %vm9344, %v9334, 2102212464
      %v9347 = vsel %vm9343, %v9331, %v9346
      %v9348 = vsel %vm9342, %v9345, %v9347
      %v9349 = vsel %vm9341, %v9328, %v9331
      %v9350 = vsel %vm9344, %v9337, 920167782
      %v9351 = vsel %vm9343, %v9334, %v9350
      %v9352 = vsel %vm9342, %v9349, %v9351
      %v9353 = vsel %vm9341, %v9331, %v9334
      %v9354 = vsel %vm9344, %v9340, 1326507024
      %v9355 = vsel %vm9343, %v9337, %v9354
      %v9356 = vsel %vm9342, %v9353, %v9355
      %v9357 = vshll.u32 %v9317, 8
      %v9358 = vmul.u32.u64.compose %v9357, %v9356
      %v9359 = vextract.low.u32 %v9358
      %v9360 = vextract.high.u32 %v9358
      %v9361 = vmul.u32.u64.compose %v9357, %v9352
      %v9362 = vextract.low.u32 %v9361
      %v9363 = vextract.high.u32 %v9361
      %v9364 = vmul.u32 %v9357, %v9348
      %v9365 = vadd.s32 %v9360, %v9362
      %vm9366 = vc.u32 %v9360, %v9362
      %v9367 = vadd.s32 %v9363, 1
      %v9368 = vsel %vm9366, %v9367, %v9363
      %v9369 = vadd.s32 %v9364, %v9368
      %v9370 = vadd.s32 %v9369, 536870912
      %v9371 = vshrl.u32 %v9370, 30
      %v9372 = vshll.u32 %v9371, 30
      %v9373 = vsub.s32 %v9369, %v9372
      %vm9374 = vcmp.lt.s32.totalorder %v9373, 0
      %v9375 = vsub.s32 0, %v9373
      %v9376 = vsel %vm9374, %v9375, %v9373
      %v9377 = vclz %v9376
      %v9378 = vsub.s32 %v9377, 2
      %vm9379 = vcmp.gt.s32.totalorder 0, %v9378
      %v9380 = vsel %vm9379, 0, %v9378
      %v9381 = vsub.s32 32, %v9380
      %v9382 = vshll.u32 %v9373, %v9380
      %v9383 = vshrl.u32 %v9365, %v9381
      %v9384 = vor.u32 %v9382, %v9383
      %v9385 = vsub.s32 4294967266, %v9380
      %v9386 = vadd.s32 %v9385, 127
      %v9387 = vshll.u32 %v9386, 23
      %v9388 = vor.u32 4788187, %v9387
      %v9389 = vand.u32 2147483647, %v9388
      %v9391 = vcvt.s32.f32 %v9384
      %v9392 = vmul.f32 %v9391, %v9389
      %v9393 = vxor.u32 %v9392, 2147483648
      %v9394 = vsel %vm9311, %v9393, %v9392
      %v9395 = vsub.s32 4, %v9371
      %v9396 = vsel %vm9311, %v9395, %v9371
      %v9397 = vsel %vm9310, %v3544, %v9394
      %v9398 = vsel %vm9310, 0, %v9396
      %v9399 = vcosq.f32.pop %v9397
      %v9400 = vsinq.f32.pop %v9397
      %vm9401 = vweird.f32 %v3544
      %v9402 = vadd.s32 %v9398, 3
      %v9403 = vand.u32 %v9402, 3
      %vm9404 = vcmp.lt.s32.totalorder %v9403, 2
      %vm9405 = vcmp.eq.s32.totalorder %v9403, 0
      %v9406 = vxor.u32 %v9400, 2147483648
      %v9407 = vsel %vm9405, %v9399, %v9406
      %vm9408 = vcmp.eq.s32.totalorder %v9403, 2
      %v9409 = vxor.u32 %v9399, 2147483648
      %v9410 = vsel %vm9408, %v9409, %v9400
      %v9411 = vsel %vm9404, %v9407, %v9410
      %v9412 = vsel %vm9401, nan, %v9411
      %v9413 = vand.u32 2147483647, %v3550
      %vm9414 = vcmp.le.f32.partialorder %v9413, 0.7853982
      %vm9415 = vcmp.lt.s32.totalorder %v3550, 0
      %v9416 = vand.u32 %v3550, 2139095040
      %v9417 = vshrl.u32 %v9416, 23
      %v9418 = vsub.s32 %v9417, 127
      %v9419 = vand.u32 2147483647, %v3550
      %v9420 = vand.u32 %v9419, 8388607
      %v9421 = vor.u32 %v9420, 8388608
      %v9422 = vsub.s32 0, %v9421
      %v9423 = vadd.s32 %v9418, 1
      %vm9424 = vcmp.gt.s32.totalorder %v9423, 0
      %v9425 = vsel %vm9424, %v9423, 0
      %v9426 = vshrl.u32 %v9425, 5
      %v9427 = vand.u32 %v9425, 31
      %v9428 = vsub.s32 32, %v9427
      %v9429 = vshrl.u32 683565275, %v9428
      %v9430 = vshll.u32 683565275, %v9427
      %v9431 = vshrl.u32 2475754826, %v9428
      %v9432 = vor.u32 %v9430, %v9431
      %v9433 = vshll.u32 2475754826, %v9427
      %v9434 = vshrl.u32 2131351028, %v9428
      %v9435 = vor.u32 %v9433, %v9434
      %v9436 = vshll.u32 2131351028, %v9427
      %v9437 = vshrl.u32 2102212464, %v9428
      %v9438 = vor.u32 %v9436, %v9437
      %v9439 = vshll.u32 2102212464, %v9427
      %v9440 = vshrl.u32 920167782, %v9428
      %v9441 = vor.u32 %v9439, %v9440
      %v9442 = vshll.u32 920167782, %v9427
      %v9443 = vshrl.u32 1326507024, %v9428
      %v9444 = vor.u32 %v9442, %v9443
      %vm9445 = vcmp.lt.s32.totalorder %v9426, 1
      %vm9446 = vcmp.lt.s32.totalorder %v9426, 2
      %vm9447 = vcmp.lt.s32.totalorder %v9426, 3
      %vm9448 = vcmp.lt.s32.totalorder %v9426, 4
      %v9449 = vsel %vm9445, %v9429, %v9432
      %v9450 = vsel %vm9448, %v9438, 2102212464
      %v9451 = vsel %vm9447, %v9435, %v9450
      %v9452 = vsel %vm9446, %v9449, %v9451
      %v9453 = vsel %vm9445, %v9432, %v9435
      %v9454 = vsel %vm9448, %v9441, 920167782
      %v9455 = vsel %vm9447, %v9438, %v9454
      %v9456 = vsel %vm9446, %v9453, %v9455
      %v9457 = vsel %vm9445, %v9435, %v9438
      %v9458 = vsel %vm9448, %v9444, 1326507024
      %v9459 = vsel %vm9447, %v9441, %v9458
      %v9460 = vsel %vm9446, %v9457, %v9459
      %v9461 = vshll.u32 %v9421, 8
      %v9462 = vmul.u32.u64.compose %v9461, %v9460
      %v9463 = vextract.low.u32 %v9462
      %v9464 = vextract.high.u32 %v9462
      %v9465 = vmul.u32.u64.compose %v9461, %v9456
      %v9466 = vextract.low.u32 %v9465
      %v9467 = vextract.high.u32 %v9465
      %v9468 = vmul.u32 %v9461, %v9452
      %v9469 = vadd.s32 %v9464, %v9466
      %vm9470 = vc.u32 %v9464, %v9466
      %v9471 = vadd.s32 %v9467, 1
      %v9472 = vsel %vm9470, %v9471, %v9467
      %v9473 = vadd.s32 %v9468, %v9472
      %v9474 = vadd.s32 %v9473, 536870912
      %v9475 = vshrl.u32 %v9474, 30
      %v9476 = vshll.u32 %v9475, 30
      %v9477 = vsub.s32 %v9473, %v9476
      %vm9478 = vcmp.lt.s32.totalorder %v9477, 0
      %v9479 = vsub.s32 0, %v9477
      %v9480 = vsel %vm9478, %v9479, %v9477
      %v9481 = vclz %v9480
      %v9482 = vsub.s32 %v9481, 2
      %vm9483 = vcmp.gt.s32.totalorder 0, %v9482
      %v9484 = vsel %vm9483, 0, %v9482
      %v9485 = vsub.s32 32, %v9484
      %v9486 = vshll.u32 %v9477, %v9484
      %v9487 = vshrl.u32 %v9469, %v9485
      %v9488 = vor.u32 %v9486, %v9487
      %v9489 = vsub.s32 4294967266, %v9484
      %v9490 = vadd.s32 %v9489, 127
      %v9491 = vshll.u32 %v9490, 23
      %v9492 = vor.u32 4788187, %v9491
      %v9493 = vand.u32 2147483647, %v9492
      %v9495 = vcvt.s32.f32 %v9488
      %v9496 = vmul.f32 %v9495, %v9493
      %v9497 = vxor.u32 %v9496, 2147483648
      %v9498 = vsel %vm9415, %v9497, %v9496
      %v9499 = vsub.s32 4, %v9475
      %v9500 = vsel %vm9415, %v9499, %v9475
      %v9501 = vsel %vm9414, %v3550, %v9498
      %v9502 = vsel %vm9414, 0, %v9500
      %v9503 = vcosq.f32.pop %v9501
      %v9504 = vsinq.f32.pop %v9501
      %vm9505 = vweird.f32 %v3550
      %v9506 = vadd.s32 %v9502, 3
      %v9507 = vand.u32 %v9506, 3
      %vm9508 = vcmp.lt.s32.totalorder %v9507, 2
      %vm9509 = vcmp.eq.s32.totalorder %v9507, 0
      %v9510 = vxor.u32 %v9504, 2147483648
      %v9511 = vsel %vm9509, %v9503, %v9510
      %vm9512 = vcmp.eq.s32.totalorder %v9507, 2
      %v9513 = vxor.u32 %v9503, 2147483648
      %v9514 = vsel %vm9512, %v9513, %v9504
      %v9515 = vsel %vm9508, %v9511, %v9514
      %v9516 = vsel %vm9505, nan, %v9515
      %v9517 = vand.u32 2147483647, %v3556
      %vm9518 = vcmp.le.f32.partialorder %v9517, 0.7853982
      %vm9519 = vcmp.lt.s32.totalorder %v3556, 0
      %v9520 = vand.u32 %v3556, 2139095040
      %v9521 = vshrl.u32 %v9520, 23
      %v9522 = vsub.s32 %v9521, 127
      %v9523 = vand.u32 2147483647, %v3556
      %v9524 = vand.u32 %v9523, 8388607
      %v9525 = vor.u32 %v9524, 8388608
      %v9526 = vsub.s32 0, %v9525
      %v9527 = vadd.s32 %v9522, 1
      %vm9528 = vcmp.gt.s32.totalorder %v9527, 0
      %v9529 = vsel %vm9528, %v9527, 0
      %v9530 = vshrl.u32 %v9529, 5
      %v9531 = vand.u32 %v9529, 31
      %v9532 = vsub.s32 32, %v9531
      %v9533 = vshrl.u32 683565275, %v9532
      %v9534 = vshll.u32 683565275, %v9531
      %v9535 = vshrl.u32 2475754826, %v9532
      %v9536 = vor.u32 %v9534, %v9535
      %v9537 = vshll.u32 2475754826, %v9531
      %v9538 = vshrl.u32 2131351028, %v9532
      %v9539 = vor.u32 %v9537, %v9538
      %v9540 = vshll.u32 2131351028, %v9531
      %v9541 = vshrl.u32 2102212464, %v9532
      %v9542 = vor.u32 %v9540, %v9541
      %v9543 = vshll.u32 2102212464, %v9531
      %v9544 = vshrl.u32 920167782, %v9532
      %v9545 = vor.u32 %v9543, %v9544
      %v9546 = vshll.u32 920167782, %v9531
      %v9547 = vshrl.u32 1326507024, %v9532
      %v9548 = vor.u32 %v9546, %v9547
      %vm9549 = vcmp.lt.s32.totalorder %v9530, 1
      %vm9550 = vcmp.lt.s32.totalorder %v9530, 2
      %vm9551 = vcmp.lt.s32.totalorder %v9530, 3
      %vm9552 = vcmp.lt.s32.totalorder %v9530, 4
      %v9553 = vsel %vm9549, %v9533, %v9536
      %v9554 = vsel %vm9552, %v9542, 2102212464
      %v9555 = vsel %vm9551, %v9539, %v9554
      %v9556 = vsel %vm9550, %v9553, %v9555
      %v9557 = vsel %vm9549, %v9536, %v9539
      %v9558 = vsel %vm9552, %v9545, 920167782
      %v9559 = vsel %vm9551, %v9542, %v9558
      %v9560 = vsel %vm9550, %v9557, %v9559
      %v9561 = vsel %vm9549, %v9539, %v9542
      %v9562 = vsel %vm9552, %v9548, 1326507024
      %v9563 = vsel %vm9551, %v9545, %v9562
      %v9564 = vsel %vm9550, %v9561, %v9563
      %v9565 = vshll.u32 %v9525, 8
      %v9566 = vmul.u32.u64.compose %v9565, %v9564
      %v9567 = vextract.low.u32 %v9566
      %v9568 = vextract.high.u32 %v9566
      %v9569 = vmul.u32.u64.compose %v9565, %v9560
      %v9570 = vextract.low.u32 %v9569
      %v9571 = vextract.high.u32 %v9569
      %v9572 = vmul.u32 %v9565, %v9556
      %v9573 = vadd.s32 %v9568, %v9570
      %vm9574 = vc.u32 %v9568, %v9570
      %v9575 = vadd.s32 %v9571, 1
      %v9576 = vsel %vm9574, %v9575, %v9571
      %v9577 = vadd.s32 %v9572, %v9576
      %v9578 = vadd.s32 %v9577, 536870912
      %v9579 = vshrl.u32 %v9578, 30
      %v9580 = vshll.u32 %v9579, 30
      %v9581 = vsub.s32 %v9577, %v9580
      %vm9582 = vcmp.lt.s32.totalorder %v9581, 0
      %v9583 = vsub.s32 0, %v9581
      %v9584 = vsel %vm9582, %v9583, %v9581
      %v9585 = vclz %v9584
      %v9586 = vsub.s32 %v9585, 2
      %vm9587 = vcmp.gt.s32.totalorder 0, %v9586
      %v9588 = vsel %vm9587, 0, %v9586
      %v9589 = vsub.s32 32, %v9588
      %v9590 = vshll.u32 %v9581, %v9588
      %v9591 = vshrl.u32 %v9573, %v9589
      %v9592 = vor.u32 %v9590, %v9591
      %v9593 = vsub.s32 4294967266, %v9588
      %v9594 = vadd.s32 %v9593, 127
      %v9595 = vshll.u32 %v9594, 23
      %v9596 = vor.u32 4788187, %v9595
      %v9597 = vand.u32 2147483647, %v9596
      %v9599 = vcvt.s32.f32 %v9592
      %v9600 = vmul.f32 %v9599, %v9597
      %v9601 = vxor.u32 %v9600, 2147483648
      %v9602 = vsel %vm9519, %v9601, %v9600
      %v9603 = vsub.s32 4, %v9579
      %v9604 = vsel %vm9519, %v9603, %v9579
      %v9605 = vsel %vm9518, %v3556, %v9602
      %v9606 = vsel %vm9518, 0, %v9604
      %v9607 = vcosq.f32.pop %v9605
      %v9608 = vsinq.f32.pop %v9605
      %vm9609 = vweird.f32 %v3556
      %v9610 = vadd.s32 %v9606, 3
      %v9611 = vand.u32 %v9610, 3
      %vm9612 = vcmp.lt.s32.totalorder %v9611, 2
      %vm9613 = vcmp.eq.s32.totalorder %v9611, 0
      %v9614 = vxor.u32 %v9608, 2147483648
      %v9615 = vsel %vm9613, %v9607, %v9614
      %vm9616 = vcmp.eq.s32.totalorder %v9611, 2
      %v9617 = vxor.u32 %v9607, 2147483648
      %v9618 = vsel %vm9616, %v9617, %v9608
      %v9619 = vsel %vm9612, %v9615, %v9618
      %v9620 = vsel %vm9609, nan, %v9619
      %v9621 = vand.u32 2147483647, %v3562
      %vm9622 = vcmp.le.f32.partialorder %v9621, 0.7853982
      %vm9623 = vcmp.lt.s32.totalorder %v3562, 0
      %v9624 = vand.u32 %v3562, 2139095040
      %v9625 = vshrl.u32 %v9624, 23
      %v9626 = vsub.s32 %v9625, 127
      %v9627 = vand.u32 2147483647, %v3562
      %v9628 = vand.u32 %v9627, 8388607
      %v9629 = vor.u32 %v9628, 8388608
      %v9630 = vsub.s32 0, %v9629
      %v9631 = vadd.s32 %v9626, 1
      %vm9632 = vcmp.gt.s32.totalorder %v9631, 0
      %v9633 = vsel %vm9632, %v9631, 0
      %v9634 = vshrl.u32 %v9633, 5
      %v9635 = vand.u32 %v9633, 31
      %v9636 = vsub.s32 32, %v9635
      %v9637 = vshrl.u32 683565275, %v9636
      %v9638 = vshll.u32 683565275, %v9635
      %v9639 = vshrl.u32 2475754826, %v9636
      %v9640 = vor.u32 %v9638, %v9639
      %v9641 = vshll.u32 2475754826, %v9635
      %v9642 = vshrl.u32 2131351028, %v9636
      %v9643 = vor.u32 %v9641, %v9642
      %v9644 = vshll.u32 2131351028, %v9635
      %v9645 = vshrl.u32 2102212464, %v9636
      %v9646 = vor.u32 %v9644, %v9645
      %v9647 = vshll.u32 2102212464, %v9635
      %v9648 = vshrl.u32 920167782, %v9636
      %v9649 = vor.u32 %v9647, %v9648
      %v9650 = vshll.u32 920167782, %v9635
      %v9651 = vshrl.u32 1326507024, %v9636
      %v9652 = vor.u32 %v9650, %v9651
      %vm9653 = vcmp.lt.s32.totalorder %v9634, 1
      %vm9654 = vcmp.lt.s32.totalorder %v9634, 2
      %vm9655 = vcmp.lt.s32.totalorder %v9634, 3
      %vm9656 = vcmp.lt.s32.totalorder %v9634, 4
      %v9657 = vsel %vm9653, %v9637, %v9640
      %v9658 = vsel %vm9656, %v9646, 2102212464
      %v9659 = vsel %vm9655, %v9643, %v9658
      %v9660 = vsel %vm9654, %v9657, %v9659
      %v9661 = vsel %vm9653, %v9640, %v9643
      %v9662 = vsel %vm9656, %v9649, 920167782
      %v9663 = vsel %vm9655, %v9646, %v9662
      %v9664 = vsel %vm9654, %v9661, %v9663
      %v9665 = vsel %vm9653, %v9643, %v9646
      %v9666 = vsel %vm9656, %v9652, 1326507024
      %v9667 = vsel %vm9655, %v9649, %v9666
      %v9668 = vsel %vm9654, %v9665, %v9667
      %v9669 = vshll.u32 %v9629, 8
      %v9670 = vmul.u32.u64.compose %v9669, %v9668
      %v9671 = vextract.low.u32 %v9670
      %v9672 = vextract.high.u32 %v9670
      %v9673 = vmul.u32.u64.compose %v9669, %v9664
      %v9674 = vextract.low.u32 %v9673
      %v9675 = vextract.high.u32 %v9673
      %v9676 = vmul.u32 %v9669, %v9660
      %v9677 = vadd.s32 %v9672, %v9674
      %vm9678 = vc.u32 %v9672, %v9674
      %v9679 = vadd.s32 %v9675, 1
      %v9680 = vsel %vm9678, %v9679, %v9675
      %v9681 = vadd.s32 %v9676, %v9680
      %v9682 = vadd.s32 %v9681, 536870912
      %v9683 = vshrl.u32 %v9682, 30
      %v9684 = vshll.u32 %v9683, 30
      %v9685 = vsub.s32 %v9681, %v9684
      %vm9686 = vcmp.lt.s32.totalorder %v9685, 0
      %v9687 = vsub.s32 0, %v9685
      %v9688 = vsel %vm9686, %v9687, %v9685
      %v9689 = vclz %v9688
      %v9690 = vsub.s32 %v9689, 2
      %vm9691 = vcmp.gt.s32.totalorder 0, %v9690
      %v9692 = vsel %vm9691, 0, %v9690
      %v9693 = vsub.s32 32, %v9692
      %v9694 = vshll.u32 %v9685, %v9692
      %v9695 = vshrl.u32 %v9677, %v9693
      %v9696 = vor.u32 %v9694, %v9695
      %v9697 = vsub.s32 4294967266, %v9692
      %v9698 = vadd.s32 %v9697, 127
      %v9699 = vshll.u32 %v9698, 23
      %v9700 = vor.u32 4788187, %v9699
      %v9701 = vand.u32 2147483647, %v9700
      %v9703 = vcvt.s32.f32 %v9696
      %v9704 = vmul.f32 %v9703, %v9701
      %v9705 = vxor.u32 %v9704, 2147483648
      %v9706 = vsel %vm9623, %v9705, %v9704
      %v9707 = vsub.s32 4, %v9683
      %v9708 = vsel %vm9623, %v9707, %v9683
      %v9709 = vsel %vm9622, %v3562, %v9706
      %v9710 = vsel %vm9622, 0, %v9708
      %v9711 = vcosq.f32.pop %v9709
      %v9712 = vsinq.f32.pop %v9709
      %vm9713 = vweird.f32 %v3562
      %v9714 = vadd.s32 %v9710, 3
      %v9715 = vand.u32 %v9714, 3
      %vm9716 = vcmp.lt.s32.totalorder %v9715, 2
      %vm9717 = vcmp.eq.s32.totalorder %v9715, 0
      %v9718 = vxor.u32 %v9712, 2147483648
      %v9719 = vsel %vm9717, %v9711, %v9718
      %vm9720 = vcmp.eq.s32.totalorder %v9715, 2
      %v9721 = vxor.u32 %v9711, 2147483648
      %v9722 = vsel %vm9720, %v9721, %v9712
      %v9723 = vsel %vm9716, %v9719, %v9722
      %v9724 = vsel %vm9713, nan, %v9723
      %v9725 = vand.u32 2147483647, %v3568
      %vm9726 = vcmp.le.f32.partialorder %v9725, 0.7853982
      %vm9727 = vcmp.lt.s32.totalorder %v3568, 0
      %v9728 = vand.u32 %v3568, 2139095040
      %v9729 = vshrl.u32 %v9728, 23
      %v9730 = vsub.s32 %v9729, 127
      %v9731 = vand.u32 2147483647, %v3568
      %v9732 = vand.u32 %v9731, 8388607
      %v9733 = vor.u32 %v9732, 8388608
      %v9734 = vsub.s32 0, %v9733
      %v9735 = vadd.s32 %v9730, 1
      %vm9736 = vcmp.gt.s32.totalorder %v9735, 0
      %v9737 = vsel %vm9736, %v9735, 0
      %v9738 = vshrl.u32 %v9737, 5
      %v9739 = vand.u32 %v9737, 31
      %v9740 = vsub.s32 32, %v9739
      %v9741 = vshrl.u32 683565275, %v9740
      %v9742 = vshll.u32 683565275, %v9739
      %v9743 = vshrl.u32 2475754826, %v9740
      %v9744 = vor.u32 %v9742, %v9743
      %v9745 = vshll.u32 2475754826, %v9739
      %v9746 = vshrl.u32 2131351028, %v9740
      %v9747 = vor.u32 %v9745, %v9746
      %v9748 = vshll.u32 2131351028, %v9739
      %v9749 = vshrl.u32 2102212464, %v9740
      %v9750 = vor.u32 %v9748, %v9749
      %v9751 = vshll.u32 2102212464, %v9739
      %v9752 = vshrl.u32 920167782, %v9740
      %v9753 = vor.u32 %v9751, %v9752
      %v9754 = vshll.u32 920167782, %v9739
      %v9755 = vshrl.u32 1326507024, %v9740
      %v9756 = vor.u32 %v9754, %v9755
      %vm9757 = vcmp.lt.s32.totalorder %v9738, 1
      %vm9758 = vcmp.lt.s32.totalorder %v9738, 2
      %vm9759 = vcmp.lt.s32.totalorder %v9738, 3
      %vm9760 = vcmp.lt.s32.totalorder %v9738, 4
      %v9761 = vsel %vm9757, %v9741, %v9744
      %v9762 = vsel %vm9760, %v9750, 2102212464
      %v9763 = vsel %vm9759, %v9747, %v9762
      %v9764 = vsel %vm9758, %v9761, %v9763
      %v9765 = vsel %vm9757, %v9744, %v9747
      %v9766 = vsel %vm9760, %v9753, 920167782
      %v9767 = vsel %vm9759, %v9750, %v9766
      %v9768 = vsel %vm9758, %v9765, %v9767
      %v9769 = vsel %vm9757, %v9747, %v9750
      %v9770 = vsel %vm9760, %v9756, 1326507024
      %v9771 = vsel %vm9759, %v9753, %v9770
      %v9772 = vsel %vm9758, %v9769, %v9771
      %v9773 = vshll.u32 %v9733, 8
      %v9774 = vmul.u32.u64.compose %v9773, %v9772
      %v9775 = vextract.low.u32 %v9774
      %v9776 = vextract.high.u32 %v9774
      %v9777 = vmul.u32.u64.compose %v9773, %v9768
      %v9778 = vextract.low.u32 %v9777
      %v9779 = vextract.high.u32 %v9777
      %v9780 = vmul.u32 %v9773, %v9764
      %v9781 = vadd.s32 %v9776, %v9778
      %vm9782 = vc.u32 %v9776, %v9778
      %v9783 = vadd.s32 %v9779, 1
      %v9784 = vsel %vm9782, %v9783, %v9779
      %v9785 = vadd.s32 %v9780, %v9784
      %v9786 = vadd.s32 %v9785, 536870912
      %v9787 = vshrl.u32 %v9786, 30
      %v9788 = vshll.u32 %v9787, 30
      %v9789 = vsub.s32 %v9785, %v9788
      %vm9790 = vcmp.lt.s32.totalorder %v9789, 0
      %v9791 = vsub.s32 0, %v9789
      %v9792 = vsel %vm9790, %v9791, %v9789
      %v9793 = vclz %v9792
      %v9794 = vsub.s32 %v9793, 2
      %vm9795 = vcmp.gt.s32.totalorder 0, %v9794
      %v9796 = vsel %vm9795, 0, %v9794
      %v9797 = vsub.s32 32, %v9796
      %v9798 = vshll.u32 %v9789, %v9796
      %v9799 = vshrl.u32 %v9781, %v9797
      %v9800 = vor.u32 %v9798, %v9799
      %v9801 = vsub.s32 4294967266, %v9796
      %v9802 = vadd.s32 %v9801, 127
      %v9803 = vshll.u32 %v9802, 23
      %v9804 = vor.u32 4788187, %v9803
      %v9805 = vand.u32 2147483647, %v9804
      %v9807 = vcvt.s32.f32 %v9800
      %v9808 = vmul.f32 %v9807, %v9805
      %v9809 = vxor.u32 %v9808, 2147483648
      %v9810 = vsel %vm9727, %v9809, %v9808
      %v9811 = vsub.s32 4, %v9787
      %v9812 = vsel %vm9727, %v9811, %v9787
      %v9813 = vsel %vm9726, %v3568, %v9810
      %v9814 = vsel %vm9726, 0, %v9812
      %v9815 = vcosq.f32.pop %v9813
      %v9816 = vsinq.f32.pop %v9813
      %vm9817 = vweird.f32 %v3568
      %v9818 = vadd.s32 %v9814, 3
      %v9819 = vand.u32 %v9818, 3
      %vm9820 = vcmp.lt.s32.totalorder %v9819, 2
      %vm9821 = vcmp.eq.s32.totalorder %v9819, 0
      %v9822 = vxor.u32 %v9816, 2147483648
      %v9823 = vsel %vm9821, %v9815, %v9822
      %vm9824 = vcmp.eq.s32.totalorder %v9819, 2
      %v9825 = vxor.u32 %v9815, 2147483648
      %v9826 = vsel %vm9824, %v9825, %v9816
      %v9827 = vsel %vm9820, %v9823, %v9826
      %v9828 = vsel %vm9817, nan, %v9827
      %v9829 = vand.u32 2147483647, %v3574
      %vm9830 = vcmp.le.f32.partialorder %v9829, 0.7853982
      %vm9831 = vcmp.lt.s32.totalorder %v3574, 0
      %v9832 = vand.u32 %v3574, 2139095040
      %v9833 = vshrl.u32 %v9832, 23
      %v9834 = vsub.s32 %v9833, 127
      %v9835 = vand.u32 2147483647, %v3574
      %v9836 = vand.u32 %v9835, 8388607
      %v9837 = vor.u32 %v9836, 8388608
      %v9838 = vsub.s32 0, %v9837
      %v9839 = vadd.s32 %v9834, 1
      %vm9840 = vcmp.gt.s32.totalorder %v9839, 0
      %v9841 = vsel %vm9840, %v9839, 0
      %v9842 = vshrl.u32 %v9841, 5
      %v9843 = vand.u32 %v9841, 31
      %v9844 = vsub.s32 32, %v9843
      %v9845 = vshrl.u32 683565275, %v9844
      %v9846 = vshll.u32 683565275, %v9843
      %v9847 = vshrl.u32 2475754826, %v9844
      %v9848 = vor.u32 %v9846, %v9847
      %v9849 = vshll.u32 2475754826, %v9843
      %v9850 = vshrl.u32 2131351028, %v9844
      %v9851 = vor.u32 %v9849, %v9850
      %v9852 = vshll.u32 2131351028, %v9843
      %v9853 = vshrl.u32 2102212464, %v9844
      %v9854 = vor.u32 %v9852, %v9853
      %v9855 = vshll.u32 2102212464, %v9843
      %v9856 = vshrl.u32 920167782, %v9844
      %v9857 = vor.u32 %v9855, %v9856
      %v9858 = vshll.u32 920167782, %v9843
      %v9859 = vshrl.u32 1326507024, %v9844
      %v9860 = vor.u32 %v9858, %v9859
      %vm9861 = vcmp.lt.s32.totalorder %v9842, 1
      %vm9862 = vcmp.lt.s32.totalorder %v9842, 2
      %vm9863 = vcmp.lt.s32.totalorder %v9842, 3
      %vm9864 = vcmp.lt.s32.totalorder %v9842, 4
      %v9865 = vsel %vm9861, %v9845, %v9848
      %v9866 = vsel %vm9864, %v9854, 2102212464
      %v9867 = vsel %vm9863, %v9851, %v9866
      %v9868 = vsel %vm9862, %v9865, %v9867
      %v9869 = vsel %vm9861, %v9848, %v9851
      %v9870 = vsel %vm9864, %v9857, 920167782
      %v9871 = vsel %vm9863, %v9854, %v9870
      %v9872 = vsel %vm9862, %v9869, %v9871
      %v9873 = vsel %vm9861, %v9851, %v9854
      %v9874 = vsel %vm9864, %v9860, 1326507024
      %v9875 = vsel %vm9863, %v9857, %v9874
      %v9876 = vsel %vm9862, %v9873, %v9875
      %v9877 = vshll.u32 %v9837, 8
      %v9878 = vmul.u32.u64.compose %v9877, %v9876
      %v9879 = vextract.low.u32 %v9878
      %v9880 = vextract.high.u32 %v9878
      %v9881 = vmul.u32.u64.compose %v9877, %v9872
      %v9882 = vextract.low.u32 %v9881
      %v9883 = vextract.high.u32 %v9881
      %v9884 = vmul.u32 %v9877, %v9868
      %v9885 = vadd.s32 %v9880, %v9882
      %vm9886 = vc.u32 %v9880, %v9882
      %v9887 = vadd.s32 %v9883, 1
      %v9888 = vsel %vm9886, %v9887, %v9883
      %v9889 = vadd.s32 %v9884, %v9888
      %v9890 = vadd.s32 %v9889, 536870912
      %v9891 = vshrl.u32 %v9890, 30
      %v9892 = vshll.u32 %v9891, 30
      %v9893 = vsub.s32 %v9889, %v9892
      %vm9894 = vcmp.lt.s32.totalorder %v9893, 0
      %v9895 = vsub.s32 0, %v9893
      %v9896 = vsel %vm9894, %v9895, %v9893
      %v9897 = vclz %v9896
      %v9898 = vsub.s32 %v9897, 2
      %vm9899 = vcmp.gt.s32.totalorder 0, %v9898
      %v9900 = vsel %vm9899, 0, %v9898
      %v9901 = vsub.s32 32, %v9900
      %v9902 = vshll.u32 %v9893, %v9900
      %v9903 = vshrl.u32 %v9885, %v9901
      %v9904 = vor.u32 %v9902, %v9903
      %v9905 = vsub.s32 4294967266, %v9900
      %v9906 = vadd.s32 %v9905, 127
      %v9907 = vshll.u32 %v9906, 23
      %v9908 = vor.u32 4788187, %v9907
      %v9909 = vand.u32 2147483647, %v9908
      %v9911 = vcvt.s32.f32 %v9904
      %v9912 = vmul.f32 %v9911, %v9909
      %v9913 = vxor.u32 %v9912, 2147483648
      %v9914 = vsel %vm9831, %v9913, %v9912
      %v9915 = vsub.s32 4, %v9891
      %v9916 = vsel %vm9831, %v9915, %v9891
      %v9917 = vsel %vm9830, %v3574, %v9914
      %v9918 = vsel %vm9830, 0, %v9916
      %v9919 = vcosq.f32.pop %v9917
      %v9920 = vsinq.f32.pop %v9917
      %vm9921 = vweird.f32 %v3574
      %v9922 = vadd.s32 %v9918, 3
      %v9923 = vand.u32 %v9922, 3
      %vm9924 = vcmp.lt.s32.totalorder %v9923, 2
      %vm9925 = vcmp.eq.s32.totalorder %v9923, 0
      %v9926 = vxor.u32 %v9920, 2147483648
      %v9927 = vsel %vm9925, %v9919, %v9926
      %vm9928 = vcmp.eq.s32.totalorder %v9923, 2
      %v9929 = vxor.u32 %v9919, 2147483648
      %v9930 = vsel %vm9928, %v9929, %v9920
      %v9931 = vsel %vm9924, %v9927, %v9930
      %v9932 = vsel %vm9921, nan, %v9931
      %v9933 = vand.u32 2147483647, %v3580
      %vm9934 = vcmp.le.f32.partialorder %v9933, 0.7853982
      %vm9935 = vcmp.lt.s32.totalorder %v3580, 0
      %v9936 = vand.u32 %v3580, 2139095040
      %v9937 = vshrl.u32 %v9936, 23
      %v9938 = vsub.s32 %v9937, 127
      %v9939 = vand.u32 2147483647, %v3580
      %v9940 = vand.u32 %v9939, 8388607
      %v9941 = vor.u32 %v9940, 8388608
      %v9942 = vsub.s32 0, %v9941
      %v9943 = vadd.s32 %v9938, 1
      %vm9944 = vcmp.gt.s32.totalorder %v9943, 0
      %v9945 = vsel %vm9944, %v9943, 0
      %v9946 = vshrl.u32 %v9945, 5
      %v9947 = vand.u32 %v9945, 31
      %v9948 = vsub.s32 32, %v9947
      %v9949 = vshrl.u32 683565275, %v9948
      %v9950 = vshll.u32 683565275, %v9947
      %v9951 = vshrl.u32 2475754826, %v9948
      %v9952 = vor.u32 %v9950, %v9951
      %v9953 = vshll.u32 2475754826, %v9947
      %v9954 = vshrl.u32 2131351028, %v9948
      %v9955 = vor.u32 %v9953, %v9954
      %v9956 = vshll.u32 2131351028, %v9947
      %v9957 = vshrl.u32 2102212464, %v9948
      %v9958 = vor.u32 %v9956, %v9957
      %v9959 = vshll.u32 2102212464, %v9947
      %v9960 = vshrl.u32 920167782, %v9948
      %v9961 = vor.u32 %v9959, %v9960
      %v9962 = vshll.u32 920167782, %v9947
      %v9963 = vshrl.u32 1326507024, %v9948
      %v9964 = vor.u32 %v9962, %v9963
      %vm9965 = vcmp.lt.s32.totalorder %v9946, 1
      %vm9966 = vcmp.lt.s32.totalorder %v9946, 2
      %vm9967 = vcmp.lt.s32.totalorder %v9946, 3
      %vm9968 = vcmp.lt.s32.totalorder %v9946, 4
      %v9969 = vsel %vm9965, %v9949, %v9952
      %v9970 = vsel %vm9968, %v9958, 2102212464
      %v9971 = vsel %vm9967, %v9955, %v9970
      %v9972 = vsel %vm9966, %v9969, %v9971
      %v9973 = vsel %vm9965, %v9952, %v9955
      %v9974 = vsel %vm9968, %v9961, 920167782
      %v9975 = vsel %vm9967, %v9958, %v9974
      %v9976 = vsel %vm9966, %v9973, %v9975
      %v9977 = vsel %vm9965, %v9955, %v9958
      %v9978 = vsel %vm9968, %v9964, 1326507024
      %v9979 = vsel %vm9967, %v9961, %v9978
      %v9980 = vsel %vm9966, %v9977, %v9979
      %v9981 = vshll.u32 %v9941, 8
      %v9982 = vmul.u32.u64.compose %v9981, %v9980
      %v9983 = vextract.low.u32 %v9982
      %v9984 = vextract.high.u32 %v9982
      %v9985 = vmul.u32.u64.compose %v9981, %v9976
      %v9986 = vextract.low.u32 %v9985
      %v9987 = vextract.high.u32 %v9985
      %v9988 = vmul.u32 %v9981, %v9972
      %v9989 = vadd.s32 %v9984, %v9986
      %vm9990 = vc.u32 %v9984, %v9986
      %v9991 = vadd.s32 %v9987, 1
      %v9992 = vsel %vm9990, %v9991, %v9987
      %v9993 = vadd.s32 %v9988, %v9992
      %v9994 = vadd.s32 %v9993, 536870912
      %v9995 = vshrl.u32 %v9994, 30
      %v9996 = vshll.u32 %v9995, 30
      %v9997 = vsub.s32 %v9993, %v9996
      %vm9998 = vcmp.lt.s32.totalorder %v9997, 0
      %v9999 = vsub.s32 0, %v9997
      %v10000 = vsel %vm9998, %v9999, %v9997
      %v10001 = vclz %v10000
      %v10002 = vsub.s32 %v10001, 2
      %vm10003 = vcmp.gt.s32.totalorder 0, %v10002
      %v10004 = vsel %vm10003, 0, %v10002
      %v10005 = vsub.s32 32, %v10004
      %v10006 = vshll.u32 %v9997, %v10004
      %v10007 = vshrl.u32 %v9989, %v10005
      %v10008 = vor.u32 %v10006, %v10007
      %v10009 = vsub.s32 4294967266, %v10004
      %v10010 = vadd.s32 %v10009, 127
      %v10011 = vshll.u32 %v10010, 23
      %v10012 = vor.u32 4788187, %v10011
      %v10013 = vand.u32 2147483647, %v10012
      %v10015 = vcvt.s32.f32 %v10008
      %v10016 = vmul.f32 %v10015, %v10013
      %v10017 = vxor.u32 %v10016, 2147483648
      %v10018 = vsel %vm9935, %v10017, %v10016
      %v10019 = vsub.s32 4, %v9995
      %v10020 = vsel %vm9935, %v10019, %v9995
      %v10021 = vsel %vm9934, %v3580, %v10018
      %v10022 = vsel %vm9934, 0, %v10020
      %v10023 = vcosq.f32.pop %v10021
      %v10024 = vsinq.f32.pop %v10021
      %vm10025 = vweird.f32 %v3580
      %v10026 = vadd.s32 %v10022, 3
      %v10027 = vand.u32 %v10026, 3
      %vm10028 = vcmp.lt.s32.totalorder %v10027, 2
      %vm10029 = vcmp.eq.s32.totalorder %v10027, 0
      %v10030 = vxor.u32 %v10024, 2147483648
      %v10031 = vsel %vm10029, %v10023, %v10030
      %vm10032 = vcmp.eq.s32.totalorder %v10027, 2
      %v10033 = vxor.u32 %v10023, 2147483648
      %v10034 = vsel %vm10032, %v10033, %v10024
      %v10035 = vsel %vm10028, %v10031, %v10034
      %v10036 = vsel %vm10025, nan, %v10035
      %v10037 = vand.u32 2147483647, %v3586
      %vm10038 = vcmp.le.f32.partialorder %v10037, 0.7853982
      %vm10039 = vcmp.lt.s32.totalorder %v3586, 0
      %v10040 = vand.u32 %v3586, 2139095040
      %v10041 = vshrl.u32 %v10040, 23
      %v10042 = vsub.s32 %v10041, 127
      %v10043 = vand.u32 2147483647, %v3586
      %v10044 = vand.u32 %v10043, 8388607
      %v10045 = vor.u32 %v10044, 8388608
      %v10046 = vsub.s32 0, %v10045
      %v10047 = vadd.s32 %v10042, 1
      %vm10048 = vcmp.gt.s32.totalorder %v10047, 0
      %v10049 = vsel %vm10048, %v10047, 0
      %v10050 = vshrl.u32 %v10049, 5
      %v10051 = vand.u32 %v10049, 31
      %v10052 = vsub.s32 32, %v10051
      %v10053 = vshrl.u32 683565275, %v10052
      %v10054 = vshll.u32 683565275, %v10051
      %v10055 = vshrl.u32 2475754826, %v10052
      %v10056 = vor.u32 %v10054, %v10055
      %v10057 = vshll.u32 2475754826, %v10051
      %v10058 = vshrl.u32 2131351028, %v10052
      %v10059 = vor.u32 %v10057, %v10058
      %v10060 = vshll.u32 2131351028, %v10051
      %v10061 = vshrl.u32 2102212464, %v10052
      %v10062 = vor.u32 %v10060, %v10061
      %v10063 = vshll.u32 2102212464, %v10051
      %v10064 = vshrl.u32 920167782, %v10052
      %v10065 = vor.u32 %v10063, %v10064
      %v10066 = vshll.u32 920167782, %v10051
      %v10067 = vshrl.u32 1326507024, %v10052
      %v10068 = vor.u32 %v10066, %v10067
      %vm10069 = vcmp.lt.s32.totalorder %v10050, 1
      %vm10070 = vcmp.lt.s32.totalorder %v10050, 2
      %vm10071 = vcmp.lt.s32.totalorder %v10050, 3
      %vm10072 = vcmp.lt.s32.totalorder %v10050, 4
      %v10073 = vsel %vm10069, %v10053, %v10056
      %v10074 = vsel %vm10072, %v10062, 2102212464
      %v10075 = vsel %vm10071, %v10059, %v10074
      %v10076 = vsel %vm10070, %v10073, %v10075
      %v10077 = vsel %vm10069, %v10056, %v10059
      %v10078 = vsel %vm10072, %v10065, 920167782
      %v10079 = vsel %vm10071, %v10062, %v10078
      %v10080 = vsel %vm10070, %v10077, %v10079
      %v10081 = vsel %vm10069, %v10059, %v10062
      %v10082 = vsel %vm10072, %v10068, 1326507024
      %v10083 = vsel %vm10071, %v10065, %v10082
      %v10084 = vsel %vm10070, %v10081, %v10083
      %v10085 = vshll.u32 %v10045, 8
      %v10086 = vmul.u32.u64.compose %v10085, %v10084
      %v10087 = vextract.low.u32 %v10086
      %v10088 = vextract.high.u32 %v10086
      %v10089 = vmul.u32.u64.compose %v10085, %v10080
      %v10090 = vextract.low.u32 %v10089
      %v10091 = vextract.high.u32 %v10089
      %v10092 = vmul.u32 %v10085, %v10076
      %v10093 = vadd.s32 %v10088, %v10090
      %vm10094 = vc.u32 %v10088, %v10090
      %v10095 = vadd.s32 %v10091, 1
      %v10096 = vsel %vm10094, %v10095, %v10091
      %v10097 = vadd.s32 %v10092, %v10096
      %v10098 = vadd.s32 %v10097, 536870912
      %v10099 = vshrl.u32 %v10098, 30
      %v10100 = vshll.u32 %v10099, 30
      %v10101 = vsub.s32 %v10097, %v10100
      %vm10102 = vcmp.lt.s32.totalorder %v10101, 0
      %v10103 = vsub.s32 0, %v10101
      %v10104 = vsel %vm10102, %v10103, %v10101
      %v10105 = vclz %v10104
      %v10106 = vsub.s32 %v10105, 2
      %vm10107 = vcmp.gt.s32.totalorder 0, %v10106
      %v10108 = vsel %vm10107, 0, %v10106
      %v10109 = vsub.s32 32, %v10108
      %v10110 = vshll.u32 %v10101, %v10108
      %v10111 = vshrl.u32 %v10093, %v10109
      %v10112 = vor.u32 %v10110, %v10111
      %v10113 = vsub.s32 4294967266, %v10108
      %v10114 = vadd.s32 %v10113, 127
      %v10115 = vshll.u32 %v10114, 23
      %v10116 = vor.u32 4788187, %v10115
      %v10117 = vand.u32 2147483647, %v10116
      %v10119 = vcvt.s32.f32 %v10112
      %v10120 = vmul.f32 %v10119, %v10117
      %v10121 = vxor.u32 %v10120, 2147483648
      %v10122 = vsel %vm10039, %v10121, %v10120
      %v10123 = vsub.s32 4, %v10099
      %v10124 = vsel %vm10039, %v10123, %v10099
      %v10125 = vsel %vm10038, %v3586, %v10122
      %v10126 = vsel %vm10038, 0, %v10124
      %v10127 = vcosq.f32.pop %v10125
      %v10128 = vsinq.f32.pop %v10125
      %vm10129 = vweird.f32 %v3586
      %v10130 = vadd.s32 %v10126, 3
      %v10131 = vand.u32 %v10130, 3
      %vm10132 = vcmp.lt.s32.totalorder %v10131, 2
      %vm10133 = vcmp.eq.s32.totalorder %v10131, 0
      %v10134 = vxor.u32 %v10128, 2147483648
      %v10135 = vsel %vm10133, %v10127, %v10134
      %vm10136 = vcmp.eq.s32.totalorder %v10131, 2
      %v10137 = vxor.u32 %v10127, 2147483648
      %v10138 = vsel %vm10136, %v10137, %v10128
      %v10139 = vsel %vm10132, %v10135, %v10138
      %v10140 = vsel %vm10129, nan, %v10139
      %v10141 = vand.u32 2147483647, %v3214
      %v10142 = vand.u32 2147483647, %v3220
      %v10143 = vand.u32 2147483647, %v3226
      %v10144 = vand.u32 2147483647, %v3232
      %v10145 = vand.u32 2147483647, %v3238
      %v10146 = vand.u32 2147483647, %v3244
      %v10147 = vand.u32 2147483647, %v3250
      %v10148 = vand.u32 2147483647, %v3256
      %v10149 = vand.u32 2147483647, %v3262
      %v10150 = vand.u32 2147483647, %v3268
      %v10151 = vand.u32 2147483647, %v3274
      %v10152 = vand.u32 2147483647, %v3280
      %v10153 = vand.u32 2147483647, %v3286
      %v10154 = vand.u32 2147483647, %v3292
      %v10155 = vand.u32 2147483647, %v3298
      %v10156 = vand.u32 2147483647, %v3304
      %v10157 = vand.u32 2147483647, %v3310
      %v10158 = vand.u32 2147483647, %v3316
      %v10159 = vand.u32 2147483647, %v3322
      %v10160 = vand.u32 2147483647, %v3328
      %v10161 = vand.u32 2147483647, %v3334
      %v10162 = vand.u32 2147483647, %v3340
      %v10163 = vand.u32 2147483647, %v3346
      %v10164 = vand.u32 2147483647, %v3352
      %v10165 = vand.u32 2147483647, %v3358
      %v10166 = vand.u32 2147483647, %v3364
      %v10167 = vand.u32 2147483647, %v3370
      %v10168 = vand.u32 2147483647, %v3376
      %v10169 = vand.u32 2147483647, %v3382
      %v10170 = vand.u32 2147483647, %v3388
      %v10171 = vand.u32 2147483647, %v3394
      %v10172 = vand.u32 2147483647, %v3400
      %v10173 = vand.u32 2147483647, %v3406
      %v10174 = vand.u32 2147483647, %v3412
      %v10175 = vand.u32 2147483647, %v3418
      %v10176 = vand.u32 2147483647, %v3424
      %v10177 = vand.u32 2147483647, %v3430
      %v10178 = vand.u32 2147483647, %v3436
      %v10179 = vand.u32 2147483647, %v3442
      %v10180 = vand.u32 2147483647, %v3448
      %v10181 = vand.u32 2147483647, %v3454
      %v10182 = vand.u32 2147483647, %v3460
      %v10183 = vand.u32 2147483647, %v3466
      %v10184 = vand.u32 2147483647, %v3472
      %v10185 = vand.u32 2147483647, %v3478
      %v10186 = vand.u32 2147483647, %v3484
      %v10187 = vand.u32 2147483647, %v3490
      %v10188 = vand.u32 2147483647, %v3496
      %v10189 = vand.u32 2147483647, %v3502
      %v10190 = vand.u32 2147483647, %v3508
      %v10191 = vand.u32 2147483647, %v3514
      %v10192 = vand.u32 2147483647, %v3520
      %v10193 = vand.u32 2147483647, %v3526
      %v10194 = vand.u32 2147483647, %v3532
      %v10195 = vand.u32 2147483647, %v3538
      %v10196 = vand.u32 2147483647, %v3544
      %v10197 = vand.u32 2147483647, %v3550
      %v10198 = vand.u32 2147483647, %v3556
      %v10199 = vand.u32 2147483647, %v3562
      %v10200 = vand.u32 2147483647, %v3568
      %v10201 = vand.u32 2147483647, %v3574
      %v10202 = vand.u32 2147483647, %v3580
      %v10203 = vand.u32 2147483647, %v3586
      %v10204 = vrsqrt.pop %v10141
      %v10205 = vmul.f32 %v10141, %v10204
      %vm10206 = vcmp.eq.f32.partialorder %v10141, inf
      %v10207 = vsel %vm10206, %v10141, %v10205
      %vm10208 = vcmp.eq.f32.partialorder %v10141, 0.0
      %v10209 = vand.u32 %v10141, 2147483648
      %v10210 = vsel %vm10208, %v10209, %v10207
      %v10211 = vrsqrt.pop %v10142
      %v10212 = vmul.f32 %v10142, %v10211
      %vm10213 = vcmp.eq.f32.partialorder %v10142, inf
      %v10214 = vsel %vm10213, %v10142, %v10212
      %vm10215 = vcmp.eq.f32.partialorder %v10142, 0.0
      %v10216 = vand.u32 %v10142, 2147483648
      %v10217 = vsel %vm10215, %v10216, %v10214
      %v10218 = vrsqrt.pop %v10143
      %v10219 = vmul.f32 %v10143, %v10218
      %vm10220 = vcmp.eq.f32.partialorder %v10143, inf
      %v10221 = vsel %vm10220, %v10143, %v10219
      %vm10222 = vcmp.eq.f32.partialorder %v10143, 0.0
      %v10223 = vand.u32 %v10143, 2147483648
      %v10224 = vsel %vm10222, %v10223, %v10221
      %v10225 = vrsqrt.pop %v10144
      %v10226 = vmul.f32 %v10144, %v10225
      %vm10227 = vcmp.eq.f32.partialorder %v10144, inf
      %v10228 = vsel %vm10227, %v10144, %v10226
      %vm10229 = vcmp.eq.f32.partialorder %v10144, 0.0
      %v10230 = vand.u32 %v10144, 2147483648
      %v10231 = vsel %vm10229, %v10230, %v10228
      %v10232 = vrsqrt.pop %v10145
      %v10233 = vmul.f32 %v10145, %v10232
      %vm10234 = vcmp.eq.f32.partialorder %v10145, inf
      %v10235 = vsel %vm10234, %v10145, %v10233
      %vm10236 = vcmp.eq.f32.partialorder %v10145, 0.0
      %v10237 = vand.u32 %v10145, 2147483648
      %v10238 = vsel %vm10236, %v10237, %v10235
      %v10239 = vrsqrt.pop %v10146
      %v10240 = vmul.f32 %v10146, %v10239
      %vm10241 = vcmp.eq.f32.partialorder %v10146, inf
      %v10242 = vsel %vm10241, %v10146, %v10240
      %vm10243 = vcmp.eq.f32.partialorder %v10146, 0.0
      %v10244 = vand.u32 %v10146, 2147483648
      %v10245 = vsel %vm10243, %v10244, %v10242
      %v10246 = vrsqrt.pop %v10147
      %v10247 = vmul.f32 %v10147, %v10246
      %vm10248 = vcmp.eq.f32.partialorder %v10147, inf
      %v10249 = vsel %vm10248, %v10147, %v10247
      %vm10250 = vcmp.eq.f32.partialorder %v10147, 0.0
      %v10251 = vand.u32 %v10147, 2147483648
      %v10252 = vsel %vm10250, %v10251, %v10249
      %v10253 = vrsqrt.pop %v10148
      %v10254 = vmul.f32 %v10148, %v10253
      %vm10255 = vcmp.eq.f32.partialorder %v10148, inf
      %v10256 = vsel %vm10255, %v10148, %v10254
      %vm10257 = vcmp.eq.f32.partialorder %v10148, 0.0
      %v10258 = vand.u32 %v10148, 2147483648
      %v10259 = vsel %vm10257, %v10258, %v10256
      %v10260 = vrsqrt.pop %v10149
      %v10261 = vmul.f32 %v10149, %v10260
      %vm10262 = vcmp.eq.f32.partialorder %v10149, inf
      %v10263 = vsel %vm10262, %v10149, %v10261
      %vm10264 = vcmp.eq.f32.partialorder %v10149, 0.0
      %v10265 = vand.u32 %v10149, 2147483648
      %v10266 = vsel %vm10264, %v10265, %v10263
      %v10267 = vrsqrt.pop %v10150
      %v10268 = vmul.f32 %v10150, %v10267
      %vm10269 = vcmp.eq.f32.partialorder %v10150, inf
      %v10270 = vsel %vm10269, %v10150, %v10268
      %vm10271 = vcmp.eq.f32.partialorder %v10150, 0.0
      %v10272 = vand.u32 %v10150, 2147483648
      %v10273 = vsel %vm10271, %v10272, %v10270
      %v10274 = vrsqrt.pop %v10151
      %v10275 = vmul.f32 %v10151, %v10274
      %vm10276 = vcmp.eq.f32.partialorder %v10151, inf
      %v10277 = vsel %vm10276, %v10151, %v10275
      %vm10278 = vcmp.eq.f32.partialorder %v10151, 0.0
      %v10279 = vand.u32 %v10151, 2147483648
      %v10280 = vsel %vm10278, %v10279, %v10277
      %v10281 = vrsqrt.pop %v10152
      %v10282 = vmul.f32 %v10152, %v10281
      %vm10283 = vcmp.eq.f32.partialorder %v10152, inf
      %v10284 = vsel %vm10283, %v10152, %v10282
      %vm10285 = vcmp.eq.f32.partialorder %v10152, 0.0
      %v10286 = vand.u32 %v10152, 2147483648
      %v10287 = vsel %vm10285, %v10286, %v10284
      %v10288 = vrsqrt.pop %v10153
      %v10289 = vmul.f32 %v10153, %v10288
      %vm10290 = vcmp.eq.f32.partialorder %v10153, inf
      %v10291 = vsel %vm10290, %v10153, %v10289
      %vm10292 = vcmp.eq.f32.partialorder %v10153, 0.0
      %v10293 = vand.u32 %v10153, 2147483648
      %v10294 = vsel %vm10292, %v10293, %v10291
      %v10295 = vrsqrt.pop %v10154
      %v10296 = vmul.f32 %v10154, %v10295
      %vm10297 = vcmp.eq.f32.partialorder %v10154, inf
      %v10298 = vsel %vm10297, %v10154, %v10296
      %vm10299 = vcmp.eq.f32.partialorder %v10154, 0.0
      %v10300 = vand.u32 %v10154, 2147483648
      %v10301 = vsel %vm10299, %v10300, %v10298
      %v10302 = vrsqrt.pop %v10155
      %v10303 = vmul.f32 %v10155, %v10302
      %vm10304 = vcmp.eq.f32.partialorder %v10155, inf
      %v10305 = vsel %vm10304, %v10155, %v10303
      %vm10306 = vcmp.eq.f32.partialorder %v10155, 0.0
      %v10307 = vand.u32 %v10155, 2147483648
      %v10308 = vsel %vm10306, %v10307, %v10305
      %v10309 = vrsqrt.pop %v10156
      %v10310 = vmul.f32 %v10156, %v10309
      %vm10311 = vcmp.eq.f32.partialorder %v10156, inf
      %v10312 = vsel %vm10311, %v10156, %v10310
      %vm10313 = vcmp.eq.f32.partialorder %v10156, 0.0
      %v10314 = vand.u32 %v10156, 2147483648
      %v10315 = vsel %vm10313, %v10314, %v10312
      %v10316 = vrsqrt.pop %v10157
      %v10317 = vmul.f32 %v10157, %v10316
      %vm10318 = vcmp.eq.f32.partialorder %v10157, inf
      %v10319 = vsel %vm10318, %v10157, %v10317
      %vm10320 = vcmp.eq.f32.partialorder %v10157, 0.0
      %v10321 = vand.u32 %v10157, 2147483648
      %v10322 = vsel %vm10320, %v10321, %v10319
      %v10323 = vrsqrt.pop %v10158
      %v10324 = vmul.f32 %v10158, %v10323
      %vm10325 = vcmp.eq.f32.partialorder %v10158, inf
      %v10326 = vsel %vm10325, %v10158, %v10324
      %vm10327 = vcmp.eq.f32.partialorder %v10158, 0.0
      %v10328 = vand.u32 %v10158, 2147483648
      %v10329 = vsel %vm10327, %v10328, %v10326
      %v10330 = vrsqrt.pop %v10159
      %v10331 = vmul.f32 %v10159, %v10330
      %vm10332 = vcmp.eq.f32.partialorder %v10159, inf
      %v10333 = vsel %vm10332, %v10159, %v10331
      %vm10334 = vcmp.eq.f32.partialorder %v10159, 0.0
      %v10335 = vand.u32 %v10159, 2147483648
      %v10336 = vsel %vm10334, %v10335, %v10333
      %v10337 = vrsqrt.pop %v10160
      %v10338 = vmul.f32 %v10160, %v10337
      %vm10339 = vcmp.eq.f32.partialorder %v10160, inf
      %v10340 = vsel %vm10339, %v10160, %v10338
      %vm10341 = vcmp.eq.f32.partialorder %v10160, 0.0
      %v10342 = vand.u32 %v10160, 2147483648
      %v10343 = vsel %vm10341, %v10342, %v10340
      %v10344 = vrsqrt.pop %v10161
      %v10345 = vmul.f32 %v10161, %v10344
      %vm10346 = vcmp.eq.f32.partialorder %v10161, inf
      %v10347 = vsel %vm10346, %v10161, %v10345
      %vm10348 = vcmp.eq.f32.partialorder %v10161, 0.0
      %v10349 = vand.u32 %v10161, 2147483648
      %v10350 = vsel %vm10348, %v10349, %v10347
      %v10351 = vrsqrt.pop %v10162
      %v10352 = vmul.f32 %v10162, %v10351
      %vm10353 = vcmp.eq.f32.partialorder %v10162, inf
      %v10354 = vsel %vm10353, %v10162, %v10352
      %vm10355 = vcmp.eq.f32.partialorder %v10162, 0.0
      %v10356 = vand.u32 %v10162, 2147483648
      %v10357 = vsel %vm10355, %v10356, %v10354
      %v10358 = vrsqrt.pop %v10163
      %v10359 = vmul.f32 %v10163, %v10358
      %vm10360 = vcmp.eq.f32.partialorder %v10163, inf
      %v10361 = vsel %vm10360, %v10163, %v10359
      %vm10362 = vcmp.eq.f32.partialorder %v10163, 0.0
      %v10363 = vand.u32 %v10163, 2147483648
      %v10364 = vsel %vm10362, %v10363, %v10361
      %v10365 = vrsqrt.pop %v10164
      %v10366 = vmul.f32 %v10164, %v10365
      %vm10367 = vcmp.eq.f32.partialorder %v10164, inf
      %v10368 = vsel %vm10367, %v10164, %v10366
      %vm10369 = vcmp.eq.f32.partialorder %v10164, 0.0
      %v10370 = vand.u32 %v10164, 2147483648
      %v10371 = vsel %vm10369, %v10370, %v10368
      %v10372 = vrsqrt.pop %v10165
      %v10373 = vmul.f32 %v10165, %v10372
      %vm10374 = vcmp.eq.f32.partialorder %v10165, inf
      %v10375 = vsel %vm10374, %v10165, %v10373
      %vm10376 = vcmp.eq.f32.partialorder %v10165, 0.0
      %v10377 = vand.u32 %v10165, 2147483648
      %v10378 = vsel %vm10376, %v10377, %v10375
      %v10379 = vrsqrt.pop %v10166
      %v10380 = vmul.f32 %v10166, %v10379
      %vm10381 = vcmp.eq.f32.partialorder %v10166, inf
      %v10382 = vsel %vm10381, %v10166, %v10380
      %vm10383 = vcmp.eq.f32.partialorder %v10166, 0.0
      %v10384 = vand.u32 %v10166, 2147483648
      %v10385 = vsel %vm10383, %v10384, %v10382
      %v10386 = vrsqrt.pop %v10167
      %v10387 = vmul.f32 %v10167, %v10386
      %vm10388 = vcmp.eq.f32.partialorder %v10167, inf
      %v10389 = vsel %vm10388, %v10167, %v10387
      %vm10390 = vcmp.eq.f32.partialorder %v10167, 0.0
      %v10391 = vand.u32 %v10167, 2147483648
      %v10392 = vsel %vm10390, %v10391, %v10389
      %v10393 = vrsqrt.pop %v10168
      %v10394 = vmul.f32 %v10168, %v10393
      %vm10395 = vcmp.eq.f32.partialorder %v10168, inf
      %v10396 = vsel %vm10395, %v10168, %v10394
      %vm10397 = vcmp.eq.f32.partialorder %v10168, 0.0
      %v10398 = vand.u32 %v10168, 2147483648
      %v10399 = vsel %vm10397, %v10398, %v10396
      %v10400 = vrsqrt.pop %v10169
      %v10401 = vmul.f32 %v10169, %v10400
      %vm10402 = vcmp.eq.f32.partialorder %v10169, inf
      %v10403 = vsel %vm10402, %v10169, %v10401
      %vm10404 = vcmp.eq.f32.partialorder %v10169, 0.0
      %v10405 = vand.u32 %v10169, 2147483648
      %v10406 = vsel %vm10404, %v10405, %v10403
      %v10407 = vrsqrt.pop %v10170
      %v10408 = vmul.f32 %v10170, %v10407
      %vm10409 = vcmp.eq.f32.partialorder %v10170, inf
      %v10410 = vsel %vm10409, %v10170, %v10408
      %vm10411 = vcmp.eq.f32.partialorder %v10170, 0.0
      %v10412 = vand.u32 %v10170, 2147483648
      %v10413 = vsel %vm10411, %v10412, %v10410
      %v10414 = vrsqrt.pop %v10171
      %v10415 = vmul.f32 %v10171, %v10414
      %vm10416 = vcmp.eq.f32.partialorder %v10171, inf
      %v10417 = vsel %vm10416, %v10171, %v10415
      %vm10418 = vcmp.eq.f32.partialorder %v10171, 0.0
      %v10419 = vand.u32 %v10171, 2147483648
      %v10420 = vsel %vm10418, %v10419, %v10417
      %v10421 = vrsqrt.pop %v10172
      %v10422 = vmul.f32 %v10172, %v10421
      %vm10423 = vcmp.eq.f32.partialorder %v10172, inf
      %v10424 = vsel %vm10423, %v10172, %v10422
      %vm10425 = vcmp.eq.f32.partialorder %v10172, 0.0
      %v10426 = vand.u32 %v10172, 2147483648
      %v10427 = vsel %vm10425, %v10426, %v10424
      %v10428 = vrsqrt.pop %v10173
      %v10429 = vmul.f32 %v10173, %v10428
      %vm10430 = vcmp.eq.f32.partialorder %v10173, inf
      %v10431 = vsel %vm10430, %v10173, %v10429
      %vm10432 = vcmp.eq.f32.partialorder %v10173, 0.0
      %v10433 = vand.u32 %v10173, 2147483648
      %v10434 = vsel %vm10432, %v10433, %v10431
      %v10435 = vrsqrt.pop %v10174
      %v10436 = vmul.f32 %v10174, %v10435
      %vm10437 = vcmp.eq.f32.partialorder %v10174, inf
      %v10438 = vsel %vm10437, %v10174, %v10436
      %vm10439 = vcmp.eq.f32.partialorder %v10174, 0.0
      %v10440 = vand.u32 %v10174, 2147483648
      %v10441 = vsel %vm10439, %v10440, %v10438
      %v10442 = vrsqrt.pop %v10175
      %v10443 = vmul.f32 %v10175, %v10442
      %vm10444 = vcmp.eq.f32.partialorder %v10175, inf
      %v10445 = vsel %vm10444, %v10175, %v10443
      %vm10446 = vcmp.eq.f32.partialorder %v10175, 0.0
      %v10447 = vand.u32 %v10175, 2147483648
      %v10448 = vsel %vm10446, %v10447, %v10445
      %v10449 = vrsqrt.pop %v10176
      %v10450 = vmul.f32 %v10176, %v10449
      %vm10451 = vcmp.eq.f32.partialorder %v10176, inf
      %v10452 = vsel %vm10451, %v10176, %v10450
      %vm10453 = vcmp.eq.f32.partialorder %v10176, 0.0
      %v10454 = vand.u32 %v10176, 2147483648
      %v10455 = vsel %vm10453, %v10454, %v10452
      %v10456 = vrsqrt.pop %v10177
      %v10457 = vmul.f32 %v10177, %v10456
      %vm10458 = vcmp.eq.f32.partialorder %v10177, inf
      %v10459 = vsel %vm10458, %v10177, %v10457
      %vm10460 = vcmp.eq.f32.partialorder %v10177, 0.0
      %v10461 = vand.u32 %v10177, 2147483648
      %v10462 = vsel %vm10460, %v10461, %v10459
      %v10463 = vrsqrt.pop %v10178
      %v10464 = vmul.f32 %v10178, %v10463
      %vm10465 = vcmp.eq.f32.partialorder %v10178, inf
      %v10466 = vsel %vm10465, %v10178, %v10464
      %vm10467 = vcmp.eq.f32.partialorder %v10178, 0.0
      %v10468 = vand.u32 %v10178, 2147483648
      %v10469 = vsel %vm10467, %v10468, %v10466
      %v10470 = vrsqrt.pop %v10179
      %v10471 = vmul.f32 %v10179, %v10470
      %vm10472 = vcmp.eq.f32.partialorder %v10179, inf
      %v10473 = vsel %vm10472, %v10179, %v10471
      %vm10474 = vcmp.eq.f32.partialorder %v10179, 0.0
      %v10475 = vand.u32 %v10179, 2147483648
      %v10476 = vsel %vm10474, %v10475, %v10473
      %v10477 = vrsqrt.pop %v10180
      %v10478 = vmul.f32 %v10180, %v10477
      %vm10479 = vcmp.eq.f32.partialorder %v10180, inf
      %v10480 = vsel %vm10479, %v10180, %v10478
      %vm10481 = vcmp.eq.f32.partialorder %v10180, 0.0
      %v10482 = vand.u32 %v10180, 2147483648
      %v10483 = vsel %vm10481, %v10482, %v10480
      %v10484 = vrsqrt.pop %v10181
      %v10485 = vmul.f32 %v10181, %v10484
      %vm10486 = vcmp.eq.f32.partialorder %v10181, inf
      %v10487 = vsel %vm10486, %v10181, %v10485
      %vm10488 = vcmp.eq.f32.partialorder %v10181, 0.0
      %v10489 = vand.u32 %v10181, 2147483648
      %v10490 = vsel %vm10488, %v10489, %v10487
      %v10491 = vrsqrt.pop %v10182
      %v10492 = vmul.f32 %v10182, %v10491
      %vm10493 = vcmp.eq.f32.partialorder %v10182, inf
      %v10494 = vsel %vm10493, %v10182, %v10492
      %vm10495 = vcmp.eq.f32.partialorder %v10182, 0.0
      %v10496 = vand.u32 %v10182, 2147483648
      %v10497 = vsel %vm10495, %v10496, %v10494
      %v10498 = vrsqrt.pop %v10183
      %v10499 = vmul.f32 %v10183, %v10498
      %vm10500 = vcmp.eq.f32.partialorder %v10183, inf
      %v10501 = vsel %vm10500, %v10183, %v10499
      %vm10502 = vcmp.eq.f32.partialorder %v10183, 0.0
      %v10503 = vand.u32 %v10183, 2147483648
      %v10504 = vsel %vm10502, %v10503, %v10501
      %v10505 = vrsqrt.pop %v10184
      %v10506 = vmul.f32 %v10184, %v10505
      %vm10507 = vcmp.eq.f32.partialorder %v10184, inf
      %v10508 = vsel %vm10507, %v10184, %v10506
      %vm10509 = vcmp.eq.f32.partialorder %v10184, 0.0
      %v10510 = vand.u32 %v10184, 2147483648
      %v10511 = vsel %vm10509, %v10510, %v10508
      %v10512 = vrsqrt.pop %v10185
      %v10513 = vmul.f32 %v10185, %v10512
      %vm10514 = vcmp.eq.f32.partialorder %v10185, inf
      %v10515 = vsel %vm10514, %v10185, %v10513
      %vm10516 = vcmp.eq.f32.partialorder %v10185, 0.0
      %v10517 = vand.u32 %v10185, 2147483648
      %v10518 = vsel %vm10516, %v10517, %v10515
      %v10519 = vrsqrt.pop %v10186
      %v10520 = vmul.f32 %v10186, %v10519
      %vm10521 = vcmp.eq.f32.partialorder %v10186, inf
      %v10522 = vsel %vm10521, %v10186, %v10520
      %vm10523 = vcmp.eq.f32.partialorder %v10186, 0.0
      %v10524 = vand.u32 %v10186, 2147483648
      %v10525 = vsel %vm10523, %v10524, %v10522
      %v10526 = vrsqrt.pop %v10187
      %v10527 = vmul.f32 %v10187, %v10526
      %vm10528 = vcmp.eq.f32.partialorder %v10187, inf
      %v10529 = vsel %vm10528, %v10187, %v10527
      %vm10530 = vcmp.eq.f32.partialorder %v10187, 0.0
      %v10531 = vand.u32 %v10187, 2147483648
      %v10532 = vsel %vm10530, %v10531, %v10529
      %v10533 = vrsqrt.pop %v10188
      %v10534 = vmul.f32 %v10188, %v10533
      %vm10535 = vcmp.eq.f32.partialorder %v10188, inf
      %v10536 = vsel %vm10535, %v10188, %v10534
      %vm10537 = vcmp.eq.f32.partialorder %v10188, 0.0
      %v10538 = vand.u32 %v10188, 2147483648
      %v10539 = vsel %vm10537, %v10538, %v10536
      %v10540 = vrsqrt.pop %v10189
      %v10541 = vmul.f32 %v10189, %v10540
      %vm10542 = vcmp.eq.f32.partialorder %v10189, inf
      %v10543 = vsel %vm10542, %v10189, %v10541
      %vm10544 = vcmp.eq.f32.partialorder %v10189, 0.0
      %v10545 = vand.u32 %v10189, 2147483648
      %v10546 = vsel %vm10544, %v10545, %v10543
      %v10547 = vrsqrt.pop %v10190
      %v10548 = vmul.f32 %v10190, %v10547
      %vm10549 = vcmp.eq.f32.partialorder %v10190, inf
      %v10550 = vsel %vm10549, %v10190, %v10548
      %vm10551 = vcmp.eq.f32.partialorder %v10190, 0.0
      %v10552 = vand.u32 %v10190, 2147483648
      %v10553 = vsel %vm10551, %v10552, %v10550
      %v10554 = vrsqrt.pop %v10191
      %v10555 = vmul.f32 %v10191, %v10554
      %vm10556 = vcmp.eq.f32.partialorder %v10191, inf
      %v10557 = vsel %vm10556, %v10191, %v10555
      %vm10558 = vcmp.eq.f32.partialorder %v10191, 0.0
      %v10559 = vand.u32 %v10191, 2147483648
      %v10560 = vsel %vm10558, %v10559, %v10557
      %v10561 = vrsqrt.pop %v10192
      %v10562 = vmul.f32 %v10192, %v10561
      %vm10563 = vcmp.eq.f32.partialorder %v10192, inf
      %v10564 = vsel %vm10563, %v10192, %v10562
      %vm10565 = vcmp.eq.f32.partialorder %v10192, 0.0
      %v10566 = vand.u32 %v10192, 2147483648
      %v10567 = vsel %vm10565, %v10566, %v10564
      %v10568 = vrsqrt.pop %v10193
      %v10569 = vmul.f32 %v10193, %v10568
      %vm10570 = vcmp.eq.f32.partialorder %v10193, inf
      %v10571 = vsel %vm10570, %v10193, %v10569
      %vm10572 = vcmp.eq.f32.partialorder %v10193, 0.0
      %v10573 = vand.u32 %v10193, 2147483648
      %v10574 = vsel %vm10572, %v10573, %v10571
      %v10575 = vrsqrt.pop %v10194
      %v10576 = vmul.f32 %v10194, %v10575
      %vm10577 = vcmp.eq.f32.partialorder %v10194, inf
      %v10578 = vsel %vm10577, %v10194, %v10576
      %vm10579 = vcmp.eq.f32.partialorder %v10194, 0.0
      %v10580 = vand.u32 %v10194, 2147483648
      %v10581 = vsel %vm10579, %v10580, %v10578
      %v10582 = vrsqrt.pop %v10195
      %v10583 = vmul.f32 %v10195, %v10582
      %vm10584 = vcmp.eq.f32.partialorder %v10195, inf
      %v10585 = vsel %vm10584, %v10195, %v10583
      %vm10586 = vcmp.eq.f32.partialorder %v10195, 0.0
      %v10587 = vand.u32 %v10195, 2147483648
      %v10588 = vsel %vm10586, %v10587, %v10585
      %v10589 = vrsqrt.pop %v10196
      %v10590 = vmul.f32 %v10196, %v10589
      %vm10591 = vcmp.eq.f32.partialorder %v10196, inf
      %v10592 = vsel %vm10591, %v10196, %v10590
      %vm10593 = vcmp.eq.f32.partialorder %v10196, 0.0
      %v10594 = vand.u32 %v10196, 2147483648
      %v10595 = vsel %vm10593, %v10594, %v10592
      %v10596 = vrsqrt.pop %v10197
      %v10597 = vmul.f32 %v10197, %v10596
      %vm10598 = vcmp.eq.f32.partialorder %v10197, inf
      %v10599 = vsel %vm10598, %v10197, %v10597
      %vm10600 = vcmp.eq.f32.partialorder %v10197, 0.0
      %v10601 = vand.u32 %v10197, 2147483648
      %v10602 = vsel %vm10600, %v10601, %v10599
      %v10603 = vrsqrt.pop %v10198
      %v10604 = vmul.f32 %v10198, %v10603
      %vm10605 = vcmp.eq.f32.partialorder %v10198, inf
      %v10606 = vsel %vm10605, %v10198, %v10604
      %vm10607 = vcmp.eq.f32.partialorder %v10198, 0.0
      %v10608 = vand.u32 %v10198, 2147483648
      %v10609 = vsel %vm10607, %v10608, %v10606
      %v10610 = vrsqrt.pop %v10199
      %v10611 = vmul.f32 %v10199, %v10610
      %vm10612 = vcmp.eq.f32.partialorder %v10199, inf
      %v10613 = vsel %vm10612, %v10199, %v10611
      %vm10614 = vcmp.eq.f32.partialorder %v10199, 0.0
      %v10615 = vand.u32 %v10199, 2147483648
      %v10616 = vsel %vm10614, %v10615, %v10613
      %v10617 = vrsqrt.pop %v10200
      %v10618 = vmul.f32 %v10200, %v10617
      %vm10619 = vcmp.eq.f32.partialorder %v10200, inf
      %v10620 = vsel %vm10619, %v10200, %v10618
      %vm10621 = vcmp.eq.f32.partialorder %v10200, 0.0
      %v10622 = vand.u32 %v10200, 2147483648
      %v10623 = vsel %vm10621, %v10622, %v10620
      %v10624 = vrsqrt.pop %v10201
      %v10625 = vmul.f32 %v10201, %v10624
      %vm10626 = vcmp.eq.f32.partialorder %v10201, inf
      %v10627 = vsel %vm10626, %v10201, %v10625
      %vm10628 = vcmp.eq.f32.partialorder %v10201, 0.0
      %v10629 = vand.u32 %v10201, 2147483648
      %v10630 = vsel %vm10628, %v10629, %v10627
      %v10631 = vrsqrt.pop %v10202
      %v10632 = vmul.f32 %v10202, %v10631
      %vm10633 = vcmp.eq.f32.partialorder %v10202, inf
      %v10634 = vsel %vm10633, %v10202, %v10632
      %vm10635 = vcmp.eq.f32.partialorder %v10202, 0.0
      %v10636 = vand.u32 %v10202, 2147483648
      %v10637 = vsel %vm10635, %v10636, %v10634
      %v10638 = vrsqrt.pop %v10203
      %v10639 = vmul.f32 %v10203, %v10638
      %vm10640 = vcmp.eq.f32.partialorder %v10203, inf
      %v10641 = vsel %vm10640, %v10203, %v10639
      %vm10642 = vcmp.eq.f32.partialorder %v10203, 0.0
      %v10643 = vand.u32 %v10203, 2147483648
      %v10644 = vsel %vm10642, %v10643, %v10641
      %v10645 = vmul.f32 %v3692, %v10210
      %v10646 = vmul.f32 %v3796, %v10217
      %v10647 = vmul.f32 %v3900, %v10224
      %v10648 = vmul.f32 %v4004, %v10231
      %v10649 = vmul.f32 %v4108, %v10238
      %v10650 = vmul.f32 %v4212, %v10245
      %v10651 = vmul.f32 %v4316, %v10252
      %v10652 = vmul.f32 %v4420, %v10259
      %v10653 = vmul.f32 %v4524, %v10266
      %v10654 = vmul.f32 %v4628, %v10273
      %v10655 = vmul.f32 %v4732, %v10280
      %v10656 = vmul.f32 %v4836, %v10287
      %v10657 = vmul.f32 %v4940, %v10294
      %v10658 = vmul.f32 %v5044, %v10301
      %v10659 = vmul.f32 %v5148, %v10308
      %v10660 = vmul.f32 %v5252, %v10315
      %v10661 = vmul.f32 %v5356, %v10322
      %v10662 = vmul.f32 %v5460, %v10329
      %v10663 = vmul.f32 %v5564, %v10336
      %v10664 = vmul.f32 %v5668, %v10343
      %v10665 = vmul.f32 %v5772, %v10350
      %v10666 = vmul.f32 %v5876, %v10357
      %v10667 = vmul.f32 %v5980, %v10364
      %v10668 = vmul.f32 %v6084, %v10371
      %v10669 = vmul.f32 %v6188, %v10378
      %v10670 = vmul.f32 %v6292, %v10385
      %v10671 = vmul.f32 %v6396, %v10392
      %v10672 = vmul.f32 %v6500, %v10399
      %v10673 = vmul.f32 %v6604, %v10406
      %v10674 = vmul.f32 %v6708, %v10413
      %v10675 = vmul.f32 %v6812, %v10420
      %v10676 = vmul.f32 %v6916, %v10427
      %v10677 = vmul.f32 %v7020, %v10434
      %v10678 = vmul.f32 %v7124, %v10441
      %v10679 = vmul.f32 %v7228, %v10448
      %v10680 = vmul.f32 %v7332, %v10455
      %v10681 = vmul.f32 %v7436, %v10462
      %v10682 = vmul.f32 %v7540, %v10469
      %v10683 = vmul.f32 %v7644, %v10476
      %v10684 = vmul.f32 %v7748, %v10483
      %v10685 = vmul.f32 %v7852, %v10490
      %v10686 = vmul.f32 %v7956, %v10497
      %v10687 = vmul.f32 %v8060, %v10504
      %v10688 = vmul.f32 %v8164, %v10511
      %v10689 = vmul.f32 %v8268, %v10518
      %v10690 = vmul.f32 %v8372, %v10525
      %v10691 = vmul.f32 %v8476, %v10532
      %v10692 = vmul.f32 %v8580, %v10539
      %v10693 = vmul.f32 %v8684, %v10546
      %v10694 = vmul.f32 %v8788, %v10553
      %v10695 = vmul.f32 %v8892, %v10560
      %v10696 = vmul.f32 %v8996, %v10567
      %v10697 = vmul.f32 %v9100, %v10574
      %v10698 = vmul.f32 %v9204, %v10581
      %v10699 = vmul.f32 %v9308, %v10588
      %v10700 = vmul.f32 %v9412, %v10595
      %v10701 = vmul.f32 %v9516, %v10602
      %v10702 = vmul.f32 %v9620, %v10609
      %v10703 = vmul.f32 %v9724, %v10616
      %v10704 = vmul.f32 %v9828, %v10623
      %v10705 = vmul.f32 %v9932, %v10630
      %v10706 = vmul.f32 %v10036, %v10637
      %v10707 = vmul.f32 %v10140, %v10644
      %vm10708 = vcmask 523264
      %10709 = vst.msk [vmem:[%s172] sm:$0xff] %vm10708, %v10645
      %10710 = vst.msk [vmem:[%s172 + $0x8] sm:$0xff] %vm10708, %v10646
      %10711 = vst.msk [vmem:[%s172 + $0x10] sm:$0xff] %vm10708, %v10647
      %10712 = vst.msk [vmem:[%s172 + $0x18] sm:$0xff] %vm10708, %v10648
      %10713 = vst.msk [vmem:[%s172 + $0x20] sm:$0xff] %vm10708, %v10649
      %10714 = vst.msk [vmem:[%s172 + $0x28] sm:$0xff] %vm10708, %v10650
      %10715 = vst.msk [vmem:[%s172 + $0x30] sm:$0xff] %vm10708, %v10651
      %10716 = vst.msk [vmem:[%s172 + $0x38] sm:$0xff] %vm10708, %v10652
      %10717 = vst.msk [vmem:[%s172 + $0x40] sm:$0xff] %vm10708, %v10653
      %10718 = vst.msk [vmem:[%s172 + $0x48] sm:$0xff] %vm10708, %v10654
      %10719 = vst.msk [vmem:[%s172 + $0x50] sm:$0xff] %vm10708, %v10655
      %10720 = vst.msk [vmem:[%s172 + $0x58] sm:$0xff] %vm10708, %v10656
      %10721 = vst.msk [vmem:[%s172 + $0x60] sm:$0xff] %vm10708, %v10657
      %10722 = vst.msk [vmem:[%s172 + $0x68] sm:$0xff] %vm10708, %v10658
      %10723 = vst.msk [vmem:[%s172 + $0x70] sm:$0xff] %vm10708, %v10659
      %10724 = vst.msk [vmem:[%s172 + $0x78] sm:$0xff] %vm10708, %v10660
      %10725 = vst.msk [vmem:[%s172 + $0x80] sm:$0xff] %vm10708, %v10661
      %10726 = vst.msk [vmem:[%s172 + $0x88] sm:$0xff] %vm10708, %v10662
      %10727 = vst.msk [vmem:[%s172 + $0x90] sm:$0xff] %vm10708, %v10663
      %10728 = vst.msk [vmem:[%s172 + $0x98] sm:$0xff] %vm10708, %v10664
      %10729 = vst.msk [vmem:[%s172 + $0xa0] sm:$0xff] %vm10708, %v10665
      %10730 = vst.msk [vmem:[%s172 + $0xa8] sm:$0xff] %vm10708, %v10666
      %10731 = vst.msk [vmem:[%s172 + $0xb0] sm:$0xff] %vm10708, %v10667
      %10732 = vst.msk [vmem:[%s172 + $0xb8] sm:$0xff] %vm10708, %v10668
      %10733 = vst.msk [vmem:[%s172 + $0xc0] sm:$0xff] %vm10708, %v10669
      %10734 = vst.msk [vmem:[%s172 + $0xc8] sm:$0xff] %vm10708, %v10670
      %10735 = vst.msk [vmem:[%s172 + $0xd0] sm:$0xff] %vm10708, %v10671
      %10736 = vst.msk [vmem:[%s172 + $0xd8] sm:$0xff] %vm10708, %v10672
      %10737 = vst.msk [vmem:[%s172 + $0xe0] sm:$0xff] %vm10708, %v10673
      %10738 = vst.msk [vmem:[%s172 + $0xe8] sm:$0xff] %vm10708, %v10674
      %10739 = vst.msk [vmem:[%s172 + $0xf0] sm:$0xff] %vm10708, %v10675
      %10740 = vst.msk [vmem:[%s172 + $0xf8] sm:$0xff] %vm10708, %v10676
      %10741 = vst.msk [vmem:[%s172 + $0x100] sm:$0xff] %vm10708, %v10677
      %10742 = vst.msk [vmem:[%s172 + $0x108] sm:$0xff] %vm10708, %v10678
      %10743 = vst.msk [vmem:[%s172 + $0x110] sm:$0xff] %vm10708, %v10679
      %10744 = vst.msk [vmem:[%s172 + $0x118] sm:$0xff] %vm10708, %v10680
      %10745 = vst.msk [vmem:[%s172 + $0x120] sm:$0xff] %vm10708, %v10681
      %10746 = vst.msk [vmem:[%s172 + $0x128] sm:$0xff] %vm10708, %v10682
      %10747 = vst.msk [vmem:[%s172 + $0x130] sm:$0xff] %vm10708, %v10683
      %10748 = vst.msk [vmem:[%s172 + $0x138] sm:$0xff] %vm10708, %v10684
      %10749 = vst.msk [vmem:[%s172 + $0x140] sm:$0xff] %vm10708, %v10685
      %10750 = vst.msk [vmem:[%s172 + $0x148] sm:$0xff] %vm10708, %v10686
      %10751 = vst.msk [vmem:[%s172 + $0x150] sm:$0xff] %vm10708, %v10687
      %10752 = vst.msk [vmem:[%s172 + $0x158] sm:$0xff] %vm10708, %v10688
      %10753 = vst.msk [vmem:[%s172 + $0x160] sm:$0xff] %vm10708, %v10689
      %10754 = vst.msk [vmem:[%s172 + $0x168] sm:$0xff] %vm10708, %v10690
      %10755 = vst.msk [vmem:[%s172 + $0x170] sm:$0xff] %vm10708, %v10691
      %10756 = vst.msk [vmem:[%s172 + $0x178] sm:$0xff] %vm10708, %v10692
      %10757 = vst.msk [vmem:[%s172 + $0x180] sm:$0xff] %vm10708, %v10693
      %10758 = vst.msk [vmem:[%s172 + $0x188] sm:$0xff] %vm10708, %v10694
      %10759 = vst.msk [vmem:[%s172 + $0x190] sm:$0xff] %vm10708, %v10695
      %10760 = vst.msk [vmem:[%s172 + $0x198] sm:$0xff] %vm10708, %v10696
      %10761 = vst.msk [vmem:[%s172 + $0x1a0] sm:$0xff] %vm10708, %v10697
      %10762 = vst.msk [vmem:[%s172 + $0x1a8] sm:$0xff] %vm10708, %v10698
      %10763 = vst.msk [vmem:[%s172 + $0x1b0] sm:$0xff] %vm10708, %v10699
      %10764 = vst.msk [vmem:[%s172 + $0x1b8] sm:$0xff] %vm10708, %v10700
      %10765 = vst.msk [vmem:[%s172 + $0x1c0] sm:$0xff] %vm10708, %v10701
      %10766 = vst.msk [vmem:[%s172 + $0x1c8] sm:$0xff] %vm10708, %v10702
      %10767 = vst.msk [vmem:[%s172 + $0x1d0] sm:$0xff] %vm10708, %v10703
      %10768 = vst.msk [vmem:[%s172 + $0x1d8] sm:$0xff] %vm10708, %v10704
      %10769 = vst.msk [vmem:[%s172 + $0x1e0] sm:$0xff] %vm10708, %v10705
      %10770 = vst.msk [vmem:[%s172 + $0x1e8] sm:$0xff] %vm10708, %v10706
      %10771 = vst.msk [vmem:[%s172 + $0x1f0] sm:$0xff] %vm10708, %v10707
      %s10772 = smul.u32 63, %s14
      %p10773 = scmp.lt.s32.totalorder %s10772, 125
      %s10774 = scalar_select %p10773, %s10772, 125
      %s10775 = smul.addr %s10774, 8
      %s10776 = scalar_lea.vmem %s3, %s10775
      // Predicated region
      $region33: #{tpu_custom_call.1} parent=31 // pred_check
        %p10777 = pneg %p100
      $region34: #{tpu_custom_call.1} parent=31 // pred_check_branch
        %10779 = sbr.rel (%p10777) target = $region36
      $region35: #{tpu_custom_call.1} parent=31 // pred_region
        %s10780 = smul.u32 63, %s14
      $region36: #{tpu_custom_call.1} parent=31 // pred_fallthru
        _
    $region32: #{tpu_custom_call.1} parent=5 // pred_fallthru
      _
    %p10781 = scmp.le.s32.totalorder 2, %s9
    // Predicated region
    $region37: #{tpu_custom_call.1} parent=5 // pred_check
      %p10782 = pneg %p10781
    $region38: #{tpu_custom_call.1} parent=5 // pred_check_branch
      %10784 = sbr.rel (%p10782) target = $region40
    $region39: #{tpu_custom_call.1} parent=5 // pred_region
      %s10785 = ssub.s32 %s9, 2
      // Predicated region
      $region41: #{tpu_custom_call.1} parent=39 // pred_check
        %p10786 = pneg %p106
      $region42: #{tpu_custom_call.1} parent=39 // pred_check_branch
        %10788 = sbr.rel (%p10786) target = $region44
      $region43: #{tpu_custom_call.1} parent=39 // pred_region
        %s10789 = smul.u32 63, %s15
        %p10790 = scmp.lt.s32.totalorder %s10789, 125
        %s10791 = scalar_select %p10790, %s10789, 125
        %s10792 = smul.addr %s10791, 8
        %s10793 = scalar_lea.vmem %s3, %s10792
      $region44: #{tpu_custom_call.1} parent=39 // pred_fallthru
        _
    $region40: #{tpu_custom_call.1} parent=5 // pred_fallthru
      _
  $region6: #{tpu_custom_call.1} parent=0 // loop_footer
    %s13 = sadd.s32 1, %s9
  $region7: #{tpu_custom_call.1} parent=0 // loop_footer_branch
    %8 = sbr.rel target = $region3
  $region8: #{tpu_custom_call.1} parent=0 // loop_exit
    _

</llo_original>
